<compile_context>
chip_gen: v6e
topology: v6e:2x2x1
jax: 0.10.0
libtpu: 0.0.40
codegen_flags: <defaults>
</compile_context>

<pallas_src>
import functools

import jax
import jax.numpy as jnp
from jax.experimental import pallas as pl
from jax.experimental.pallas import tpu as pltpu


_TM_MAX = 1024  # rows per tile cap: K<=288 bf16 keeps double-buffered tiles < ~1 MiB


def _round_up(x, m):
    return ((x + m - 1) // m) * m


def _pick_tm(m, tm_max=_TM_MAX):
    # Balanced, multiple-of-8 tiles with >=2 grid blocks (so both v7x TensorCores get work)
    # and a cap so VMEM use is batch-independent and well under the 32 MiB scoped default.
    if m <= 8:
        return m  # single block; block dim == full array dim is always legal
    n_blocks = max(pl.cdiv(m, tm_max), 2)
    return min(_round_up(pl.cdiv(m, n_blocks), 8), m)


def _parallel_params():
    return pltpu.CompilerParams(dimension_semantics=("parallel",))


# ----------------------------------------------------------------------------
# Pallas kernels
# ----------------------------------------------------------------------------
def _matmul_kernel(x_ref, w_ref, b_ref, o_ref, *, relu_out):
    acc = jnp.dot(x_ref[...], w_ref[...], preferred_element_type=jnp.float32)
    acc = acc + b_ref[...]                        # f32 epilogue
    if relu_out:
        acc = jnp.maximum(acc, 0.0)
    o_ref[...] = acc


def _residual_kernel(xcol_ref, r_ref, w1_ref, w2_ref, o_ref, *, relu_out):
    # One fused kernel per residual layer (no biases):
    #   out = r + ReLU( xcol @ w1 ) @ w2        (xcol already ReLU'd in f32 pre-im2col)
    # optional f32 relu_out epilogue implements the residual stack's trailing ReLU.
    h = jnp.dot(xcol_ref[...], w1_ref[...], preferred_element_type=jnp.float32)
    h = jnp.maximum(h, 0.0)
    y = jnp.dot(h.astype(jnp.bfloat16), w2_ref[...],
                preferred_element_type=jnp.float32)
    out = r_ref[...] + y
    if relu_out:
        out = jnp.maximum(out, 0.0)
    o_ref[...] = out


def _pq_vq_kernel(h_ref, wq_ref, bq_ref, et_ref, e2_ref, e_ref, idx_ref, zq_ref):
    # Fused: residual-stack final ReLU -> 1x1 pre-quant conv -> vector quantization.
    # e2 (codebook row norms) and et (transposed codebook) are precomputed outside the kernel.
    h = jnp.maximum(h_ref[...], 0.0)
    z = jnp.dot(h, wq_ref[...], preferred_element_type=jnp.float32) + bq_ref[...]
    z2 = jnp.sum(z * z, axis=1, keepdims=True)                      # (TM, 1)
    d = z2 + e2_ref[...] - 2.0 * jnp.dot(z, et_ref[...],
                                         preferred_element_type=jnp.float32)
    n_emb = d.shape[1]
    d_min = jnp.min(d, axis=1, keepdims=True)
    iota = jax.lax.broadcasted_iota(jnp.int32, d.shape, 1)
    masked = jnp.where(d <= d_min, iota, n_emb)                     # first-occurrence argmin
    idx = jnp.min(masked, axis=1).astype(jnp.int32)
    idx_ref[...] = idx[:, None]
    onehot = (iota == idx[:, None]).astype(jnp.float32)
    zq_ref[...] = jnp.dot(onehot, e_ref[...], preferred_element_type=jnp.float32)


# ----------------------------------------------------------------------------
# Pallas wrappers (all tiled over M, weights resident as full-array blocks)
# ----------------------------------------------------------------------------
def pallas_matmul(x_bf, w_bf, b, relu_out=False):
    M, K = x_bf.shape
    N = w_bf.shape[1]
    TM = _pick_tm(M)
    kern = functools.partial(_matmul_kernel, relu_out=relu_out)
    return pl.pallas_call(
        kern,
        out_shape=jax.ShapeDtypeStruct((M, N), jnp.float32),
        grid=(pl.cdiv(M, TM),),
        in_specs=[
            pl.BlockSpec((TM, K), lambda i: (i, 0)),
            pl.BlockSpec((K, N), lambda i: (0, 0)),
            pl.BlockSpec((1, N), lambda i: (0, 0)),
        ],
        out_specs=pl.BlockSpec((TM, N), lambda i: (i, 0)),
        compiler_params=_parallel_params(),
    )(x_bf, w_bf, b)


def pallas_residual(xcol_bf, r_f32, w1_bf, w2_bf, relu_out=False):
    M, K = xcol_bf.shape
    R = w1_bf.shape[1]
    C = w2_bf.shape[1]
    TM = _pick_tm(M)
    kern = functools.partial(_residual_kernel, relu_out=relu_out)
    return pl.pallas_call(
        kern,
        out_shape=jax.ShapeDtypeStruct((M, C), jnp.float32),
        grid=(pl.cdiv(M, TM),),
        in_specs=[
            pl.BlockSpec((TM, K), lambda i: (i, 0)),
            pl.BlockSpec((TM, C), lambda i: (i, 0)),
            pl.BlockSpec((K, R), lambda i: (0, 0)),
            pl.BlockSpec((R, C), lambda i: (0, 0)),
        ],
        out_specs=pl.BlockSpec((TM, C), lambda i: (i, 0)),
        compiler_params=_parallel_params(),
    )(xcol_bf, r_f32, w1_bf, w2_bf)


def pallas_pq_vq(h_flat, wq, bq, e_t, e_sq, codebook):
    M, K = h_flat.shape
    D = wq.shape[1]
    n_emb = codebook.shape[0]
    TM = _pick_tm(M)
    return pl.pallas_call(
        _pq_vq_kernel,
        out_shape=(
            jax.ShapeDtypeStruct((M, 1), jnp.int32),
            jax.ShapeDtypeStruct((M, D), jnp.float32),
        ),
        grid=(pl.cdiv(M, TM),),
        in_specs=[
            pl.BlockSpec((TM, K), lambda i: (i, 0)),
            pl.BlockSpec((K, D), lambda i: (0, 0)),
            pl.BlockSpec((1, D), lambda i: (0, 0)),
            pl.BlockSpec((D, n_emb), lambda i: (0, 0)),
            pl.BlockSpec((1, n_emb), lambda i: (0, 0)),
            pl.BlockSpec((n_emb, D), lambda i: (0, 0)),
        ],
        out_specs=(
            pl.BlockSpec((TM, 1), lambda i: (i, 0)),
            pl.BlockSpec((TM, D), lambda i: (i, 0)),
        ),
        compiler_params=_parallel_params(),
    )(h_flat, wq, bq, e_t, e_sq, codebook)


# ----------------------------------------------------------------------------
# Conv helpers (im2col in JAX glue, matmul in Pallas)
# ----------------------------------------------------------------------------
def _im2col(x, kH, kW, stride, pad_h, pad_w):
    # x is already bf16 (cast-before-im2col); pad_h/pad_w are (before, after) tuples.
    B, H, W, C = x.shape
    xp = jnp.pad(x, ((0, 0), pad_h, pad_w, (0, 0)))
    Ho = (H + pad_h[0] + pad_h[1] - kH) // stride + 1
    Wo = (W + pad_w[0] + pad_w[1] - kW) // stride + 1
    patches = [
        xp[:, kh:kh + Ho * stride:stride, kw:kw + Wo * stride:stride, :]
        for kh in range(kH) for kw in range(kW)
    ]
    pat = jnp.concatenate(patches, axis=-1)            # (B, Ho, Wo, kH*kW*C)
    return pat.reshape(B * Ho * Wo, kH * kW * C), (B, Ho, Wo)


def conv2d_mm(x_bf, w2_bf, b, kH, kW, stride, pad_h, pad_w, relu_out=False):
    # w2_bf: pre-reshaped (kH*kW*Cin, Cout) bf16 weight; b: (1, Cout) f32.
    x2, (B, Ho, Wo) = _im2col(x_bf, kH, kW, stride, pad_h, pad_w)
    Cout = w2_bf.shape[1]
    y = pallas_matmul(x2, w2_bf, b, relu_out=relu_out)
    return y.reshape(B, Ho, Wo, Cout)


def residual_layer(x, w1_bf, w2_bf, relu_out=False):
    # x + Conv1x1(ReLU(Conv3x3(ReLU(x)))) ; no biases. Both matmuls + skip in ONE kernel.
    # The block's leading ReLU is done in f32 on the un-amplified tensor, before im2col.
    B, H, W, Cin = x.shape
    M = B * H * W
    x_bf = jnp.maximum(x, 0.0).astype(jnp.bfloat16)
    xcol, _ = _im2col(x_bf, 3, 3, 1, (1, 1), (1, 1))
    y = pallas_residual(xcol, x.reshape(M, Cin), w1_bf, w2_bf, relu_out=relu_out)
    return y.reshape(B, H, W, Cin)


# --- stride-s ConvTranspose: merged-phase formulation -------------------------------
def _convt_geometry(k, s, pad):
    # Per-dimension phase geometry of ConvTranspose(k, stride=s, padding=pad).
    # Output oh = s*m + r gathers input positions m + a_r - t with kernel taps s*t + b_r.
    phases = []
    d_min, d_max = 10 ** 9, -(10 ** 9)
    for r in range(s):
        a, b = divmod(r + pad, s)
        taps = list(range(b, k, s))            # kernel indices used by this phase
        assert taps, "phase with no taps is unsupported"
        d_lo, d_hi = a - (len(taps) - 1), a
        d_min, d_max = min(d_min, d_lo), max(d_max, d_hi)
        phases.append((a, b, taps))
    k_sh = d_max - d_min + 1                   # shared im2col window size
    return phases, d_min, d_max, k_sh


def _build_merged_convt(w_t, b, stride, pad):
    # w_t: torch ConvTranspose2d weight (Cin, Cout, kH, kW).  Returns a single matmul weight
    # (k_sh*k_sh*Cin, s*s*Cout) holding every phase's sub-kernel zero-placed along Cout,
    # plus the per-phase tiled bias (1, s*s*Cout).
    Cin, Cout, kH, kW = w_t.shape
    assert kH == kW
    s = stride
    phases, d_min, _, k_sh = _convt_geometry(kH, s, pad)
    W = jnp.zeros((k_sh, k_sh, Cin, s * s * Cout), jnp.float32)
    for rh, (ah, _bh, taps_h) in enumerate(phases):
        for rw, (aw, _bw, taps_w) in enumerate(phases):
            c0 = (rh * s + rw) * Cout
            for th, kk_h in enumerate(taps_h):
                u_h = ah - th - d_min
                for tw, kk_w in enumerate(taps_w):
                    u_w = aw - tw - d_min
                    W = W.at[u_h, u_w, :, c0:c0 + Cout].set(w_t[:, :, kk_h, kk_w])
    W2 = W.reshape(k_sh * k_sh * Cin, s * s * Cout).astype(jnp.bfloat16)
    b2 = jnp.tile(b, s * s).reshape(1, s * s * Cout).astype(jnp.float32)
    return W2, b2


def conv_transpose2d_merged(x_bf, w_merged_bf, b_merged, k, s, pad, relu_out=False):
    # Single im2col over the shared k_sh x k_sh window + ONE Pallas matmul producing all
    # s*s output phases at once; free transpose/reshape reassembles the (B, H_out, W_out, Cout).
    B, H, W, _Cin = x_bf.shape
    Cout = w_merged_bf.shape[1] // (s * s)
    _, d_min, _, k_sh = _convt_geometry(k, s, pad)
    H_out = (H - 1) * s - 2 * pad + k
    W_out = (W - 1) * s - 2 * pad + k
    assert H_out % s == 0 and W_out % s == 0, "phase decomposition assumes uniform phases"
    Hm, Wm = H_out // s, W_out // s
    pad_before = -d_min
    pad_h = (pad_before, Hm + k_sh - 1 - H - pad_before)
    pad_w = (pad_before, Wm + k_sh - 1 - W - pad_before)
    assert pad_before >= 0 and pad_h[1] >= 0 and pad_w[1] >= 0, "unsupported k/s/pad combo"
    x2, _ = _im2col(x_bf, k_sh, k_sh, 1, pad_h, pad_w)
    y = pallas_matmul(x2, w_merged_bf, b_merged, relu_out=relu_out)   # (B*Hm*Wm, s*s*Cout)
    y = y.reshape(B, Hm, Wm, s, s, Cout).transpose(0, 1, 3, 2, 4, 5)
    return y.reshape(B, Hm * s, Wm * s, Cout)


# ----------------------------------------------------------------------------
# VQVAE forward: x -> (z_index, x_hat)
# ----------------------------------------------------------------------------
def vqvae_forward(x_img, rp):
    # x_img: (B, 28, 28, 3) float, values in [0, 3]  (NHWC); rp: prepared (matmul-ready) params.
    x = x_img - 1.5

    # ----- Encoder -----
    h = conv2d_mm(x.astype(jnp.bfloat16), rp["enc_w1"], rp["enc_b1"],
                  4, 4, 2, (1, 1), (1, 1), relu_out=True)             # (B,14,14,h/2)
    h = conv2d_mm(h.astype(jnp.bfloat16), rp["enc_w2"], rp["enc_b2"],
                  4, 4, 2, (1, 1), (1, 1), relu_out=True)             # (B, 7, 7, h)
    h = conv2d_mm(h.astype(jnp.bfloat16), rp["enc_w3"], rp["enc_b3"],
                  3, 3, 1, (1, 1), (1, 1))                            # (B, 7, 7, h)
    for (w1, w2) in rp["enc_res"]:
        h = residual_layer(h, w1, w2)

    # ----- fused: stack final ReLU + pre-quant 1x1 conv + vector quantization -----
    B, Hq, Wq, C = h.shape
    D = rp["codebook"].shape[1]
    idx_flat, zq_flat = pallas_pq_vq(
        h.reshape(B * Hq * Wq, C), rp["pq_w"], rp["pq_b"],
        rp["codebook_t"], rp["e_sq"], rp["codebook"])
    z_index = idx_flat.reshape(B, Hq, Wq)
    z_q = zq_flat.reshape(B, Hq, Wq, D)

    # ----- Decoder -----
    h = conv2d_mm(z_q.astype(jnp.bfloat16), rp["dec_w1"], rp["dec_b1"],
                  3, 3, 1, (1, 1), (1, 1))                            # (B,7,7,h)
    n_dec = len(rp["dec_res"])
    for li, (w1, w2) in enumerate(rp["dec_res"]):
        # stack's trailing ReLU fused as f32 epilogue of the last residual layer
        h = residual_layer(h, w1, w2, relu_out=(li == n_dec - 1))
    h = conv_transpose2d_merged(h.astype(jnp.bfloat16), rp["dec_w2m"], rp["dec_b2m"],
                                4, 2, 1, relu_out=True)               # (B,14,14,h/2)
    h = conv_transpose2d_merged(h.astype(jnp.bfloat16), rp["dec_w3m"], rp["dec_b3m"],
                                4, 2, 1)                              # (B,28,28,3)
    x_hat = h + 1.5
    return z_index, x_hat


# ----------------------------------------------------------------------------
# Parameter construction / one-time preparation (reshape + bf16 cast outside the forward)
# ----------------------------------------------------------------------------
def make_params(key, h_dim, res_h_dim, n_res_layers, n_embeddings, embedding_dim):
    ks = iter(jax.random.split(key, 64))
    s = 0.05

    def rnd(shape):
        return s * jax.random.normal(next(ks), shape, jnp.float32)

    def res_layers(cin):
        return [
            (rnd((3, 3, cin, res_h_dim)), rnd((1, 1, res_h_dim, cin)))
            for _ in range(n_res_layers)
        ]

    return {
        # encoder convs, HWIO layout
        "enc_w1": rnd((4, 4, 3, h_dim // 2)), "enc_b1": rnd((h_dim // 2,)),
        "enc_w2": rnd((4, 4, h_dim // 2, h_dim)), "enc_b2": rnd((h_dim,)),
        "enc_w3": rnd((3, 3, h_dim, h_dim)), "enc_b3": rnd((h_dim,)),
        "enc_res": res_layers(h_dim),
        # pre-quantization 1x1 conv
        "pq_w": rnd((1, 1, h_dim, embedding_dim)), "pq_b": rnd((embedding_dim,)),
        # codebook
        "codebook": jax.random.uniform(
            next(ks), (n_embeddings, embedding_dim), jnp.float32,
            -1.0 / n_embeddings, 1.0 / n_embeddings),
        # decoder conv-transposes, torch (Cin, Cout, kH, kW) layout
        "dec_wt1": rnd((embedding_dim, h_dim, 3, 3)), "dec_b1": rnd((h_dim,)),
        "dec_res": res_layers(h_dim),
        "dec_wt2": rnd((h_dim, h_dim // 2, 4, 4)), "dec_b2": rnd((h_dim // 2,)),
        "dec_wt3": rnd((h_dim // 2, 3, 4, 4)), "dec_b3": rnd((3,)),
    }


def prepare_params(p):
    # One-time: reshape conv weights to matmul form, cast MXU operands to bf16, build the
    # merged ConvTranspose weights, precompute VQ codebook norms / transposed codebook.
    def wmat(w_hwio):
        kH, kW, Cin, Cout = w_hwio.shape
        return w_hwio.reshape(kH * kW * Cin, Cout).astype(jnp.bfloat16)

    def bias(b):
        return b.reshape(1, -1).astype(jnp.float32)

    def convt1_wmat(w_t):
        # ConvT(stride=1, k, p) == Conv(stride=1, pad=k-1-p) with a spatially flipped kernel.
        wf = jnp.flip(w_t, axis=(2, 3)).transpose(2, 3, 0, 1)   # HWIO
        return wmat(wf)

    cb = p["codebook"].astype(jnp.float32)
    rp = {
        "enc_w1": wmat(p["enc_w1"]), "enc_b1": bias(p["enc_b1"]),
        "enc_w2": wmat(p["enc_w2"]), "enc_b2": bias(p["enc_b2"]),
        "enc_w3": wmat(p["enc_w3"]), "enc_b3": bias(p["enc_b3"]),
        "enc_res": [(wmat(w1), wmat(w2)) for (w1, w2) in p["enc_res"]],
        # VQ path kept f32 so codebook assignments track the f32 reference closely
        "pq_w": p["pq_w"].reshape(p["pq_w"].shape[-2], p["pq_w"].shape[-1]).astype(jnp.float32),
        "pq_b": bias(p["pq_b"]),
        "codebook": cb,
        "codebook_t": cb.T,
        "e_sq": jnp.sum(cb * cb, axis=1).reshape(1, -1),
        "dec_w1": convt1_wmat(p["dec_wt1"]), "dec_b1": bias(p["dec_b1"]),
        "dec_res": [(wmat(w1), wmat(w2)) for (w1, w2) in p["dec_res"]],
    }
    w2m, b2m = _build_merged_convt(p["dec_wt2"], p["dec_b2"], stride=2, pad=1)
    w3m, b3m = _build_merged_convt(p["dec_wt3"], p["dec_b3"], stride=2, pad=1)
    rp.update({"dec_w2m": w2m, "dec_b2m": b2m, "dec_w3m": w3m, "dec_b3m": b3m})
    return rp


if __name__ == "__main__":
    # small config: h_dim=32, res_h_dim=8, n_res_layers=2, n_embeddings=16, embedding_dim=8
    # (beta only affects the training loss, unused in the inference forward)
    h_dim, res_h_dim, n_res_layers = 32, 8, 2
    n_embeddings, embedding_dim = 16, 8

    key = jax.random.PRNGKey(0)
    k_x, k_p = jax.random.split(key)
    # image with integer values in [0, 3], shape (B, 28, 28, 3) — as in quantize()
    x = jax.random.randint(k_x, (2, 28, 28, 3), 0, 4).astype(jnp.float32)
    params = make_params(k_p, h_dim, res_h_dim, n_res_layers,
                         n_embeddings, embedding_dim)
    rparams = prepare_params(params)          # one-time weight prep, outside the jitted forward

    fwd = jax.jit(vqvae_forward)
    z_index, x_hat = fwd(x, rparams)
    jax.block_until_ready((z_index, x_hat))

    assert z_index.shape == (2, 7, 7) and z_index.dtype == jnp.int32
    assert x_hat.shape == (2, 28, 28, 3)
    assert int(z_index.min()) >= 0 and int(z_index.max()) < n_embeddings
    assert bool(jnp.all(jnp.isfinite(x_hat)))
    print("KERNEL_OK")
</pallas_src>

<mosaic_0001>
module attributes {stable_mosaic.version = 11 : i64} {
  func.func @_matmul_kernel(%arg0: i32, %arg1: memref<200x48xbf16, #tpu.memory_space<vmem>>, %arg2: memref<48x16xbf16, #tpu.memory_space<vmem>>, %arg3: memref<1x16xf32, #tpu.memory_space<vmem>>, %arg4: memref<200x16xf32, #tpu.memory_space<vmem>>) attributes {dimension_semantics = [#tpu.dimension_semantics<parallel>], iteration_bounds = array<i64: 2>, scalar_prefetch = 0 : i64, scratch_operands = 0 : i64, tpu.core_type = #tpu.core_type<tc>, window_params = [{transform_indices = @transform_0, window_bounds = array<i64: 200, 48>}, {pipeline_mode = #tpu.pipeline_mode<synchronous>, transform_indices = @transform_1, window_bounds = array<i64: 48, 16>}, {pipeline_mode = #tpu.pipeline_mode<synchronous>, transform_indices = @transform_2, window_bounds = array<i64: 1, 16>}, {transform_indices = @transform_3, window_bounds = array<i64: 200, 16>}]} {
    %c0 = arith.constant 0 : index
    %c0_0 = arith.constant 0 : index
    %0 = vector.load %arg1[%c0, %c0_0] : memref<200x48xbf16, #tpu.memory_space<vmem>>, vector<200x48xbf16>
    %c0_1 = arith.constant 0 : index
    %c0_2 = arith.constant 0 : index
    %1 = vector.load %arg2[%c0_1, %c0_2] : memref<48x16xbf16, #tpu.memory_space<vmem>>, vector<48x16xbf16>
    %cst = arith.constant dense<0.000000e+00> : vector<200x16xf32>
    %2 = tpu.matmul %0, %1, %cst {dimension_numbers = #tpu.dot_dimension_numbers<[1], [0], [0], [1], [0, 0, 1, 1], [], []>} : vector<200x48xbf16>, vector<48x16xbf16>, vector<200x16xf32> -> vector<200x16xf32>
    %c0_3 = arith.constant 0 : index
    %c0_4 = arith.constant 0 : index
    %3 = vector.load %arg3[%c0_3, %c0_4] : memref<1x16xf32, #tpu.memory_space<vmem>>, vector<1x16xf32>
    %4 = vector.broadcast %3 : vector<1x16xf32> to vector<200x16xf32>
    %5 = arith.addf %2, %4 : vector<200x16xf32>
    %cst_5 = arith.constant 0.000000e+00 : f32
    %6 = vector.broadcast %cst_5 : f32 to vector<200x16xf32>
    %7 = arith.maximumf %5, %6 : vector<200x16xf32>
    %c0_6 = arith.constant 0 : index
    %c0_7 = arith.constant 0 : index
    %8 = vector.load %arg4[%c0_6, %c0_7] : memref<200x16xf32, #tpu.memory_space<vmem>>, vector<200x16xf32>
    tpu.vector_store %arg4[%c0_6, %c0_7], %7 {strides = array<i32>} : memref<200x16xf32, #tpu.memory_space<vmem>>, vector<200x16xf32>,
    return
  }
  func.func @transform_0(%arg0: i32) -> (i32, i32) {
    %c0_i32 = arith.constant 0 : i32
    %c0_i32_0 = arith.constant 0 : i32
    return %arg0, %c0_i32 : i32, i32
  }
  func.func @transform_1(%arg0: i32) -> (i32, i32) {
    %c0_i32 = arith.constant 0 : i32
    %c0_i32_0 = arith.constant 0 : i32
    %c0_i32_1 = arith.constant 0 : i32
    return %c0_i32, %c0_i32_0 : i32, i32
  }
  func.func @transform_2(%arg0: i32) -> (i32, i32) {
    %c0_i32 = arith.constant 0 : i32
    %c0_i32_0 = arith.constant 0 : i32
    %c0_i32_1 = arith.constant 0 : i32
    return %c0_i32, %c0_i32_0 : i32, i32
  }
  func.func @transform_3(%arg0: i32) -> (i32, i32) {
    %c0_i32 = arith.constant 0 : i32
    %c0_i32_0 = arith.constant 0 : i32
    return %arg0, %c0_i32 : i32, i32
  }
}

module attributes {stable_mosaic.version = 11 : i64} {
  func.func @_matmul_kernel(%arg0: i32, %arg1: memref<56x256xbf16, #tpu.memory_space<vmem>>, %arg2: memref<256x32xbf16, #tpu.memory_space<vmem>>, %arg3: memref<1x32xf32, #tpu.memory_space<vmem>>, %arg4: memref<56x32xf32, #tpu.memory_space<vmem>>) attributes {dimension_semantics = [#tpu.dimension_semantics<parallel>], iteration_bounds = array<i64: 2>, scalar_prefetch = 0 : i64, scratch_operands = 0 : i64, tpu.core_type = #tpu.core_type<tc>, window_params = [{transform_indices = @transform_0, window_bounds = array<i64: 56, 256>}, {pipeline_mode = #tpu.pipeline_mode<synchronous>, transform_indices = @transform_1, window_bounds = array<i64: 256, 32>}, {pipeline_mode = #tpu.pipeline_mode<synchronous>, transform_indices = @transform_2, window_bounds = array<i64: 1, 32>}, {transform_indices = @transform_3, window_bounds = array<i64: 56, 32>}]} {
    %c0 = arith.constant 0 : index
    %c0_0 = arith.constant 0 : index
    %0 = vector.load %arg1[%c0, %c0_0] : memref<56x256xbf16, #tpu.memory_space<vmem>>, vector<56x256xbf16>
    %c0_1 = arith.constant 0 : index
    %c0_2 = arith.constant 0 : index
    %1 = vector.load %arg2[%c0_1, %c0_2] : memref<256x32xbf16, #tpu.memory_space<vmem>>, vector<256x32xbf16>
    %cst = arith.constant dense<0.000000e+00> : vector<56x32xf32>
    %2 = tpu.matmul %0, %1, %cst {dimension_numbers = #tpu.dot_dimension_numbers<[1], [0], [0], [1], [0, 0, 1, 1], [], []>} : vector<56x256xbf16>, vector<256x32xbf16>, vector<56x32xf32> -> vector<56x32xf32>
    %c0_3 = arith.constant 0 : index
    %c0_4 = arith.constant 0 : index
    %3 = vector.load %arg3[%c0_3, %c0_4] : memref<1x32xf32, #tpu.memory_space<vmem>>, vector<1x32xf32>
    %4 = vector.broadcast %3 : vector<1x32xf32> to vector<56x32xf32>
    %5 = arith.addf %2, %4 : vector<56x32xf32>
    %cst_5 = arith.constant 0.000000e+00 : f32
    %6 = vector.broadcast %cst_5 : f32 to vector<56x32xf32>
    %7 = arith.maximumf %5, %6 : vector<56x32xf32>
    %c0_6 = arith.constant 0 : index
    %c0_7 = arith.constant 0 : index
    %8 = vector.load %arg4[%c0_6, %c0_7] : memref<56x32xf32, #tpu.memory_space<vmem>>, vector<56x32xf32>
    tpu.vector_store %arg4[%c0_6, %c0_7], %7 {strides = array<i32>} : memref<56x32xf32, #tpu.memory_space<vmem>>, vector<56x32xf32>,
    return
  }
  func.func @transform_0(%arg0: i32) -> (i32, i32) {
    %c0_i32 = arith.constant 0 : i32
    %c0_i32_0 = arith.constant 0 : i32
    return %arg0, %c0_i32 : i32, i32
  }
  func.func @transform_1(%arg0: i32) -> (i32, i32) {
    %c0_i32 = arith.constant 0 : i32
    %c0_i32_0 = arith.constant 0 : i32
    %c0_i32_1 = arith.constant 0 : i32
    return %c0_i32, %c0_i32_0 : i32, i32
  }
  func.func @transform_2(%arg0: i32) -> (i32, i32) {
    %c0_i32 = arith.constant 0 : i32
    %c0_i32_0 = arith.constant 0 : i32
    %c0_i32_1 = arith.constant 0 : i32
    return %c0_i32, %c0_i32_0 : i32, i32
  }
  func.func @transform_3(%arg0: i32) -> (i32, i32) {
    %c0_i32 = arith.constant 0 : i32
    %c0_i32_0 = arith.constant 0 : i32
    return %arg0, %c0_i32 : i32, i32
  }
}

module attributes {stable_mosaic.version = 11 : i64} {
  func.func @_matmul_kernel(%arg0: i32, %arg1: memref<56x288xbf16, #tpu.memory_space<vmem>>, %arg2: memref<288x32xbf16, #tpu.memory_space<vmem>>, %arg3: memref<1x32xf32, #tpu.memory_space<vmem>>, %arg4: memref<56x32xf32, #tpu.memory_space<vmem>>) attributes {dimension_semantics = [#tpu.dimension_semantics<parallel>], iteration_bounds = array<i64: 2>, scalar_prefetch = 0 : i64, scratch_operands = 0 : i64, tpu.core_type = #tpu.core_type<tc>, window_params = [{transform_indices = @transform_0, window_bounds = array<i64: 56, 288>}, {pipeline_mode = #tpu.pipeline_mode<synchronous>, transform_indices = @transform_1, window_bounds = array<i64: 288, 32>}, {pipeline_mode = #tpu.pipeline_mode<synchronous>, transform_indices = @transform_2, window_bounds = array<i64: 1, 32>}, {transform_indices = @transform_3, window_bounds = array<i64: 56, 32>}]} {
    %c0 = arith.constant 0 : index
    %c0_0 = arith.constant 0 : index
    %0 = vector.load %arg1[%c0, %c0_0] : memref<56x288xbf16, #tpu.memory_space<vmem>>, vector<56x288xbf16>
    %c0_1 = arith.constant 0 : index
    %c0_2 = arith.constant 0 : index
    %1 = vector.load %arg2[%c0_1, %c0_2] : memref<288x32xbf16, #tpu.memory_space<vmem>>, vector<288x32xbf16>
    %cst = arith.constant dense<0.000000e+00> : vector<56x32xf32>
    %2 = tpu.matmul %0, %1, %cst {dimension_numbers = #tpu.dot_dimension_numbers<[1], [0], [0], [1], [0, 0, 1, 1], [], []>} : vector<56x288xbf16>, vector<288x32xbf16>, vector<56x32xf32> -> vector<56x32xf32>
    %c0_3 = arith.constant 0 : index
    %c0_4 = arith.constant 0 : index
    %3 = vector.load %arg3[%c0_3, %c0_4] : memref<1x32xf32, #tpu.memory_space<vmem>>, vector<1x32xf32>
    %4 = vector.broadcast %3 : vector<1x32xf32> to vector<56x32xf32>
    %5 = arith.addf %2, %4 : vector<56x32xf32>
    %c0_5 = arith.constant 0 : index
    %c0_6 = arith.constant 0 : index
    %6 = vector.load %arg4[%c0_5, %c0_6] : memref<56x32xf32, #tpu.memory_space<vmem>>, vector<56x32xf32>
    tpu.vector_store %arg4[%c0_5, %c0_6], %5 {strides = array<i32>} : memref<56x32xf32, #tpu.memory_space<vmem>>, vector<56x32xf32>,
    return
  }
  func.func @transform_0(%arg0: i32) -> (i32, i32) {
    %c0_i32 = arith.constant 0 : i32
    %c0_i32_0 = arith.constant 0 : i32
    return %arg0, %c0_i32 : i32, i32
  }
  func.func @transform_1(%arg0: i32) -> (i32, i32) {
    %c0_i32 = arith.constant 0 : i32
    %c0_i32_0 = arith.constant 0 : i32
    %c0_i32_1 = arith.constant 0 : i32
    return %c0_i32, %c0_i32_0 : i32, i32
  }
  func.func @transform_2(%arg0: i32) -> (i32, i32) {
    %c0_i32 = arith.constant 0 : i32
    %c0_i32_0 = arith.constant 0 : i32
    %c0_i32_1 = arith.constant 0 : i32
    return %c0_i32, %c0_i32_0 : i32, i32
  }
  func.func @transform_3(%arg0: i32) -> (i32, i32) {
    %c0_i32 = arith.constant 0 : i32
    %c0_i32_0 = arith.constant 0 : i32
    return %arg0, %c0_i32 : i32, i32
  }
}

module attributes {stable_mosaic.version = 11 : i64} {
  func.func @_residual_kernel(%arg0: i32, %arg1: memref<56x288xbf16, #tpu.memory_space<vmem>>, %arg2: memref<56x32xf32, #tpu.memory_space<vmem>>, %arg3: memref<288x8xbf16, #tpu.memory_space<vmem>>, %arg4: memref<8x32xbf16, #tpu.memory_space<vmem>>, %arg5: memref<56x32xf32, #tpu.memory_space<vmem>>) attributes {dimension_semantics = [#tpu.dimension_semantics<parallel>], iteration_bounds = array<i64: 2>, scalar_prefetch = 0 : i64, scratch_operands = 0 : i64, tpu.core_type = #tpu.core_type<tc>, window_params = [{transform_indices = @transform_0, window_bounds = array<i64: 56, 288>}, {transform_indices = @transform_1, window_bounds = array<i64: 56, 32>}, {pipeline_mode = #tpu.pipeline_mode<synchronous>, transform_indices = @transform_2, window_bounds = array<i64: 288, 8>}, {pipeline_mode = #tpu.pipeline_mode<synchronous>, transform_indices = @transform_3, window_bounds = array<i64: 8, 32>}, {transform_indices = @transform_4, window_bounds = array<i64: 56, 32>}]} {
    %c0 = arith.constant 0 : index
    %c0_0 = arith.constant 0 : index
    %0 = vector.load %arg1[%c0, %c0_0] : memref<56x288xbf16, #tpu.memory_space<vmem>>, vector<56x288xbf16>
    %c0_1 = arith.constant 0 : index
    %c0_2 = arith.constant 0 : index
    %1 = vector.load %arg3[%c0_1, %c0_2] : memref<288x8xbf16, #tpu.memory_space<vmem>>, vector<288x8xbf16>
    %cst = arith.constant dense<0.000000e+00> : vector<56x8xf32>
    %2 = tpu.matmul %0, %1, %cst {dimension_numbers = #tpu.dot_dimension_numbers<[1], [0], [0], [1], [0, 0, 1, 1], [], []>} : vector<56x288xbf16>, vector<288x8xbf16>, vector<56x8xf32> -> vector<56x8xf32>
    %cst_3 = arith.constant 0.000000e+00 : f32
    %3 = vector.broadcast %cst_3 : f32 to vector<56x8xf32>
    %4 = arith.maximumf %2, %3 : vector<56x8xf32>
    %5 = arith.truncf %4 : vector<56x8xf32> to vector<56x8xbf16>
    %c0_4 = arith.constant 0 : index
    %c0_5 = arith.constant 0 : index
    %6 = vector.load %arg4[%c0_4, %c0_5] : memref<8x32xbf16, #tpu.memory_space<vmem>>, vector<8x32xbf16>
    %cst_6 = arith.constant dense<0.000000e+00> : vector<56x32xf32>
    %7 = tpu.matmul %5, %6, %cst_6 {dimension_numbers = #tpu.dot_dimension_numbers<[1], [0], [0], [1], [0, 0, 1, 1], [], []>} : vector<56x8xbf16>, vector<8x32xbf16>, vector<56x32xf32> -> vector<56x32xf32>
    %c0_7 = arith.constant 0 : index
    %c0_8 = arith.constant 0 : index
    %8 = vector.load %arg2[%c0_7, %c0_8] : memref<56x32xf32, #tpu.memory_space<vmem>>, vector<56x32xf32>
    %9 = arith.addf %8, %7 : vector<56x32xf32>
    %c0_9 = arith.constant 0 : index
    %c0_10 = arith.constant 0 : index
    %10 = vector.load %arg5[%c0_9, %c0_10] : memref<56x32xf32, #tpu.memory_space<vmem>>, vector<56x32xf32>
    tpu.vector_store %arg5[%c0_9, %c0_10], %9 {strides = array<i32>} : memref<56x32xf32, #tpu.memory_space<vmem>>, vector<56x32xf32>,
    return
  }
  func.func @transform_0(%arg0: i32) -> (i32, i32) {
    %c0_i32 = arith.constant 0 : i32
    %c0_i32_0 = arith.constant 0 : i32
    return %arg0, %c0_i32 : i32, i32
  }
  func.func @transform_1(%arg0: i32) -> (i32, i32) {
    %c0_i32 = arith.constant 0 : i32
    %c0_i32_0 = arith.constant 0 : i32
    return %arg0, %c0_i32 : i32, i32
  }
  func.func @transform_2(%arg0: i32) -> (i32, i32) {
    %c0_i32 = arith.constant 0 : i32
    %c0_i32_0 = arith.constant 0 : i32
    %c0_i32_1 = arith.constant 0 : i32
    return %c0_i32, %c0_i32_0 : i32, i32
  }
  func.func @transform_3(%arg0: i32) -> (i32, i32) {
    %c0_i32 = arith.constant 0 : i32
    %c0_i32_0 = arith.constant 0 : i32
    %c0_i32_1 = arith.constant 0 : i32
    return %c0_i32, %c0_i32_0 : i32, i32
  }
  func.func @transform_4(%arg0: i32) -> (i32, i32) {
    %c0_i32 = arith.constant 0 : i32
    %c0_i32_0 = arith.constant 0 : i32
    return %arg0, %c0_i32 : i32, i32
  }
}

module attributes {stable_mosaic.version = 11 : i64} {
  func.func @_pq_vq_kernel(%arg0: i32, %arg1: memref<56x32xf32, #tpu.memory_space<vmem>>, %arg2: memref<32x8xf32, #tpu.memory_space<vmem>>, %arg3: memref<1x8xf32, #tpu.memory_space<vmem>>, %arg4: memref<8x16xf32, #tpu.memory_space<vmem>>, %arg5: memref<1x16xf32, #tpu.memory_space<vmem>>, %arg6: memref<16x8xf32, #tpu.memory_space<vmem>>, %arg7: memref<56x1xi32, #tpu.memory_space<vmem>>, %arg8: memref<56x8xf32, #tpu.memory_space<vmem>>) attributes {dimension_semantics = [#tpu.dimension_semantics<parallel>], iteration_bounds = array<i64: 2>, scalar_prefetch = 0 : i64, scratch_operands = 0 : i64, tpu.core_type = #tpu.core_type<tc>, window_params = [{transform_indices = @transform_0, window_bounds = array<i64: 56, 32>}, {pipeline_mode = #tpu.pipeline_mode<synchronous>, transform_indices = @transform_1, window_bounds = array<i64: 32, 8>}, {pipeline_mode = #tpu.pipeline_mode<synchronous>, transform_indices = @transform_2, window_bounds = array<i64: 1, 8>}, {pipeline_mode = #tpu.pipeline_mode<synchronous>, transform_indices = @transform_3, window_bounds = array<i64: 8, 16>}, {pipeline_mode = #tpu.pipeline_mode<synchronous>, transform_indices = @transform_4, window_bounds = array<i64: 1, 16>}, {pipeline_mode = #tpu.pipeline_mode<synchronous>, transform_indices = @transform_5, window_bounds = array<i64: 16, 8>}, {transform_indices = @transform_6, window_bounds = array<i64: 56, 1>}, {transform_indices = @transform_7, window_bounds = array<i64: 56, 8>}]} {
    %c0 = arith.constant 0 : index
    %c0_0 = arith.constant 0 : index
    %0 = vector.load %arg1[%c0, %c0_0] : memref<56x32xf32, #tpu.memory_space<vmem>>, vector<56x32xf32>
    %cst = arith.constant 0.000000e+00 : f32
    %1 = vector.broadcast %cst : f32 to vector<56x32xf32>
    %2 = arith.maximumf %0, %1 : vector<56x32xf32>
    %c0_1 = arith.constant 0 : index
    %c0_2 = arith.constant 0 : index
    %3 = vector.load %arg2[%c0_1, %c0_2] : memref<32x8xf32, #tpu.memory_space<vmem>>, vector<32x8xf32>
    %cst_3 = arith.constant dense<0.000000e+00> : vector<56x8xf32>
    %4 = tpu.matmul %2, %3, %cst_3 {dimension_numbers = #tpu.dot_dimension_numbers<[1], [0], [0], [1], [0, 0, 1, 1], [], []>} : vector<56x32xf32>, vector<32x8xf32>, vector<56x8xf32> -> vector<56x8xf32>
    %c0_4 = arith.constant 0 : index
    %c0_5 = arith.constant 0 : index
    %5 = vector.load %arg3[%c0_4, %c0_5] : memref<1x8xf32, #tpu.memory_space<vmem>>, vector<1x8xf32>
    %6 = vector.broadcast %5 : vector<1x8xf32> to vector<56x8xf32>
    %7 = arith.addf %4, %6 : vector<56x8xf32>
    %8 = arith.mulf %7, %7 : vector<56x8xf32>
    %cst_6 = arith.constant dense<0.000000e+00> : vector<56xf32>
    %9 = vector.multi_reduction <add>, %8, %cst_6 [1] : vector<56x8xf32> to vector<56xf32>
    %10 = vector.shape_cast %9 : vector<56xf32> to vector<56x1xf32>
    %c0_7 = arith.constant 0 : index
    %c0_8 = arith.constant 0 : index
    %11 = vector.load %arg5[%c0_7, %c0_8] : memref<1x16xf32, #tpu.memory_space<vmem>>, vector<1x16xf32>
    %12 = vector.broadcast %10 : vector<56x1xf32> to vector<56x16xf32>
    %13 = vector.broadcast %11 : vector<1x16xf32> to vector<56x16xf32>
    %14 = arith.addf %12, %13 : vector<56x16xf32>
    %c0_9 = arith.constant 0 : index
    %c0_10 = arith.constant 0 : index
    %15 = vector.load %arg4[%c0_9, %c0_10] : memref<8x16xf32, #tpu.memory_space<vmem>>, vector<8x16xf32>
    %cst_11 = arith.constant dense<0.000000e+00> : vector<56x16xf32>
    %16 = tpu.matmul %7, %15, %cst_11 {dimension_numbers = #tpu.dot_dimension_numbers<[1], [0], [0], [1], [0, 0, 1, 1], [], []>} : vector<56x8xf32>, vector<8x16xf32>, vector<56x16xf32> -> vector<56x16xf32>
    %cst_12 = arith.constant 2.000000e+00 : f32
    %17 = vector.broadcast %cst_12 : f32 to vector<56x16xf32>
    %18 = arith.mulf %17, %16 : vector<56x16xf32>
    %19 = arith.subf %14, %18 : vector<56x16xf32>
    %cst_13 = arith.constant dense<0x7F800000> : vector<56xf32>
    %20 = vector.multi_reduction <minimumf>, %19, %cst_13 [1] : vector<56x16xf32> to vector<56xf32>
    %21 = vector.shape_cast %20 : vector<56xf32> to vector<56x1xf32>
    %22 = tpu.iota {dimensions = array<i32: 1>} : vector<56x16xi32>
    %23 = vector.broadcast %21 : vector<56x1xf32> to vector<56x16xf32>
    %24 = arith.cmpf ole, %19, %23 : vector<56x16xf32>
    %c16_i32 = arith.constant 16 : i32
    %25 = vector.broadcast %c16_i32 : i32 to vector<56x16xi32>
    %26 = arith.select %24, %22, %25 : vector<56x16xi1>, vector<56x16xi32>
    %cst_14 = arith.constant dense<2147483647> : vector<56xi32>
    %27 = vector.multi_reduction <minsi>, %26, %cst_14 [1] : vector<56x16xi32> to vector<56xi32>
    %28 = vector.shape_cast %27 : vector<56xi32> to vector<56x1xi32>
    %c0_15 = arith.constant 0 : index
    %c0_16 = arith.constant 0 : index
    %29 = vector.load %arg7[%c0_15, %c0_16] : memref<56x1xi32, #tpu.memory_space<vmem>>, vector<56x1xi32>
    tpu.vector_store %arg7[%c0_15, %c0_16], %28 {strides = array<i32>} : memref<56x1xi32, #tpu.memory_space<vmem>>, vector<56x1xi32>,
    %30 = vector.shape_cast %27 : vector<56xi32> to vector<56x1xi32>
    %31 = vector.broadcast %30 : vector<56x1xi32> to vector<56x16xi32>
    %32 = arith.cmpi eq, %22, %31 : vector<56x16xi32>
    %33 = arith.extui %32 : vector<56x16xi1> to vector<56x16xi32>
    %34 = arith.sitofp %33 : vector<56x16xi32> to vector<56x16xf32>
    %c0_17 = arith.constant 0 : index
    %c0_18 = arith.constant 0 : index
    %35 = vector.load %arg6[%c0_17, %c0_18] : memref<16x8xf32, #tpu.memory_space<vmem>>, vector<16x8xf32>
    %cst_19 = arith.constant dense<0.000000e+00> : vector<56x8xf32>
    %36 = tpu.matmul %34, %35, %cst_19 {dimension_numbers = #tpu.dot_dimension_numbers<[1], [0], [0], [1], [0, 0, 1, 1], [], []>} : vector<56x16xf32>, vector<16x8xf32>, vector<56x8xf32> -> vector<56x8xf32>
    %c0_20 = arith.constant 0 : index
    %c0_21 = arith.constant 0 : index
    %37 = vector.load %arg8[%c0_20, %c0_21] : memref<56x8xf32, #tpu.memory_space<vmem>>, vector<56x8xf32>
    tpu.vector_store %arg8[%c0_20, %c0_21], %36 {strides = array<i32>} : memref<56x8xf32, #tpu.memory_space<vmem>>, vector<56x8xf32>,
    return
  }
  func.func @transform_0(%arg0: i32) -> (i32, i32) {
    %c0_i32 = arith.constant 0 : i32
    %c0_i32_0 = arith.constant 0 : i32
    return %arg0, %c0_i32 : i32, i32
  }
  func.func @transform_1(%arg0: i32) -> (i32, i32) {
    %c0_i32 = arith.constant 0 : i32
    %c0_i32_0 = arith.constant 0 : i32
    %c0_i32_1 = arith.constant 0 : i32
    return %c0_i32, %c0_i32_0 : i32, i32
  }
  func.func @transform_2(%arg0: i32) -> (i32, i32) {
    %c0_i32 = arith.constant 0 : i32
    %c0_i32_0 = arith.constant 0 : i32
    %c0_i32_1 = arith.constant 0 : i32
    return %c0_i32, %c0_i32_0 : i32, i32
  }
  func.func @transform_3(%arg0: i32) -> (i32, i32) {
    %c0_i32 = arith.constant 0 : i32
    %c0_i32_0 = arith.constant 0 : i32
    %c0_i32_1 = arith.constant 0 : i32
    return %c0_i32, %c0_i32_0 : i32, i32
  }
  func.func @transform_4(%arg0: i32) -> (i32, i32) {
    %c0_i32 = arith.constant 0 : i32
    %c0_i32_0 = arith.constant 0 : i32
    %c0_i32_1 = arith.constant 0 : i32
    return %c0_i32, %c0_i32_0 : i32, i32
  }
  func.func @transform_5(%arg0: i32) -> (i32, i32) {
    %c0_i32 = arith.constant 0 : i32
    %c0_i32_0 = arith.constant 0 : i32
    %c0_i32_1 = arith.constant 0 : i32
    return %c0_i32, %c0_i32_0 : i32, i32
  }
  func.func @transform_6(%arg0: i32) -> (i32, i32) {
    %c0_i32 = arith.constant 0 : i32
    %c0_i32_0 = arith.constant 0 : i32
    return %arg0, %c0_i32 : i32, i32
  }
  func.func @transform_7(%arg0: i32) -> (i32, i32) {
    %c0_i32 = arith.constant 0 : i32
    %c0_i32_0 = arith.constant 0 : i32
    return %arg0, %c0_i32 : i32, i32
  }
}

module attributes {stable_mosaic.version = 11 : i64} {
  func.func @_residual_kernel(%arg0: i32, %arg1: memref<56x288xbf16, #tpu.memory_space<vmem>>, %arg2: memref<56x32xf32, #tpu.memory_space<vmem>>, %arg3: memref<288x8xbf16, #tpu.memory_space<vmem>>, %arg4: memref<8x32xbf16, #tpu.memory_space<vmem>>, %arg5: memref<56x32xf32, #tpu.memory_space<vmem>>) attributes {dimension_semantics = [#tpu.dimension_semantics<parallel>], iteration_bounds = array<i64: 2>, scalar_prefetch = 0 : i64, scratch_operands = 0 : i64, tpu.core_type = #tpu.core_type<tc>, window_params = [{transform_indices = @transform_0, window_bounds = array<i64: 56, 288>}, {transform_indices = @transform_1, window_bounds = array<i64: 56, 32>}, {pipeline_mode = #tpu.pipeline_mode<synchronous>, transform_indices = @transform_2, window_bounds = array<i64: 288, 8>}, {pipeline_mode = #tpu.pipeline_mode<synchronous>, transform_indices = @transform_3, window_bounds = array<i64: 8, 32>}, {transform_indices = @transform_4, window_bounds = array<i64: 56, 32>}]} {
    %c0 = arith.constant 0 : index
    %c0_0 = arith.constant 0 : index
    %0 = vector.load %arg1[%c0, %c0_0] : memref<56x288xbf16, #tpu.memory_space<vmem>>, vector<56x288xbf16>
    %c0_1 = arith.constant 0 : index
    %c0_2 = arith.constant 0 : index
    %1 = vector.load %arg3[%c0_1, %c0_2] : memref<288x8xbf16, #tpu.memory_space<vmem>>, vector<288x8xbf16>
    %cst = arith.constant dense<0.000000e+00> : vector<56x8xf32>
    %2 = tpu.matmul %0, %1, %cst {dimension_numbers = #tpu.dot_dimension_numbers<[1], [0], [0], [1], [0, 0, 1, 1], [], []>} : vector<56x288xbf16>, vector<288x8xbf16>, vector<56x8xf32> -> vector<56x8xf32>
    %cst_3 = arith.constant 0.000000e+00 : f32
    %3 = vector.broadcast %cst_3 : f32 to vector<56x8xf32>
    %4 = arith.maximumf %2, %3 : vector<56x8xf32>
    %5 = arith.truncf %4 : vector<56x8xf32> to vector<56x8xbf16>
    %c0_4 = arith.constant 0 : index
    %c0_5 = arith.constant 0 : index
    %6 = vector.load %arg4[%c0_4, %c0_5] : memref<8x32xbf16, #tpu.memory_space<vmem>>, vector<8x32xbf16>
    %cst_6 = arith.constant dense<0.000000e+00> : vector<56x32xf32>
    %7 = tpu.matmul %5, %6, %cst_6 {dimension_numbers = #tpu.dot_dimension_numbers<[1], [0], [0], [1], [0, 0, 1, 1], [], []>} : vector<56x8xbf16>, vector<8x32xbf16>, vector<56x32xf32> -> vector<56x32xf32>
    %c0_7 = arith.constant 0 : index
    %c0_8 = arith.constant 0 : index
    %8 = vector.load %arg2[%c0_7, %c0_8] : memref<56x32xf32, #tpu.memory_space<vmem>>, vector<56x32xf32>
    %9 = arith.addf %8, %7 : vector<56x32xf32>
    %cst_9 = arith.constant 0.000000e+00 : f32
    %10 = vector.broadcast %cst_9 : f32 to vector<56x32xf32>
    %11 = arith.maximumf %9, %10 : vector<56x32xf32>
    %c0_10 = arith.constant 0 : index
    %c0_11 = arith.constant 0 : index
    %12 = vector.load %arg5[%c0_10, %c0_11] : memref<56x32xf32, #tpu.memory_space<vmem>>, vector<56x32xf32>
    tpu.vector_store %arg5[%c0_10, %c0_11], %11 {strides = array<i32>} : memref<56x32xf32, #tpu.memory_space<vmem>>, vector<56x32xf32>,
    return
  }
  func.func @transform_0(%arg0: i32) -> (i32, i32) {
    %c0_i32 = arith.constant 0 : i32
    %c0_i32_0 = arith.constant 0 : i32
    return %arg0, %c0_i32 : i32, i32
  }
  func.func @transform_1(%arg0: i32) -> (i32, i32) {
    %c0_i32 = arith.constant 0 : i32
    %c0_i32_0 = arith.constant 0 : i32
    return %arg0, %c0_i32 : i32, i32
  }
  func.func @transform_2(%arg0: i32) -> (i32, i32) {
    %c0_i32 = arith.constant 0 : i32
    %c0_i32_0 = arith.constant 0 : i32
    %c0_i32_1 = arith.constant 0 : i32
    return %c0_i32, %c0_i32_0 : i32, i32
  }
  func.func @transform_3(%arg0: i32) -> (i32, i32) {
    %c0_i32 = arith.constant 0 : i32
    %c0_i32_0 = arith.constant 0 : i32
    %c0_i32_1 = arith.constant 0 : i32
    return %c0_i32, %c0_i32_0 : i32, i32
  }
  func.func @transform_4(%arg0: i32) -> (i32, i32) {
    %c0_i32 = arith.constant 0 : i32
    %c0_i32_0 = arith.constant 0 : i32
    return %arg0, %c0_i32 : i32, i32
  }
}

module attributes {stable_mosaic.version = 11 : i64} {
  func.func @_matmul_kernel(%arg0: i32, %arg1: memref<56x72xbf16, #tpu.memory_space<vmem>>, %arg2: memref<72x32xbf16, #tpu.memory_space<vmem>>, %arg3: memref<1x32xf32, #tpu.memory_space<vmem>>, %arg4: memref<56x32xf32, #tpu.memory_space<vmem>>) attributes {dimension_semantics = [#tpu.dimension_semantics<parallel>], iteration_bounds = array<i64: 2>, scalar_prefetch = 0 : i64, scratch_operands = 0 : i64, tpu.core_type = #tpu.core_type<tc>, window_params = [{transform_indices = @transform_0, window_bounds = array<i64: 56, 72>}, {pipeline_mode = #tpu.pipeline_mode<synchronous>, transform_indices = @transform_1, window_bounds = array<i64: 72, 32>}, {pipeline_mode = #tpu.pipeline_mode<synchronous>, transform_indices = @transform_2, window_bounds = array<i64: 1, 32>}, {transform_indices = @transform_3, window_bounds = array<i64: 56, 32>}]} {
    %c0 = arith.constant 0 : index
    %c0_0 = arith.constant 0 : index
    %0 = vector.load %arg1[%c0, %c0_0] : memref<56x72xbf16, #tpu.memory_space<vmem>>, vector<56x72xbf16>
    %c0_1 = arith.constant 0 : index
    %c0_2 = arith.constant 0 : index
    %1 = vector.load %arg2[%c0_1, %c0_2] : memref<72x32xbf16, #tpu.memory_space<vmem>>, vector<72x32xbf16>
    %cst = arith.constant dense<0.000000e+00> : vector<56x32xf32>
    %2 = tpu.matmul %0, %1, %cst {dimension_numbers = #tpu.dot_dimension_numbers<[1], [0], [0], [1], [0, 0, 1, 1], [], []>} : vector<56x72xbf16>, vector<72x32xbf16>, vector<56x32xf32> -> vector<56x32xf32>
    %c0_3 = arith.constant 0 : index
    %c0_4 = arith.constant 0 : index
    %3 = vector.load %arg3[%c0_3, %c0_4] : memref<1x32xf32, #tpu.memory_space<vmem>>, vector<1x32xf32>
    %4 = vector.broadcast %3 : vector<1x32xf32> to vector<56x32xf32>
    %5 = arith.addf %2, %4 : vector<56x32xf32>
    %c0_5 = arith.constant 0 : index
    %c0_6 = arith.constant 0 : index
    %6 = vector.load %arg4[%c0_5, %c0_6] : memref<56x32xf32, #tpu.memory_space<vmem>>, vector<56x32xf32>
    tpu.vector_store %arg4[%c0_5, %c0_6], %5 {strides = array<i32>} : memref<56x32xf32, #tpu.memory_space<vmem>>, vector<56x32xf32>,
    return
  }
  func.func @transform_0(%arg0: i32) -> (i32, i32) {
    %c0_i32 = arith.constant 0 : i32
    %c0_i32_0 = arith.constant 0 : i32
    return %arg0, %c0_i32 : i32, i32
  }
  func.func @transform_1(%arg0: i32) -> (i32, i32) {
    %c0_i32 = arith.constant 0 : i32
    %c0_i32_0 = arith.constant 0 : i32
    %c0_i32_1 = arith.constant 0 : i32
    return %c0_i32, %c0_i32_0 : i32, i32
  }
  func.func @transform_2(%arg0: i32) -> (i32, i32) {
    %c0_i32 = arith.constant 0 : i32
    %c0_i32_0 = arith.constant 0 : i32
    %c0_i32_1 = arith.constant 0 : i32
    return %c0_i32, %c0_i32_0 : i32, i32
  }
  func.func @transform_3(%arg0: i32) -> (i32, i32) {
    %c0_i32 = arith.constant 0 : i32
    %c0_i32_0 = arith.constant 0 : i32
    return %arg0, %c0_i32 : i32, i32
  }
}

module attributes {stable_mosaic.version = 11 : i64} {
  func.func @_matmul_kernel(%arg0: i32, %arg1: memref<56x288xbf16, #tpu.memory_space<vmem>>, %arg2: memref<288x64xbf16, #tpu.memory_space<vmem>>, %arg3: memref<1x64xf32, #tpu.memory_space<vmem>>, %arg4: memref<56x64xf32, #tpu.memory_space<vmem>>) attributes {dimension_semantics = [#tpu.dimension_semantics<parallel>], iteration_bounds = array<i64: 2>, scalar_prefetch = 0 : i64, scratch_operands = 0 : i64, tpu.core_type = #tpu.core_type<tc>, window_params = [{transform_indices = @transform_0, window_bounds = array<i64: 56, 288>}, {pipeline_mode = #tpu.pipeline_mode<synchronous>, transform_indices = @transform_1, window_bounds = array<i64: 288, 64>}, {pipeline_mode = #tpu.pipeline_mode<synchronous>, transform_indices = @transform_2, window_bounds = array<i64: 1, 64>}, {transform_indices = @transform_3, window_bounds = array<i64: 56, 64>}]} {
    %c0 = arith.constant 0 : index
    %c0_0 = arith.constant 0 : index
    %0 = vector.load %arg1[%c0, %c0_0] : memref<56x288xbf16, #tpu.memory_space<vmem>>, vector<56x288xbf16>
    %c0_1 = arith.constant 0 : index
    %c0_2 = arith.constant 0 : index
    %1 = vector.load %arg2[%c0_1, %c0_2] : memref<288x64xbf16, #tpu.memory_space<vmem>>, vector<288x64xbf16>
    %cst = arith.constant dense<0.000000e+00> : vector<56x64xf32>
    %2 = tpu.matmul %0, %1, %cst {dimension_numbers = #tpu.dot_dimension_numbers<[1], [0], [0], [1], [0, 0, 1, 1], [], []>} : vector<56x288xbf16>, vector<288x64xbf16>, vector<56x64xf32> -> vector<56x64xf32>
    %c0_3 = arith.constant 0 : index
    %c0_4 = arith.constant 0 : index
    %3 = vector.load %arg3[%c0_3, %c0_4] : memref<1x64xf32, #tpu.memory_space<vmem>>, vector<1x64xf32>
    %4 = vector.broadcast %3 : vector<1x64xf32> to vector<56x64xf32>
    %5 = arith.addf %2, %4 : vector<56x64xf32>
    %cst_5 = arith.constant 0.000000e+00 : f32
    %6 = vector.broadcast %cst_5 : f32 to vector<56x64xf32>
    %7 = arith.maximumf %5, %6 : vector<56x64xf32>
    %c0_6 = arith.constant 0 : index
    %c0_7 = arith.constant 0 : index
    %8 = vector.load %arg4[%c0_6, %c0_7] : memref<56x64xf32, #tpu.memory_space<vmem>>, vector<56x64xf32>
    tpu.vector_store %arg4[%c0_6, %c0_7], %7 {strides = array<i32>} : memref<56x64xf32, #tpu.memory_space<vmem>>, vector<56x64xf32>,
    return
  }
  func.func @transform_0(%arg0: i32) -> (i32, i32) {
    %c0_i32 = arith.constant 0 : i32
    %c0_i32_0 = arith.constant 0 : i32
    return %arg0, %c0_i32 : i32, i32
  }
  func.func @transform_1(%arg0: i32) -> (i32, i32) {
    %c0_i32 = arith.constant 0 : i32
    %c0_i32_0 = arith.constant 0 : i32
    %c0_i32_1 = arith.constant 0 : i32
    return %c0_i32, %c0_i32_0 : i32, i32
  }
  func.func @transform_2(%arg0: i32) -> (i32, i32) {
    %c0_i32 = arith.constant 0 : i32
    %c0_i32_0 = arith.constant 0 : i32
    %c0_i32_1 = arith.constant 0 : i32
    return %c0_i32, %c0_i32_0 : i32, i32
  }
  func.func @transform_3(%arg0: i32) -> (i32, i32) {
    %c0_i32 = arith.constant 0 : i32
    %c0_i32_0 = arith.constant 0 : i32
    return %arg0, %c0_i32 : i32, i32
  }
}

module attributes {stable_mosaic.version = 11 : i64} {
  func.func @_matmul_kernel(%arg0: i32, %arg1: memref<200x144xbf16, #tpu.memory_space<vmem>>, %arg2: memref<144x12xbf16, #tpu.memory_space<vmem>>, %arg3: memref<1x12xf32, #tpu.memory_space<vmem>>, %arg4: memref<200x12xf32, #tpu.memory_space<vmem>>) attributes {dimension_semantics = [#tpu.dimension_semantics<parallel>], iteration_bounds = array<i64: 2>, scalar_prefetch = 0 : i64, scratch_operands = 0 : i64, tpu.core_type = #tpu.core_type<tc>, window_params = [{transform_indices = @transform_0, window_bounds = array<i64: 200, 144>}, {pipeline_mode = #tpu.pipeline_mode<synchronous>, transform_indices = @transform_1, window_bounds = array<i64: 144, 12>}, {pipeline_mode = #tpu.pipeline_mode<synchronous>, transform_indices = @transform_2, window_bounds = array<i64: 1, 12>}, {transform_indices = @transform_3, window_bounds = array<i64: 200, 12>}]} {
    %c0 = arith.constant 0 : index
    %c0_0 = arith.constant 0 : index
    %0 = vector.load %arg1[%c0, %c0_0] : memref<200x144xbf16, #tpu.memory_space<vmem>>, vector<200x144xbf16>
    %c0_1 = arith.constant 0 : index
    %c0_2 = arith.constant 0 : index
    %1 = vector.load %arg2[%c0_1, %c0_2] : memref<144x12xbf16, #tpu.memory_space<vmem>>, vector<144x12xbf16>
    %cst = arith.constant dense<0.000000e+00> : vector<200x12xf32>
    %2 = tpu.matmul %0, %1, %cst {dimension_numbers = #tpu.dot_dimension_numbers<[1], [0], [0], [1], [0, 0, 1, 1], [], []>} : vector<200x144xbf16>, vector<144x12xbf16>, vector<200x12xf32> -> vector<200x12xf32>
    %c0_3 = arith.constant 0 : index
    %c0_4 = arith.constant 0 : index
    %3 = vector.load %arg3[%c0_3, %c0_4] : memref<1x12xf32, #tpu.memory_space<vmem>>, vector<1x12xf32>
    %4 = vector.broadcast %3 : vector<1x12xf32> to vector<200x12xf32>
    %5 = arith.addf %2, %4 : vector<200x12xf32>
    %c0_5 = arith.constant 0 : index
    %c0_6 = arith.constant 0 : index
    %6 = vector.load %arg4[%c0_5, %c0_6] : memref<200x12xf32, #tpu.memory_space<vmem>>, vector<200x12xf32>
    tpu.vector_store %arg4[%c0_5, %c0_6], %5 {strides = array<i32>} : memref<200x12xf32, #tpu.memory_space<vmem>>, vector<200x12xf32>,
    return
  }
  func.func @transform_0(%arg0: i32) -> (i32, i32) {
    %c0_i32 = arith.constant 0 : i32
    %c0_i32_0 = arith.constant 0 : i32
    return %arg0, %c0_i32 : i32, i32
  }
  func.func @transform_1(%arg0: i32) -> (i32, i32) {
    %c0_i32 = arith.constant 0 : i32
    %c0_i32_0 = arith.constant 0 : i32
    %c0_i32_1 = arith.constant 0 : i32
    return %c0_i32, %c0_i32_0 : i32, i32
  }
  func.func @transform_2(%arg0: i32) -> (i32, i32) {
    %c0_i32 = arith.constant 0 : i32
    %c0_i32_0 = arith.constant 0 : i32
    %c0_i32_1 = arith.constant 0 : i32
    return %c0_i32, %c0_i32_0 : i32, i32
  }
  func.func @transform_3(%arg0: i32) -> (i32, i32) {
    %c0_i32 = arith.constant 0 : i32
    %c0_i32_0 = arith.constant 0 : i32
    return %arg0, %c0_i32 : i32, i32
  }
}

</mosaic_0001>

<llo_original>
// kernel: vqvae_forward.11
$region0: #{vqvae_forward.11}
  #allocation0 [shape = 'u32[]', space=smem, size = 0x4, offset = 0x4, fixed_abs, tag = 'smem constant byte address 0x4 - core index']
  #allocation1 [shape = 'u32[144,128]{1,0:T(1,128)}', space=vmem, size = 0x12000, scoped, tag = 'internal scratch']
  %s0 = inlined_call_operand.vmem [shape: bf16[392,48], index: 0, kind: input, shape index: {}]
  %s1 = inlined_call_operand.vmem [shape: bf16[48,16], index: 1, kind: input, shape index: {}]
  %s2 = inlined_call_operand.vmem [shape: f32[1,16], index: 2, kind: input, shape index: {}]
  %s3 = inlined_call_operand.vmem [shape: f32[392,16], index: 3, kind: output, shape index: {}]
  %s4 = sld [smem:[#allocation0]]
  $region93: #{vqvae_forward.11} parent=0
    _
  %s6 = ssub.s32 1, %s4
  %s7 = scalar_select 0, %s6, %s4
  $region1: #{vqvae_forward.11} parent=0
    #allocation2 [shape = 'u8[204800]{0}', space=vmem, size = 0x32000, scoped, tag = 'output window, operand 0']
    loop: start=0, step=1, limit=4
    $region2: #{vqvae_forward.11} parent=1 // loop_pre_header
      _
    $region3: #{vqvae_forward.11} parent=1 // loop_header
      %s9 = sphi 0, %s13
      %p10 = scmp.ge.s32.totalorder %s9, 4
      %s19 = sphi 0, %s21
      %s22 = sphi 0, %s19
      %s23 = sphi 0, %s22
      %s39 = sphi 0, %s23
      %s43 = sphi 0, %s43
      %s45 = sphi 0, %s43
      %s46 = sphi 0, %s45
      %s60 = sphi 0, %s46
      %s64 = sphi 0, %s64
      %s66 = sphi 0, %s64
      %s67 = sphi 0, %s66
      %s81 = sphi 0, %s67
      %s87 = sphi 0, %s89
      %s90 = sphi 0, %s87
      %s91 = sphi 0, %s90
      %s107 = sphi 0, %s91
    $region4: #{vqvae_forward.11} parent=1 // loop_header_branch
      %12 = sbr.rel (%p10) target = $region8
    $region5: #{vqvae_forward.11} parent=1 // loop_body
      %s14 = ssub.s32 %s9, 1
      %s15 = ssub.s32 %s9, 2
      %s16 = sadd.s32 %s9, 1
      %s17 = ssub.s32 %s9, %s16
      %p18 = scmp.eq.s32.totalorder %s17, 0
      %s20 = sadd.s32 %s19, 1
      %s21 = scalar_select %p18, %s19, %s20
      %p24 = pneg %p18
      %p25 = scmp.eq.s32.totalorder %s9, 1
      %p26 = por %p24, %p25
      %p27 = scmp.ne.s32.totalorder %s19, %s22
      %p28 = scmp.eq.s32.totalorder %s9, 0
      %p29 = por %p27, %p28
      %p30 = scmp.ne.s32.totalorder %s19, %s22
      %p31 = scmp.eq.s32.totalorder %s14, 1
      %p32 = por %p30, %p31
      %p33 = scmp.ne.s32.totalorder %s22, %s23
      %p34 = scmp.eq.s32.totalorder %s14, 0
      %p35 = por %p33, %p34
      %p36 = scmp.ne.s32.totalorder %s22, %s23
      %p37 = scmp.eq.s32.totalorder %s15, 1
      %p38 = por %p36, %p37
      %p40 = scmp.ne.s32.totalorder %s23, %s39
      %p41 = scmp.eq.s32.totalorder %s15, 0
      %p42 = por %p40, %p41
      %s44 = sadd.s32 %s43, 1
      %p47 = scmp.eq.s32.totalorder %s9, 1
      %p48 = scmp.ne.s32.totalorder %s43, %s45
      %p49 = scmp.eq.s32.totalorder %s9, 0
      %p50 = por %p48, %p49
      %p51 = scmp.ne.s32.totalorder %s43, %s45
      %p52 = scmp.eq.s32.totalorder %s14, 1
      %p53 = por %p51, %p52
      %p54 = scmp.ne.s32.totalorder %s45, %s46
      %p55 = scmp.eq.s32.totalorder %s14, 0
      %p56 = por %p54, %p55
      %p57 = scmp.ne.s32.totalorder %s45, %s46
      %p58 = scmp.eq.s32.totalorder %s15, 1
      %p59 = por %p57, %p58
      %p61 = scmp.ne.s32.totalorder %s46, %s60
      %p62 = scmp.eq.s32.totalorder %s15, 0
      %p63 = por %p61, %p62
      %s65 = sadd.s32 %s64, 1
      %p68 = scmp.eq.s32.totalorder %s9, 1
      %p69 = scmp.ne.s32.totalorder %s64, %s66
      %p70 = scmp.eq.s32.totalorder %s9, 0
      %p71 = por %p69, %p70
      %p72 = scmp.ne.s32.totalorder %s64, %s66
      %p73 = scmp.eq.s32.totalorder %s14, 1
      %p74 = por %p72, %p73
      %p75 = scmp.ne.s32.totalorder %s66, %s67
      %p76 = scmp.eq.s32.totalorder %s14, 0
      %p77 = por %p75, %p76
      %p78 = scmp.ne.s32.totalorder %s66, %s67
      %p79 = scmp.eq.s32.totalorder %s15, 1
      %p80 = por %p78, %p79
      %p82 = scmp.ne.s32.totalorder %s67, %s81
      %p83 = scmp.eq.s32.totalorder %s15, 0
      %p84 = por %p82, %p83
      %s85 = ssub.s32 %s9, %s16
      %p86 = scmp.eq.s32.totalorder %s85, 0
      %s88 = sadd.s32 %s87, 1
      %s89 = scalar_select %p86, %s87, %s88
      %p92 = pneg %p86
      %p93 = scmp.eq.s32.totalorder %s9, 1
      %p94 = por %p92, %p93
      %p95 = scmp.ne.s32.totalorder %s87, %s90
      %p96 = scmp.eq.s32.totalorder %s9, 0
      %p97 = por %p95, %p96
      %p98 = scmp.ne.s32.totalorder %s87, %s90
      %p99 = scmp.eq.s32.totalorder %s14, 1
      %p100 = por %p98, %p99
      %p101 = scmp.ne.s32.totalorder %s90, %s91
      %p102 = scmp.eq.s32.totalorder %s14, 0
      %p103 = por %p101, %p102
      %p104 = scmp.ne.s32.totalorder %s90, %s91
      %p105 = scmp.eq.s32.totalorder %s15, 1
      %p106 = por %p104, %p105
      %p108 = scmp.ne.s32.totalorder %s91, %s107
      %p109 = scmp.eq.s32.totalorder %s15, 0
      %p110 = por %p108, %p109
      %p111 = scmp.le.s32.totalorder 1, %s9
      %p112 = scmp.lt.s32.totalorder %s9, 3
      %p113 = pnand %p111, %p112
      %p114 = pneg %p113
      // Predicated region
      $region9: #{vqvae_forward.11} parent=5 // pred_check
        _
      $region10: #{vqvae_forward.11} parent=5 // pred_check_branch
        %116 = sbr.rel (%p113) target = $region12
      $region11: #{vqvae_forward.11} parent=5 // pred_region
        %s117 = ssub.s32 %s9, 1
        // Predicated region
        $region13: #{vqvae_forward.11} parent=11 // pred_check
          %p118 = pneg %p56
        $region14: #{vqvae_forward.11} parent=11 // pred_check_branch
          %120 = sbr.rel (%p118) target = $region16
        $region15: #{vqvae_forward.11} parent=11 // pred_region
          _
        $region16: #{vqvae_forward.11} parent=11 // pred_fallthru
          _
        // Predicated region
        $region17: #{vqvae_forward.11} parent=11 // pred_check
          %p121 = pneg %p77
        $region18: #{vqvae_forward.11} parent=11 // pred_check_branch
          %123 = sbr.rel (%p121) target = $region20
        $region19: #{vqvae_forward.11} parent=11 // pred_region
          _
        $region20: #{vqvae_forward.11} parent=11 // pred_fallthru
          _
      $region12: #{vqvae_forward.11} parent=5 // pred_fallthru
        _
      %p124 = scmp.lt.s32.totalorder %s9, 2
      // Predicated region
      $region21: #{vqvae_forward.11} parent=5 // pred_check
        %p125 = pneg %p124
      $region22: #{vqvae_forward.11} parent=5 // pred_check_branch
        %127 = sbr.rel (%p125) target = $region24
      $region23: #{vqvae_forward.11} parent=5 // pred_region
        // Predicated region
        $region25: #{vqvae_forward.11} parent=23 // pred_check
          %p128 = pneg %p29
        $region26: #{vqvae_forward.11} parent=23 // pred_check_branch
          %130 = sbr.rel (%p128) target = $region28
        $region27: #{vqvae_forward.11} parent=23 // pred_region
          %s131 = smul.u32 25, %s9
          %s132 = ssub.s32 49, %s131
          %p133 = scmp.lt.s32.totalorder %s132, 25
          %s134 = scalar_select %p133, %s132, 25
          %s135 = smul.u32 64, %s134
          %p136 = scmp.lt.s32.totalorder %s131, 48
          %s137 = scalar_select %p136, %s131, 48
          %s138 = smul.addr %s137, 4
          %s139 = scalar_lea.vmem %s0, %s138
          %s140 = smul.u32 25, %s9
          %s141 = ssub.s32 49, %s140
          %p142 = scmp.lt.s32.totalorder %s141, 25
          %s143 = scalar_select %p142, %s141, 25
          %s144 = smul.u32 64, %s143
        $region28: #{vqvae_forward.11} parent=23 // pred_fallthru
          _
      $region24: #{vqvae_forward.11} parent=5 // pred_fallthru
        _
      %p145 = scmp.le.s32.totalorder 1, %s9
      %p146 = scmp.lt.s32.totalorder %s9, 3
      %p147 = pnand %p145, %p146
      %p148 = pneg %p147
      // Predicated region
      $region29: #{vqvae_forward.11} parent=5 // pred_check
        _
      $region30: #{vqvae_forward.11} parent=5 // pred_check_branch
        %150 = sbr.rel (%p147) target = $region32
      $region31: #{vqvae_forward.11} parent=5 // pred_region
        %s151 = ssub.s32 %s9, 1
        %s152 = smul.u32 25, %s14
        %s153 = ssub.s32 49, %s152
        %p154 = scmp.lt.s32.totalorder %s153, 25
        %s155 = scalar_select %p154, %s153, 25
        %s156 = smul.u32 64, %s155
        %p157 = scmp.lt.s32.totalorder %s152, 48
        %s158 = scalar_select %p157, %s152, 48
        %s159 = smul.addr %s158, 4
        %s160 = scalar_lea.vmem %s0, %s159
        %p161 = pneg %p35
        %p162 = pneg %p32
        %p163 = pneg %p56
        %p164 = pneg %p53
        %p165 = pneg %p77
        %p166 = pneg %p74
        %p167 = pneg %p103
        %p168 = pneg %p100
        %s169 = sand.u32 %s90, 1
        %s170 = sand.u32 %s90, 1
        %s171 = smul.addr %s170, 200
        %s172 = scalar_lea.vmem [#allocation2], %s171
        %s173 = smul.u32 25, %s14
        %s174 = ssub.s32 49, %s173
        %p175 = scmp.lt.s32.totalorder %s174, 25
        %s176 = scalar_select %p175, %s174, 25
        %s177 = smul.u32 64, %s176
        %p178 = scmp.lt.s32.totalorder %s173, 48
        %s179 = scalar_select %p178, %s173, 48
        %s180 = smul.addr %s179, 4
        %s181 = scalar_lea.vmem %s0, %s180
        %s182 = smul.u32 25, %s14
        %s183 = ssub.s32 49, %s182
        %p184 = scmp.lt.s32.totalorder %s183, 25
        %s185 = scalar_select %p184, %s183, 25
        %s186 = smul.u32 64, %s185
        %s187 = smul.u32 25, %s14
        %s188 = ssub.s32 49, %s187
        %p189 = scmp.lt.s32.totalorder %s188, 25
        %s190 = scalar_select %p189, %s188, 25
        %s191 = smul.u32 128, %s190
        %v193 = vld [vmem:[%s181] sm:$0xf]
        %v194 = vld [vmem:[%s181 + $0x4] sm:$0xf]
        %v195 = vld [vmem:[%s181 + $0x8] sm:$0xf]
        %v196 = vld [vmem:[%s181 + $0xc] sm:$0xf]
        %v197 = vld [vmem:[%s181 + $0x10] sm:$0xf]
        %v198 = vld [vmem:[%s181 + $0x14] sm:$0xf]
        %v199 = vld [vmem:[%s181 + $0x18] sm:$0xf]
        %v200 = vld [vmem:[%s181 + $0x1c] sm:$0xf]
        %v201 = vld [vmem:[%s181 + $0x20] sm:$0xf]
        %v202 = vld [vmem:[%s181 + $0x24] sm:$0xf]
        %v203 = vld [vmem:[%s181 + $0x28] sm:$0xf]
        %v204 = vld [vmem:[%s181 + $0x2c] sm:$0xf]
        %v205 = vld [vmem:[%s181 + $0x30] sm:$0xf]
        %v206 = vld [vmem:[%s181 + $0x34] sm:$0xf]
        %v207 = vld [vmem:[%s181 + $0x38] sm:$0xf]
        %v208 = vld [vmem:[%s181 + $0x3c] sm:$0xf]
        %v209 = vld [vmem:[%s181 + $0x40] sm:$0xf]
        %v210 = vld [vmem:[%s181 + $0x44] sm:$0xf]
        %v211 = vld [vmem:[%s181 + $0x48] sm:$0xf]
        %v212 = vld [vmem:[%s181 + $0x4c] sm:$0xf]
        %v213 = vld [vmem:[%s181 + $0x50] sm:$0xf]
        %v214 = vld [vmem:[%s181 + $0x54] sm:$0xf]
        %v215 = vld [vmem:[%s181 + $0x58] sm:$0xf]
        %v216 = vld [vmem:[%s181 + $0x5c] sm:$0xf]
        %v217 = vld [vmem:[%s181 + $0x60] sm:$0xf]
        %v218 = vld [vmem:[%s1] sm:$0xf]
        %v219 = vld [vmem:[%s1 + $0x4] sm:$0xf]
        %v220 = vld [vmem:[%s1 + $0x8] sm:$0xf]
        %v221 = vld [vmem:[%s1 + $0xc] sm:$0xf]
        %v222 = vld [vmem:[%s1 + $0x10] sm:$0xf]
        %v223 = vld [vmem:[%s1 + $0x14] sm:$0xf]
        %v224 = vld [vmem:[%s2] sm:$0x1]
        %v226 = vlaneseq
        %v227 = vshrl.u32 %v226, 7
        %v228 = vsub.s32 0, %v227
        %v229 = vrot.slane %v224, %v228
        %v256 = vunpack.c.l.b16 %v193
        %v257 = vunpack.c.l.b16 %v194
        %v258 = vunpack.c.l.b16 %v195
        %v259 = vunpack.c.l.b16 %v196
        %v260 = vunpack.c.l.b16 %v197
        %v261 = vunpack.c.l.b16 %v198
        %v262 = vunpack.c.l.b16 %v199
        %v263 = vunpack.c.l.b16 %v200
        %v264 = vunpack.c.l.b16 %v201
        %v265 = vunpack.c.l.b16 %v202
        %v266 = vunpack.c.l.b16 %v203
        %v267 = vunpack.c.l.b16 %v204
        %v268 = vunpack.c.l.b16 %v205
        %v269 = vunpack.c.l.b16 %v206
        %v270 = vunpack.c.l.b16 %v207
        %v271 = vunpack.c.l.b16 %v208
        %v272 = vunpack.c.l.b16 %v209
        %v273 = vunpack.c.l.b16 %v210
        %v274 = vunpack.c.l.b16 %v211
        %v275 = vunpack.c.l.b16 %v212
        %v276 = vunpack.c.l.b16 %v213
        %v277 = vunpack.c.l.b16 %v214
        %v278 = vunpack.c.l.b16 %v215
        %v279 = vunpack.c.l.b16 %v216
        %v280 = vunpack.c.l.b16 %v217
        %v281 = vpack.c.b16 %v257, %v256
        %v282 = vpack.c.b16 %v259, %v258
        %v283 = vpack.c.b16 %v261, %v260
        %v284 = vpack.c.b16 %v263, %v262
        %v285 = vpack.c.b16 %v265, %v264
        %v286 = vpack.c.b16 %v267, %v266
        %v287 = vpack.c.b16 %v269, %v268
        %v288 = vpack.c.b16 %v271, %v270
        %v289 = vpack.c.b16 %v273, %v272
        %v290 = vpack.c.b16 %v275, %v274
        %v291 = vpack.c.b16 %v277, %v276
        %v292 = vpack.c.b16 %v279, %v278
        %v293 = vpack.c.b16 %v280, %v280
        %v300 = vunpack.c.l.b16 %v218
        %v301 = vunpack.c.l.b16 %v219
        %v302 = vunpack.c.l.b16 %v220
        %v303 = vunpack.c.l.b16 %v221
        %v304 = vunpack.c.l.b16 %v222
        %v305 = vunpack.c.l.b16 %v223
        %v306 = vpack.c.b16 %v301, %v300
        %v307 = vpack.c.b16 %v303, %v302
        %v308 = vpack.c.b16 %v305, %v304
        %vm312 = vcmask 392192
        %v314 = vsel %vm312, %v281, 0
        %v317 = vsel %vm312, %v282, 0
        %v320 = vsel %vm312, %v283, 0
        %v323 = vsel %vm312, %v284, 0
        %v326 = vsel %vm312, %v285, 0
        %v329 = vsel %vm312, %v286, 0
        %v332 = vsel %vm312, %v287, 0
        %v335 = vsel %vm312, %v288, 0
        %v338 = vsel %vm312, %v289, 0
        %v341 = vsel %vm312, %v290, 0
        %v344 = vsel %vm312, %v291, 0
        %v347 = vsel %vm312, %v292, 0
        %v350 = vsel %vm312, %v293, 0
        %352 = vmatprep.subr.bf16.mxu0 0
        %353 = vmatpush1.bf16.msra.mxu0 0
        %354 = vmatprep.subr.bf16.mxu0 0
        %355 = vmatpush1.bf16.msra.mxu0 0
        %356 = vmatprep.subr.bf16.mxu0 0
        %357 = vmatpush1.bf16.msra.mxu0 0
        %358 = vmatprep.subr.bf16.mxu0 0
        %359 = vmatpush1.bf16.msra.mxu0 0
        %360 = vmatprep.subr.bf16.mxu0 0
        %361 = vmatpush1.bf16.msra.mxu0 0
        %362 = vmatprep.subr.bf16.mxu0 0
        %363 = vmatpush1.bf16.msra.mxu0 %v308
        %364 = vmatprep.subr.bf16.mxu0 0
        %365 = vmatpush1.bf16.msra.mxu0 %v307
        %366 = vmatprep.subr.bf16.mxu0 0
        %367 = vmatpush1.bf16.msra.mxu0 %v306
        %368 = vmatprep.subr.bf16.mxu0 0
        %369 = vmatpush2.bf16.msra.mxu0 0
        %370 = vmatprep.subr.bf16.mxu0 0
        %371 = vmatpush2.bf16.msra.mxu0 0
        %372 = vmatprep.subr.bf16.mxu0 0
        %373 = vmatpush2.bf16.msra.mxu0 0
        %374 = vmatprep.subr.bf16.mxu0 0
        %375 = vmatpush2.bf16.msra.mxu0 0
        %376 = vmatprep.subr.bf16.mxu0 0
        %377 = vmatpush2.bf16.msra.mxu0 0
        %378 = vmatprep.subr.bf16.mxu0 0
        %379 = vmatpush2.bf16.msra.mxu0 0
        %380 = vmatprep.subr.bf16.mxu0 0
        %381 = vmatpush2.bf16.msra.mxu0 0
        %382 = vmatprep.subr.bf16.mxu0 0
        %383 = vmatpush2.bf16.msra.mxu0 0
        %384 = vmatprep.mubr.bf16.mxu0 0
        %385 = vmatmul.mubr.bf16.gmra.mxu0 %v314
        %v386 = vpop.f32.mrf.mxu0
        %v387 = vadd.f32 %v229, %v386
        %v388 = vpop.f32.mrf.mxu0
        %v389 = vpop.f32.mrf.mxu0
        %v390 = vadd.f32 %v229, %v389
        %v391 = vpop.f32.mrf.mxu0
        %392 = vmatprep.mubr.bf16.mxu0 0
        %393 = vmatmul.mubr.bf16.gmra.mxu0 %v317
        %v394 = vpop.f32.mrf.mxu0
        %v395 = vadd.f32 %v229, %v394
        %v396 = vpop.f32.mrf.mxu0
        %v397 = vpop.f32.mrf.mxu0
        %v398 = vadd.f32 %v229, %v397
        %v399 = vpop.f32.mrf.mxu0
        %400 = vmatprep.mubr.bf16.mxu0 0
        %401 = vmatmul.mubr.bf16.gmra.mxu0 %v320
        %v402 = vpop.f32.mrf.mxu0
        %v403 = vadd.f32 %v229, %v402
        %v404 = vpop.f32.mrf.mxu0
        %v405 = vpop.f32.mrf.mxu0
        %v406 = vadd.f32 %v229, %v405
        %v407 = vpop.f32.mrf.mxu0
        %408 = vmatprep.mubr.bf16.mxu0 0
        %409 = vmatmul.mubr.bf16.gmra.mxu0 %v323
        %v410 = vpop.f32.mrf.mxu0
        %v411 = vadd.f32 %v229, %v410
        %v412 = vpop.f32.mrf.mxu0
        %v413 = vpop.f32.mrf.mxu0
        %v414 = vadd.f32 %v229, %v413
        %v415 = vpop.f32.mrf.mxu0
        %416 = vmatprep.mubr.bf16.mxu0 0
        %417 = vmatmul.mubr.bf16.gmra.mxu0 %v326
        %v418 = vpop.f32.mrf.mxu0
        %v419 = vadd.f32 %v229, %v418
        %v420 = vpop.f32.mrf.mxu0
        %v421 = vpop.f32.mrf.mxu0
        %v422 = vadd.f32 %v229, %v421
        %v423 = vpop.f32.mrf.mxu0
        %424 = vmatprep.mubr.bf16.mxu0 0
        %425 = vmatmul.mubr.bf16.gmra.mxu0 %v329
        %v426 = vpop.f32.mrf.mxu0
        %v427 = vadd.f32 %v229, %v426
        %v428 = vpop.f32.mrf.mxu0
        %v429 = vpop.f32.mrf.mxu0
        %v430 = vadd.f32 %v229, %v429
        %v431 = vpop.f32.mrf.mxu0
        %432 = vmatprep.mubr.bf16.mxu0 0
        %433 = vmatmul.mubr.bf16.gmra.mxu0 %v332
        %v434 = vpop.f32.mrf.mxu0
        %v435 = vadd.f32 %v229, %v434
        %v436 = vpop.f32.mrf.mxu0
        %v437 = vpop.f32.mrf.mxu0
        %v438 = vadd.f32 %v229, %v437
        %v439 = vpop.f32.mrf.mxu0
        %440 = vmatprep.mubr.bf16.mxu0 0
        %441 = vmatmul.mubr.bf16.gmra.mxu0 %v335
        %v442 = vpop.f32.mrf.mxu0
        %v443 = vadd.f32 %v229, %v442
        %v444 = vpop.f32.mrf.mxu0
        %v445 = vpop.f32.mrf.mxu0
        %v446 = vadd.f32 %v229, %v445
        %v447 = vpop.f32.mrf.mxu0
        %448 = vmatprep.mubr.bf16.mxu0 0
        %449 = vmatmul.mubr.bf16.gmra.mxu0 %v338
        %v450 = vpop.f32.mrf.mxu0
        %v451 = vadd.f32 %v229, %v450
        %v452 = vpop.f32.mrf.mxu0
        %v453 = vpop.f32.mrf.mxu0
        %v454 = vadd.f32 %v229, %v453
        %v455 = vpop.f32.mrf.mxu0
        %456 = vmatprep.mubr.bf16.mxu0 0
        %457 = vmatmul.mubr.bf16.gmra.mxu0 %v341
        %v458 = vpop.f32.mrf.mxu0
        %v459 = vadd.f32 %v229, %v458
        %v460 = vpop.f32.mrf.mxu0
        %v461 = vpop.f32.mrf.mxu0
        %v462 = vadd.f32 %v229, %v461
        %v463 = vpop.f32.mrf.mxu0
        %464 = vmatprep.mubr.bf16.mxu0 0
        %465 = vmatmul.mubr.bf16.gmra.mxu0 %v344
        %v466 = vpop.f32.mrf.mxu0
        %v467 = vadd.f32 %v229, %v466
        %v468 = vpop.f32.mrf.mxu0
        %v469 = vpop.f32.mrf.mxu0
        %v470 = vadd.f32 %v229, %v469
        %v471 = vpop.f32.mrf.mxu0
        %472 = vmatprep.mubr.bf16.mxu0 0
        %473 = vmatmul.mubr.bf16.gmra.mxu0 %v347
        %v474 = vpop.f32.mrf.mxu0
        %v475 = vadd.f32 %v229, %v474
        %v476 = vpop.f32.mrf.mxu0
        %v477 = vpop.f32.mrf.mxu0
        %v478 = vadd.f32 %v229, %v477
        %v479 = vpop.f32.mrf.mxu0
        %480 = vmatprep.mubr.bf16.mxu0 0
        %481 = vmatmul.mubr.bf16.gmra.mxu0 %v350
        %v482 = vpop.f32.mrf.mxu0
        %v483 = vadd.f32 %v229, %v482
        %v484 = vpop.f32.mrf.mxu0
        %v485 = vpop.f32.mrf.mxu0
        %v486 = vpop.f32.mrf.mxu0
        %487 = vdwg.mxu0
        %v488 = vmax.f32 %v387, 0.0
        %v489 = vmax.f32 %v390, 0.0
        %v490 = vmax.f32 %v395, 0.0
        %v491 = vmax.f32 %v398, 0.0
        %v492 = vmax.f32 %v403, 0.0
        %v493 = vmax.f32 %v406, 0.0
        %v494 = vmax.f32 %v411, 0.0
        %v495 = vmax.f32 %v414, 0.0
        %v496 = vmax.f32 %v419, 0.0
        %v497 = vmax.f32 %v422, 0.0
        %v498 = vmax.f32 %v427, 0.0
        %v499 = vmax.f32 %v430, 0.0
        %v500 = vmax.f32 %v435, 0.0
        %v501 = vmax.f32 %v438, 0.0
        %v502 = vmax.f32 %v443, 0.0
        %v503 = vmax.f32 %v446, 0.0
        %v504 = vmax.f32 %v451, 0.0
        %v505 = vmax.f32 %v454, 0.0
        %v506 = vmax.f32 %v459, 0.0
        %v507 = vmax.f32 %v462, 0.0
        %v508 = vmax.f32 %v467, 0.0
        %v509 = vmax.f32 %v470, 0.0
        %v510 = vmax.f32 %v475, 0.0
        %v511 = vmax.f32 %v478, 0.0
        %v512 = vmax.f32 %v483, 0.0
        %vm513 = vcmask 130048
        %514 = vst.msk [vmem:[%s172] sm:$0xff] %vm513, %v488
        %515 = vst.msk [vmem:[%s172 + $0x8] sm:$0xff] %vm513, %v489
        %516 = vst.msk [vmem:[%s172 + $0x10] sm:$0xff] %vm513, %v490
        %517 = vst.msk [vmem:[%s172 + $0x18] sm:$0xff] %vm513, %v491
        %518 = vst.msk [vmem:[%s172 + $0x20] sm:$0xff] %vm513, %v492
        %519 = vst.msk [vmem:[%s172 + $0x28] sm:$0xff] %vm513, %v493
        %520 = vst.msk [vmem:[%s172 + $0x30] sm:$0xff] %vm513, %v494
        %521 = vst.msk [vmem:[%s172 + $0x38] sm:$0xff] %vm513, %v495
        %522 = vst.msk [vmem:[%s172 + $0x40] sm:$0xff] %vm513, %v496
        %523 = vst.msk [vmem:[%s172 + $0x48] sm:$0xff] %vm513, %v497
        %524 = vst.msk [vmem:[%s172 + $0x50] sm:$0xff] %vm513, %v498
        %525 = vst.msk [vmem:[%s172 + $0x58] sm:$0xff] %vm513, %v499
        %526 = vst.msk [vmem:[%s172 + $0x60] sm:$0xff] %vm513, %v500
        %527 = vst.msk [vmem:[%s172 + $0x68] sm:$0xff] %vm513, %v501
        %528 = vst.msk [vmem:[%s172 + $0x70] sm:$0xff] %vm513, %v502
        %529 = vst.msk [vmem:[%s172 + $0x78] sm:$0xff] %vm513, %v503
        %530 = vst.msk [vmem:[%s172 + $0x80] sm:$0xff] %vm513, %v504
        %531 = vst.msk [vmem:[%s172 + $0x88] sm:$0xff] %vm513, %v505
        %532 = vst.msk [vmem:[%s172 + $0x90] sm:$0xff] %vm513, %v506
        %533 = vst.msk [vmem:[%s172 + $0x98] sm:$0xff] %vm513, %v507
        %534 = vst.msk [vmem:[%s172 + $0xa0] sm:$0xff] %vm513, %v508
        %535 = vst.msk [vmem:[%s172 + $0xa8] sm:$0xff] %vm513, %v509
        %536 = vst.msk [vmem:[%s172 + $0xb0] sm:$0xff] %vm513, %v510
        %537 = vst.msk [vmem:[%s172 + $0xb8] sm:$0xff] %vm513, %v511
        %538 = vst.msk [vmem:[%s172 + $0xc0] sm:$0xff] %vm513, %v512
        %s539 = sand.u32 %s90, 1
        %s540 = sand.u32 %s90, 1
        %s541 = smul.addr %s540, 200
        %s542 = scalar_lea.vmem [#allocation2], %s541
        // Predicated region
        $region33: #{vqvae_forward.11} parent=31 // pred_check
          %p543 = pneg %p100
        $region34: #{vqvae_forward.11} parent=31 // pred_check_branch
          %545 = sbr.rel (%p543) target = $region36
        $region35: #{vqvae_forward.11} parent=31 // pred_region
          %s546 = smul.u32 25, %s14
          %s547 = ssub.s32 49, %s546
          %p548 = scmp.lt.s32.totalorder %s547, 25
          %s549 = scalar_select %p548, %s547, 25
          %s550 = smul.u32 128, %s549
          %p551 = scmp.ne.s32.totalorder 0, %s550
          %s552 = smul.addr %s546, 8
          %s553 = scalar_lea.vmem %s3, %s552
          // Predicated region
          $region37: #{vqvae_forward.11} parent=35 // pred_check
            %p554 = pneg %p551
          $region38: #{vqvae_forward.11} parent=35 // pred_check_branch
            %556 = sbr.rel (%p554) target = $region40
          $region39: #{vqvae_forward.11} parent=35 // pred_region
            // Predicated region
            $region41: #{vqvae_forward.11} parent=39 // pred_check
              _
            $region42: #{vqvae_forward.11} parent=39 // pred_check_branch
              %558 = sbr.rel (0) target = $region44
            $region43: #{vqvae_forward.11} parent=39 // pred_region
              // Predicated region
              $region63: #{vqvae_forward.11} parent=43 // pred_check
                _
              $region64: #{vqvae_forward.11} parent=43 // pred_check_branch
                %657 = sbr.rel (0) target = $region66
              $region65: #{vqvae_forward.11} parent=43 // pred_region
                %s658 = sdiv.u32.pop %s549, 25
                %s659 = srem.u32.pop %s549, 25
                // While loop
                $region67: #{vqvae_forward.11} parent=65 // loop_pre_header
                  _
                $region68: #{vqvae_forward.11} parent=65 // loop_header
                  %s661 = sphi 0, %s663
                  %p662 = scmp.ge.s32.totalorder %s661, %s658
                  %s666 = sphi 0, %s721
                  %s667 = sphi %s542, %s724
                  %s668 = sphi %s553, %s725
                $region69: #{vqvae_forward.11} parent=65 // loop_header_branch
                  %665 = sbr.rel (%p662) target = $region73
                $region70: #{vqvae_forward.11} parent=65 // loop_body
                  %v669 = vld [vmem:[%s667] sm:$0xff]
                  %670 = vst [vmem:[%s668] sm:$0xff] %v669
                  %v671 = vld [vmem:[%s667 + $0x8] sm:$0xff]
                  %672 = vst [vmem:[%s668 + $0x8] sm:$0xff] %v671
                  %v673 = vld [vmem:[%s667 + $0x10] sm:$0xff]
                  %674 = vst [vmem:[%s668 + $0x10] sm:$0xff] %v673
                  %v675 = vld [vmem:[%s667 + $0x18] sm:$0xff]
                  %676 = vst [vmem:[%s668 + $0x18] sm:$0xff] %v675
                  %v677 = vld [vmem:[%s667 + $0x20] sm:$0xff]
                  %678 = vst [vmem:[%s668 + $0x20] sm:$0xff] %v677
                  %v679 = vld [vmem:[%s667 + $0x28] sm:$0xff]
                  %680 = vst [vmem:[%s668 + $0x28] sm:$0xff] %v679
                  %v681 = vld [vmem:[%s667 + $0x30] sm:$0xff]
                  %682 = vst [vmem:[%s668 + $0x30] sm:$0xff] %v681
                  %v683 = vld [vmem:[%s667 + $0x38] sm:$0xff]
                  %684 = vst [vmem:[%s668 + $0x38] sm:$0xff] %v683
                  %v685 = vld [vmem:[%s667 + $0x40] sm:$0xff]
                  %686 = vst [vmem:[%s668 + $0x40] sm:$0xff] %v685
                  %v687 = vld [vmem:[%s667 + $0x48] sm:$0xff]
                  %688 = vst [vmem:[%s668 + $0x48] sm:$0xff] %v687
                  %v689 = vld [vmem:[%s667 + $0x50] sm:$0xff]
                  %690 = vst [vmem:[%s668 + $0x50] sm:$0xff] %v689
                  %v691 = vld [vmem:[%s667 + $0x58] sm:$0xff]
                  %692 = vst [vmem:[%s668 + $0x58] sm:$0xff] %v691
                  %v693 = vld [vmem:[%s667 + $0x60] sm:$0xff]
                  %694 = vst [vmem:[%s668 + $0x60] sm:$0xff] %v693
                  %v695 = vld [vmem:[%s667 + $0x68] sm:$0xff]
                  %696 = vst [vmem:[%s668 + $0x68] sm:$0xff] %v695
                  %v697 = vld [vmem:[%s667 + $0x70] sm:$0xff]
                  %698 = vst [vmem:[%s668 + $0x70] sm:$0xff] %v697
                  %v699 = vld [vmem:[%s667 + $0x78] sm:$0xff]
                  %700 = vst [vmem:[%s668 + $0x78] sm:$0xff] %v699
                  %v701 = vld [vmem:[%s667 + $0x80] sm:$0xff]
                  %702 = vst [vmem:[%s668 + $0x80] sm:$0xff] %v701
                  %v703 = vld [vmem:[%s667 + $0x88] sm:$0xff]
                  %704 = vst [vmem:[%s668 + $0x88] sm:$0xff] %v703
                  %v705 = vld [vmem:[%s667 + $0x90] sm:$0xff]
                  %706 = vst [vmem:[%s668 + $0x90] sm:$0xff] %v705
                  %v707 = vld [vmem:[%s667 + $0x98] sm:$0xff]
                  %708 = vst [vmem:[%s668 + $0x98] sm:$0xff] %v707
                  %v709 = vld [vmem:[%s667 + $0xa0] sm:$0xff]
                  %710 = vst [vmem:[%s668 + $0xa0] sm:$0xff] %v709
                  %v711 = vld [vmem:[%s667 + $0xa8] sm:$0xff]
                  %712 = vst [vmem:[%s668 + $0xa8] sm:$0xff] %v711
                  %v713 = vld [vmem:[%s667 + $0xb0] sm:$0xff]
                  %714 = vst [vmem:[%s668 + $0xb0] sm:$0xff] %v713
                  %v715 = vld [vmem:[%s667 + $0xb8] sm:$0xff]
                  %716 = vst [vmem:[%s668 + $0xb8] sm:$0xff] %v715
                  %v717 = vld [vmem:[%s667 + $0xc0] sm:$0xff]
                  %718 = vst [vmem:[%s668 + $0xc0] sm:$0xff] %v717
                  %s719 = sadd.s32 1, %s666
                  %p720 = scmp.ge.s32.totalorder %s719, %s658
                  %s721 = scalar_select %p720, 0, %s719
                  %s722 = smul.u32 %s721, 200
                  %s723 = smul.u32 %s721, 200
                  %s724 = scalar_lea.vmem %s542, %s722 [#allocation2]
                  %s725 = scalar_lea.vmem %s553, %s723
                $region71: #{vqvae_forward.11} parent=65 // loop_footer
                  %s663 = sadd.s32 %s661, 1
                $region72: #{vqvae_forward.11} parent=65 // loop_footer_branch
                  %660 = sbr.rel target = $region68
                $region73: #{vqvae_forward.11} parent=65 // loop_exit
                  _
                %s726 = sdiv.u32.pop %s549, 25
                %s727 = srem.u32.pop %s549, 25
                %s728 = smul.u32 %s726, 25
                %s729 = smul.u32 8, %s728
                %s730 = scalar_lea.vmem %s542, %s729 [#allocation2]
                %s731 = smul.u32 8, %s728
                %s732 = scalar_lea.vmem %s553, %s731
                // While loop
                $region74: #{vqvae_forward.11} parent=65 // loop_pre_header
                  _
                $region75: #{vqvae_forward.11} parent=65 // loop_header
                  %s734 = sphi 0, %s736
                  %p735 = scmp.ge.s32.totalorder %s734, %s727
                  %s739 = sphi 0, %s746
                  %s740 = sphi %s730, %s749
                  %s741 = sphi %s732, %s750
                $region76: #{vqvae_forward.11} parent=65 // loop_header_branch
                  %738 = sbr.rel (%p735) target = $region80
                $region77: #{vqvae_forward.11} parent=65 // loop_body
                  %v742 = vld [vmem:[%s740] sm:$0xff]
                  %743 = vst [vmem:[%s741] sm:$0xff] %v742
                  %s744 = sadd.s32 1, %s739
                  %p745 = scmp.ge.s32.totalorder %s744, %s727
                  %s746 = scalar_select %p745, 0, %s744
                  %s747 = smul.u32 %s746, 8
                  %s748 = smul.u32 %s746, 8
                  %s749 = scalar_lea.vmem %s730, %s747 [#allocation2]
                  %s750 = scalar_lea.vmem %s732, %s748
                $region78: #{vqvae_forward.11} parent=65 // loop_footer
                  %s736 = sadd.s32 %s734, 1
                $region79: #{vqvae_forward.11} parent=65 // loop_footer_branch
                  %733 = sbr.rel target = $region75
                $region80: #{vqvae_forward.11} parent=65 // loop_exit
                  _
              $region66: #{vqvae_forward.11} parent=43 // pred_fallthru
                _
              // Predicated region
              $region81: #{vqvae_forward.11} parent=43 // pred_check
                _
              $region82: #{vqvae_forward.11} parent=43 // pred_check_branch
                %752 = sbr.rel target = $region84
              $region83: #{vqvae_forward.11} parent=43 // pred_region
                _
              $region84: #{vqvae_forward.11} parent=43 // pred_fallthru
                _
            $region44: #{vqvae_forward.11} parent=39 // pred_fallthru
              _
            // Predicated region
            $region45: #{vqvae_forward.11} parent=39 // pred_check
              _
            $region46: #{vqvae_forward.11} parent=39 // pred_check_branch
              %560 = sbr.rel target = $region48
            $region47: #{vqvae_forward.11} parent=39 // pred_region
              %s562 = ssub.s32 256, 1
              %s563 = sdiv.u32.pop %s549, 25
              %s564 = srem.u32.pop %s549, 25
              // While loop
              $region49: #{vqvae_forward.11} parent=47 // loop_pre_header
                _
              $region50: #{vqvae_forward.11} parent=47 // loop_header
                %s566 = sphi 0, %s568
                %p567 = scmp.ge.s32.totalorder %s566, %s563
                %s571 = sphi 0, %s626
                %s572 = sphi %s542, %s629
                %s573 = sphi %s553, %s630
              $region51: #{vqvae_forward.11} parent=47 // loop_header_branch
                %570 = sbr.rel (%p567) target = $region55
              $region52: #{vqvae_forward.11} parent=47 // loop_body
                %v574 = vld [vmem:[%s572] sm:%s562]
                %575 = vst [vmem:[%s573] sm:%s562] %v574
                %v576 = vld [vmem:[%s572 + $0x8] sm:%s562]
                %577 = vst [vmem:[%s573 + $0x8] sm:%s562] %v576
                %v578 = vld [vmem:[%s572 + $0x10] sm:%s562]
                %579 = vst [vmem:[%s573 + $0x10] sm:%s562] %v578
                %v580 = vld [vmem:[%s572 + $0x18] sm:%s562]
                %581 = vst [vmem:[%s573 + $0x18] sm:%s562] %v580
                %v582 = vld [vmem:[%s572 + $0x20] sm:%s562]
                %583 = vst [vmem:[%s573 + $0x20] sm:%s562] %v582
                %v584 = vld [vmem:[%s572 + $0x28] sm:%s562]
                %585 = vst [vmem:[%s573 + $0x28] sm:%s562] %v584
                %v586 = vld [vmem:[%s572 + $0x30] sm:%s562]
                %587 = vst [vmem:[%s573 + $0x30] sm:%s562] %v586
                %v588 = vld [vmem:[%s572 + $0x38] sm:%s562]
                %589 = vst [vmem:[%s573 + $0x38] sm:%s562] %v588
                %v590 = vld [vmem:[%s572 + $0x40] sm:%s562]
                %591 = vst [vmem:[%s573 + $0x40] sm:%s562] %v590
                %v592 = vld [vmem:[%s572 + $0x48] sm:%s562]
                %593 = vst [vmem:[%s573 + $0x48] sm:%s562] %v592
                %v594 = vld [vmem:[%s572 + $0x50] sm:%s562]
                %595 = vst [vmem:[%s573 + $0x50] sm:%s562] %v594
                %v596 = vld [vmem:[%s572 + $0x58] sm:%s562]
                %597 = vst [vmem:[%s573 + $0x58] sm:%s562] %v596
                %v598 = vld [vmem:[%s572 + $0x60] sm:%s562]
                %599 = vst [vmem:[%s573 + $0x60] sm:%s562] %v598
                %v600 = vld [vmem:[%s572 + $0x68] sm:%s562]
                %601 = vst [vmem:[%s573 + $0x68] sm:%s562] %v600
                %v602 = vld [vmem:[%s572 + $0x70] sm:%s562]
                %603 = vst [vmem:[%s573 + $0x70] sm:%s562] %v602
                %v604 = vld [vmem:[%s572 + $0x78] sm:%s562]
                %605 = vst [vmem:[%s573 + $0x78] sm:%s562] %v604
                %v606 = vld [vmem:[%s572 + $0x80] sm:%s562]
                %607 = vst [vmem:[%s573 + $0x80] sm:%s562] %v606
                %v608 = vld [vmem:[%s572 + $0x88] sm:%s562]
                %609 = vst [vmem:[%s573 + $0x88] sm:%s562] %v608
                %v610 = vld [vmem:[%s572 + $0x90] sm:%s562]
                %611 = vst [vmem:[%s573 + $0x90] sm:%s562] %v610
                %v612 = vld [vmem:[%s572 + $0x98] sm:%s562]
                %613 = vst [vmem:[%s573 + $0x98] sm:%s562] %v612
                %v614 = vld [vmem:[%s572 + $0xa0] sm:%s562]
                %615 = vst [vmem:[%s573 + $0xa0] sm:%s562] %v614
                %v616 = vld [vmem:[%s572 + $0xa8] sm:%s562]
                %617 = vst [vmem:[%s573 + $0xa8] sm:%s562] %v616
                %v618 = vld [vmem:[%s572 + $0xb0] sm:%s562]
                %619 = vst [vmem:[%s573 + $0xb0] sm:%s562] %v618
                %v620 = vld [vmem:[%s572 + $0xb8] sm:%s562]
                %621 = vst [vmem:[%s573 + $0xb8] sm:%s562] %v620
                %v622 = vld [vmem:[%s572 + $0xc0] sm:%s562]
                %623 = vst [vmem:[%s573 + $0xc0] sm:%s562] %v622
                %s624 = sadd.s32 1, %s571
                %p625 = scmp.ge.s32.totalorder %s624, %s563
                %s626 = scalar_select %p625, 0, %s624
                %s627 = smul.u32 %s626, 200
                %s628 = smul.u32 %s626, 200
                %s629 = scalar_lea.vmem %s542, %s627 [#allocation2]
                %s630 = scalar_lea.vmem %s553, %s628
              $region53: #{vqvae_forward.11} parent=47 // loop_footer
                %s568 = sadd.s32 %s566, 1
              $region54: #{vqvae_forward.11} parent=47 // loop_footer_branch
                %565 = sbr.rel target = $region50
              $region55: #{vqvae_forward.11} parent=47 // loop_exit
                _
              %s631 = sdiv.u32.pop %s549, 25
              %s632 = srem.u32.pop %s549, 25
              %s633 = smul.u32 %s631, 25
              %s634 = smul.u32 8, %s633
              %s635 = scalar_lea.vmem %s542, %s634 [#allocation2]
              %s636 = smul.u32 8, %s633
              %s637 = scalar_lea.vmem %s553, %s636
              // While loop
              $region56: #{vqvae_forward.11} parent=47 // loop_pre_header
                _
              $region57: #{vqvae_forward.11} parent=47 // loop_header
                %s639 = sphi 0, %s641
                %p640 = scmp.ge.s32.totalorder %s639, %s632
                %s644 = sphi 0, %s651
                %s645 = sphi %s635, %s654
                %s646 = sphi %s637, %s655
              $region58: #{vqvae_forward.11} parent=47 // loop_header_branch
                %643 = sbr.rel (%p640) target = $region62
              $region59: #{vqvae_forward.11} parent=47 // loop_body
                %v647 = vld [vmem:[%s645] sm:%s562]
                %648 = vst [vmem:[%s646] sm:%s562] %v647
                %s649 = sadd.s32 1, %s644
                %p650 = scmp.ge.s32.totalorder %s649, %s632
                %s651 = scalar_select %p650, 0, %s649
                %s652 = smul.u32 %s651, 8
                %s653 = smul.u32 %s651, 8
                %s654 = scalar_lea.vmem %s635, %s652 [#allocation2]
                %s655 = scalar_lea.vmem %s637, %s653
              $region60: #{vqvae_forward.11} parent=47 // loop_footer
                %s641 = sadd.s32 %s639, 1
              $region61: #{vqvae_forward.11} parent=47 // loop_footer_branch
                %638 = sbr.rel target = $region57
              $region62: #{vqvae_forward.11} parent=47 // loop_exit
                _
            $region48: #{vqvae_forward.11} parent=39 // pred_fallthru
              _
          $region40: #{vqvae_forward.11} parent=35 // pred_fallthru
            _
          %753 = vnop
        $region36: #{vqvae_forward.11} parent=31 // pred_fallthru
          _
      $region32: #{vqvae_forward.11} parent=5 // pred_fallthru
        _
      %p754 = scmp.le.s32.totalorder 2, %s9
      // Predicated region
      $region85: #{vqvae_forward.11} parent=5 // pred_check
        %p755 = pneg %p754
      $region86: #{vqvae_forward.11} parent=5 // pred_check_branch
        %757 = sbr.rel (%p755) target = $region88
      $region87: #{vqvae_forward.11} parent=5 // pred_region
        %s758 = ssub.s32 %s9, 2
        // Predicated region
        $region89: #{vqvae_forward.11} parent=87 // pred_check
          %p759 = pneg %p106
        $region90: #{vqvae_forward.11} parent=87 // pred_check_branch
          %761 = sbr.rel (%p759) target = $region92
        $region91: #{vqvae_forward.11} parent=87 // pred_region
          %s762 = sand.u32 %s91, 1
          %s763 = sand.u32 %s91, 1
          %s764 = smul.addr %s763, 200
          %s765 = scalar_lea.vmem [#allocation2], %s764
        $region92: #{vqvae_forward.11} parent=87 // pred_fallthru
          _
      $region88: #{vqvae_forward.11} parent=5 // pred_fallthru
        _
    $region6: #{vqvae_forward.11} parent=1 // loop_footer
      %s13 = sadd.s32 1, %s9
    $region7: #{vqvae_forward.11} parent=1 // loop_footer_branch
      %8 = sbr.rel target = $region3
    $region8: #{vqvae_forward.11} parent=1 // loop_exit
      _

// kernel: vqvae_forward.12
$region0: #{vqvae_forward.12}
  #allocation0 [shape = 'u32[]', space=smem, size = 0x4, offset = 0x4, fixed_abs, tag = 'smem constant byte address 0x4 - core index']
  #allocation1 [shape = 'u32[144,128]{1,0:T(1,128)}', space=vmem, size = 0x12000, scoped, tag = 'internal scratch']
  %s0 = inlined_call_operand.vmem [shape: bf16[98,256], index: 0, kind: input, shape index: {}]
  %s1 = inlined_call_operand.vmem [shape: bf16[256,32], index: 1, kind: input, shape index: {}]
  %s2 = inlined_call_operand.vmem [shape: f32[1,32], index: 2, kind: input, shape index: {}]
  %s3 = inlined_call_operand.vmem [shape: f32[98,32], index: 3, kind: output, shape index: {}]
  %s4 = sld [smem:[#allocation0]]
  $region93: #{vqvae_forward.12} parent=0
    _
  %s6 = ssub.s32 1, %s4
  %s7 = scalar_select 0, %s6, %s4
  $region1: #{vqvae_forward.12} parent=0
    #allocation2 [shape = 'u8[57344]{0}', space=vmem, size = 0xe000, scoped, tag = 'output window, operand 0']
    loop: start=0, step=1, limit=4
    $region2: #{vqvae_forward.12} parent=1 // loop_pre_header
      _
    $region3: #{vqvae_forward.12} parent=1 // loop_header
      %s9 = sphi 0, %s13
      %p10 = scmp.ge.s32.totalorder %s9, 4
      %s19 = sphi 0, %s21
      %s22 = sphi 0, %s19
      %s23 = sphi 0, %s22
      %s39 = sphi 0, %s23
      %s43 = sphi 0, %s43
      %s45 = sphi 0, %s43
      %s46 = sphi 0, %s45
      %s60 = sphi 0, %s46
      %s64 = sphi 0, %s64
      %s66 = sphi 0, %s64
      %s67 = sphi 0, %s66
      %s81 = sphi 0, %s67
      %s87 = sphi 0, %s89
      %s90 = sphi 0, %s87
      %s91 = sphi 0, %s90
      %s107 = sphi 0, %s91
    $region4: #{vqvae_forward.12} parent=1 // loop_header_branch
      %12 = sbr.rel (%p10) target = $region8
    $region5: #{vqvae_forward.12} parent=1 // loop_body
      %s14 = ssub.s32 %s9, 1
      %s15 = ssub.s32 %s9, 2
      %s16 = sadd.s32 %s9, 1
      %s17 = ssub.s32 %s9, %s16
      %p18 = scmp.eq.s32.totalorder %s17, 0
      %s20 = sadd.s32 %s19, 1
      %s21 = scalar_select %p18, %s19, %s20
      %p24 = pneg %p18
      %p25 = scmp.eq.s32.totalorder %s9, 1
      %p26 = por %p24, %p25
      %p27 = scmp.ne.s32.totalorder %s19, %s22
      %p28 = scmp.eq.s32.totalorder %s9, 0
      %p29 = por %p27, %p28
      %p30 = scmp.ne.s32.totalorder %s19, %s22
      %p31 = scmp.eq.s32.totalorder %s14, 1
      %p32 = por %p30, %p31
      %p33 = scmp.ne.s32.totalorder %s22, %s23
      %p34 = scmp.eq.s32.totalorder %s14, 0
      %p35 = por %p33, %p34
      %p36 = scmp.ne.s32.totalorder %s22, %s23
      %p37 = scmp.eq.s32.totalorder %s15, 1
      %p38 = por %p36, %p37
      %p40 = scmp.ne.s32.totalorder %s23, %s39
      %p41 = scmp.eq.s32.totalorder %s15, 0
      %p42 = por %p40, %p41
      %s44 = sadd.s32 %s43, 1
      %p47 = scmp.eq.s32.totalorder %s9, 1
      %p48 = scmp.ne.s32.totalorder %s43, %s45
      %p49 = scmp.eq.s32.totalorder %s9, 0
      %p50 = por %p48, %p49
      %p51 = scmp.ne.s32.totalorder %s43, %s45
      %p52 = scmp.eq.s32.totalorder %s14, 1
      %p53 = por %p51, %p52
      %p54 = scmp.ne.s32.totalorder %s45, %s46
      %p55 = scmp.eq.s32.totalorder %s14, 0
      %p56 = por %p54, %p55
      %p57 = scmp.ne.s32.totalorder %s45, %s46
      %p58 = scmp.eq.s32.totalorder %s15, 1
      %p59 = por %p57, %p58
      %p61 = scmp.ne.s32.totalorder %s46, %s60
      %p62 = scmp.eq.s32.totalorder %s15, 0
      %p63 = por %p61, %p62
      %s65 = sadd.s32 %s64, 1
      %p68 = scmp.eq.s32.totalorder %s9, 1
      %p69 = scmp.ne.s32.totalorder %s64, %s66
      %p70 = scmp.eq.s32.totalorder %s9, 0
      %p71 = por %p69, %p70
      %p72 = scmp.ne.s32.totalorder %s64, %s66
      %p73 = scmp.eq.s32.totalorder %s14, 1
      %p74 = por %p72, %p73
      %p75 = scmp.ne.s32.totalorder %s66, %s67
      %p76 = scmp.eq.s32.totalorder %s14, 0
      %p77 = por %p75, %p76
      %p78 = scmp.ne.s32.totalorder %s66, %s67
      %p79 = scmp.eq.s32.totalorder %s15, 1
      %p80 = por %p78, %p79
      %p82 = scmp.ne.s32.totalorder %s67, %s81
      %p83 = scmp.eq.s32.totalorder %s15, 0
      %p84 = por %p82, %p83
      %s85 = ssub.s32 %s9, %s16
      %p86 = scmp.eq.s32.totalorder %s85, 0
      %s88 = sadd.s32 %s87, 1
      %s89 = scalar_select %p86, %s87, %s88
      %p92 = pneg %p86
      %p93 = scmp.eq.s32.totalorder %s9, 1
      %p94 = por %p92, %p93
      %p95 = scmp.ne.s32.totalorder %s87, %s90
      %p96 = scmp.eq.s32.totalorder %s9, 0
      %p97 = por %p95, %p96
      %p98 = scmp.ne.s32.totalorder %s87, %s90
      %p99 = scmp.eq.s32.totalorder %s14, 1
      %p100 = por %p98, %p99
      %p101 = scmp.ne.s32.totalorder %s90, %s91
      %p102 = scmp.eq.s32.totalorder %s14, 0
      %p103 = por %p101, %p102
      %p104 = scmp.ne.s32.totalorder %s90, %s91
      %p105 = scmp.eq.s32.totalorder %s15, 1
      %p106 = por %p104, %p105
      %p108 = scmp.ne.s32.totalorder %s91, %s107
      %p109 = scmp.eq.s32.totalorder %s15, 0
      %p110 = por %p108, %p109
      %p111 = scmp.le.s32.totalorder 1, %s9
      %p112 = scmp.lt.s32.totalorder %s9, 3
      %p113 = pnand %p111, %p112
      %p114 = pneg %p113
      // Predicated region
      $region9: #{vqvae_forward.12} parent=5 // pred_check
        _
      $region10: #{vqvae_forward.12} parent=5 // pred_check_branch
        %116 = sbr.rel (%p113) target = $region12
      $region11: #{vqvae_forward.12} parent=5 // pred_region
        %s117 = ssub.s32 %s9, 1
        // Predicated region
        $region13: #{vqvae_forward.12} parent=11 // pred_check
          %p118 = pneg %p56
        $region14: #{vqvae_forward.12} parent=11 // pred_check_branch
          %120 = sbr.rel (%p118) target = $region16
        $region15: #{vqvae_forward.12} parent=11 // pred_region
          _
        $region16: #{vqvae_forward.12} parent=11 // pred_fallthru
          _
        // Predicated region
        $region17: #{vqvae_forward.12} parent=11 // pred_check
          %p121 = pneg %p77
        $region18: #{vqvae_forward.12} parent=11 // pred_check_branch
          %123 = sbr.rel (%p121) target = $region20
        $region19: #{vqvae_forward.12} parent=11 // pred_region
          _
        $region20: #{vqvae_forward.12} parent=11 // pred_fallthru
          _
      $region12: #{vqvae_forward.12} parent=5 // pred_fallthru
        _
      %p124 = scmp.lt.s32.totalorder %s9, 2
      // Predicated region
      $region21: #{vqvae_forward.12} parent=5 // pred_check
        %p125 = pneg %p124
      $region22: #{vqvae_forward.12} parent=5 // pred_check_branch
        %127 = sbr.rel (%p125) target = $region24
      $region23: #{vqvae_forward.12} parent=5 // pred_region
        // Predicated region
        $region25: #{vqvae_forward.12} parent=23 // pred_check
          %p128 = pneg %p29
        $region26: #{vqvae_forward.12} parent=23 // pred_check_branch
          %130 = sbr.rel (%p128) target = $region28
        $region27: #{vqvae_forward.12} parent=23 // pred_region
          %s131 = smul.u32 7, %s9
          %s132 = ssub.s32 13, %s131
          %p133 = scmp.lt.s32.totalorder %s132, 7
          %s134 = scalar_select %p133, %s132, 7
          %s135 = smul.u32 64, %s134
          %s136 = smul.u32 %s135, 2
          %p137 = scmp.lt.s32.totalorder %s131, 12
          %s138 = scalar_select %p137, %s131, 12
          %s139 = smul.addr %s138, 2
          %s140 = smul.addr %s139, 4
          %s141 = scalar_lea.vmem %s0, %s140
          %s142 = smul.u32 7, %s9
          %s143 = ssub.s32 13, %s142
          %p144 = scmp.lt.s32.totalorder %s143, 7
          %s145 = scalar_select %p144, %s143, 7
          %s146 = smul.u32 64, %s145
          %s147 = smul.u32 %s146, 2
        $region28: #{vqvae_forward.12} parent=23 // pred_fallthru
          _
      $region24: #{vqvae_forward.12} parent=5 // pred_fallthru
        _
      %p148 = scmp.le.s32.totalorder 1, %s9
      %p149 = scmp.lt.s32.totalorder %s9, 3
      %p150 = pnand %p148, %p149
      %p151 = pneg %p150
      // Predicated region
      $region29: #{vqvae_forward.12} parent=5 // pred_check
        _
      $region30: #{vqvae_forward.12} parent=5 // pred_check_branch
        %153 = sbr.rel (%p150) target = $region32
      $region31: #{vqvae_forward.12} parent=5 // pred_region
        %s154 = ssub.s32 %s9, 1
        %s155 = smul.u32 7, %s14
        %s156 = ssub.s32 13, %s155
        %p157 = scmp.lt.s32.totalorder %s156, 7
        %s158 = scalar_select %p157, %s156, 7
        %s159 = smul.u32 64, %s158
        %s160 = smul.u32 %s159, 2
        %p161 = scmp.lt.s32.totalorder %s155, 12
        %s162 = scalar_select %p161, %s155, 12
        %s163 = smul.addr %s162, 2
        %s164 = smul.addr %s163, 4
        %s165 = scalar_lea.vmem %s0, %s164
        %p166 = pneg %p35
        %p167 = pneg %p32
        %p168 = pneg %p56
        %p169 = pneg %p53
        %p170 = pneg %p77
        %p171 = pneg %p74
        %p172 = pneg %p103
        %p173 = pneg %p100
        %s174 = sand.u32 %s90, 1
        %s175 = sand.u32 %s90, 1
        %s176 = smul.addr %s175, 56
        %s177 = scalar_lea.vmem [#allocation2], %s176
        %s178 = smul.u32 7, %s14
        %s179 = ssub.s32 13, %s178
        %p180 = scmp.lt.s32.totalorder %s179, 7
        %s181 = scalar_select %p180, %s179, 7
        %s182 = smul.u32 64, %s181
        %s183 = smul.u32 %s182, 2
        %p184 = scmp.lt.s32.totalorder %s178, 12
        %s185 = scalar_select %p184, %s178, 12
        %s186 = smul.addr %s185, 2
        %s187 = smul.addr %s186, 4
        %s188 = scalar_lea.vmem %s0, %s187
        %s189 = smul.u32 7, %s14
        %s190 = ssub.s32 13, %s189
        %p191 = scmp.lt.s32.totalorder %s190, 7
        %s192 = scalar_select %p191, %s190, 7
        %s193 = smul.u32 64, %s192
        %s194 = smul.u32 %s193, 2
        %s195 = smul.u32 7, %s14
        %s196 = ssub.s32 13, %s195
        %p197 = scmp.lt.s32.totalorder %s196, 7
        %s198 = scalar_select %p197, %s196, 7
        %s199 = smul.u32 128, %s198
        %v201 = vld [vmem:[%s188] sm:$0xff]
        %v202 = vld [vmem:[%s188 + $0x8] sm:$0xff]
        %v203 = vld [vmem:[%s188 + $0x10] sm:$0xff]
        %v204 = vld [vmem:[%s188 + $0x18] sm:$0xff]
        %v205 = vld [vmem:[%s188 + $0x20] sm:$0xff]
        %v206 = vld [vmem:[%s188 + $0x28] sm:$0xff]
        %v207 = vld [vmem:[%s188 + $0x30] sm:$0xff]
        %v208 = vld [vmem:[%s1] sm:$0xf]
        %v209 = vld [vmem:[%s1 + $0x4] sm:$0xf]
        %v210 = vld [vmem:[%s1 + $0x8] sm:$0xf]
        %v211 = vld [vmem:[%s1 + $0xc] sm:$0xf]
        %v212 = vld [vmem:[%s1 + $0x10] sm:$0xf]
        %v213 = vld [vmem:[%s1 + $0x14] sm:$0xf]
        %v214 = vld [vmem:[%s1 + $0x18] sm:$0xf]
        %v215 = vld [vmem:[%s1 + $0x1c] sm:$0xf]
        %v216 = vld [vmem:[%s1 + $0x20] sm:$0xf]
        %v217 = vld [vmem:[%s1 + $0x24] sm:$0xf]
        %v218 = vld [vmem:[%s1 + $0x28] sm:$0xf]
        %v219 = vld [vmem:[%s1 + $0x2c] sm:$0xf]
        %v220 = vld [vmem:[%s1 + $0x30] sm:$0xf]
        %v221 = vld [vmem:[%s1 + $0x34] sm:$0xf]
        %v222 = vld [vmem:[%s1 + $0x38] sm:$0xf]
        %v223 = vld [vmem:[%s1 + $0x3c] sm:$0xf]
        %v224 = vld [vmem:[%s1 + $0x40] sm:$0xf]
        %v225 = vld [vmem:[%s1 + $0x44] sm:$0xf]
        %v226 = vld [vmem:[%s1 + $0x48] sm:$0xf]
        %v227 = vld [vmem:[%s1 + $0x4c] sm:$0xf]
        %v228 = vld [vmem:[%s1 + $0x50] sm:$0xf]
        %v229 = vld [vmem:[%s1 + $0x54] sm:$0xf]
        %v230 = vld [vmem:[%s1 + $0x58] sm:$0xf]
        %v231 = vld [vmem:[%s1 + $0x5c] sm:$0xf]
        %v232 = vld [vmem:[%s1 + $0x60] sm:$0xf]
        %v233 = vld [vmem:[%s1 + $0x64] sm:$0xf]
        %v234 = vld [vmem:[%s1 + $0x68] sm:$0xf]
        %v235 = vld [vmem:[%s1 + $0x6c] sm:$0xf]
        %v236 = vld [vmem:[%s1 + $0x70] sm:$0xf]
        %v237 = vld [vmem:[%s1 + $0x74] sm:$0xf]
        %v238 = vld [vmem:[%s1 + $0x78] sm:$0xf]
        %v239 = vld [vmem:[%s1 + $0x7c] sm:$0xf]
        %v240 = vld [vmem:[%s2] sm:$0x1]
        %v242 = vlaneseq
        %v243 = vshrl.u32 %v242, 7
        %v244 = vsub.s32 0, %v243
        %v245 = vrot.slane %v240, %v244
        %v254 = vunpack.c.l.b16 %v201
        %v255 = vunpack.c.h.b16 %v201
        %v256 = vunpack.c.l.b16 %v202
        %v257 = vunpack.c.h.b16 %v202
        %v258 = vunpack.c.l.b16 %v203
        %v259 = vunpack.c.h.b16 %v203
        %v260 = vunpack.c.l.b16 %v204
        %v261 = vunpack.c.h.b16 %v204
        %v262 = vunpack.c.l.b16 %v205
        %v263 = vunpack.c.h.b16 %v205
        %v264 = vunpack.c.l.b16 %v206
        %v265 = vunpack.c.h.b16 %v206
        %v266 = vunpack.c.l.b16 %v207
        %v267 = vunpack.c.h.b16 %v207
        %v268 = vpack.c.b16 %v256, %v254
        %v269 = vpack.c.b16 %v257, %v255
        %v270 = vpack.c.b16 %v260, %v258
        %v271 = vpack.c.b16 %v261, %v259
        %v272 = vpack.c.b16 %v264, %v262
        %v273 = vpack.c.b16 %v265, %v263
        %v274 = vpack.c.b16 %v266, %v266
        %v275 = vpack.c.b16 %v267, %v267
        %v316 = vunpack.c.l.b16 %v208
        %v317 = vunpack.c.l.b16 %v209
        %v318 = vunpack.c.l.b16 %v210
        %v319 = vunpack.c.l.b16 %v211
        %v320 = vunpack.c.l.b16 %v212
        %v321 = vunpack.c.l.b16 %v213
        %v322 = vunpack.c.l.b16 %v214
        %v323 = vunpack.c.l.b16 %v215
        %v324 = vunpack.c.l.b16 %v216
        %v325 = vunpack.c.l.b16 %v217
        %v326 = vunpack.c.l.b16 %v218
        %v327 = vunpack.c.l.b16 %v219
        %v328 = vunpack.c.l.b16 %v220
        %v329 = vunpack.c.l.b16 %v221
        %v330 = vunpack.c.l.b16 %v222
        %v331 = vunpack.c.l.b16 %v223
        %v332 = vunpack.c.l.b16 %v224
        %v333 = vunpack.c.l.b16 %v225
        %v334 = vunpack.c.l.b16 %v226
        %v335 = vunpack.c.l.b16 %v227
        %v336 = vunpack.c.l.b16 %v228
        %v337 = vunpack.c.l.b16 %v229
        %v338 = vunpack.c.l.b16 %v230
        %v339 = vunpack.c.l.b16 %v231
        %v340 = vunpack.c.l.b16 %v232
        %v341 = vunpack.c.l.b16 %v233
        %v342 = vunpack.c.l.b16 %v234
        %v343 = vunpack.c.l.b16 %v235
        %v344 = vunpack.c.l.b16 %v236
        %v345 = vunpack.c.l.b16 %v237
        %v346 = vunpack.c.l.b16 %v238
        %v347 = vunpack.c.l.b16 %v239
        %v348 = vpack.c.b16 %v317, %v316
        %v349 = vpack.c.b16 %v319, %v318
        %v350 = vpack.c.b16 %v321, %v320
        %v351 = vpack.c.b16 %v323, %v322
        %v352 = vpack.c.b16 %v325, %v324
        %v353 = vpack.c.b16 %v327, %v326
        %v354 = vpack.c.b16 %v329, %v328
        %v355 = vpack.c.b16 %v331, %v330
        %v356 = vpack.c.b16 %v333, %v332
        %v357 = vpack.c.b16 %v335, %v334
        %v358 = vpack.c.b16 %v337, %v336
        %v359 = vpack.c.b16 %v339, %v338
        %v360 = vpack.c.b16 %v341, %v340
        %v361 = vpack.c.b16 %v343, %v342
        %v362 = vpack.c.b16 %v345, %v344
        %v363 = vpack.c.b16 %v347, %v346
        %380 = vmatprep.subr.bf16.mxu0 0
        %381 = vmatpush1.bf16.msra.mxu0 %v355
        %382 = vmatprep.subr.bf16.mxu0 0
        %383 = vmatpush1.bf16.msra.mxu0 %v354
        %384 = vmatprep.subr.bf16.mxu0 0
        %385 = vmatpush1.bf16.msra.mxu0 %v353
        %386 = vmatprep.subr.bf16.mxu0 0
        %387 = vmatpush1.bf16.msra.mxu0 %v352
        %388 = vmatprep.subr.bf16.mxu0 0
        %389 = vmatpush1.bf16.msra.mxu0 %v351
        %390 = vmatprep.subr.bf16.mxu0 0
        %391 = vmatpush1.bf16.msra.mxu0 %v350
        %392 = vmatprep.subr.bf16.mxu0 0
        %393 = vmatpush1.bf16.msra.mxu0 %v349
        %394 = vmatprep.subr.bf16.mxu0 0
        %395 = vmatpush1.bf16.msra.mxu0 %v348
        %396 = vmatprep.subr.bf16.mxu0 0
        %397 = vmatpush2.bf16.msra.mxu0 %v363
        %398 = vmatprep.subr.bf16.mxu0 0
        %399 = vmatpush2.bf16.msra.mxu0 %v362
        %400 = vmatprep.subr.bf16.mxu0 0
        %401 = vmatpush2.bf16.msra.mxu0 %v361
        %402 = vmatprep.subr.bf16.mxu0 0
        %403 = vmatpush2.bf16.msra.mxu0 %v360
        %404 = vmatprep.subr.bf16.mxu0 0
        %405 = vmatpush2.bf16.msra.mxu0 %v359
        %406 = vmatprep.subr.bf16.mxu0 0
        %407 = vmatpush2.bf16.msra.mxu0 %v358
        %408 = vmatprep.subr.bf16.mxu0 0
        %409 = vmatpush2.bf16.msra.mxu0 %v357
        %410 = vmatprep.subr.bf16.mxu0 0
        %411 = vmatpush2.bf16.msra.mxu0 %v356
        %412 = vmatprep.mubr.bf16.mxu0 %v269
        %413 = vmatmul.mubr.bf16.gmra.mxu0 %v268
        %v414 = vpop.f32.mrf.mxu0
        %v415 = vadd.f32 %v245, %v414
        %v416 = vpop.f32.mrf.mxu0
        %v417 = vpop.f32.mrf.mxu0
        %v418 = vadd.f32 %v245, %v417
        %v419 = vpop.f32.mrf.mxu0
        %420 = vmatprep.mubr.bf16.mxu0 %v271
        %421 = vmatmul.mubr.bf16.gmra.mxu0 %v270
        %v422 = vpop.f32.mrf.mxu0
        %v423 = vadd.f32 %v245, %v422
        %v424 = vpop.f32.mrf.mxu0
        %v425 = vpop.f32.mrf.mxu0
        %v426 = vadd.f32 %v245, %v425
        %v427 = vpop.f32.mrf.mxu0
        %428 = vmatprep.mubr.bf16.mxu0 %v273
        %429 = vmatmul.mubr.bf16.gmra.mxu0 %v272
        %v430 = vpop.f32.mrf.mxu0
        %v431 = vadd.f32 %v245, %v430
        %v432 = vpop.f32.mrf.mxu0
        %v433 = vpop.f32.mrf.mxu0
        %v434 = vadd.f32 %v245, %v433
        %v435 = vpop.f32.mrf.mxu0
        %436 = vmatprep.mubr.bf16.mxu0 %v275
        %437 = vmatmul.mubr.bf16.gmra.mxu0 %v274
        %v438 = vpop.f32.mrf.mxu0
        %v439 = vadd.f32 %v245, %v438
        %v440 = vpop.f32.mrf.mxu0
        %v441 = vpop.f32.mrf.mxu0
        %v442 = vpop.f32.mrf.mxu0
        %443 = vdwg.mxu0
        %v444 = vmax.f32 %v415, 0.0
        %v445 = vmax.f32 %v418, 0.0
        %v446 = vmax.f32 %v423, 0.0
        %v447 = vmax.f32 %v426, 0.0
        %v448 = vmax.f32 %v431, 0.0
        %v449 = vmax.f32 %v434, 0.0
        %v450 = vmax.f32 %v439, 0.0
        %vm451 = vcmask 261120
        %452 = vst.msk [vmem:[%s177] sm:$0xff] %vm451, %v444
        %453 = vst.msk [vmem:[%s177 + $0x8] sm:$0xff] %vm451, %v445
        %454 = vst.msk [vmem:[%s177 + $0x10] sm:$0xff] %vm451, %v446
        %455 = vst.msk [vmem:[%s177 + $0x18] sm:$0xff] %vm451, %v447
        %456 = vst.msk [vmem:[%s177 + $0x20] sm:$0xff] %vm451, %v448
        %457 = vst.msk [vmem:[%s177 + $0x28] sm:$0xff] %vm451, %v449
        %458 = vst.msk [vmem:[%s177 + $0x30] sm:$0xff] %vm451, %v450
        %s459 = sand.u32 %s90, 1
        %s460 = sand.u32 %s90, 1
        %s461 = smul.addr %s460, 56
        %s462 = scalar_lea.vmem [#allocation2], %s461
        // Predicated region
        $region33: #{vqvae_forward.12} parent=31 // pred_check
          %p463 = pneg %p100
        $region34: #{vqvae_forward.12} parent=31 // pred_check_branch
          %465 = sbr.rel (%p463) target = $region36
        $region35: #{vqvae_forward.12} parent=31 // pred_region
          %s466 = smul.u32 7, %s14
          %s467 = ssub.s32 13, %s466
          %p468 = scmp.lt.s32.totalorder %s467, 7
          %s469 = scalar_select %p468, %s467, 7
          %s470 = smul.u32 128, %s469
          %p471 = scmp.ne.s32.totalorder 0, %s470
          %s472 = smul.addr %s466, 8
          %s473 = scalar_lea.vmem %s3, %s472
          // Predicated region
          $region37: #{vqvae_forward.12} parent=35 // pred_check
            %p474 = pneg %p471
          $region38: #{vqvae_forward.12} parent=35 // pred_check_branch
            %476 = sbr.rel (%p474) target = $region40
          $region39: #{vqvae_forward.12} parent=35 // pred_region
            // Predicated region
            $region41: #{vqvae_forward.12} parent=39 // pred_check
              _
            $region42: #{vqvae_forward.12} parent=39 // pred_check_branch
              %478 = sbr.rel (0) target = $region44
            $region43: #{vqvae_forward.12} parent=39 // pred_region
              // Predicated region
              $region63: #{vqvae_forward.12} parent=43 // pred_check
                _
              $region64: #{vqvae_forward.12} parent=43 // pred_check_branch
                %541 = sbr.rel (0) target = $region66
              $region65: #{vqvae_forward.12} parent=43 // pred_region
                %s542 = sdiv.u32.pop %s469, 7
                %s543 = srem.u32.pop %s469, 7
                // While loop
                $region67: #{vqvae_forward.12} parent=65 // loop_pre_header
                  _
                $region68: #{vqvae_forward.12} parent=65 // loop_header
                  %s545 = sphi 0, %s547
                  %p546 = scmp.ge.s32.totalorder %s545, %s542
                  %s550 = sphi 0, %s569
                  %s551 = sphi %s462, %s572
                  %s552 = sphi %s473, %s573
                $region69: #{vqvae_forward.12} parent=65 // loop_header_branch
                  %549 = sbr.rel (%p546) target = $region73
                $region70: #{vqvae_forward.12} parent=65 // loop_body
                  %v553 = vld [vmem:[%s551] sm:$0xff]
                  %554 = vst [vmem:[%s552] sm:$0xff] %v553
                  %v555 = vld [vmem:[%s551 + $0x8] sm:$0xff]
                  %556 = vst [vmem:[%s552 + $0x8] sm:$0xff] %v555
                  %v557 = vld [vmem:[%s551 + $0x10] sm:$0xff]
                  %558 = vst [vmem:[%s552 + $0x10] sm:$0xff] %v557
                  %v559 = vld [vmem:[%s551 + $0x18] sm:$0xff]
                  %560 = vst [vmem:[%s552 + $0x18] sm:$0xff] %v559
                  %v561 = vld [vmem:[%s551 + $0x20] sm:$0xff]
                  %562 = vst [vmem:[%s552 + $0x20] sm:$0xff] %v561
                  %v563 = vld [vmem:[%s551 + $0x28] sm:$0xff]
                  %564 = vst [vmem:[%s552 + $0x28] sm:$0xff] %v563
                  %v565 = vld [vmem:[%s551 + $0x30] sm:$0xff]
                  %566 = vst [vmem:[%s552 + $0x30] sm:$0xff] %v565
                  %s567 = sadd.s32 1, %s550
                  %p568 = scmp.ge.s32.totalorder %s567, %s542
                  %s569 = scalar_select %p568, 0, %s567
                  %s570 = smul.u32 %s569, 56
                  %s571 = smul.u32 %s569, 56
                  %s572 = scalar_lea.vmem %s462, %s570 [#allocation2]
                  %s573 = scalar_lea.vmem %s473, %s571
                $region71: #{vqvae_forward.12} parent=65 // loop_footer
                  %s547 = sadd.s32 %s545, 1
                $region72: #{vqvae_forward.12} parent=65 // loop_footer_branch
                  %544 = sbr.rel target = $region68
                $region73: #{vqvae_forward.12} parent=65 // loop_exit
                  _
                %s574 = sdiv.u32.pop %s469, 7
                %s575 = srem.u32.pop %s469, 7
                %s576 = smul.u32 %s574, 7
                %s577 = smul.u32 8, %s576
                %s578 = scalar_lea.vmem %s462, %s577 [#allocation2]
                %s579 = smul.u32 8, %s576
                %s580 = scalar_lea.vmem %s473, %s579
                // While loop
                $region74: #{vqvae_forward.12} parent=65 // loop_pre_header
                  _
                $region75: #{vqvae_forward.12} parent=65 // loop_header
                  %s582 = sphi 0, %s584
                  %p583 = scmp.ge.s32.totalorder %s582, %s575
                  %s587 = sphi 0, %s594
                  %s588 = sphi %s578, %s597
                  %s589 = sphi %s580, %s598
                $region76: #{vqvae_forward.12} parent=65 // loop_header_branch
                  %586 = sbr.rel (%p583) target = $region80
                $region77: #{vqvae_forward.12} parent=65 // loop_body
                  %v590 = vld [vmem:[%s588] sm:$0xff]
                  %591 = vst [vmem:[%s589] sm:$0xff] %v590
                  %s592 = sadd.s32 1, %s587
                  %p593 = scmp.ge.s32.totalorder %s592, %s575
                  %s594 = scalar_select %p593, 0, %s592
                  %s595 = smul.u32 %s594, 8
                  %s596 = smul.u32 %s594, 8
                  %s597 = scalar_lea.vmem %s578, %s595 [#allocation2]
                  %s598 = scalar_lea.vmem %s580, %s596
                $region78: #{vqvae_forward.12} parent=65 // loop_footer
                  %s584 = sadd.s32 %s582, 1
                $region79: #{vqvae_forward.12} parent=65 // loop_footer_branch
                  %581 = sbr.rel target = $region75
                $region80: #{vqvae_forward.12} parent=65 // loop_exit
                  _
              $region66: #{vqvae_forward.12} parent=43 // pred_fallthru
                _
              // Predicated region
              $region81: #{vqvae_forward.12} parent=43 // pred_check
                _
              $region82: #{vqvae_forward.12} parent=43 // pred_check_branch
                %600 = sbr.rel target = $region84
              $region83: #{vqvae_forward.12} parent=43 // pred_region
                _
              $region84: #{vqvae_forward.12} parent=43 // pred_fallthru
                _
            $region44: #{vqvae_forward.12} parent=39 // pred_fallthru
              _
            // Predicated region
            $region45: #{vqvae_forward.12} parent=39 // pred_check
              _
            $region46: #{vqvae_forward.12} parent=39 // pred_check_branch
              %480 = sbr.rel target = $region48
            $region47: #{vqvae_forward.12} parent=39 // pred_region
              %s482 = ssub.s32 256, 1
              %s483 = sdiv.u32.pop %s469, 7
              %s484 = srem.u32.pop %s469, 7
              // While loop
              $region49: #{vqvae_forward.12} parent=47 // loop_pre_header
                _
              $region50: #{vqvae_forward.12} parent=47 // loop_header
                %s486 = sphi 0, %s488
                %p487 = scmp.ge.s32.totalorder %s486, %s483
                %s491 = sphi 0, %s510
                %s492 = sphi %s462, %s513
                %s493 = sphi %s473, %s514
              $region51: #{vqvae_forward.12} parent=47 // loop_header_branch
                %490 = sbr.rel (%p487) target = $region55
              $region52: #{vqvae_forward.12} parent=47 // loop_body
                %v494 = vld [vmem:[%s492] sm:%s482]
                %495 = vst [vmem:[%s493] sm:%s482] %v494
                %v496 = vld [vmem:[%s492 + $0x8] sm:%s482]
                %497 = vst [vmem:[%s493 + $0x8] sm:%s482] %v496
                %v498 = vld [vmem:[%s492 + $0x10] sm:%s482]
                %499 = vst [vmem:[%s493 + $0x10] sm:%s482] %v498
                %v500 = vld [vmem:[%s492 + $0x18] sm:%s482]
                %501 = vst [vmem:[%s493 + $0x18] sm:%s482] %v500
                %v502 = vld [vmem:[%s492 + $0x20] sm:%s482]
                %503 = vst [vmem:[%s493 + $0x20] sm:%s482] %v502
                %v504 = vld [vmem:[%s492 + $0x28] sm:%s482]
                %505 = vst [vmem:[%s493 + $0x28] sm:%s482] %v504
                %v506 = vld [vmem:[%s492 + $0x30] sm:%s482]
                %507 = vst [vmem:[%s493 + $0x30] sm:%s482] %v506
                %s508 = sadd.s32 1, %s491
                %p509 = scmp.ge.s32.totalorder %s508, %s483
                %s510 = scalar_select %p509, 0, %s508
                %s511 = smul.u32 %s510, 56
                %s512 = smul.u32 %s510, 56
                %s513 = scalar_lea.vmem %s462, %s511 [#allocation2]
                %s514 = scalar_lea.vmem %s473, %s512
              $region53: #{vqvae_forward.12} parent=47 // loop_footer
                %s488 = sadd.s32 %s486, 1
              $region54: #{vqvae_forward.12} parent=47 // loop_footer_branch
                %485 = sbr.rel target = $region50
              $region55: #{vqvae_forward.12} parent=47 // loop_exit
                _
              %s515 = sdiv.u32.pop %s469, 7
              %s516 = srem.u32.pop %s469, 7
              %s517 = smul.u32 %s515, 7
              %s518 = smul.u32 8, %s517
              %s519 = scalar_lea.vmem %s462, %s518 [#allocation2]
              %s520 = smul.u32 8, %s517
              %s521 = scalar_lea.vmem %s473, %s520
              // While loop
              $region56: #{vqvae_forward.12} parent=47 // loop_pre_header
                _
              $region57: #{vqvae_forward.12} parent=47 // loop_header
                %s523 = sphi 0, %s525
                %p524 = scmp.ge.s32.totalorder %s523, %s516
                %s528 = sphi 0, %s535
                %s529 = sphi %s519, %s538
                %s530 = sphi %s521, %s539
              $region58: #{vqvae_forward.12} parent=47 // loop_header_branch
                %527 = sbr.rel (%p524) target = $region62
              $region59: #{vqvae_forward.12} parent=47 // loop_body
                %v531 = vld [vmem:[%s529] sm:%s482]
                %532 = vst [vmem:[%s530] sm:%s482] %v531
                %s533 = sadd.s32 1, %s528
                %p534 = scmp.ge.s32.totalorder %s533, %s516
                %s535 = scalar_select %p534, 0, %s533
                %s536 = smul.u32 %s535, 8
                %s537 = smul.u32 %s535, 8
                %s538 = scalar_lea.vmem %s519, %s536 [#allocation2]
                %s539 = scalar_lea.vmem %s521, %s537
              $region60: #{vqvae_forward.12} parent=47 // loop_footer
                %s525 = sadd.s32 %s523, 1
              $region61: #{vqvae_forward.12} parent=47 // loop_footer_branch
                %522 = sbr.rel target = $region57
              $region62: #{vqvae_forward.12} parent=47 // loop_exit
                _
            $region48: #{vqvae_forward.12} parent=39 // pred_fallthru
              _
          $region40: #{vqvae_forward.12} parent=35 // pred_fallthru
            _
          %601 = vnop
        $region36: #{vqvae_forward.12} parent=31 // pred_fallthru
          _
      $region32: #{vqvae_forward.12} parent=5 // pred_fallthru
        _
      %p602 = scmp.le.s32.totalorder 2, %s9
      // Predicated region
      $region85: #{vqvae_forward.12} parent=5 // pred_check
        %p603 = pneg %p602
      $region86: #{vqvae_forward.12} parent=5 // pred_check_branch
        %605 = sbr.rel (%p603) target = $region88
      $region87: #{vqvae_forward.12} parent=5 // pred_region
        %s606 = ssub.s32 %s9, 2
        // Predicated region
        $region89: #{vqvae_forward.12} parent=87 // pred_check
          %p607 = pneg %p106
        $region90: #{vqvae_forward.12} parent=87 // pred_check_branch
          %609 = sbr.rel (%p607) target = $region92
        $region91: #{vqvae_forward.12} parent=87 // pred_region
          %s610 = sand.u32 %s91, 1
          %s611 = sand.u32 %s91, 1
          %s612 = smul.addr %s611, 56
          %s613 = scalar_lea.vmem [#allocation2], %s612
        $region92: #{vqvae_forward.12} parent=87 // pred_fallthru
          _
      $region88: #{vqvae_forward.12} parent=5 // pred_fallthru
        _
    $region6: #{vqvae_forward.12} parent=1 // loop_footer
      %s13 = sadd.s32 1, %s9
    $region7: #{vqvae_forward.12} parent=1 // loop_footer_branch
      %8 = sbr.rel target = $region3
    $region8: #{vqvae_forward.12} parent=1 // loop_exit
      _

// kernel: vqvae_forward.13
$region0: #{vqvae_forward.13}
  #allocation0 [shape = 'u32[]', space=smem, size = 0x4, offset = 0x4, fixed_abs, tag = 'smem constant byte address 0x4 - core index']
  #allocation1 [shape = 'u32[144,128]{1,0:T(1,128)}', space=vmem, size = 0x12000, scoped, tag = 'internal scratch']
  %s0 = inlined_call_operand.vmem [shape: bf16[98,288], index: 0, kind: input, shape index: {}]
  %s1 = inlined_call_operand.vmem [shape: bf16[288,32], index: 1, kind: input, shape index: {}]
  %s2 = inlined_call_operand.vmem [shape: f32[1,32], index: 2, kind: input, shape index: {}]
  %s3 = inlined_call_operand.vmem [shape: f32[98,32], index: 3, kind: output, shape index: {}]
  %s4 = sld [smem:[#allocation0]]
  $region93: #{vqvae_forward.13} parent=0
    _
  %s6 = ssub.s32 1, %s4
  %s7 = scalar_select 0, %s6, %s4
  $region1: #{vqvae_forward.13} parent=0
    #allocation2 [shape = 'u8[57344]{0}', space=vmem, size = 0xe000, scoped, tag = 'output window, operand 0']
    loop: start=0, step=1, limit=4
    $region2: #{vqvae_forward.13} parent=1 // loop_pre_header
      _
    $region3: #{vqvae_forward.13} parent=1 // loop_header
      %s9 = sphi 0, %s13
      %p10 = scmp.ge.s32.totalorder %s9, 4
      %s19 = sphi 0, %s21
      %s22 = sphi 0, %s19
      %s23 = sphi 0, %s22
      %s39 = sphi 0, %s23
      %s43 = sphi 0, %s43
      %s45 = sphi 0, %s43
      %s46 = sphi 0, %s45
      %s60 = sphi 0, %s46
      %s64 = sphi 0, %s64
      %s66 = sphi 0, %s64
      %s67 = sphi 0, %s66
      %s81 = sphi 0, %s67
      %s87 = sphi 0, %s89
      %s90 = sphi 0, %s87
      %s91 = sphi 0, %s90
      %s107 = sphi 0, %s91
    $region4: #{vqvae_forward.13} parent=1 // loop_header_branch
      %12 = sbr.rel (%p10) target = $region8
    $region5: #{vqvae_forward.13} parent=1 // loop_body
      %s14 = ssub.s32 %s9, 1
      %s15 = ssub.s32 %s9, 2
      %s16 = sadd.s32 %s9, 1
      %s17 = ssub.s32 %s9, %s16
      %p18 = scmp.eq.s32.totalorder %s17, 0
      %s20 = sadd.s32 %s19, 1
      %s21 = scalar_select %p18, %s19, %s20
      %p24 = pneg %p18
      %p25 = scmp.eq.s32.totalorder %s9, 1
      %p26 = por %p24, %p25
      %p27 = scmp.ne.s32.totalorder %s19, %s22
      %p28 = scmp.eq.s32.totalorder %s9, 0
      %p29 = por %p27, %p28
      %p30 = scmp.ne.s32.totalorder %s19, %s22
      %p31 = scmp.eq.s32.totalorder %s14, 1
      %p32 = por %p30, %p31
      %p33 = scmp.ne.s32.totalorder %s22, %s23
      %p34 = scmp.eq.s32.totalorder %s14, 0
      %p35 = por %p33, %p34
      %p36 = scmp.ne.s32.totalorder %s22, %s23
      %p37 = scmp.eq.s32.totalorder %s15, 1
      %p38 = por %p36, %p37
      %p40 = scmp.ne.s32.totalorder %s23, %s39
      %p41 = scmp.eq.s32.totalorder %s15, 0
      %p42 = por %p40, %p41
      %s44 = sadd.s32 %s43, 1
      %p47 = scmp.eq.s32.totalorder %s9, 1
      %p48 = scmp.ne.s32.totalorder %s43, %s45
      %p49 = scmp.eq.s32.totalorder %s9, 0
      %p50 = por %p48, %p49
      %p51 = scmp.ne.s32.totalorder %s43, %s45
      %p52 = scmp.eq.s32.totalorder %s14, 1
      %p53 = por %p51, %p52
      %p54 = scmp.ne.s32.totalorder %s45, %s46
      %p55 = scmp.eq.s32.totalorder %s14, 0
      %p56 = por %p54, %p55
      %p57 = scmp.ne.s32.totalorder %s45, %s46
      %p58 = scmp.eq.s32.totalorder %s15, 1
      %p59 = por %p57, %p58
      %p61 = scmp.ne.s32.totalorder %s46, %s60
      %p62 = scmp.eq.s32.totalorder %s15, 0
      %p63 = por %p61, %p62
      %s65 = sadd.s32 %s64, 1
      %p68 = scmp.eq.s32.totalorder %s9, 1
      %p69 = scmp.ne.s32.totalorder %s64, %s66
      %p70 = scmp.eq.s32.totalorder %s9, 0
      %p71 = por %p69, %p70
      %p72 = scmp.ne.s32.totalorder %s64, %s66
      %p73 = scmp.eq.s32.totalorder %s14, 1
      %p74 = por %p72, %p73
      %p75 = scmp.ne.s32.totalorder %s66, %s67
      %p76 = scmp.eq.s32.totalorder %s14, 0
      %p77 = por %p75, %p76
      %p78 = scmp.ne.s32.totalorder %s66, %s67
      %p79 = scmp.eq.s32.totalorder %s15, 1
      %p80 = por %p78, %p79
      %p82 = scmp.ne.s32.totalorder %s67, %s81
      %p83 = scmp.eq.s32.totalorder %s15, 0
      %p84 = por %p82, %p83
      %s85 = ssub.s32 %s9, %s16
      %p86 = scmp.eq.s32.totalorder %s85, 0
      %s88 = sadd.s32 %s87, 1
      %s89 = scalar_select %p86, %s87, %s88
      %p92 = pneg %p86
      %p93 = scmp.eq.s32.totalorder %s9, 1
      %p94 = por %p92, %p93
      %p95 = scmp.ne.s32.totalorder %s87, %s90
      %p96 = scmp.eq.s32.totalorder %s9, 0
      %p97 = por %p95, %p96
      %p98 = scmp.ne.s32.totalorder %s87, %s90
      %p99 = scmp.eq.s32.totalorder %s14, 1
      %p100 = por %p98, %p99
      %p101 = scmp.ne.s32.totalorder %s90, %s91
      %p102 = scmp.eq.s32.totalorder %s14, 0
      %p103 = por %p101, %p102
      %p104 = scmp.ne.s32.totalorder %s90, %s91
      %p105 = scmp.eq.s32.totalorder %s15, 1
      %p106 = por %p104, %p105
      %p108 = scmp.ne.s32.totalorder %s91, %s107
      %p109 = scmp.eq.s32.totalorder %s15, 0
      %p110 = por %p108, %p109
      %p111 = scmp.le.s32.totalorder 1, %s9
      %p112 = scmp.lt.s32.totalorder %s9, 3
      %p113 = pnand %p111, %p112
      %p114 = pneg %p113
      // Predicated region
      $region9: #{vqvae_forward.13} parent=5 // pred_check
        _
      $region10: #{vqvae_forward.13} parent=5 // pred_check_branch
        %116 = sbr.rel (%p113) target = $region12
      $region11: #{vqvae_forward.13} parent=5 // pred_region
        %s117 = ssub.s32 %s9, 1
        // Predicated region
        $region13: #{vqvae_forward.13} parent=11 // pred_check
          %p118 = pneg %p56
        $region14: #{vqvae_forward.13} parent=11 // pred_check_branch
          %120 = sbr.rel (%p118) target = $region16
        $region15: #{vqvae_forward.13} parent=11 // pred_region
          _
        $region16: #{vqvae_forward.13} parent=11 // pred_fallthru
          _
        // Predicated region
        $region17: #{vqvae_forward.13} parent=11 // pred_check
          %p121 = pneg %p77
        $region18: #{vqvae_forward.13} parent=11 // pred_check_branch
          %123 = sbr.rel (%p121) target = $region20
        $region19: #{vqvae_forward.13} parent=11 // pred_region
          _
        $region20: #{vqvae_forward.13} parent=11 // pred_fallthru
          _
      $region12: #{vqvae_forward.13} parent=5 // pred_fallthru
        _
      %p124 = scmp.lt.s32.totalorder %s9, 2
      // Predicated region
      $region21: #{vqvae_forward.13} parent=5 // pred_check
        %p125 = pneg %p124
      $region22: #{vqvae_forward.13} parent=5 // pred_check_branch
        %127 = sbr.rel (%p125) target = $region24
      $region23: #{vqvae_forward.13} parent=5 // pred_region
        // Predicated region
        $region25: #{vqvae_forward.13} parent=23 // pred_check
          %p128 = pneg %p29
        $region26: #{vqvae_forward.13} parent=23 // pred_check_branch
          %130 = sbr.rel (%p128) target = $region28
        $region27: #{vqvae_forward.13} parent=23 // pred_region
          %s131 = smul.u32 7, %s9
          %s132 = ssub.s32 13, %s131
          %p133 = scmp.lt.s32.totalorder %s132, 7
          %s134 = scalar_select %p133, %s132, 7
          %s135 = smul.u32 64, %s134
          %s136 = smul.u32 %s135, 3
          %p137 = scmp.lt.s32.totalorder %s131, 12
          %s138 = scalar_select %p137, %s131, 12
          %s139 = smul.addr %s138, 3
          %s140 = smul.addr %s139, 4
          %s141 = scalar_lea.vmem %s0, %s140
          %s142 = smul.u32 7, %s9
          %s143 = ssub.s32 13, %s142
          %p144 = scmp.lt.s32.totalorder %s143, 7
          %s145 = scalar_select %p144, %s143, 7
          %s146 = smul.u32 64, %s145
          %s147 = smul.u32 %s146, 3
        $region28: #{vqvae_forward.13} parent=23 // pred_fallthru
          _
      $region24: #{vqvae_forward.13} parent=5 // pred_fallthru
        _
      %p148 = scmp.le.s32.totalorder 1, %s9
      %p149 = scmp.lt.s32.totalorder %s9, 3
      %p150 = pnand %p148, %p149
      %p151 = pneg %p150
      // Predicated region
      $region29: #{vqvae_forward.13} parent=5 // pred_check
        _
      $region30: #{vqvae_forward.13} parent=5 // pred_check_branch
        %153 = sbr.rel (%p150) target = $region32
      $region31: #{vqvae_forward.13} parent=5 // pred_region
        %s154 = ssub.s32 %s9, 1
        %s155 = smul.u32 7, %s14
        %s156 = ssub.s32 13, %s155
        %p157 = scmp.lt.s32.totalorder %s156, 7
        %s158 = scalar_select %p157, %s156, 7
        %s159 = smul.u32 64, %s158
        %s160 = smul.u32 %s159, 3
        %p161 = scmp.lt.s32.totalorder %s155, 12
        %s162 = scalar_select %p161, %s155, 12
        %s163 = smul.addr %s162, 3
        %s164 = smul.addr %s163, 4
        %s165 = scalar_lea.vmem %s0, %s164
        %p166 = pneg %p35
        %p167 = pneg %p32
        %p168 = pneg %p56
        %p169 = pneg %p53
        %p170 = pneg %p77
        %p171 = pneg %p74
        %p172 = pneg %p103
        %p173 = pneg %p100
        %s174 = sand.u32 %s90, 1
        %s175 = sand.u32 %s90, 1
        %s176 = smul.addr %s175, 56
        %s177 = scalar_lea.vmem [#allocation2], %s176
        %s178 = smul.u32 7, %s14
        %s179 = ssub.s32 13, %s178
        %p180 = scmp.lt.s32.totalorder %s179, 7
        %s181 = scalar_select %p180, %s179, 7
        %s182 = smul.u32 64, %s181
        %s183 = smul.u32 %s182, 3
        %p184 = scmp.lt.s32.totalorder %s178, 12
        %s185 = scalar_select %p184, %s178, 12
        %s186 = smul.addr %s185, 3
        %s187 = smul.addr %s186, 4
        %s188 = scalar_lea.vmem %s0, %s187
        %s189 = smul.u32 7, %s14
        %s190 = ssub.s32 13, %s189
        %p191 = scmp.lt.s32.totalorder %s190, 7
        %s192 = scalar_select %p191, %s190, 7
        %s193 = smul.u32 64, %s192
        %s194 = smul.u32 %s193, 3
        %s195 = smul.u32 7, %s14
        %s196 = ssub.s32 13, %s195
        %p197 = scmp.lt.s32.totalorder %s196, 7
        %s198 = scalar_select %p197, %s196, 7
        %s199 = smul.u32 128, %s198
        %v201 = vld [vmem:[%s188] sm:$0xff]
        %v202 = vld [vmem:[%s188 + $0x8] sm:$0xf]
        %v203 = vld [vmem:[%s188 + $0xc] sm:$0xff]
        %v204 = vld [vmem:[%s188 + $0x14] sm:$0xf]
        %v205 = vld [vmem:[%s188 + $0x18] sm:$0xff]
        %v206 = vld [vmem:[%s188 + $0x20] sm:$0xf]
        %v207 = vld [vmem:[%s188 + $0x24] sm:$0xff]
        %v208 = vld [vmem:[%s188 + $0x2c] sm:$0xf]
        %v209 = vld [vmem:[%s188 + $0x30] sm:$0xff]
        %v210 = vld [vmem:[%s188 + $0x38] sm:$0xf]
        %v211 = vld [vmem:[%s188 + $0x3c] sm:$0xff]
        %v212 = vld [vmem:[%s188 + $0x44] sm:$0xf]
        %v213 = vld [vmem:[%s188 + $0x48] sm:$0xff]
        %v214 = vld [vmem:[%s188 + $0x50] sm:$0xf]
        %v215 = vld [vmem:[%s1] sm:$0xf]
        %v216 = vld [vmem:[%s1 + $0x4] sm:$0xf]
        %v217 = vld [vmem:[%s1 + $0x8] sm:$0xf]
        %v218 = vld [vmem:[%s1 + $0xc] sm:$0xf]
        %v219 = vld [vmem:[%s1 + $0x10] sm:$0xf]
        %v220 = vld [vmem:[%s1 + $0x14] sm:$0xf]
        %v221 = vld [vmem:[%s1 + $0x18] sm:$0xf]
        %v222 = vld [vmem:[%s1 + $0x1c] sm:$0xf]
        %v223 = vld [vmem:[%s1 + $0x20] sm:$0xf]
        %v224 = vld [vmem:[%s1 + $0x24] sm:$0xf]
        %v225 = vld [vmem:[%s1 + $0x28] sm:$0xf]
        %v226 = vld [vmem:[%s1 + $0x2c] sm:$0xf]
        %v227 = vld [vmem:[%s1 + $0x30] sm:$0xf]
        %v228 = vld [vmem:[%s1 + $0x34] sm:$0xf]
        %v229 = vld [vmem:[%s1 + $0x38] sm:$0xf]
        %v230 = vld [vmem:[%s1 + $0x3c] sm:$0xf]
        %v231 = vld [vmem:[%s1 + $0x40] sm:$0xf]
        %v232 = vld [vmem:[%s1 + $0x44] sm:$0xf]
        %v233 = vld [vmem:[%s1 + $0x48] sm:$0xf]
        %v234 = vld [vmem:[%s1 + $0x4c] sm:$0xf]
        %v235 = vld [vmem:[%s1 + $0x50] sm:$0xf]
        %v236 = vld [vmem:[%s1 + $0x54] sm:$0xf]
        %v237 = vld [vmem:[%s1 + $0x58] sm:$0xf]
        %v238 = vld [vmem:[%s1 + $0x5c] sm:$0xf]
        %v239 = vld [vmem:[%s1 + $0x60] sm:$0xf]
        %v240 = vld [vmem:[%s1 + $0x64] sm:$0xf]
        %v241 = vld [vmem:[%s1 + $0x68] sm:$0xf]
        %v242 = vld [vmem:[%s1 + $0x6c] sm:$0xf]
        %v243 = vld [vmem:[%s1 + $0x70] sm:$0xf]
        %v244 = vld [vmem:[%s1 + $0x74] sm:$0xf]
        %v245 = vld [vmem:[%s1 + $0x78] sm:$0xf]
        %v246 = vld [vmem:[%s1 + $0x7c] sm:$0xf]
        %v247 = vld [vmem:[%s1 + $0x80] sm:$0xf]
        %v248 = vld [vmem:[%s1 + $0x84] sm:$0xf]
        %v249 = vld [vmem:[%s1 + $0x88] sm:$0xf]
        %v250 = vld [vmem:[%s1 + $0x8c] sm:$0xf]
        %v251 = vld [vmem:[%s2] sm:$0x1]
        %v253 = vlaneseq
        %v254 = vshrl.u32 %v253, 7
        %v255 = vsub.s32 0, %v254
        %v256 = vrot.slane %v251, %v255
        %v272 = vunpack.c.l.b16 %v201
        %v273 = vunpack.c.h.b16 %v201
        %v274 = vunpack.c.l.b16 %v202
        %v275 = vunpack.c.l.b16 %v203
        %v276 = vunpack.c.h.b16 %v203
        %v277 = vunpack.c.l.b16 %v204
        %v278 = vunpack.c.l.b16 %v205
        %v279 = vunpack.c.h.b16 %v205
        %v280 = vunpack.c.l.b16 %v206
        %v281 = vunpack.c.l.b16 %v207
        %v282 = vunpack.c.h.b16 %v207
        %v283 = vunpack.c.l.b16 %v208
        %v284 = vunpack.c.l.b16 %v209
        %v285 = vunpack.c.h.b16 %v209
        %v286 = vunpack.c.l.b16 %v210
        %v287 = vunpack.c.l.b16 %v211
        %v288 = vunpack.c.h.b16 %v211
        %v289 = vunpack.c.l.b16 %v212
        %v290 = vunpack.c.l.b16 %v213
        %v291 = vunpack.c.h.b16 %v213
        %v292 = vunpack.c.l.b16 %v214
        %v293 = vpack.c.b16 %v275, %v272
        %v294 = vpack.c.b16 %v276, %v273
        %v295 = vpack.c.b16 %v277, %v274
        %v296 = vpack.c.b16 %v281, %v278
        %v297 = vpack.c.b16 %v282, %v279
        %v298 = vpack.c.b16 %v283, %v280
        %v299 = vpack.c.b16 %v287, %v284
        %v300 = vpack.c.b16 %v288, %v285
        %v301 = vpack.c.b16 %v289, %v286
        %v302 = vpack.c.b16 %v290, %v290
        %v303 = vpack.c.b16 %v291, %v291
        %v304 = vpack.c.b16 %v292, %v292
        %v349 = vunpack.c.l.b16 %v215
        %v350 = vunpack.c.l.b16 %v216
        %v351 = vunpack.c.l.b16 %v217
        %v352 = vunpack.c.l.b16 %v218
        %v353 = vunpack.c.l.b16 %v219
        %v354 = vunpack.c.l.b16 %v220
        %v355 = vunpack.c.l.b16 %v221
        %v356 = vunpack.c.l.b16 %v222
        %v357 = vunpack.c.l.b16 %v223
        %v358 = vunpack.c.l.b16 %v224
        %v359 = vunpack.c.l.b16 %v225
        %v360 = vunpack.c.l.b16 %v226
        %v361 = vunpack.c.l.b16 %v227
        %v362 = vunpack.c.l.b16 %v228
        %v363 = vunpack.c.l.b16 %v229
        %v364 = vunpack.c.l.b16 %v230
        %v365 = vunpack.c.l.b16 %v231
        %v366 = vunpack.c.l.b16 %v232
        %v367 = vunpack.c.l.b16 %v233
        %v368 = vunpack.c.l.b16 %v234
        %v369 = vunpack.c.l.b16 %v235
        %v370 = vunpack.c.l.b16 %v236
        %v371 = vunpack.c.l.b16 %v237
        %v372 = vunpack.c.l.b16 %v238
        %v373 = vunpack.c.l.b16 %v239
        %v374 = vunpack.c.l.b16 %v240
        %v375 = vunpack.c.l.b16 %v241
        %v376 = vunpack.c.l.b16 %v242
        %v377 = vunpack.c.l.b16 %v243
        %v378 = vunpack.c.l.b16 %v244
        %v379 = vunpack.c.l.b16 %v245
        %v380 = vunpack.c.l.b16 %v246
        %v381 = vunpack.c.l.b16 %v247
        %v382 = vunpack.c.l.b16 %v248
        %v383 = vunpack.c.l.b16 %v249
        %v384 = vunpack.c.l.b16 %v250
        %v385 = vpack.c.b16 %v350, %v349
        %v386 = vpack.c.b16 %v352, %v351
        %v387 = vpack.c.b16 %v354, %v353
        %v388 = vpack.c.b16 %v356, %v355
        %v389 = vpack.c.b16 %v358, %v357
        %v390 = vpack.c.b16 %v360, %v359
        %v391 = vpack.c.b16 %v362, %v361
        %v392 = vpack.c.b16 %v364, %v363
        %v393 = vpack.c.b16 %v366, %v365
        %v394 = vpack.c.b16 %v368, %v367
        %v395 = vpack.c.b16 %v370, %v369
        %v396 = vpack.c.b16 %v372, %v371
        %v397 = vpack.c.b16 %v374, %v373
        %v398 = vpack.c.b16 %v376, %v375
        %v399 = vpack.c.b16 %v378, %v377
        %v400 = vpack.c.b16 %v380, %v379
        %v401 = vpack.c.b16 %v382, %v381
        %v402 = vpack.c.b16 %v384, %v383
        %vm421 = vcmask 261120
        %v423 = vsel %vm421, %v295, 0
        %v426 = vsel %vm421, %v298, 0
        %v429 = vsel %vm421, %v301, 0
        %v432 = vsel %vm421, %v304, 0
        %434 = vmatprep.subr.bf16.mxu0 0
        %435 = vmatpush1.bf16.msra.mxu0 %v392
        %436 = vmatprep.subr.bf16.mxu0 0
        %437 = vmatpush1.bf16.msra.mxu0 %v391
        %438 = vmatprep.subr.bf16.mxu0 0
        %439 = vmatpush1.bf16.msra.mxu0 %v390
        %440 = vmatprep.subr.bf16.mxu0 0
        %441 = vmatpush1.bf16.msra.mxu0 %v389
        %442 = vmatprep.subr.bf16.mxu0 0
        %443 = vmatpush1.bf16.msra.mxu0 %v388
        %444 = vmatprep.subr.bf16.mxu0 0
        %445 = vmatpush1.bf16.msra.mxu0 %v387
        %446 = vmatprep.subr.bf16.mxu0 0
        %447 = vmatpush1.bf16.msra.mxu0 %v386
        %448 = vmatprep.subr.bf16.mxu0 0
        %449 = vmatpush1.bf16.msra.mxu0 %v385
        %450 = vmatprep.subr.bf16.mxu0 0
        %451 = vmatpush2.bf16.msra.mxu0 %v400
        %452 = vmatprep.subr.bf16.mxu0 0
        %453 = vmatpush2.bf16.msra.mxu0 %v399
        %454 = vmatprep.subr.bf16.mxu0 0
        %455 = vmatpush2.bf16.msra.mxu0 %v398
        %456 = vmatprep.subr.bf16.mxu0 0
        %457 = vmatpush2.bf16.msra.mxu0 %v397
        %458 = vmatprep.subr.bf16.mxu0 0
        %459 = vmatpush2.bf16.msra.mxu0 %v396
        %460 = vmatprep.subr.bf16.mxu0 0
        %461 = vmatpush2.bf16.msra.mxu0 %v395
        %462 = vmatprep.subr.bf16.mxu0 0
        %463 = vmatpush2.bf16.msra.mxu0 %v394
        %464 = vmatprep.subr.bf16.mxu0 0
        %465 = vmatpush2.bf16.msra.mxu0 %v393
        %466 = vmatprep.mubr.bf16.mxu0 %v294
        %467 = vmatmul.mubr.bf16.gmra.mxu0 %v293
        %v468 = vpop.f32.mrf.mxu0
        %v469 = vadd.f32 %v256, %v468
        %v470 = vpop.f32.mrf.mxu0
        %v471 = vpop.f32.mrf.mxu0
        %v472 = vadd.f32 %v256, %v471
        %v473 = vpop.f32.mrf.mxu0
        %474 = vmatprep.mubr.bf16.mxu0 %v297
        %475 = vmatmul.mubr.bf16.gmra.mxu0 %v296
        %v476 = vpop.f32.mrf.mxu0
        %v477 = vadd.f32 %v256, %v476
        %v478 = vpop.f32.mrf.mxu0
        %v479 = vpop.f32.mrf.mxu0
        %v480 = vadd.f32 %v256, %v479
        %v481 = vpop.f32.mrf.mxu0
        %482 = vmatprep.mubr.bf16.mxu0 %v300
        %483 = vmatmul.mubr.bf16.gmra.mxu0 %v299
        %v484 = vpop.f32.mrf.mxu0
        %v485 = vadd.f32 %v256, %v484
        %v486 = vpop.f32.mrf.mxu0
        %v487 = vpop.f32.mrf.mxu0
        %v488 = vadd.f32 %v256, %v487
        %v489 = vpop.f32.mrf.mxu0
        %490 = vmatprep.mubr.bf16.mxu0 %v303
        %491 = vmatmul.mubr.bf16.gmra.mxu0 %v302
        %v492 = vpop.f32.mrf.mxu0
        %v493 = vadd.f32 %v256, %v492
        %v494 = vpop.f32.mrf.mxu0
        %v495 = vpop.f32.mrf.mxu0
        %v496 = vpop.f32.mrf.mxu0
        %497 = vdwg.mxu0
        %498 = vmatprep.subr.bf16.mxu0 0
        %499 = vmatpush1.bf16.msra.mxu0 0
        %500 = vmatprep.subr.bf16.mxu0 0
        %501 = vmatpush1.bf16.msra.mxu0 0
        %502 = vmatprep.subr.bf16.mxu0 0
        %503 = vmatpush1.bf16.msra.mxu0 0
        %504 = vmatprep.subr.bf16.mxu0 0
        %505 = vmatpush1.bf16.msra.mxu0 0
        %506 = vmatprep.subr.bf16.mxu0 0
        %507 = vmatpush1.bf16.msra.mxu0 0
        %508 = vmatprep.subr.bf16.mxu0 0
        %509 = vmatpush1.bf16.msra.mxu0 0
        %510 = vmatprep.subr.bf16.mxu0 0
        %511 = vmatpush1.bf16.msra.mxu0 %v402
        %512 = vmatprep.subr.bf16.mxu0 0
        %513 = vmatpush1.bf16.msra.mxu0 %v401
        %514 = vmatprep.subr.bf16.mxu0 0
        %515 = vmatpush2.bf16.msra.mxu0 0
        %516 = vmatprep.subr.bf16.mxu0 0
        %517 = vmatpush2.bf16.msra.mxu0 0
        %518 = vmatprep.subr.bf16.mxu0 0
        %519 = vmatpush2.bf16.msra.mxu0 0
        %520 = vmatprep.subr.bf16.mxu0 0
        %521 = vmatpush2.bf16.msra.mxu0 0
        %522 = vmatprep.subr.bf16.mxu0 0
        %523 = vmatpush2.bf16.msra.mxu0 0
        %524 = vmatprep.subr.bf16.mxu0 0
        %525 = vmatpush2.bf16.msra.mxu0 0
        %526 = vmatprep.subr.bf16.mxu0 0
        %527 = vmatpush2.bf16.msra.mxu0 0
        %528 = vmatprep.subr.bf16.mxu0 0
        %529 = vmatpush2.bf16.msra.mxu0 0
        %530 = vmatprep.mubr.bf16.mxu0 0
        %531 = vmatmul.mubr.bf16.gmra.mxu0 %v423
        %v532 = vpop.f32.mrf.mxu0
        %v533 = vadd.f32 %v469, %v532
        %v534 = vpop.f32.mrf.mxu0
        %v535 = vpop.f32.mrf.mxu0
        %v536 = vadd.f32 %v472, %v535
        %v537 = vpop.f32.mrf.mxu0
        %538 = vmatprep.mubr.bf16.mxu0 0
        %539 = vmatmul.mubr.bf16.gmra.mxu0 %v426
        %v540 = vpop.f32.mrf.mxu0
        %v541 = vadd.f32 %v477, %v540
        %v542 = vpop.f32.mrf.mxu0
        %v543 = vpop.f32.mrf.mxu0
        %v544 = vadd.f32 %v480, %v543
        %v545 = vpop.f32.mrf.mxu0
        %546 = vmatprep.mubr.bf16.mxu0 0
        %547 = vmatmul.mubr.bf16.gmra.mxu0 %v429
        %v548 = vpop.f32.mrf.mxu0
        %v549 = vadd.f32 %v485, %v548
        %v550 = vpop.f32.mrf.mxu0
        %v551 = vpop.f32.mrf.mxu0
        %v552 = vadd.f32 %v488, %v551
        %v553 = vpop.f32.mrf.mxu0
        %554 = vmatprep.mubr.bf16.mxu0 0
        %555 = vmatmul.mubr.bf16.gmra.mxu0 %v432
        %v556 = vpop.f32.mrf.mxu0
        %v557 = vadd.f32 %v493, %v556
        %v558 = vpop.f32.mrf.mxu0
        %v559 = vpop.f32.mrf.mxu0
        %v560 = vpop.f32.mrf.mxu0
        %561 = vdwg.mxu0
        %562 = vst.msk [vmem:[%s177] sm:$0xff] %vm421, %v533
        %563 = vst.msk [vmem:[%s177 + $0x8] sm:$0xff] %vm421, %v536
        %564 = vst.msk [vmem:[%s177 + $0x10] sm:$0xff] %vm421, %v541
        %565 = vst.msk [vmem:[%s177 + $0x18] sm:$0xff] %vm421, %v544
        %566 = vst.msk [vmem:[%s177 + $0x20] sm:$0xff] %vm421, %v549
        %567 = vst.msk [vmem:[%s177 + $0x28] sm:$0xff] %vm421, %v552
        %568 = vst.msk [vmem:[%s177 + $0x30] sm:$0xff] %vm421, %v557
        %s569 = sand.u32 %s90, 1
        %s570 = sand.u32 %s90, 1
        %s571 = smul.addr %s570, 56
        %s572 = scalar_lea.vmem [#allocation2], %s571
        // Predicated region
        $region33: #{vqvae_forward.13} parent=31 // pred_check
          %p573 = pneg %p100
        $region34: #{vqvae_forward.13} parent=31 // pred_check_branch
          %575 = sbr.rel (%p573) target = $region36
        $region35: #{vqvae_forward.13} parent=31 // pred_region
          %s576 = smul.u32 7, %s14
          %s577 = ssub.s32 13, %s576
          %p578 = scmp.lt.s32.totalorder %s577, 7
          %s579 = scalar_select %p578, %s577, 7
          %s580 = smul.u32 128, %s579
          %p581 = scmp.ne.s32.totalorder 0, %s580
          %s582 = smul.addr %s576, 8
          %s583 = scalar_lea.vmem %s3, %s582
          // Predicated region
          $region37: #{vqvae_forward.13} parent=35 // pred_check
            %p584 = pneg %p581
          $region38: #{vqvae_forward.13} parent=35 // pred_check_branch
            %586 = sbr.rel (%p584) target = $region40
          $region39: #{vqvae_forward.13} parent=35 // pred_region
            // Predicated region
            $region41: #{vqvae_forward.13} parent=39 // pred_check
              _
            $region42: #{vqvae_forward.13} parent=39 // pred_check_branch
              %588 = sbr.rel (0) target = $region44
            $region43: #{vqvae_forward.13} parent=39 // pred_region
              // Predicated region
              $region63: #{vqvae_forward.13} parent=43 // pred_check
                _
              $region64: #{vqvae_forward.13} parent=43 // pred_check_branch
                %651 = sbr.rel (0) target = $region66
              $region65: #{vqvae_forward.13} parent=43 // pred_region
                %s652 = sdiv.u32.pop %s579, 7
                %s653 = srem.u32.pop %s579, 7
                // While loop
                $region67: #{vqvae_forward.13} parent=65 // loop_pre_header
                  _
                $region68: #{vqvae_forward.13} parent=65 // loop_header
                  %s655 = sphi 0, %s657
                  %p656 = scmp.ge.s32.totalorder %s655, %s652
                  %s660 = sphi 0, %s679
                  %s661 = sphi %s572, %s682
                  %s662 = sphi %s583, %s683
                $region69: #{vqvae_forward.13} parent=65 // loop_header_branch
                  %659 = sbr.rel (%p656) target = $region73
                $region70: #{vqvae_forward.13} parent=65 // loop_body
                  %v663 = vld [vmem:[%s661] sm:$0xff]
                  %664 = vst [vmem:[%s662] sm:$0xff] %v663
                  %v665 = vld [vmem:[%s661 + $0x8] sm:$0xff]
                  %666 = vst [vmem:[%s662 + $0x8] sm:$0xff] %v665
                  %v667 = vld [vmem:[%s661 + $0x10] sm:$0xff]
                  %668 = vst [vmem:[%s662 + $0x10] sm:$0xff] %v667
                  %v669 = vld [vmem:[%s661 + $0x18] sm:$0xff]
                  %670 = vst [vmem:[%s662 + $0x18] sm:$0xff] %v669
                  %v671 = vld [vmem:[%s661 + $0x20] sm:$0xff]
                  %672 = vst [vmem:[%s662 + $0x20] sm:$0xff] %v671
                  %v673 = vld [vmem:[%s661 + $0x28] sm:$0xff]
                  %674 = vst [vmem:[%s662 + $0x28] sm:$0xff] %v673
                  %v675 = vld [vmem:[%s661 + $0x30] sm:$0xff]
                  %676 = vst [vmem:[%s662 + $0x30] sm:$0xff] %v675
                  %s677 = sadd.s32 1, %s660
                  %p678 = scmp.ge.s32.totalorder %s677, %s652
                  %s679 = scalar_select %p678, 0, %s677
                  %s680 = smul.u32 %s679, 56
                  %s681 = smul.u32 %s679, 56
                  %s682 = scalar_lea.vmem %s572, %s680 [#allocation2]
                  %s683 = scalar_lea.vmem %s583, %s681
                $region71: #{vqvae_forward.13} parent=65 // loop_footer
                  %s657 = sadd.s32 %s655, 1
                $region72: #{vqvae_forward.13} parent=65 // loop_footer_branch
                  %654 = sbr.rel target = $region68
                $region73: #{vqvae_forward.13} parent=65 // loop_exit
                  _
                %s684 = sdiv.u32.pop %s579, 7
                %s685 = srem.u32.pop %s579, 7
                %s686 = smul.u32 %s684, 7
                %s687 = smul.u32 8, %s686
                %s688 = scalar_lea.vmem %s572, %s687 [#allocation2]
                %s689 = smul.u32 8, %s686
                %s690 = scalar_lea.vmem %s583, %s689
                // While loop
                $region74: #{vqvae_forward.13} parent=65 // loop_pre_header
                  _
                $region75: #{vqvae_forward.13} parent=65 // loop_header
                  %s692 = sphi 0, %s694
                  %p693 = scmp.ge.s32.totalorder %s692, %s685
                  %s697 = sphi 0, %s704
                  %s698 = sphi %s688, %s707
                  %s699 = sphi %s690, %s708
                $region76: #{vqvae_forward.13} parent=65 // loop_header_branch
                  %696 = sbr.rel (%p693) target = $region80
                $region77: #{vqvae_forward.13} parent=65 // loop_body
                  %v700 = vld [vmem:[%s698] sm:$0xff]
                  %701 = vst [vmem:[%s699] sm:$0xff] %v700
                  %s702 = sadd.s32 1, %s697
                  %p703 = scmp.ge.s32.totalorder %s702, %s685
                  %s704 = scalar_select %p703, 0, %s702
                  %s705 = smul.u32 %s704, 8
                  %s706 = smul.u32 %s704, 8
                  %s707 = scalar_lea.vmem %s688, %s705 [#allocation2]
                  %s708 = scalar_lea.vmem %s690, %s706
                $region78: #{vqvae_forward.13} parent=65 // loop_footer
                  %s694 = sadd.s32 %s692, 1
                $region79: #{vqvae_forward.13} parent=65 // loop_footer_branch
                  %691 = sbr.rel target = $region75
                $region80: #{vqvae_forward.13} parent=65 // loop_exit
                  _
              $region66: #{vqvae_forward.13} parent=43 // pred_fallthru
                _
              // Predicated region
              $region81: #{vqvae_forward.13} parent=43 // pred_check
                _
              $region82: #{vqvae_forward.13} parent=43 // pred_check_branch
                %710 = sbr.rel target = $region84
              $region83: #{vqvae_forward.13} parent=43 // pred_region
                _
              $region84: #{vqvae_forward.13} parent=43 // pred_fallthru
                _
            $region44: #{vqvae_forward.13} parent=39 // pred_fallthru
              _
            // Predicated region
            $region45: #{vqvae_forward.13} parent=39 // pred_check
              _
            $region46: #{vqvae_forward.13} parent=39 // pred_check_branch
              %590 = sbr.rel target = $region48
            $region47: #{vqvae_forward.13} parent=39 // pred_region
              %s592 = ssub.s32 256, 1
              %s593 = sdiv.u32.pop %s579, 7
              %s594 = srem.u32.pop %s579, 7
              // While loop
              $region49: #{vqvae_forward.13} parent=47 // loop_pre_header
                _
              $region50: #{vqvae_forward.13} parent=47 // loop_header
                %s596 = sphi 0, %s598
                %p597 = scmp.ge.s32.totalorder %s596, %s593
                %s601 = sphi 0, %s620
                %s602 = sphi %s572, %s623
                %s603 = sphi %s583, %s624
              $region51: #{vqvae_forward.13} parent=47 // loop_header_branch
                %600 = sbr.rel (%p597) target = $region55
              $region52: #{vqvae_forward.13} parent=47 // loop_body
                %v604 = vld [vmem:[%s602] sm:%s592]
                %605 = vst [vmem:[%s603] sm:%s592] %v604
                %v606 = vld [vmem:[%s602 + $0x8] sm:%s592]
                %607 = vst [vmem:[%s603 + $0x8] sm:%s592] %v606
                %v608 = vld [vmem:[%s602 + $0x10] sm:%s592]
                %609 = vst [vmem:[%s603 + $0x10] sm:%s592] %v608
                %v610 = vld [vmem:[%s602 + $0x18] sm:%s592]
                %611 = vst [vmem:[%s603 + $0x18] sm:%s592] %v610
                %v612 = vld [vmem:[%s602 + $0x20] sm:%s592]
                %613 = vst [vmem:[%s603 + $0x20] sm:%s592] %v612
                %v614 = vld [vmem:[%s602 + $0x28] sm:%s592]
                %615 = vst [vmem:[%s603 + $0x28] sm:%s592] %v614
                %v616 = vld [vmem:[%s602 + $0x30] sm:%s592]
                %617 = vst [vmem:[%s603 + $0x30] sm:%s592] %v616
                %s618 = sadd.s32 1, %s601
                %p619 = scmp.ge.s32.totalorder %s618, %s593
                %s620 = scalar_select %p619, 0, %s618
                %s621 = smul.u32 %s620, 56
                %s622 = smul.u32 %s620, 56
                %s623 = scalar_lea.vmem %s572, %s621 [#allocation2]
                %s624 = scalar_lea.vmem %s583, %s622
              $region53: #{vqvae_forward.13} parent=47 // loop_footer
                %s598 = sadd.s32 %s596, 1
              $region54: #{vqvae_forward.13} parent=47 // loop_footer_branch
                %595 = sbr.rel target = $region50
              $region55: #{vqvae_forward.13} parent=47 // loop_exit
                _
              %s625 = sdiv.u32.pop %s579, 7
              %s626 = srem.u32.pop %s579, 7
              %s627 = smul.u32 %s625, 7
              %s628 = smul.u32 8, %s627
              %s629 = scalar_lea.vmem %s572, %s628 [#allocation2]
              %s630 = smul.u32 8, %s627
              %s631 = scalar_lea.vmem %s583, %s630
              // While loop
              $region56: #{vqvae_forward.13} parent=47 // loop_pre_header
                _
              $region57: #{vqvae_forward.13} parent=47 // loop_header
                %s633 = sphi 0, %s635
                %p634 = scmp.ge.s32.totalorder %s633, %s626
                %s638 = sphi 0, %s645
                %s639 = sphi %s629, %s648
                %s640 = sphi %s631, %s649
              $region58: #{vqvae_forward.13} parent=47 // loop_header_branch
                %637 = sbr.rel (%p634) target = $region62
              $region59: #{vqvae_forward.13} parent=47 // loop_body
                %v641 = vld [vmem:[%s639] sm:%s592]
                %642 = vst [vmem:[%s640] sm:%s592] %v641
                %s643 = sadd.s32 1, %s638
                %p644 = scmp.ge.s32.totalorder %s643, %s626
                %s645 = scalar_select %p644, 0, %s643
                %s646 = smul.u32 %s645, 8
                %s647 = smul.u32 %s645, 8
                %s648 = scalar_lea.vmem %s629, %s646 [#allocation2]
                %s649 = scalar_lea.vmem %s631, %s647
              $region60: #{vqvae_forward.13} parent=47 // loop_footer
                %s635 = sadd.s32 %s633, 1
              $region61: #{vqvae_forward.13} parent=47 // loop_footer_branch
                %632 = sbr.rel target = $region57
              $region62: #{vqvae_forward.13} parent=47 // loop_exit
                _
            $region48: #{vqvae_forward.13} parent=39 // pred_fallthru
              _
          $region40: #{vqvae_forward.13} parent=35 // pred_fallthru
            _
          %711 = vnop
        $region36: #{vqvae_forward.13} parent=31 // pred_fallthru
          _
      $region32: #{vqvae_forward.13} parent=5 // pred_fallthru
        _
      %p712 = scmp.le.s32.totalorder 2, %s9
      // Predicated region
      $region85: #{vqvae_forward.13} parent=5 // pred_check
        %p713 = pneg %p712
      $region86: #{vqvae_forward.13} parent=5 // pred_check_branch
        %715 = sbr.rel (%p713) target = $region88
      $region87: #{vqvae_forward.13} parent=5 // pred_region
        %s716 = ssub.s32 %s9, 2
        // Predicated region
        $region89: #{vqvae_forward.13} parent=87 // pred_check
          %p717 = pneg %p106
        $region90: #{vqvae_forward.13} parent=87 // pred_check_branch
          %719 = sbr.rel (%p717) target = $region92
        $region91: #{vqvae_forward.13} parent=87 // pred_region
          %s720 = sand.u32 %s91, 1
          %s721 = sand.u32 %s91, 1
          %s722 = smul.addr %s721, 56
          %s723 = scalar_lea.vmem [#allocation2], %s722
        $region92: #{vqvae_forward.13} parent=87 // pred_fallthru
          _
      $region88: #{vqvae_forward.13} parent=5 // pred_fallthru
        _
    $region6: #{vqvae_forward.13} parent=1 // loop_footer
      %s13 = sadd.s32 1, %s9
    $region7: #{vqvae_forward.13} parent=1 // loop_footer_branch
      %8 = sbr.rel target = $region3
    $region8: #{vqvae_forward.13} parent=1 // loop_exit
      _

// kernel: vqvae_forward.14
$region0: #{vqvae_forward.14}
  #allocation0 [shape = 'u32[]', space=smem, size = 0x4, offset = 0x4, fixed_abs, tag = 'smem constant byte address 0x4 - core index']
  #allocation1 [shape = 'u32[144,128]{1,0:T(1,128)}', space=vmem, size = 0x12000, scoped, tag = 'internal scratch']
  %s0 = inlined_call_operand.vmem [shape: bf16[98,288], index: 0, kind: input, shape index: {}]
  %s1 = inlined_call_operand.vmem [shape: f32[98,32], index: 1, kind: input, shape index: {}]
  %s2 = inlined_call_operand.vmem [shape: bf16[288,8], index: 2, kind: input, shape index: {}]
  %s3 = inlined_call_operand.vmem [shape: bf16[8,32], index: 3, kind: input, shape index: {}]
  %s4 = inlined_call_operand.vmem [shape: f32[98,32], index: 4, kind: output, shape index: {}]
  %s5 = sld [smem:[#allocation0]]
  $region97: #{vqvae_forward.14} parent=0
    _
  %s7 = ssub.s32 1, %s5
  %s8 = scalar_select 0, %s7, %s5
  $region1: #{vqvae_forward.14} parent=0
    #allocation2 [shape = 'u8[57344]{0}', space=vmem, size = 0xe000, scoped, tag = 'output window, operand 0']
    loop: start=0, step=1, limit=4
    $region2: #{vqvae_forward.14} parent=1 // loop_pre_header
      _
    $region3: #{vqvae_forward.14} parent=1 // loop_header
      %s10 = sphi 0, %s14
      %p11 = scmp.ge.s32.totalorder %s10, 4
      %s20 = sphi 0, %s22
      %s23 = sphi 0, %s20
      %s24 = sphi 0, %s23
      %s40 = sphi 0, %s24
      %s46 = sphi 0, %s48
      %s49 = sphi 0, %s46
      %s50 = sphi 0, %s49
      %s66 = sphi 0, %s50
      %s70 = sphi 0, %s70
      %s72 = sphi 0, %s70
      %s73 = sphi 0, %s72
      %s87 = sphi 0, %s73
      %s91 = sphi 0, %s91
      %s93 = sphi 0, %s91
      %s94 = sphi 0, %s93
      %s108 = sphi 0, %s94
      %s114 = sphi 0, %s116
      %s117 = sphi 0, %s114
      %s118 = sphi 0, %s117
      %s134 = sphi 0, %s118
    $region4: #{vqvae_forward.14} parent=1 // loop_header_branch
      %13 = sbr.rel (%p11) target = $region8
    $region5: #{vqvae_forward.14} parent=1 // loop_body
      %s15 = ssub.s32 %s10, 1
      %s16 = ssub.s32 %s10, 2
      %s17 = sadd.s32 %s10, 1
      %s18 = ssub.s32 %s10, %s17
      %p19 = scmp.eq.s32.totalorder %s18, 0
      %s21 = sadd.s32 %s20, 1
      %s22 = scalar_select %p19, %s20, %s21
      %p25 = pneg %p19
      %p26 = scmp.eq.s32.totalorder %s10, 1
      %p27 = por %p25, %p26
      %p28 = scmp.ne.s32.totalorder %s20, %s23
      %p29 = scmp.eq.s32.totalorder %s10, 0
      %p30 = por %p28, %p29
      %p31 = scmp.ne.s32.totalorder %s20, %s23
      %p32 = scmp.eq.s32.totalorder %s15, 1
      %p33 = por %p31, %p32
      %p34 = scmp.ne.s32.totalorder %s23, %s24
      %p35 = scmp.eq.s32.totalorder %s15, 0
      %p36 = por %p34, %p35
      %p37 = scmp.ne.s32.totalorder %s23, %s24
      %p38 = scmp.eq.s32.totalorder %s16, 1
      %p39 = por %p37, %p38
      %p41 = scmp.ne.s32.totalorder %s24, %s40
      %p42 = scmp.eq.s32.totalorder %s16, 0
      %p43 = por %p41, %p42
      %s44 = ssub.s32 %s10, %s17
      %p45 = scmp.eq.s32.totalorder %s44, 0
      %s47 = sadd.s32 %s46, 1
      %s48 = scalar_select %p45, %s46, %s47
      %p51 = pneg %p45
      %p52 = scmp.eq.s32.totalorder %s10, 1
      %p53 = por %p51, %p52
      %p54 = scmp.ne.s32.totalorder %s46, %s49
      %p55 = scmp.eq.s32.totalorder %s10, 0
      %p56 = por %p54, %p55
      %p57 = scmp.ne.s32.totalorder %s46, %s49
      %p58 = scmp.eq.s32.totalorder %s15, 1
      %p59 = por %p57, %p58
      %p60 = scmp.ne.s32.totalorder %s49, %s50
      %p61 = scmp.eq.s32.totalorder %s15, 0
      %p62 = por %p60, %p61
      %p63 = scmp.ne.s32.totalorder %s49, %s50
      %p64 = scmp.eq.s32.totalorder %s16, 1
      %p65 = por %p63, %p64
      %p67 = scmp.ne.s32.totalorder %s50, %s66
      %p68 = scmp.eq.s32.totalorder %s16, 0
      %p69 = por %p67, %p68
      %s71 = sadd.s32 %s70, 1
      %p74 = scmp.eq.s32.totalorder %s10, 1
      %p75 = scmp.ne.s32.totalorder %s70, %s72
      %p76 = scmp.eq.s32.totalorder %s10, 0
      %p77 = por %p75, %p76
      %p78 = scmp.ne.s32.totalorder %s70, %s72
      %p79 = scmp.eq.s32.totalorder %s15, 1
      %p80 = por %p78, %p79
      %p81 = scmp.ne.s32.totalorder %s72, %s73
      %p82 = scmp.eq.s32.totalorder %s15, 0
      %p83 = por %p81, %p82
      %p84 = scmp.ne.s32.totalorder %s72, %s73
      %p85 = scmp.eq.s32.totalorder %s16, 1
      %p86 = por %p84, %p85
      %p88 = scmp.ne.s32.totalorder %s73, %s87
      %p89 = scmp.eq.s32.totalorder %s16, 0
      %p90 = por %p88, %p89
      %s92 = sadd.s32 %s91, 1
      %p95 = scmp.eq.s32.totalorder %s10, 1
      %p96 = scmp.ne.s32.totalorder %s91, %s93
      %p97 = scmp.eq.s32.totalorder %s10, 0
      %p98 = por %p96, %p97
      %p99 = scmp.ne.s32.totalorder %s91, %s93
      %p100 = scmp.eq.s32.totalorder %s15, 1
      %p101 = por %p99, %p100
      %p102 = scmp.ne.s32.totalorder %s93, %s94
      %p103 = scmp.eq.s32.totalorder %s15, 0
      %p104 = por %p102, %p103
      %p105 = scmp.ne.s32.totalorder %s93, %s94
      %p106 = scmp.eq.s32.totalorder %s16, 1
      %p107 = por %p105, %p106
      %p109 = scmp.ne.s32.totalorder %s94, %s108
      %p110 = scmp.eq.s32.totalorder %s16, 0
      %p111 = por %p109, %p110
      %s112 = ssub.s32 %s10, %s17
      %p113 = scmp.eq.s32.totalorder %s112, 0
      %s115 = sadd.s32 %s114, 1
      %s116 = scalar_select %p113, %s114, %s115
      %p119 = pneg %p113
      %p120 = scmp.eq.s32.totalorder %s10, 1
      %p121 = por %p119, %p120
      %p122 = scmp.ne.s32.totalorder %s114, %s117
      %p123 = scmp.eq.s32.totalorder %s10, 0
      %p124 = por %p122, %p123
      %p125 = scmp.ne.s32.totalorder %s114, %s117
      %p126 = scmp.eq.s32.totalorder %s15, 1
      %p127 = por %p125, %p126
      %p128 = scmp.ne.s32.totalorder %s117, %s118
      %p129 = scmp.eq.s32.totalorder %s15, 0
      %p130 = por %p128, %p129
      %p131 = scmp.ne.s32.totalorder %s117, %s118
      %p132 = scmp.eq.s32.totalorder %s16, 1
      %p133 = por %p131, %p132
      %p135 = scmp.ne.s32.totalorder %s118, %s134
      %p136 = scmp.eq.s32.totalorder %s16, 0
      %p137 = por %p135, %p136
      %p138 = scmp.le.s32.totalorder 1, %s10
      %p139 = scmp.lt.s32.totalorder %s10, 3
      %p140 = pnand %p138, %p139
      %p141 = pneg %p140
      // Predicated region
      $region9: #{vqvae_forward.14} parent=5 // pred_check
        _
      $region10: #{vqvae_forward.14} parent=5 // pred_check_branch
        %143 = sbr.rel (%p140) target = $region12
      $region11: #{vqvae_forward.14} parent=5 // pred_region
        %s144 = ssub.s32 %s10, 1
        // Predicated region
        $region13: #{vqvae_forward.14} parent=11 // pred_check
          %p145 = pneg %p83
        $region14: #{vqvae_forward.14} parent=11 // pred_check_branch
          %147 = sbr.rel (%p145) target = $region16
        $region15: #{vqvae_forward.14} parent=11 // pred_region
          _
        $region16: #{vqvae_forward.14} parent=11 // pred_fallthru
          _
        // Predicated region
        $region17: #{vqvae_forward.14} parent=11 // pred_check
          %p148 = pneg %p104
        $region18: #{vqvae_forward.14} parent=11 // pred_check_branch
          %150 = sbr.rel (%p148) target = $region20
        $region19: #{vqvae_forward.14} parent=11 // pred_region
          _
        $region20: #{vqvae_forward.14} parent=11 // pred_fallthru
          _
      $region12: #{vqvae_forward.14} parent=5 // pred_fallthru
        _
      %p151 = scmp.lt.s32.totalorder %s10, 2
      // Predicated region
      $region21: #{vqvae_forward.14} parent=5 // pred_check
        %p152 = pneg %p151
      $region22: #{vqvae_forward.14} parent=5 // pred_check_branch
        %154 = sbr.rel (%p152) target = $region24
      $region23: #{vqvae_forward.14} parent=5 // pred_region
        // Predicated region
        $region25: #{vqvae_forward.14} parent=23 // pred_check
          %p155 = pneg %p30
        $region26: #{vqvae_forward.14} parent=23 // pred_check_branch
          %157 = sbr.rel (%p155) target = $region28
        $region27: #{vqvae_forward.14} parent=23 // pred_region
          %s158 = smul.u32 7, %s10
          %s159 = ssub.s32 13, %s158
          %p160 = scmp.lt.s32.totalorder %s159, 7
          %s161 = scalar_select %p160, %s159, 7
          %s162 = smul.u32 64, %s161
          %s163 = smul.u32 %s162, 3
          %p164 = scmp.lt.s32.totalorder %s158, 12
          %s165 = scalar_select %p164, %s158, 12
          %s166 = smul.addr %s165, 3
          %s167 = smul.addr %s166, 4
          %s168 = scalar_lea.vmem %s0, %s167
          %s169 = smul.u32 7, %s10
          %s170 = ssub.s32 13, %s169
          %p171 = scmp.lt.s32.totalorder %s170, 7
          %s172 = scalar_select %p171, %s170, 7
          %s173 = smul.u32 64, %s172
          %s174 = smul.u32 %s173, 3
        $region28: #{vqvae_forward.14} parent=23 // pred_fallthru
          _
        // Predicated region
        $region29: #{vqvae_forward.14} parent=23 // pred_check
          %p175 = pneg %p56
        $region30: #{vqvae_forward.14} parent=23 // pred_check_branch
          %177 = sbr.rel (%p175) target = $region32
        $region31: #{vqvae_forward.14} parent=23 // pred_region
          %s178 = smul.u32 7, %s10
          %s179 = ssub.s32 13, %s178
          %p180 = scmp.lt.s32.totalorder %s179, 7
          %s181 = scalar_select %p180, %s179, 7
          %s182 = smul.u32 128, %s181
          %p183 = scmp.lt.s32.totalorder %s178, 12
          %s184 = scalar_select %p183, %s178, 12
          %s185 = smul.addr %s184, 8
          %s186 = scalar_lea.vmem %s1, %s185
          %s187 = smul.u32 7, %s10
          %s188 = ssub.s32 13, %s187
          %p189 = scmp.lt.s32.totalorder %s188, 7
          %s190 = scalar_select %p189, %s188, 7
          %s191 = smul.u32 128, %s190
        $region32: #{vqvae_forward.14} parent=23 // pred_fallthru
          _
      $region24: #{vqvae_forward.14} parent=5 // pred_fallthru
        _
      %p192 = scmp.le.s32.totalorder 1, %s10
      %p193 = scmp.lt.s32.totalorder %s10, 3
      %p194 = pnand %p192, %p193
      %p195 = pneg %p194
      // Predicated region
      $region33: #{vqvae_forward.14} parent=5 // pred_check
        _
      $region34: #{vqvae_forward.14} parent=5 // pred_check_branch
        %197 = sbr.rel (%p194) target = $region36
      $region35: #{vqvae_forward.14} parent=5 // pred_region
        %s198 = ssub.s32 %s10, 1
        %s199 = smul.u32 7, %s15
        %s200 = ssub.s32 13, %s199
        %p201 = scmp.lt.s32.totalorder %s200, 7
        %s202 = scalar_select %p201, %s200, 7
        %s203 = smul.u32 64, %s202
        %s204 = smul.u32 %s203, 3
        %p205 = scmp.lt.s32.totalorder %s199, 12
        %s206 = scalar_select %p205, %s199, 12
        %s207 = smul.addr %s206, 3
        %s208 = smul.addr %s207, 4
        %s209 = scalar_lea.vmem %s0, %s208
        %p210 = pneg %p36
        %p211 = pneg %p33
        %s212 = smul.u32 7, %s15
        %s213 = ssub.s32 13, %s212
        %p214 = scmp.lt.s32.totalorder %s213, 7
        %s215 = scalar_select %p214, %s213, 7
        %s216 = smul.u32 128, %s215
        %p217 = scmp.lt.s32.totalorder %s212, 12
        %s218 = scalar_select %p217, %s212, 12
        %s219 = smul.addr %s218, 8
        %s220 = scalar_lea.vmem %s1, %s219
        %p221 = pneg %p62
        %p222 = pneg %p59
        %p223 = pneg %p83
        %p224 = pneg %p80
        %p225 = pneg %p104
        %p226 = pneg %p101
        %p227 = pneg %p130
        %p228 = pneg %p127
        %s229 = sand.u32 %s117, 1
        %s230 = sand.u32 %s117, 1
        %s231 = smul.addr %s230, 56
        %s232 = scalar_lea.vmem [#allocation2], %s231
        %s233 = smul.u32 7, %s15
        %s234 = ssub.s32 13, %s233
        %p235 = scmp.lt.s32.totalorder %s234, 7
        %s236 = scalar_select %p235, %s234, 7
        %s237 = smul.u32 64, %s236
        %s238 = smul.u32 %s237, 3
        %p239 = scmp.lt.s32.totalorder %s233, 12
        %s240 = scalar_select %p239, %s233, 12
        %s241 = smul.addr %s240, 3
        %s242 = smul.addr %s241, 4
        %s243 = scalar_lea.vmem %s0, %s242
        %s244 = smul.u32 7, %s15
        %s245 = ssub.s32 13, %s244
        %p246 = scmp.lt.s32.totalorder %s245, 7
        %s247 = scalar_select %p246, %s245, 7
        %s248 = smul.u32 64, %s247
        %s249 = smul.u32 %s248, 3
        %s250 = smul.u32 7, %s15
        %s251 = ssub.s32 13, %s250
        %p252 = scmp.lt.s32.totalorder %s251, 7
        %s253 = scalar_select %p252, %s251, 7
        %s254 = smul.u32 128, %s253
        %p255 = scmp.lt.s32.totalorder %s250, 12
        %s256 = scalar_select %p255, %s250, 12
        %s257 = smul.addr %s256, 8
        %s258 = scalar_lea.vmem %s1, %s257
        %s259 = smul.u32 7, %s15
        %s260 = ssub.s32 13, %s259
        %p261 = scmp.lt.s32.totalorder %s260, 7
        %s262 = scalar_select %p261, %s260, 7
        %s263 = smul.u32 128, %s262
        %s264 = smul.u32 7, %s15
        %s265 = ssub.s32 13, %s264
        %p266 = scmp.lt.s32.totalorder %s265, 7
        %s267 = scalar_select %p266, %s265, 7
        %s268 = smul.u32 128, %s267
        %v270 = vld [vmem:[%s243] sm:$0xff]
        %v271 = vld [vmem:[%s243 + $0x8] sm:$0xf]
        %v272 = vld [vmem:[%s243 + $0xc] sm:$0xff]
        %v273 = vld [vmem:[%s243 + $0x14] sm:$0xf]
        %v274 = vld [vmem:[%s243 + $0x18] sm:$0xff]
        %v275 = vld [vmem:[%s243 + $0x20] sm:$0xf]
        %v276 = vld [vmem:[%s243 + $0x24] sm:$0xff]
        %v277 = vld [vmem:[%s243 + $0x2c] sm:$0xf]
        %v278 = vld [vmem:[%s243 + $0x30] sm:$0xff]
        %v279 = vld [vmem:[%s243 + $0x38] sm:$0xf]
        %v280 = vld [vmem:[%s243 + $0x3c] sm:$0xff]
        %v281 = vld [vmem:[%s243 + $0x44] sm:$0xf]
        %v282 = vld [vmem:[%s243 + $0x48] sm:$0xff]
        %v283 = vld [vmem:[%s243 + $0x50] sm:$0xf]
        %v284 = vld [vmem:[%s2] sm:$0xf]
        %v285 = vld [vmem:[%s2 + $0x4] sm:$0xf]
        %v286 = vld [vmem:[%s2 + $0x8] sm:$0xf]
        %v287 = vld [vmem:[%s2 + $0xc] sm:$0xf]
        %v288 = vld [vmem:[%s2 + $0x10] sm:$0xf]
        %v289 = vld [vmem:[%s2 + $0x14] sm:$0xf]
        %v290 = vld [vmem:[%s2 + $0x18] sm:$0xf]
        %v291 = vld [vmem:[%s2 + $0x1c] sm:$0xf]
        %v292 = vld [vmem:[%s2 + $0x20] sm:$0xf]
        %v293 = vld [vmem:[%s2 + $0x24] sm:$0xf]
        %v294 = vld [vmem:[%s2 + $0x28] sm:$0xf]
        %v295 = vld [vmem:[%s2 + $0x2c] sm:$0xf]
        %v296 = vld [vmem:[%s2 + $0x30] sm:$0xf]
        %v297 = vld [vmem:[%s2 + $0x34] sm:$0xf]
        %v298 = vld [vmem:[%s2 + $0x38] sm:$0xf]
        %v299 = vld [vmem:[%s2 + $0x3c] sm:$0xf]
        %v300 = vld [vmem:[%s2 + $0x40] sm:$0xf]
        %v301 = vld [vmem:[%s2 + $0x44] sm:$0xf]
        %v302 = vld [vmem:[%s2 + $0x48] sm:$0xf]
        %v303 = vld [vmem:[%s2 + $0x4c] sm:$0xf]
        %v304 = vld [vmem:[%s2 + $0x50] sm:$0xf]
        %v305 = vld [vmem:[%s2 + $0x54] sm:$0xf]
        %v306 = vld [vmem:[%s2 + $0x58] sm:$0xf]
        %v307 = vld [vmem:[%s2 + $0x5c] sm:$0xf]
        %v308 = vld [vmem:[%s2 + $0x60] sm:$0xf]
        %v309 = vld [vmem:[%s2 + $0x64] sm:$0xf]
        %v310 = vld [vmem:[%s2 + $0x68] sm:$0xf]
        %v311 = vld [vmem:[%s2 + $0x6c] sm:$0xf]
        %v312 = vld [vmem:[%s2 + $0x70] sm:$0xf]
        %v313 = vld [vmem:[%s2 + $0x74] sm:$0xf]
        %v314 = vld [vmem:[%s2 + $0x78] sm:$0xf]
        %v315 = vld [vmem:[%s2 + $0x7c] sm:$0xf]
        %v316 = vld [vmem:[%s2 + $0x80] sm:$0xf]
        %v317 = vld [vmem:[%s2 + $0x84] sm:$0xf]
        %v318 = vld [vmem:[%s2 + $0x88] sm:$0xf]
        %v319 = vld [vmem:[%s2 + $0x8c] sm:$0xf]
        %v334 = vunpack.c.l.b16 %v270
        %v335 = vunpack.c.h.b16 %v270
        %v336 = vunpack.c.l.b16 %v271
        %v337 = vunpack.c.l.b16 %v272
        %v338 = vunpack.c.h.b16 %v272
        %v339 = vunpack.c.l.b16 %v273
        %v340 = vunpack.c.l.b16 %v274
        %v341 = vunpack.c.h.b16 %v274
        %v342 = vunpack.c.l.b16 %v275
        %v343 = vunpack.c.l.b16 %v276
        %v344 = vunpack.c.h.b16 %v276
        %v345 = vunpack.c.l.b16 %v277
        %v346 = vunpack.c.l.b16 %v278
        %v347 = vunpack.c.h.b16 %v278
        %v348 = vunpack.c.l.b16 %v279
        %v349 = vunpack.c.l.b16 %v280
        %v350 = vunpack.c.h.b16 %v280
        %v351 = vunpack.c.l.b16 %v281
        %v352 = vunpack.c.l.b16 %v282
        %v353 = vunpack.c.h.b16 %v282
        %v354 = vunpack.c.l.b16 %v283
        %v355 = vpack.c.b16 %v337, %v334
        %v356 = vpack.c.b16 %v338, %v335
        %v357 = vpack.c.b16 %v339, %v336
        %v358 = vpack.c.b16 %v343, %v340
        %v359 = vpack.c.b16 %v344, %v341
        %v360 = vpack.c.b16 %v345, %v342
        %v361 = vpack.c.b16 %v349, %v346
        %v362 = vpack.c.b16 %v350, %v347
        %v363 = vpack.c.b16 %v351, %v348
        %v364 = vpack.c.b16 %v352, %v352
        %v365 = vpack.c.b16 %v353, %v353
        %v366 = vpack.c.b16 %v354, %v354
        %v411 = vunpack.c.l.b16 %v284
        %v412 = vunpack.c.l.b16 %v285
        %v413 = vunpack.c.l.b16 %v286
        %v414 = vunpack.c.l.b16 %v287
        %v415 = vunpack.c.l.b16 %v288
        %v416 = vunpack.c.l.b16 %v289
        %v417 = vunpack.c.l.b16 %v290
        %v418 = vunpack.c.l.b16 %v291
        %v419 = vunpack.c.l.b16 %v292
        %v420 = vunpack.c.l.b16 %v293
        %v421 = vunpack.c.l.b16 %v294
        %v422 = vunpack.c.l.b16 %v295
        %v423 = vunpack.c.l.b16 %v296
        %v424 = vunpack.c.l.b16 %v297
        %v425 = vunpack.c.l.b16 %v298
        %v426 = vunpack.c.l.b16 %v299
        %v427 = vunpack.c.l.b16 %v300
        %v428 = vunpack.c.l.b16 %v301
        %v429 = vunpack.c.l.b16 %v302
        %v430 = vunpack.c.l.b16 %v303
        %v431 = vunpack.c.l.b16 %v304
        %v432 = vunpack.c.l.b16 %v305
        %v433 = vunpack.c.l.b16 %v306
        %v434 = vunpack.c.l.b16 %v307
        %v435 = vunpack.c.l.b16 %v308
        %v436 = vunpack.c.l.b16 %v309
        %v437 = vunpack.c.l.b16 %v310
        %v438 = vunpack.c.l.b16 %v311
        %v439 = vunpack.c.l.b16 %v312
        %v440 = vunpack.c.l.b16 %v313
        %v441 = vunpack.c.l.b16 %v314
        %v442 = vunpack.c.l.b16 %v315
        %v443 = vunpack.c.l.b16 %v316
        %v444 = vunpack.c.l.b16 %v317
        %v445 = vunpack.c.l.b16 %v318
        %v446 = vunpack.c.l.b16 %v319
        %v447 = vpack.c.b16 %v412, %v411
        %v448 = vpack.c.b16 %v414, %v413
        %v449 = vpack.c.b16 %v416, %v415
        %v450 = vpack.c.b16 %v418, %v417
        %v451 = vpack.c.b16 %v420, %v419
        %v452 = vpack.c.b16 %v422, %v421
        %v453 = vpack.c.b16 %v424, %v423
        %v454 = vpack.c.b16 %v426, %v425
        %v455 = vpack.c.b16 %v428, %v427
        %v456 = vpack.c.b16 %v430, %v429
        %v457 = vpack.c.b16 %v432, %v431
        %v458 = vpack.c.b16 %v434, %v433
        %v459 = vpack.c.b16 %v436, %v435
        %v460 = vpack.c.b16 %v438, %v437
        %v461 = vpack.c.b16 %v440, %v439
        %v462 = vpack.c.b16 %v442, %v441
        %v463 = vpack.c.b16 %v444, %v443
        %v464 = vpack.c.b16 %v446, %v445
        %vm483 = vcmask 261120
        %v485 = vsel %vm483, %v357, 0
        %v488 = vsel %vm483, %v360, 0
        %v491 = vsel %vm483, %v363, 0
        %v494 = vsel %vm483, %v366, 0
        %496 = vmatprep.subr.bf16.mxu0 0
        %497 = vmatpush1.bf16.msra.mxu0 %v454
        %498 = vmatprep.subr.bf16.mxu0 0
        %499 = vmatpush1.bf16.msra.mxu0 %v453
        %500 = vmatprep.subr.bf16.mxu0 0
        %501 = vmatpush1.bf16.msra.mxu0 %v452
        %502 = vmatprep.subr.bf16.mxu0 0
        %503 = vmatpush1.bf16.msra.mxu0 %v451
        %504 = vmatprep.subr.bf16.mxu0 0
        %505 = vmatpush1.bf16.msra.mxu0 %v450
        %506 = vmatprep.subr.bf16.mxu0 0
        %507 = vmatpush1.bf16.msra.mxu0 %v449
        %508 = vmatprep.subr.bf16.mxu0 0
        %509 = vmatpush1.bf16.msra.mxu0 %v448
        %510 = vmatprep.subr.bf16.mxu0 0
        %511 = vmatpush1.bf16.msra.mxu0 %v447
        %512 = vmatprep.subr.bf16.mxu0 0
        %513 = vmatpush2.bf16.msra.mxu0 %v462
        %514 = vmatprep.subr.bf16.mxu0 0
        %515 = vmatpush2.bf16.msra.mxu0 %v461
        %516 = vmatprep.subr.bf16.mxu0 0
        %517 = vmatpush2.bf16.msra.mxu0 %v460
        %518 = vmatprep.subr.bf16.mxu0 0
        %519 = vmatpush2.bf16.msra.mxu0 %v459
        %520 = vmatprep.subr.bf16.mxu0 0
        %521 = vmatpush2.bf16.msra.mxu0 %v458
        %522 = vmatprep.subr.bf16.mxu0 0
        %523 = vmatpush2.bf16.msra.mxu0 %v457
        %524 = vmatprep.subr.bf16.mxu0 0
        %525 = vmatpush2.bf16.msra.mxu0 %v456
        %526 = vmatprep.subr.bf16.mxu0 0
        %527 = vmatpush2.bf16.msra.mxu0 %v455
        %528 = vmatprep.mubr.bf16.mxu0 %v356
        %529 = vmatmul.mubr.bf16.gmra.mxu0 %v355
        %v530 = vpop.f32.mrf.mxu0
        %v531 = vadd.f32 0.0, %v530
        %v532 = vpop.f32.mrf.mxu0
        %v533 = vpop.f32.mrf.mxu0
        %v534 = vadd.f32 0.0, %v533
        %v535 = vpop.f32.mrf.mxu0
        %536 = vmatprep.mubr.bf16.mxu0 %v359
        %537 = vmatmul.mubr.bf16.gmra.mxu0 %v358
        %v538 = vpop.f32.mrf.mxu0
        %v539 = vadd.f32 0.0, %v538
        %v540 = vpop.f32.mrf.mxu0
        %v541 = vpop.f32.mrf.mxu0
        %v542 = vadd.f32 0.0, %v541
        %v543 = vpop.f32.mrf.mxu0
        %544 = vmatprep.mubr.bf16.mxu0 %v362
        %545 = vmatmul.mubr.bf16.gmra.mxu0 %v361
        %v546 = vpop.f32.mrf.mxu0
        %v547 = vadd.f32 0.0, %v546
        %v548 = vpop.f32.mrf.mxu0
        %v549 = vpop.f32.mrf.mxu0
        %v550 = vadd.f32 0.0, %v549
        %v551 = vpop.f32.mrf.mxu0
        %552 = vmatprep.mubr.bf16.mxu0 %v365
        %553 = vmatmul.mubr.bf16.gmra.mxu0 %v364
        %v554 = vpop.f32.mrf.mxu0
        %v555 = vadd.f32 0.0, %v554
        %v556 = vpop.f32.mrf.mxu0
        %v557 = vpop.f32.mrf.mxu0
        %v558 = vpop.f32.mrf.mxu0
        %559 = vdwg.mxu0
        %560 = vmatprep.subr.bf16.mxu0 0
        %561 = vmatpush1.bf16.msra.mxu0 0
        %562 = vmatprep.subr.bf16.mxu0 0
        %563 = vmatpush1.bf16.msra.mxu0 0
        %564 = vmatprep.subr.bf16.mxu0 0
        %565 = vmatpush1.bf16.msra.mxu0 0
        %566 = vmatprep.subr.bf16.mxu0 0
        %567 = vmatpush1.bf16.msra.mxu0 0
        %568 = vmatprep.subr.bf16.mxu0 0
        %569 = vmatpush1.bf16.msra.mxu0 0
        %570 = vmatprep.subr.bf16.mxu0 0
        %571 = vmatpush1.bf16.msra.mxu0 0
        %572 = vmatprep.subr.bf16.mxu0 0
        %573 = vmatpush1.bf16.msra.mxu0 %v464
        %574 = vmatprep.subr.bf16.mxu0 0
        %575 = vmatpush1.bf16.msra.mxu0 %v463
        %576 = vmatprep.subr.bf16.mxu0 0
        %577 = vmatpush2.bf16.msra.mxu0 0
        %578 = vmatprep.subr.bf16.mxu0 0
        %579 = vmatpush2.bf16.msra.mxu0 0
        %580 = vmatprep.subr.bf16.mxu0 0
        %581 = vmatpush2.bf16.msra.mxu0 0
        %582 = vmatprep.subr.bf16.mxu0 0
        %583 = vmatpush2.bf16.msra.mxu0 0
        %584 = vmatprep.subr.bf16.mxu0 0
        %585 = vmatpush2.bf16.msra.mxu0 0
        %586 = vmatprep.subr.bf16.mxu0 0
        %587 = vmatpush2.bf16.msra.mxu0 0
        %588 = vmatprep.subr.bf16.mxu0 0
        %589 = vmatpush2.bf16.msra.mxu0 0
        %590 = vmatprep.subr.bf16.mxu0 0
        %591 = vmatpush2.bf16.msra.mxu0 0
        %592 = vmatprep.mubr.bf16.mxu0 0
        %593 = vmatmul.mubr.bf16.gmra.mxu0 %v485
        %v594 = vpop.f32.mrf.mxu0
        %v595 = vadd.f32 %v531, %v594
        %v596 = vpop.f32.mrf.mxu0
        %v597 = vpop.f32.mrf.mxu0
        %v598 = vadd.f32 %v534, %v597
        %v599 = vpop.f32.mrf.mxu0
        %600 = vmatprep.mubr.bf16.mxu0 0
        %601 = vmatmul.mubr.bf16.gmra.mxu0 %v488
        %v602 = vpop.f32.mrf.mxu0
        %v603 = vadd.f32 %v539, %v602
        %v604 = vpop.f32.mrf.mxu0
        %v605 = vpop.f32.mrf.mxu0
        %v606 = vadd.f32 %v542, %v605
        %v607 = vpop.f32.mrf.mxu0
        %608 = vmatprep.mubr.bf16.mxu0 0
        %609 = vmatmul.mubr.bf16.gmra.mxu0 %v491
        %v610 = vpop.f32.mrf.mxu0
        %v611 = vadd.f32 %v547, %v610
        %v612 = vpop.f32.mrf.mxu0
        %v613 = vpop.f32.mrf.mxu0
        %v614 = vadd.f32 %v550, %v613
        %v615 = vpop.f32.mrf.mxu0
        %616 = vmatprep.mubr.bf16.mxu0 0
        %617 = vmatmul.mubr.bf16.gmra.mxu0 %v494
        %v618 = vpop.f32.mrf.mxu0
        %v619 = vadd.f32 %v555, %v618
        %v620 = vpop.f32.mrf.mxu0
        %v621 = vpop.f32.mrf.mxu0
        %v622 = vpop.f32.mrf.mxu0
        %623 = vdwg.mxu0
        %v624 = vmax.f32 %v595, 0.0
        %v625 = vmax.f32 %v598, 0.0
        %v626 = vmax.f32 %v603, 0.0
        %v627 = vmax.f32 %v606, 0.0
        %v628 = vmax.f32 %v611, 0.0
        %v629 = vmax.f32 %v614, 0.0
        %v630 = vmax.f32 %v619, 0.0
        %v631 = vpack.c.bf16 %v625, %v624
        %v632 = vpack.c.bf16 %v627, %v626
        %v633 = vpack.c.bf16 %v629, %v628
        %v634 = vpack.c.bf16 %v630, %v630
        %v635 = vld [vmem:[%s3] sm:$0xf]
        %vm636 = vcmask 64512
        %v638 = vsel %vm636, %v631, 0
        %v641 = vsel %vm636, %v632, 0
        %v644 = vsel %vm636, %v633, 0
        %v647 = vsel %vm636, %v634, 0
        %vm649 = vcmask 1043456
        %v651 = vsel %vm649, %v635, 0
        %653 = vmatprep.subr.bf16.mxu0 0
        %654 = vmatpush1.bf16.msra.mxu0 0
        %655 = vmatprep.subr.bf16.mxu0 0
        %656 = vmatpush1.bf16.msra.mxu0 0
        %657 = vmatprep.subr.bf16.mxu0 0
        %658 = vmatpush1.bf16.msra.mxu0 0
        %659 = vmatprep.subr.bf16.mxu0 0
        %660 = vmatpush1.bf16.msra.mxu0 0
        %661 = vmatprep.subr.bf16.mxu0 0
        %662 = vmatpush1.bf16.msra.mxu0 0
        %663 = vmatprep.subr.bf16.mxu0 0
        %664 = vmatpush1.bf16.msra.mxu0 0
        %665 = vmatprep.subr.bf16.mxu0 0
        %666 = vmatpush1.bf16.msra.mxu0 0
        %667 = vmatprep.subr.bf16.mxu0 0
        %668 = vmatpush1.bf16.msra.mxu0 %v651
        %669 = vmatprep.subr.bf16.mxu0 0
        %670 = vmatpush2.bf16.msra.mxu0 0
        %671 = vmatprep.subr.bf16.mxu0 0
        %672 = vmatpush2.bf16.msra.mxu0 0
        %673 = vmatprep.subr.bf16.mxu0 0
        %674 = vmatpush2.bf16.msra.mxu0 0
        %675 = vmatprep.subr.bf16.mxu0 0
        %676 = vmatpush2.bf16.msra.mxu0 0
        %677 = vmatprep.subr.bf16.mxu0 0
        %678 = vmatpush2.bf16.msra.mxu0 0
        %679 = vmatprep.subr.bf16.mxu0 0
        %680 = vmatpush2.bf16.msra.mxu0 0
        %681 = vmatprep.subr.bf16.mxu0 0
        %682 = vmatpush2.bf16.msra.mxu0 0
        %683 = vmatprep.subr.bf16.mxu0 0
        %684 = vmatpush2.bf16.msra.mxu0 0
        %685 = vmatprep.mubr.bf16.mxu0 0
        %686 = vmatmul.mubr.bf16.gmra.mxu0 %v638
        %v687 = vpop.f32.mrf.mxu0
        %v688 = vadd.f32 0.0, %v687
        %v689 = vpop.f32.mrf.mxu0
        %v690 = vpop.f32.mrf.mxu0
        %v691 = vadd.f32 0.0, %v690
        %v692 = vpop.f32.mrf.mxu0
        %693 = vmatprep.mubr.bf16.mxu0 0
        %694 = vmatmul.mubr.bf16.gmra.mxu0 %v641
        %v695 = vpop.f32.mrf.mxu0
        %v696 = vadd.f32 0.0, %v695
        %v697 = vpop.f32.mrf.mxu0
        %v698 = vpop.f32.mrf.mxu0
        %v699 = vadd.f32 0.0, %v698
        %v700 = vpop.f32.mrf.mxu0
        %701 = vmatprep.mubr.bf16.mxu0 0
        %702 = vmatmul.mubr.bf16.gmra.mxu0 %v644
        %v703 = vpop.f32.mrf.mxu0
        %v704 = vadd.f32 0.0, %v703
        %v705 = vpop.f32.mrf.mxu0
        %v706 = vpop.f32.mrf.mxu0
        %v707 = vadd.f32 0.0, %v706
        %v708 = vpop.f32.mrf.mxu0
        %709 = vmatprep.mubr.bf16.mxu0 0
        %710 = vmatmul.mubr.bf16.gmra.mxu0 %v647
        %v711 = vpop.f32.mrf.mxu0
        %v712 = vadd.f32 0.0, %v711
        %v713 = vpop.f32.mrf.mxu0
        %v714 = vpop.f32.mrf.mxu0
        %v715 = vpop.f32.mrf.mxu0
        %716 = vdwg.mxu0
        %v717 = vld [vmem:[%s258] sm:$0xff]
        %v718 = vld [vmem:[%s258 + $0x8] sm:$0xff]
        %v719 = vld [vmem:[%s258 + $0x10] sm:$0xff]
        %v720 = vld [vmem:[%s258 + $0x18] sm:$0xff]
        %v721 = vld [vmem:[%s258 + $0x20] sm:$0xff]
        %v722 = vld [vmem:[%s258 + $0x28] sm:$0xff]
        %v723 = vld [vmem:[%s258 + $0x30] sm:$0xff]
        %v724 = vadd.f32 %v717, %v688
        %v725 = vadd.f32 %v718, %v691
        %v726 = vadd.f32 %v719, %v696
        %v727 = vadd.f32 %v720, %v699
        %v728 = vadd.f32 %v721, %v704
        %v729 = vadd.f32 %v722, %v707
        %v730 = vadd.f32 %v723, %v712
        %731 = vst.msk [vmem:[%s232] sm:$0xff] %vm483, %v724
        %732 = vst.msk [vmem:[%s232 + $0x8] sm:$0xff] %vm483, %v725
        %733 = vst.msk [vmem:[%s232 + $0x10] sm:$0xff] %vm483, %v726
        %734 = vst.msk [vmem:[%s232 + $0x18] sm:$0xff] %vm483, %v727
        %735 = vst.msk [vmem:[%s232 + $0x20] sm:$0xff] %vm483, %v728
        %736 = vst.msk [vmem:[%s232 + $0x28] sm:$0xff] %vm483, %v729
        %737 = vst.msk [vmem:[%s232 + $0x30] sm:$0xff] %vm483, %v730
        %s738 = sand.u32 %s117, 1
        %s739 = sand.u32 %s117, 1
        %s740 = smul.addr %s739, 56
        %s741 = scalar_lea.vmem [#allocation2], %s740
        // Predicated region
        $region37: #{vqvae_forward.14} parent=35 // pred_check
          %p742 = pneg %p127
        $region38: #{vqvae_forward.14} parent=35 // pred_check_branch
          %744 = sbr.rel (%p742) target = $region40
        $region39: #{vqvae_forward.14} parent=35 // pred_region
          %s745 = smul.u32 7, %s15
          %s746 = ssub.s32 13, %s745
          %p747 = scmp.lt.s32.totalorder %s746, 7
          %s748 = scalar_select %p747, %s746, 7
          %s749 = smul.u32 128, %s748
          %p750 = scmp.ne.s32.totalorder 0, %s749
          %s751 = smul.addr %s745, 8
          %s752 = scalar_lea.vmem %s4, %s751
          // Predicated region
          $region41: #{vqvae_forward.14} parent=39 // pred_check
            %p753 = pneg %p750
          $region42: #{vqvae_forward.14} parent=39 // pred_check_branch
            %755 = sbr.rel (%p753) target = $region44
          $region43: #{vqvae_forward.14} parent=39 // pred_region
            // Predicated region
            $region45: #{vqvae_forward.14} parent=43 // pred_check
              _
            $region46: #{vqvae_forward.14} parent=43 // pred_check_branch
              %757 = sbr.rel (0) target = $region48
            $region47: #{vqvae_forward.14} parent=43 // pred_region
              // Predicated region
              $region67: #{vqvae_forward.14} parent=47 // pred_check
                _
              $region68: #{vqvae_forward.14} parent=47 // pred_check_branch
                %820 = sbr.rel (0) target = $region70
              $region69: #{vqvae_forward.14} parent=47 // pred_region
                %s821 = sdiv.u32.pop %s748, 7
                %s822 = srem.u32.pop %s748, 7
                // While loop
                $region71: #{vqvae_forward.14} parent=69 // loop_pre_header
                  _
                $region72: #{vqvae_forward.14} parent=69 // loop_header
                  %s824 = sphi 0, %s826
                  %p825 = scmp.ge.s32.totalorder %s824, %s821
                  %s829 = sphi 0, %s848
                  %s830 = sphi %s741, %s851
                  %s831 = sphi %s752, %s852
                $region73: #{vqvae_forward.14} parent=69 // loop_header_branch
                  %828 = sbr.rel (%p825) target = $region77
                $region74: #{vqvae_forward.14} parent=69 // loop_body
                  %v832 = vld [vmem:[%s830] sm:$0xff]
                  %833 = vst [vmem:[%s831] sm:$0xff] %v832
                  %v834 = vld [vmem:[%s830 + $0x8] sm:$0xff]
                  %835 = vst [vmem:[%s831 + $0x8] sm:$0xff] %v834
                  %v836 = vld [vmem:[%s830 + $0x10] sm:$0xff]
                  %837 = vst [vmem:[%s831 + $0x10] sm:$0xff] %v836
                  %v838 = vld [vmem:[%s830 + $0x18] sm:$0xff]
                  %839 = vst [vmem:[%s831 + $0x18] sm:$0xff] %v838
                  %v840 = vld [vmem:[%s830 + $0x20] sm:$0xff]
                  %841 = vst [vmem:[%s831 + $0x20] sm:$0xff] %v840
                  %v842 = vld [vmem:[%s830 + $0x28] sm:$0xff]
                  %843 = vst [vmem:[%s831 + $0x28] sm:$0xff] %v842
                  %v844 = vld [vmem:[%s830 + $0x30] sm:$0xff]
                  %845 = vst [vmem:[%s831 + $0x30] sm:$0xff] %v844
                  %s846 = sadd.s32 1, %s829
                  %p847 = scmp.ge.s32.totalorder %s846, %s821
                  %s848 = scalar_select %p847, 0, %s846
                  %s849 = smul.u32 %s848, 56
                  %s850 = smul.u32 %s848, 56
                  %s851 = scalar_lea.vmem %s741, %s849 [#allocation2]
                  %s852 = scalar_lea.vmem %s752, %s850
                $region75: #{vqvae_forward.14} parent=69 // loop_footer
                  %s826 = sadd.s32 %s824, 1
                $region76: #{vqvae_forward.14} parent=69 // loop_footer_branch
                  %823 = sbr.rel target = $region72
                $region77: #{vqvae_forward.14} parent=69 // loop_exit
                  _
                %s853 = sdiv.u32.pop %s748, 7
                %s854 = srem.u32.pop %s748, 7
                %s855 = smul.u32 %s853, 7
                %s856 = smul.u32 8, %s855
                %s857 = scalar_lea.vmem %s741, %s856 [#allocation2]
                %s858 = smul.u32 8, %s855
                %s859 = scalar_lea.vmem %s752, %s858
                // While loop
                $region78: #{vqvae_forward.14} parent=69 // loop_pre_header
                  _
                $region79: #{vqvae_forward.14} parent=69 // loop_header
                  %s861 = sphi 0, %s863
                  %p862 = scmp.ge.s32.totalorder %s861, %s854
                  %s866 = sphi 0, %s873
                  %s867 = sphi %s857, %s876
                  %s868 = sphi %s859, %s877
                $region80: #{vqvae_forward.14} parent=69 // loop_header_branch
                  %865 = sbr.rel (%p862) target = $region84
                $region81: #{vqvae_forward.14} parent=69 // loop_body
                  %v869 = vld [vmem:[%s867] sm:$0xff]
                  %870 = vst [vmem:[%s868] sm:$0xff] %v869
                  %s871 = sadd.s32 1, %s866
                  %p872 = scmp.ge.s32.totalorder %s871, %s854
                  %s873 = scalar_select %p872, 0, %s871
                  %s874 = smul.u32 %s873, 8
                  %s875 = smul.u32 %s873, 8
                  %s876 = scalar_lea.vmem %s857, %s874 [#allocation2]
                  %s877 = scalar_lea.vmem %s859, %s875
                $region82: #{vqvae_forward.14} parent=69 // loop_footer
                  %s863 = sadd.s32 %s861, 1
                $region83: #{vqvae_forward.14} parent=69 // loop_footer_branch
                  %860 = sbr.rel target = $region79
                $region84: #{vqvae_forward.14} parent=69 // loop_exit
                  _
              $region70: #{vqvae_forward.14} parent=47 // pred_fallthru
                _
              // Predicated region
              $region85: #{vqvae_forward.14} parent=47 // pred_check
                _
              $region86: #{vqvae_forward.14} parent=47 // pred_check_branch
                %879 = sbr.rel target = $region88
              $region87: #{vqvae_forward.14} parent=47 // pred_region
                _
              $region88: #{vqvae_forward.14} parent=47 // pred_fallthru
                _
            $region48: #{vqvae_forward.14} parent=43 // pred_fallthru
              _
            // Predicated region
            $region49: #{vqvae_forward.14} parent=43 // pred_check
              _
            $region50: #{vqvae_forward.14} parent=43 // pred_check_branch
              %759 = sbr.rel target = $region52
            $region51: #{vqvae_forward.14} parent=43 // pred_region
              %s761 = ssub.s32 256, 1
              %s762 = sdiv.u32.pop %s748, 7
              %s763 = srem.u32.pop %s748, 7
              // While loop
              $region53: #{vqvae_forward.14} parent=51 // loop_pre_header
                _
              $region54: #{vqvae_forward.14} parent=51 // loop_header
                %s765 = sphi 0, %s767
                %p766 = scmp.ge.s32.totalorder %s765, %s762
                %s770 = sphi 0, %s789
                %s771 = sphi %s741, %s792
                %s772 = sphi %s752, %s793
              $region55: #{vqvae_forward.14} parent=51 // loop_header_branch
                %769 = sbr.rel (%p766) target = $region59
              $region56: #{vqvae_forward.14} parent=51 // loop_body
                %v773 = vld [vmem:[%s771] sm:%s761]
                %774 = vst [vmem:[%s772] sm:%s761] %v773
                %v775 = vld [vmem:[%s771 + $0x8] sm:%s761]
                %776 = vst [vmem:[%s772 + $0x8] sm:%s761] %v775
                %v777 = vld [vmem:[%s771 + $0x10] sm:%s761]
                %778 = vst [vmem:[%s772 + $0x10] sm:%s761] %v777
                %v779 = vld [vmem:[%s771 + $0x18] sm:%s761]
                %780 = vst [vmem:[%s772 + $0x18] sm:%s761] %v779
                %v781 = vld [vmem:[%s771 + $0x20] sm:%s761]
                %782 = vst [vmem:[%s772 + $0x20] sm:%s761] %v781
                %v783 = vld [vmem:[%s771 + $0x28] sm:%s761]
                %784 = vst [vmem:[%s772 + $0x28] sm:%s761] %v783
                %v785 = vld [vmem:[%s771 + $0x30] sm:%s761]
                %786 = vst [vmem:[%s772 + $0x30] sm:%s761] %v785
                %s787 = sadd.s32 1, %s770
                %p788 = scmp.ge.s32.totalorder %s787, %s762
                %s789 = scalar_select %p788, 0, %s787
                %s790 = smul.u32 %s789, 56
                %s791 = smul.u32 %s789, 56
                %s792 = scalar_lea.vmem %s741, %s790 [#allocation2]
                %s793 = scalar_lea.vmem %s752, %s791
              $region57: #{vqvae_forward.14} parent=51 // loop_footer
                %s767 = sadd.s32 %s765, 1
              $region58: #{vqvae_forward.14} parent=51 // loop_footer_branch
                %764 = sbr.rel target = $region54
              $region59: #{vqvae_forward.14} parent=51 // loop_exit
                _
              %s794 = sdiv.u32.pop %s748, 7
              %s795 = srem.u32.pop %s748, 7
              %s796 = smul.u32 %s794, 7
              %s797 = smul.u32 8, %s796
              %s798 = scalar_lea.vmem %s741, %s797 [#allocation2]
              %s799 = smul.u32 8, %s796
              %s800 = scalar_lea.vmem %s752, %s799
              // While loop
              $region60: #{vqvae_forward.14} parent=51 // loop_pre_header
                _
              $region61: #{vqvae_forward.14} parent=51 // loop_header
                %s802 = sphi 0, %s804
                %p803 = scmp.ge.s32.totalorder %s802, %s795
                %s807 = sphi 0, %s814
                %s808 = sphi %s798, %s817
                %s809 = sphi %s800, %s818
              $region62: #{vqvae_forward.14} parent=51 // loop_header_branch
                %806 = sbr.rel (%p803) target = $region66
              $region63: #{vqvae_forward.14} parent=51 // loop_body
                %v810 = vld [vmem:[%s808] sm:%s761]
                %811 = vst [vmem:[%s809] sm:%s761] %v810
                %s812 = sadd.s32 1, %s807
                %p813 = scmp.ge.s32.totalorder %s812, %s795
                %s814 = scalar_select %p813, 0, %s812
                %s815 = smul.u32 %s814, 8
                %s816 = smul.u32 %s814, 8
                %s817 = scalar_lea.vmem %s798, %s815 [#allocation2]
                %s818 = scalar_lea.vmem %s800, %s816
              $region64: #{vqvae_forward.14} parent=51 // loop_footer
                %s804 = sadd.s32 %s802, 1
              $region65: #{vqvae_forward.14} parent=51 // loop_footer_branch
                %801 = sbr.rel target = $region61
              $region66: #{vqvae_forward.14} parent=51 // loop_exit
                _
            $region52: #{vqvae_forward.14} parent=43 // pred_fallthru
              _
          $region44: #{vqvae_forward.14} parent=39 // pred_fallthru
            _
          %880 = vnop
        $region40: #{vqvae_forward.14} parent=35 // pred_fallthru
          _
      $region36: #{vqvae_forward.14} parent=5 // pred_fallthru
        _
      %p881 = scmp.le.s32.totalorder 2, %s10
      // Predicated region
      $region89: #{vqvae_forward.14} parent=5 // pred_check
        %p882 = pneg %p881
      $region90: #{vqvae_forward.14} parent=5 // pred_check_branch
        %884 = sbr.rel (%p882) target = $region92
      $region91: #{vqvae_forward.14} parent=5 // pred_region
        %s885 = ssub.s32 %s10, 2
        // Predicated region
        $region93: #{vqvae_forward.14} parent=91 // pred_check
          %p886 = pneg %p133
        $region94: #{vqvae_forward.14} parent=91 // pred_check_branch
          %888 = sbr.rel (%p886) target = $region96
        $region95: #{vqvae_forward.14} parent=91 // pred_region
          %s889 = sand.u32 %s118, 1
          %s890 = sand.u32 %s118, 1
          %s891 = smul.addr %s890, 56
          %s892 = scalar_lea.vmem [#allocation2], %s891
        $region96: #{vqvae_forward.14} parent=91 // pred_fallthru
          _
      $region92: #{vqvae_forward.14} parent=5 // pred_fallthru
        _
    $region6: #{vqvae_forward.14} parent=1 // loop_footer
      %s14 = sadd.s32 1, %s10
    $region7: #{vqvae_forward.14} parent=1 // loop_footer_branch
      %9 = sbr.rel target = $region3
    $region8: #{vqvae_forward.14} parent=1 // loop_exit
      _

// kernel: vqvae_forward.16
$region0: #{vqvae_forward.16}
  #allocation0 [shape = 'u32[]', space=smem, size = 0x4, offset = 0x4, fixed_abs, tag = 'smem constant byte address 0x4 - core index']
  #allocation1 [shape = 'u32[144,128]{1,0:T(1,128)}', space=vmem, size = 0x12000, scoped, tag = 'internal scratch']
  %s0 = inlined_call_operand.vmem [shape: f32[98,32], index: 0, kind: input, shape index: {}]
  %s1 = inlined_call_operand.vmem [shape: f32[32,8], index: 1, kind: input, shape index: {}]
  %s2 = inlined_call_operand.vmem [shape: f32[1,8], index: 2, kind: input, shape index: {}]
  %s3 = inlined_call_operand.vmem [shape: f32[8,16], index: 3, kind: input, shape index: {}]
  %s4 = inlined_call_operand.vmem [shape: f32[1,16], index: 4, kind: input, shape index: {}]
  %s5 = inlined_call_operand.vmem [shape: f32[16,8], index: 5, kind: input, shape index: {}]
  %s6 = inlined_call_operand.vmem [shape: s32[98,1], index: 6, kind: output, shape index: {0}]
  %s7 = inlined_call_operand.vmem [shape: f32[98,8], index: 7, kind: output, shape index: {1}]
  %8 = xla_tuple %s6, %s7
  %s9 = sld [smem:[#allocation0]]
  $region161: #{vqvae_forward.16} parent=0
    _
  %s11 = ssub.s32 1, %s9
  %s12 = scalar_select 0, %s11, %s9
  $region1: #{vqvae_forward.16} parent=0
    #allocation2 [shape = 'u8[57344]{0}', space=vmem, size = 0xe000, scoped, tag = 'output window, operand 0']
    #allocation3 [shape = 'u8[57344]{0}', space=vmem, size = 0xe000, scoped, tag = 'output window, operand 1']
    loop: start=0, step=1, limit=4
    $region2: #{vqvae_forward.16} parent=1 // loop_pre_header
      _
    $region3: #{vqvae_forward.16} parent=1 // loop_header
      %s14 = sphi 0, %s18
      %p15 = scmp.ge.s32.totalorder %s14, 4
      %s24 = sphi 0, %s26
      %s27 = sphi 0, %s24
      %s28 = sphi 0, %s27
      %s44 = sphi 0, %s28
      %s48 = sphi 0, %s48
      %s50 = sphi 0, %s48
      %s51 = sphi 0, %s50
      %s65 = sphi 0, %s51
      %s69 = sphi 0, %s69
      %s71 = sphi 0, %s69
      %s72 = sphi 0, %s71
      %s86 = sphi 0, %s72
      %s90 = sphi 0, %s90
      %s92 = sphi 0, %s90
      %s93 = sphi 0, %s92
      %s107 = sphi 0, %s93
      %s111 = sphi 0, %s111
      %s113 = sphi 0, %s111
      %s114 = sphi 0, %s113
      %s128 = sphi 0, %s114
      %s132 = sphi 0, %s132
      %s134 = sphi 0, %s132
      %s135 = sphi 0, %s134
      %s149 = sphi 0, %s135
      %s155 = sphi 0, %s157
      %s158 = sphi 0, %s155
      %s159 = sphi 0, %s158
      %s175 = sphi 0, %s159
      %s181 = sphi 0, %s183
      %s184 = sphi 0, %s181
      %s185 = sphi 0, %s184
      %s201 = sphi 0, %s185
    $region4: #{vqvae_forward.16} parent=1 // loop_header_branch
      %17 = sbr.rel (%p15) target = $region8
    $region5: #{vqvae_forward.16} parent=1 // loop_body
      %s19 = ssub.s32 %s14, 1
      %s20 = ssub.s32 %s14, 2
      %s21 = sadd.s32 %s14, 1
      %s22 = ssub.s32 %s14, %s21
      %p23 = scmp.eq.s32.totalorder %s22, 0
      %s25 = sadd.s32 %s24, 1
      %s26 = scalar_select %p23, %s24, %s25
      %p29 = pneg %p23
      %p30 = scmp.eq.s32.totalorder %s14, 1
      %p31 = por %p29, %p30
      %p32 = scmp.ne.s32.totalorder %s24, %s27
      %p33 = scmp.eq.s32.totalorder %s14, 0
      %p34 = por %p32, %p33
      %p35 = scmp.ne.s32.totalorder %s24, %s27
      %p36 = scmp.eq.s32.totalorder %s19, 1
      %p37 = por %p35, %p36
      %p38 = scmp.ne.s32.totalorder %s27, %s28
      %p39 = scmp.eq.s32.totalorder %s19, 0
      %p40 = por %p38, %p39
      %p41 = scmp.ne.s32.totalorder %s27, %s28
      %p42 = scmp.eq.s32.totalorder %s20, 1
      %p43 = por %p41, %p42
      %p45 = scmp.ne.s32.totalorder %s28, %s44
      %p46 = scmp.eq.s32.totalorder %s20, 0
      %p47 = por %p45, %p46
      %s49 = sadd.s32 %s48, 1
      %p52 = scmp.eq.s32.totalorder %s14, 1
      %p53 = scmp.ne.s32.totalorder %s48, %s50
      %p54 = scmp.eq.s32.totalorder %s14, 0
      %p55 = por %p53, %p54
      %p56 = scmp.ne.s32.totalorder %s48, %s50
      %p57 = scmp.eq.s32.totalorder %s19, 1
      %p58 = por %p56, %p57
      %p59 = scmp.ne.s32.totalorder %s50, %s51
      %p60 = scmp.eq.s32.totalorder %s19, 0
      %p61 = por %p59, %p60
      %p62 = scmp.ne.s32.totalorder %s50, %s51
      %p63 = scmp.eq.s32.totalorder %s20, 1
      %p64 = por %p62, %p63
      %p66 = scmp.ne.s32.totalorder %s51, %s65
      %p67 = scmp.eq.s32.totalorder %s20, 0
      %p68 = por %p66, %p67
      %s70 = sadd.s32 %s69, 1
      %p73 = scmp.eq.s32.totalorder %s14, 1
      %p74 = scmp.ne.s32.totalorder %s69, %s71
      %p75 = scmp.eq.s32.totalorder %s14, 0
      %p76 = por %p74, %p75
      %p77 = scmp.ne.s32.totalorder %s69, %s71
      %p78 = scmp.eq.s32.totalorder %s19, 1
      %p79 = por %p77, %p78
      %p80 = scmp.ne.s32.totalorder %s71, %s72
      %p81 = scmp.eq.s32.totalorder %s19, 0
      %p82 = por %p80, %p81
      %p83 = scmp.ne.s32.totalorder %s71, %s72
      %p84 = scmp.eq.s32.totalorder %s20, 1
      %p85 = por %p83, %p84
      %p87 = scmp.ne.s32.totalorder %s72, %s86
      %p88 = scmp.eq.s32.totalorder %s20, 0
      %p89 = por %p87, %p88
      %s91 = sadd.s32 %s90, 1
      %p94 = scmp.eq.s32.totalorder %s14, 1
      %p95 = scmp.ne.s32.totalorder %s90, %s92
      %p96 = scmp.eq.s32.totalorder %s14, 0
      %p97 = por %p95, %p96
      %p98 = scmp.ne.s32.totalorder %s90, %s92
      %p99 = scmp.eq.s32.totalorder %s19, 1
      %p100 = por %p98, %p99
      %p101 = scmp.ne.s32.totalorder %s92, %s93
      %p102 = scmp.eq.s32.totalorder %s19, 0
      %p103 = por %p101, %p102
      %p104 = scmp.ne.s32.totalorder %s92, %s93
      %p105 = scmp.eq.s32.totalorder %s20, 1
      %p106 = por %p104, %p105
      %p108 = scmp.ne.s32.totalorder %s93, %s107
      %p109 = scmp.eq.s32.totalorder %s20, 0
      %p110 = por %p108, %p109
      %s112 = sadd.s32 %s111, 1
      %p115 = scmp.eq.s32.totalorder %s14, 1
      %p116 = scmp.ne.s32.totalorder %s111, %s113
      %p117 = scmp.eq.s32.totalorder %s14, 0
      %p118 = por %p116, %p117
      %p119 = scmp.ne.s32.totalorder %s111, %s113
      %p120 = scmp.eq.s32.totalorder %s19, 1
      %p121 = por %p119, %p120
      %p122 = scmp.ne.s32.totalorder %s113, %s114
      %p123 = scmp.eq.s32.totalorder %s19, 0
      %p124 = por %p122, %p123
      %p125 = scmp.ne.s32.totalorder %s113, %s114
      %p126 = scmp.eq.s32.totalorder %s20, 1
      %p127 = por %p125, %p126
      %p129 = scmp.ne.s32.totalorder %s114, %s128
      %p130 = scmp.eq.s32.totalorder %s20, 0
      %p131 = por %p129, %p130
      %s133 = sadd.s32 %s132, 1
      %p136 = scmp.eq.s32.totalorder %s14, 1
      %p137 = scmp.ne.s32.totalorder %s132, %s134
      %p138 = scmp.eq.s32.totalorder %s14, 0
      %p139 = por %p137, %p138
      %p140 = scmp.ne.s32.totalorder %s132, %s134
      %p141 = scmp.eq.s32.totalorder %s19, 1
      %p142 = por %p140, %p141
      %p143 = scmp.ne.s32.totalorder %s134, %s135
      %p144 = scmp.eq.s32.totalorder %s19, 0
      %p145 = por %p143, %p144
      %p146 = scmp.ne.s32.totalorder %s134, %s135
      %p147 = scmp.eq.s32.totalorder %s20, 1
      %p148 = por %p146, %p147
      %p150 = scmp.ne.s32.totalorder %s135, %s149
      %p151 = scmp.eq.s32.totalorder %s20, 0
      %p152 = por %p150, %p151
      %s153 = ssub.s32 %s14, %s21
      %p154 = scmp.eq.s32.totalorder %s153, 0
      %s156 = sadd.s32 %s155, 1
      %s157 = scalar_select %p154, %s155, %s156
      %p160 = pneg %p154
      %p161 = scmp.eq.s32.totalorder %s14, 1
      %p162 = por %p160, %p161
      %p163 = scmp.ne.s32.totalorder %s155, %s158
      %p164 = scmp.eq.s32.totalorder %s14, 0
      %p165 = por %p163, %p164
      %p166 = scmp.ne.s32.totalorder %s155, %s158
      %p167 = scmp.eq.s32.totalorder %s19, 1
      %p168 = por %p166, %p167
      %p169 = scmp.ne.s32.totalorder %s158, %s159
      %p170 = scmp.eq.s32.totalorder %s19, 0
      %p171 = por %p169, %p170
      %p172 = scmp.ne.s32.totalorder %s158, %s159
      %p173 = scmp.eq.s32.totalorder %s20, 1
      %p174 = por %p172, %p173
      %p176 = scmp.ne.s32.totalorder %s159, %s175
      %p177 = scmp.eq.s32.totalorder %s20, 0
      %p178 = por %p176, %p177
      %s179 = ssub.s32 %s14, %s21
      %p180 = scmp.eq.s32.totalorder %s179, 0
      %s182 = sadd.s32 %s181, 1
      %s183 = scalar_select %p180, %s181, %s182
      %p186 = pneg %p180
      %p187 = scmp.eq.s32.totalorder %s14, 1
      %p188 = por %p186, %p187
      %p189 = scmp.ne.s32.totalorder %s181, %s184
      %p190 = scmp.eq.s32.totalorder %s14, 0
      %p191 = por %p189, %p190
      %p192 = scmp.ne.s32.totalorder %s181, %s184
      %p193 = scmp.eq.s32.totalorder %s19, 1
      %p194 = por %p192, %p193
      %p195 = scmp.ne.s32.totalorder %s184, %s185
      %p196 = scmp.eq.s32.totalorder %s19, 0
      %p197 = por %p195, %p196
      %p198 = scmp.ne.s32.totalorder %s184, %s185
      %p199 = scmp.eq.s32.totalorder %s20, 1
      %p200 = por %p198, %p199
      %p202 = scmp.ne.s32.totalorder %s185, %s201
      %p203 = scmp.eq.s32.totalorder %s20, 0
      %p204 = por %p202, %p203
      %p205 = scmp.le.s32.totalorder 1, %s14
      %p206 = scmp.lt.s32.totalorder %s14, 3
      %p207 = pnand %p205, %p206
      %p208 = pneg %p207
      // Predicated region
      $region9: #{vqvae_forward.16} parent=5 // pred_check
        _
      $region10: #{vqvae_forward.16} parent=5 // pred_check_branch
        %210 = sbr.rel (%p207) target = $region12
      $region11: #{vqvae_forward.16} parent=5 // pred_region
        %s211 = ssub.s32 %s14, 1
        // Predicated region
        $region13: #{vqvae_forward.16} parent=11 // pred_check
          %p212 = pneg %p61
        $region14: #{vqvae_forward.16} parent=11 // pred_check_branch
          %214 = sbr.rel (%p212) target = $region16
        $region15: #{vqvae_forward.16} parent=11 // pred_region
          _
        $region16: #{vqvae_forward.16} parent=11 // pred_fallthru
          _
        // Predicated region
        $region17: #{vqvae_forward.16} parent=11 // pred_check
          %p215 = pneg %p82
        $region18: #{vqvae_forward.16} parent=11 // pred_check_branch
          %217 = sbr.rel (%p215) target = $region20
        $region19: #{vqvae_forward.16} parent=11 // pred_region
          _
        $region20: #{vqvae_forward.16} parent=11 // pred_fallthru
          _
        // Predicated region
        $region21: #{vqvae_forward.16} parent=11 // pred_check
          %p218 = pneg %p103
        $region22: #{vqvae_forward.16} parent=11 // pred_check_branch
          %220 = sbr.rel (%p218) target = $region24
        $region23: #{vqvae_forward.16} parent=11 // pred_region
          _
        $region24: #{vqvae_forward.16} parent=11 // pred_fallthru
          _
        // Predicated region
        $region25: #{vqvae_forward.16} parent=11 // pred_check
          %p221 = pneg %p124
        $region26: #{vqvae_forward.16} parent=11 // pred_check_branch
          %223 = sbr.rel (%p221) target = $region28
        $region27: #{vqvae_forward.16} parent=11 // pred_region
          _
        $region28: #{vqvae_forward.16} parent=11 // pred_fallthru
          _
        // Predicated region
        $region29: #{vqvae_forward.16} parent=11 // pred_check
          %p224 = pneg %p145
        $region30: #{vqvae_forward.16} parent=11 // pred_check_branch
          %226 = sbr.rel (%p224) target = $region32
        $region31: #{vqvae_forward.16} parent=11 // pred_region
          _
        $region32: #{vqvae_forward.16} parent=11 // pred_fallthru
          _
      $region12: #{vqvae_forward.16} parent=5 // pred_fallthru
        _
      %p227 = scmp.lt.s32.totalorder %s14, 2
      // Predicated region
      $region33: #{vqvae_forward.16} parent=5 // pred_check
        %p228 = pneg %p227
      $region34: #{vqvae_forward.16} parent=5 // pred_check_branch
        %230 = sbr.rel (%p228) target = $region36
      $region35: #{vqvae_forward.16} parent=5 // pred_region
        // Predicated region
        $region37: #{vqvae_forward.16} parent=35 // pred_check
          %p231 = pneg %p34
        $region38: #{vqvae_forward.16} parent=35 // pred_check_branch
          %233 = sbr.rel (%p231) target = $region40
        $region39: #{vqvae_forward.16} parent=35 // pred_region
          %s234 = smul.u32 7, %s14
          %s235 = ssub.s32 13, %s234
          %p236 = scmp.lt.s32.totalorder %s235, 7
          %s237 = scalar_select %p236, %s235, 7
          %s238 = smul.u32 128, %s237
          %p239 = scmp.lt.s32.totalorder %s234, 12
          %s240 = scalar_select %p239, %s234, 12
          %s241 = smul.addr %s240, 8
          %s242 = scalar_lea.vmem %s0, %s241
          %s243 = smul.u32 7, %s14
          %s244 = ssub.s32 13, %s243
          %p245 = scmp.lt.s32.totalorder %s244, 7
          %s246 = scalar_select %p245, %s244, 7
          %s247 = smul.u32 128, %s246
        $region40: #{vqvae_forward.16} parent=35 // pred_fallthru
          _
      $region36: #{vqvae_forward.16} parent=5 // pred_fallthru
        _
      %p248 = scmp.le.s32.totalorder 1, %s14
      %p249 = scmp.lt.s32.totalorder %s14, 3
      %p250 = pnand %p248, %p249
      %p251 = pneg %p250
      // Predicated region
      $region41: #{vqvae_forward.16} parent=5 // pred_check
        _
      $region42: #{vqvae_forward.16} parent=5 // pred_check_branch
        %253 = sbr.rel (%p250) target = $region44
      $region43: #{vqvae_forward.16} parent=5 // pred_region
        %s254 = ssub.s32 %s14, 1
        %s255 = smul.u32 7, %s19
        %s256 = ssub.s32 13, %s255
        %p257 = scmp.lt.s32.totalorder %s256, 7
        %s258 = scalar_select %p257, %s256, 7
        %s259 = smul.u32 128, %s258
        %p260 = scmp.lt.s32.totalorder %s255, 12
        %s261 = scalar_select %p260, %s255, 12
        %s262 = smul.addr %s261, 8
        %s263 = scalar_lea.vmem %s0, %s262
        %p264 = pneg %p40
        %p265 = pneg %p37
        %p266 = pneg %p61
        %p267 = pneg %p58
        %p268 = pneg %p82
        %p269 = pneg %p79
        %p270 = pneg %p103
        %p271 = pneg %p100
        %p272 = pneg %p124
        %p273 = pneg %p121
        %p274 = pneg %p145
        %p275 = pneg %p142
        %p276 = pneg %p171
        %p277 = pneg %p168
        %s278 = sand.u32 %s158, 1
        %s279 = sand.u32 %s158, 1
        %s280 = smul.addr %s279, 56
        %s281 = scalar_lea.vmem [#allocation2], %s280
        %p282 = pneg %p197
        %p283 = pneg %p194
        %s284 = sand.u32 %s184, 1
        %s285 = sand.u32 %s184, 1
        %s286 = smul.addr %s285, 56
        %s287 = scalar_lea.vmem [#allocation3], %s286
        %s288 = smul.u32 7, %s19
        %s289 = ssub.s32 13, %s288
        %p290 = scmp.lt.s32.totalorder %s289, 7
        %s291 = scalar_select %p290, %s289, 7
        %s292 = smul.u32 128, %s291
        %p293 = scmp.lt.s32.totalorder %s288, 12
        %s294 = scalar_select %p293, %s288, 12
        %s295 = smul.addr %s294, 8
        %s296 = scalar_lea.vmem %s0, %s295
        %s297 = smul.u32 7, %s19
        %s298 = ssub.s32 13, %s297
        %p299 = scmp.lt.s32.totalorder %s298, 7
        %s300 = scalar_select %p299, %s298, 7
        %s301 = smul.u32 128, %s300
        %s302 = smul.u32 7, %s19
        %s303 = ssub.s32 13, %s302
        %p304 = scmp.lt.s32.totalorder %s303, 7
        %s305 = scalar_select %p304, %s303, 7
        %s306 = smul.u32 128, %s305
        %s307 = smul.u32 7, %s19
        %s308 = ssub.s32 13, %s307
        %p309 = scmp.lt.s32.totalorder %s308, 7
        %s310 = scalar_select %p309, %s308, 7
        %s311 = smul.u32 128, %s310
        %v312 = vld [vmem:[%s296] sm:$0xff]
        %v313 = vld [vmem:[%s296 + $0x8] sm:$0xff]
        %v314 = vld [vmem:[%s296 + $0x10] sm:$0xff]
        %v315 = vld [vmem:[%s296 + $0x18] sm:$0xff]
        %v316 = vld [vmem:[%s296 + $0x20] sm:$0xff]
        %v317 = vld [vmem:[%s296 + $0x28] sm:$0xff]
        %v318 = vld [vmem:[%s296 + $0x30] sm:$0xff]
        %v319 = vmax.f32 %v312, 0.0
        %v320 = vmax.f32 %v313, 0.0
        %v321 = vmax.f32 %v314, 0.0
        %v322 = vmax.f32 %v315, 0.0
        %v323 = vmax.f32 %v316, 0.0
        %v324 = vmax.f32 %v317, 0.0
        %v325 = vmax.f32 %v318, 0.0
        %v326 = vld [vmem:[%s1] sm:$0xff]
        %v327 = vld [vmem:[%s1 + $0x8] sm:$0xff]
        %v328 = vld [vmem:[%s1 + $0x10] sm:$0xff]
        %v329 = vld [vmem:[%s1 + $0x18] sm:$0xff]
        %v330 = vld [vmem:[%s2] sm:$0x1]
        %v332 = vlaneseq
        %v333 = vshrl.u32 %v332, 7
        %v334 = vsub.s32 0, %v333
        %v335 = vrot.slane %v330, %v334
        %vm337 = vcmask 261120
        %v339 = vsel %vm337, %v319, 0
        %v342 = vsel %vm337, %v320, 0
        %v345 = vsel %vm337, %v321, 0
        %v348 = vsel %vm337, %v322, 0
        %v351 = vsel %vm337, %v323, 0
        %v354 = vsel %vm337, %v324, 0
        %v357 = vsel %vm337, %v325, 0
        %359 = vmatprep.subr.mxu0 0.0
        %360 = vmatpush1.msra.mxu0 0.0
        %361 = vmatprep.subr.mxu0 0.0
        %362 = vmatpush1.msra.mxu0 0.0
        %363 = vmatprep.subr.mxu0 0.0
        %364 = vmatpush1.msra.mxu0 0.0
        %365 = vmatprep.subr.mxu0 0.0
        %366 = vmatpush1.msra.mxu0 0.0
        %367 = vmatprep.subr.mxu0 0.0
        %368 = vmatpush1.msra.mxu0 0.0
        %369 = vmatprep.subr.mxu0 0.0
        %370 = vmatpush1.msra.mxu0 0.0
        %371 = vmatprep.subr.mxu0 0.0
        %372 = vmatpush1.msra.mxu0 0.0
        %373 = vmatprep.subr.mxu0 0.0
        %374 = vmatpush1.msra.mxu0 0.0
        %375 = vmatprep.subr.mxu0 0.0
        %376 = vmatpush1.msra.mxu0 0.0
        %377 = vmatprep.subr.mxu0 0.0
        %378 = vmatpush1.msra.mxu0 0.0
        %379 = vmatprep.subr.mxu0 0.0
        %380 = vmatpush1.msra.mxu0 0.0
        %381 = vmatprep.subr.mxu0 0.0
        %382 = vmatpush1.msra.mxu0 0.0
        %383 = vmatprep.subr.mxu0 0.0
        %384 = vmatpush1.msra.mxu0 %v329
        %385 = vmatprep.subr.mxu0 0.0
        %386 = vmatpush1.msra.mxu0 %v328
        %387 = vmatprep.subr.mxu0 0.0
        %388 = vmatpush1.msra.mxu0 %v327
        %389 = vmatprep.subr.mxu0 0.0
        %390 = vmatpush1.msra.mxu0 %v326
        %391 = vmatprep.subr.mxu0 0.0
        %392 = vmatpush2.msra.mxu0 0.0
        %393 = vmatprep.subr.mxu0 0.0
        %394 = vmatpush2.msra.mxu0 0.0
        %395 = vmatprep.subr.mxu0 0.0
        %396 = vmatpush2.msra.mxu0 0.0
        %397 = vmatprep.subr.mxu0 0.0
        %398 = vmatpush2.msra.mxu0 0.0
        %399 = vmatprep.subr.mxu0 0.0
        %400 = vmatpush2.msra.mxu0 0.0
        %401 = vmatprep.subr.mxu0 0.0
        %402 = vmatpush2.msra.mxu0 0.0
        %403 = vmatprep.subr.mxu0 0.0
        %404 = vmatpush2.msra.mxu0 0.0
        %405 = vmatprep.subr.mxu0 0.0
        %406 = vmatpush2.msra.mxu0 0.0
        %407 = vmatprep.subr.mxu0 0.0
        %408 = vmatpush2.msra.mxu0 0.0
        %409 = vmatprep.subr.mxu0 0.0
        %410 = vmatpush2.msra.mxu0 0.0
        %411 = vmatprep.subr.mxu0 0.0
        %412 = vmatpush2.msra.mxu0 0.0
        %413 = vmatprep.subr.mxu0 0.0
        %414 = vmatpush2.msra.mxu0 0.0
        %415 = vmatprep.subr.mxu0 0.0
        %416 = vmatpush2.msra.mxu0 0.0
        %417 = vmatprep.subr.mxu0 0.0
        %418 = vmatpush2.msra.mxu0 0.0
        %419 = vmatprep.subr.mxu0 0.0
        %420 = vmatpush2.msra.mxu0 0.0
        %421 = vmatprep.subr.mxu0 0.0
        %422 = vmatpush2.msra.mxu0 0.0
        %423 = vmatprep.mubr.f32.mxu0 0.0
        %424 = vmatmul.mubr.f32.gmra.mxu0 %v339
        %v425 = vpop.f32.mrf.mxu0
        %v426 = vadd.f32 %v335, %v425
        %v427 = vpop.f32.mrf.mxu0
        %428 = vmatprep.mubr.f32.mxu0 0.0
        %429 = vmatmul.mubr.f32.gmra.mxu0 %v342
        %v430 = vpop.f32.mrf.mxu0
        %v431 = vadd.f32 %v335, %v430
        %v432 = vpop.f32.mrf.mxu0
        %433 = vmatprep.mubr.f32.mxu0 0.0
        %434 = vmatmul.mubr.f32.gmra.mxu0 %v345
        %v435 = vpop.f32.mrf.mxu0
        %v436 = vadd.f32 %v335, %v435
        %v437 = vpop.f32.mrf.mxu0
        %438 = vmatprep.mubr.f32.mxu0 0.0
        %439 = vmatmul.mubr.f32.gmra.mxu0 %v348
        %v440 = vpop.f32.mrf.mxu0
        %v441 = vadd.f32 %v335, %v440
        %v442 = vpop.f32.mrf.mxu0
        %443 = vmatprep.mubr.f32.mxu0 0.0
        %444 = vmatmul.mubr.f32.gmra.mxu0 %v351
        %v445 = vpop.f32.mrf.mxu0
        %v446 = vadd.f32 %v335, %v445
        %v447 = vpop.f32.mrf.mxu0
        %448 = vmatprep.mubr.f32.mxu0 0.0
        %449 = vmatmul.mubr.f32.gmra.mxu0 %v354
        %v450 = vpop.f32.mrf.mxu0
        %v451 = vadd.f32 %v335, %v450
        %v452 = vpop.f32.mrf.mxu0
        %453 = vmatprep.mubr.f32.mxu0 0.0
        %454 = vmatmul.mubr.f32.gmra.mxu0 %v357
        %v455 = vpop.f32.mrf.mxu0
        %v456 = vadd.f32 %v335, %v455
        %v457 = vpop.f32.mrf.mxu0
        %458 = vdwg.mxu0
        %v459 = vmul.f32 %v426, %v426
        %v460 = vmul.f32 %v431, %v431
        %v461 = vmul.f32 %v436, %v436
        %v462 = vmul.f32 %v441, %v441
        %v463 = vmul.f32 %v446, %v446
        %v464 = vmul.f32 %v451, %v451
        %v465 = vmul.f32 %v456, %v456
        %vm466 = vcmask 64512
        %v467 = vsel %vm466, %v459, 0.0
        %468 = vadd.xlane.f32.xlu0 %v467
        %v469 = vpop.xlane.xlu0 %468
        %v470 = vsel %vm466, %v460, 0.0
        %471 = vadd.xlane.f32.xlu0 %v470
        %v472 = vpop.xlane.xlu0 %471
        %v473 = vsel %vm466, %v461, 0.0
        %474 = vadd.xlane.f32.xlu0 %v473
        %v475 = vpop.xlane.xlu0 %474
        %v476 = vsel %vm466, %v462, 0.0
        %477 = vadd.xlane.f32.xlu0 %v476
        %v478 = vpop.xlane.xlu0 %477
        %v479 = vsel %vm466, %v463, 0.0
        %480 = vadd.xlane.f32.xlu0 %v479
        %v481 = vpop.xlane.xlu0 %480
        %v482 = vsel %vm466, %v464, 0.0
        %483 = vadd.xlane.f32.xlu0 %v482
        %v484 = vpop.xlane.xlu0 %483
        %v485 = vsel %vm466, %v465, 0.0
        %486 = vadd.xlane.f32.xlu0 %v485
        %v487 = vpop.xlane.xlu0 %486
        %v488 = vld [vmem:[%s4] sm:$0x1]
        %v490 = vlaneseq
        %v491 = vshrl.u32 %v490, 7
        %v492 = vsub.s32 0, %v491
        %v493 = vrot.slane %v488, %v492
        %v495 = vadd.f32 %v469, %v493
        %v496 = vadd.f32 %v472, %v493
        %v497 = vadd.f32 %v475, %v493
        %v498 = vadd.f32 %v478, %v493
        %v499 = vadd.f32 %v481, %v493
        %v500 = vadd.f32 %v484, %v493
        %v501 = vadd.f32 %v487, %v493
        %v502 = vld [vmem:[%s3] sm:$0xff]
        %v504 = vsel %vm466, %v426, 0
        %v507 = vsel %vm466, %v431, 0
        %v510 = vsel %vm466, %v436, 0
        %v513 = vsel %vm466, %v441, 0
        %v516 = vsel %vm466, %v446, 0
        %v519 = vsel %vm466, %v451, 0
        %v522 = vsel %vm466, %v456, 0
        %524 = vmatprep.subr.mxu0 0.0
        %525 = vmatpush1.msra.mxu0 0.0
        %526 = vmatprep.subr.mxu0 0.0
        %527 = vmatpush1.msra.mxu0 0.0
        %528 = vmatprep.subr.mxu0 0.0
        %529 = vmatpush1.msra.mxu0 0.0
        %530 = vmatprep.subr.mxu0 0.0
        %531 = vmatpush1.msra.mxu0 0.0
        %532 = vmatprep.subr.mxu0 0.0
        %533 = vmatpush1.msra.mxu0 0.0
        %534 = vmatprep.subr.mxu0 0.0
        %535 = vmatpush1.msra.mxu0 0.0
        %536 = vmatprep.subr.mxu0 0.0
        %537 = vmatpush1.msra.mxu0 0.0
        %538 = vmatprep.subr.mxu0 0.0
        %539 = vmatpush1.msra.mxu0 0.0
        %540 = vmatprep.subr.mxu0 0.0
        %541 = vmatpush1.msra.mxu0 0.0
        %542 = vmatprep.subr.mxu0 0.0
        %543 = vmatpush1.msra.mxu0 0.0
        %544 = vmatprep.subr.mxu0 0.0
        %545 = vmatpush1.msra.mxu0 0.0
        %546 = vmatprep.subr.mxu0 0.0
        %547 = vmatpush1.msra.mxu0 0.0
        %548 = vmatprep.subr.mxu0 0.0
        %549 = vmatpush1.msra.mxu0 0.0
        %550 = vmatprep.subr.mxu0 0.0
        %551 = vmatpush1.msra.mxu0 0.0
        %552 = vmatprep.subr.mxu0 0.0
        %553 = vmatpush1.msra.mxu0 0.0
        %554 = vmatprep.subr.mxu0 0.0
        %555 = vmatpush1.msra.mxu0 %v502
        %556 = vmatprep.subr.mxu0 0.0
        %557 = vmatpush2.msra.mxu0 0.0
        %558 = vmatprep.subr.mxu0 0.0
        %559 = vmatpush2.msra.mxu0 0.0
        %560 = vmatprep.subr.mxu0 0.0
        %561 = vmatpush2.msra.mxu0 0.0
        %562 = vmatprep.subr.mxu0 0.0
        %563 = vmatpush2.msra.mxu0 0.0
        %564 = vmatprep.subr.mxu0 0.0
        %565 = vmatpush2.msra.mxu0 0.0
        %566 = vmatprep.subr.mxu0 0.0
        %567 = vmatpush2.msra.mxu0 0.0
        %568 = vmatprep.subr.mxu0 0.0
        %569 = vmatpush2.msra.mxu0 0.0
        %570 = vmatprep.subr.mxu0 0.0
        %571 = vmatpush2.msra.mxu0 0.0
        %572 = vmatprep.subr.mxu0 0.0
        %573 = vmatpush2.msra.mxu0 0.0
        %574 = vmatprep.subr.mxu0 0.0
        %575 = vmatpush2.msra.mxu0 0.0
        %576 = vmatprep.subr.mxu0 0.0
        %577 = vmatpush2.msra.mxu0 0.0
        %578 = vmatprep.subr.mxu0 0.0
        %579 = vmatpush2.msra.mxu0 0.0
        %580 = vmatprep.subr.mxu0 0.0
        %581 = vmatpush2.msra.mxu0 0.0
        %582 = vmatprep.subr.mxu0 0.0
        %583 = vmatpush2.msra.mxu0 0.0
        %584 = vmatprep.subr.mxu0 0.0
        %585 = vmatpush2.msra.mxu0 0.0
        %586 = vmatprep.subr.mxu0 0.0
        %587 = vmatpush2.msra.mxu0 0.0
        %588 = vmatprep.mubr.f32.mxu0 0.0
        %589 = vmatmul.mubr.f32.gmra.mxu0 %v504
        %v590 = vpop.f32.mrf.mxu0
        %v591 = vadd.f32 0.0, %v590
        %v592 = vpop.f32.mrf.mxu0
        %593 = vmatprep.mubr.f32.mxu0 0.0
        %594 = vmatmul.mubr.f32.gmra.mxu0 %v507
        %v595 = vpop.f32.mrf.mxu0
        %v596 = vadd.f32 0.0, %v595
        %v597 = vpop.f32.mrf.mxu0
        %598 = vmatprep.mubr.f32.mxu0 0.0
        %599 = vmatmul.mubr.f32.gmra.mxu0 %v510
        %v600 = vpop.f32.mrf.mxu0
        %v601 = vadd.f32 0.0, %v600
        %v602 = vpop.f32.mrf.mxu0
        %603 = vmatprep.mubr.f32.mxu0 0.0
        %604 = vmatmul.mubr.f32.gmra.mxu0 %v513
        %v605 = vpop.f32.mrf.mxu0
        %v606 = vadd.f32 0.0, %v605
        %v607 = vpop.f32.mrf.mxu0
        %608 = vmatprep.mubr.f32.mxu0 0.0
        %609 = vmatmul.mubr.f32.gmra.mxu0 %v516
        %v610 = vpop.f32.mrf.mxu0
        %v611 = vadd.f32 0.0, %v610
        %v612 = vpop.f32.mrf.mxu0
        %613 = vmatprep.mubr.f32.mxu0 0.0
        %614 = vmatmul.mubr.f32.gmra.mxu0 %v519
        %v615 = vpop.f32.mrf.mxu0
        %v616 = vadd.f32 0.0, %v615
        %v617 = vpop.f32.mrf.mxu0
        %618 = vmatprep.mubr.f32.mxu0 0.0
        %619 = vmatmul.mubr.f32.gmra.mxu0 %v522
        %v620 = vpop.f32.mrf.mxu0
        %v621 = vadd.f32 0.0, %v620
        %v622 = vpop.f32.mrf.mxu0
        %623 = vdwg.mxu0
        %v624 = vmul.f32 %v591, 2.0
        %v625 = vmul.f32 %v596, 2.0
        %v626 = vmul.f32 %v601, 2.0
        %v627 = vmul.f32 %v606, 2.0
        %v628 = vmul.f32 %v611, 2.0
        %v629 = vmul.f32 %v616, 2.0
        %v630 = vmul.f32 %v621, 2.0
        %v631 = vsub.f32 %v495, %v624
        %v632 = vsub.f32 %v496, %v625
        %v633 = vsub.f32 %v497, %v626
        %v634 = vsub.f32 %v498, %v627
        %v635 = vsub.f32 %v499, %v628
        %v636 = vsub.f32 %v500, %v629
        %v637 = vsub.f32 %v501, %v630
        %vm638 = vcmask 130048
        %v639 = vsel %vm638, %v631, inf
        %640 = vmin.xlane.f32.xlu0 %v639
        %v641 = vpop.xlane.xlu0 %640
        %v642 = vsel %vm638, %v632, inf
        %643 = vmin.xlane.f32.xlu0 %v642
        %v644 = vpop.xlane.xlu0 %643
        %v645 = vsel %vm638, %v633, inf
        %646 = vmin.xlane.f32.xlu0 %v645
        %v647 = vpop.xlane.xlu0 %646
        %v648 = vsel %vm638, %v634, inf
        %649 = vmin.xlane.f32.xlu0 %v648
        %v650 = vpop.xlane.xlu0 %649
        %v651 = vsel %vm638, %v635, inf
        %652 = vmin.xlane.f32.xlu0 %v651
        %v653 = vpop.xlane.xlu0 %652
        %v654 = vsel %vm638, %v636, inf
        %655 = vmin.xlane.f32.xlu0 %v654
        %v656 = vpop.xlane.xlu0 %655
        %v657 = vsel %vm638, %v637, inf
        %658 = vmin.xlane.f32.xlu0 %v657
        %v659 = vpop.xlane.xlu0 %658
        %v660 = vlaneseq
        %v661 = vand.u32 %v660, 127
        %vm662 = vcmp.le.f32.partialorder %v631, %v641
        %vm663 = vcmp.le.f32.partialorder %v632, %v644
        %vm664 = vcmp.le.f32.partialorder %v633, %v647
        %vm665 = vcmp.le.f32.partialorder %v634, %v650
        %vm666 = vcmp.le.f32.partialorder %v635, %v653
        %vm667 = vcmp.le.f32.partialorder %v636, %v656
        %vm668 = vcmp.le.f32.partialorder %v637, %v659
        %v669 = vsel %vm662, %v661, 16
        %v670 = vsel %vm663, %v661, 16
        %v671 = vsel %vm664, %v661, 16
        %v672 = vsel %vm665, %v661, 16
        %v673 = vsel %vm666, %v661, 16
        %v674 = vsel %vm667, %v661, 16
        %v675 = vsel %vm668, %v661, 16
        %v676 = vsel %vm638, %v669, 2147483647
        %v677 = vand.u32 %v676, 65535
        %v678 = vshra.s32 %v676, 16
        %v679 = vcvt.s32.f32 %v677
        %v680 = vcvt.s32.f32 %v678
        %681 = vmin.xlane.f32.xlu0 %v680
        %v682 = vpop.xlane.xlu0 %681
        %vm683 = vcmp.eq.f32.partialorder %v680, %v682
        %v684 = vsel %vm683, %v679, inf
        %685 = vmin.xlane.f32.xlu0 %v684
        %v686 = vpop.xlane.xlu0 %685
        %v687 = vcvt.f32.s32 %v686
        %v688 = vcvt.f32.s32 %v682
        %v689 = vshll.u32 %v688, 16
        %v690 = vadd.s32 %v689, %v687
        %v691 = vsel %vm638, %v670, 2147483647
        %v692 = vand.u32 %v691, 65535
        %v693 = vshra.s32 %v691, 16
        %v694 = vcvt.s32.f32 %v692
        %v695 = vcvt.s32.f32 %v693
        %696 = vmin.xlane.f32.xlu0 %v695
        %v697 = vpop.xlane.xlu0 %696
        %vm698 = vcmp.eq.f32.partialorder %v695, %v697
        %v699 = vsel %vm698, %v694, inf
        %700 = vmin.xlane.f32.xlu0 %v699
        %v701 = vpop.xlane.xlu0 %700
        %v702 = vcvt.f32.s32 %v701
        %v703 = vcvt.f32.s32 %v697
        %v704 = vshll.u32 %v703, 16
        %v705 = vadd.s32 %v704, %v702
        %v706 = vsel %vm638, %v671, 2147483647
        %v707 = vand.u32 %v706, 65535
        %v708 = vshra.s32 %v706, 16
        %v709 = vcvt.s32.f32 %v707
        %v710 = vcvt.s32.f32 %v708
        %711 = vmin.xlane.f32.xlu0 %v710
        %v712 = vpop.xlane.xlu0 %711
        %vm713 = vcmp.eq.f32.partialorder %v710, %v712
        %v714 = vsel %vm713, %v709, inf
        %715 = vmin.xlane.f32.xlu0 %v714
        %v716 = vpop.xlane.xlu0 %715
        %v717 = vcvt.f32.s32 %v716
        %v718 = vcvt.f32.s32 %v712
        %v719 = vshll.u32 %v718, 16
        %v720 = vadd.s32 %v719, %v717
        %v721 = vsel %vm638, %v672, 2147483647
        %v722 = vand.u32 %v721, 65535
        %v723 = vshra.s32 %v721, 16
        %v724 = vcvt.s32.f32 %v722
        %v725 = vcvt.s32.f32 %v723
        %726 = vmin.xlane.f32.xlu0 %v725
        %v727 = vpop.xlane.xlu0 %726
        %vm728 = vcmp.eq.f32.partialorder %v725, %v727
        %v729 = vsel %vm728, %v724, inf
        %730 = vmin.xlane.f32.xlu0 %v729
        %v731 = vpop.xlane.xlu0 %730
        %v732 = vcvt.f32.s32 %v731
        %v733 = vcvt.f32.s32 %v727
        %v734 = vshll.u32 %v733, 16
        %v735 = vadd.s32 %v734, %v732
        %v736 = vsel %vm638, %v673, 2147483647
        %v737 = vand.u32 %v736, 65535
        %v738 = vshra.s32 %v736, 16
        %v739 = vcvt.s32.f32 %v737
        %v740 = vcvt.s32.f32 %v738
        %741 = vmin.xlane.f32.xlu0 %v740
        %v742 = vpop.xlane.xlu0 %741
        %vm743 = vcmp.eq.f32.partialorder %v740, %v742
        %v744 = vsel %vm743, %v739, inf
        %745 = vmin.xlane.f32.xlu0 %v744
        %v746 = vpop.xlane.xlu0 %745
        %v747 = vcvt.f32.s32 %v746
        %v748 = vcvt.f32.s32 %v742
        %v749 = vshll.u32 %v748, 16
        %v750 = vadd.s32 %v749, %v747
        %v751 = vsel %vm638, %v674, 2147483647
        %v752 = vand.u32 %v751, 65535
        %v753 = vshra.s32 %v751, 16
        %v754 = vcvt.s32.f32 %v752
        %v755 = vcvt.s32.f32 %v753
        %756 = vmin.xlane.f32.xlu0 %v755
        %v757 = vpop.xlane.xlu0 %756
        %vm758 = vcmp.eq.f32.partialorder %v755, %v757
        %v759 = vsel %vm758, %v754, inf
        %760 = vmin.xlane.f32.xlu0 %v759
        %v761 = vpop.xlane.xlu0 %760
        %v762 = vcvt.f32.s32 %v761
        %v763 = vcvt.f32.s32 %v757
        %v764 = vshll.u32 %v763, 16
        %v765 = vadd.s32 %v764, %v762
        %v766 = vsel %vm638, %v675, 2147483647
        %v767 = vand.u32 %v766, 65535
        %v768 = vshra.s32 %v766, 16
        %v769 = vcvt.s32.f32 %v767
        %v770 = vcvt.s32.f32 %v768
        %771 = vmin.xlane.f32.xlu0 %v770
        %v772 = vpop.xlane.xlu0 %771
        %vm773 = vcmp.eq.f32.partialorder %v770, %v772
        %v774 = vsel %vm773, %v769, inf
        %775 = vmin.xlane.f32.xlu0 %v774
        %v776 = vpop.xlane.xlu0 %775
        %v777 = vcvt.f32.s32 %v776
        %v778 = vcvt.f32.s32 %v772
        %v779 = vshll.u32 %v778, 16
        %v780 = vadd.s32 %v779, %v777
        %vm781 = vcmask 7168
        %782 = vst.msk [vmem:[%s281] sm:$0xff] %vm781, %v690
        %783 = vst.msk [vmem:[%s281 + $0x8] sm:$0xff] %vm781, %v705
        %784 = vst.msk [vmem:[%s281 + $0x10] sm:$0xff] %vm781, %v720
        %785 = vst.msk [vmem:[%s281 + $0x18] sm:$0xff] %vm781, %v735
        %786 = vst.msk [vmem:[%s281 + $0x20] sm:$0xff] %vm781, %v750
        %787 = vst.msk [vmem:[%s281 + $0x28] sm:$0xff] %vm781, %v765
        %788 = vst.msk [vmem:[%s281 + $0x30] sm:$0xff] %vm781, %v780
        %vm789 = vcmp.eq.s32.totalorder %v661, %v690
        %vm790 = vcmp.eq.s32.totalorder %v661, %v705
        %vm791 = vcmp.eq.s32.totalorder %v661, %v720
        %vm792 = vcmp.eq.s32.totalorder %v661, %v735
        %vm793 = vcmp.eq.s32.totalorder %v661, %v750
        %vm794 = vcmp.eq.s32.totalorder %v661, %v765
        %vm795 = vcmp.eq.s32.totalorder %v661, %v780
        %v796 = vsel %vm789, 1, 0
        %v797 = vsel %vm790, 1, 0
        %v798 = vsel %vm791, 1, 0
        %v799 = vsel %vm792, 1, 0
        %v800 = vsel %vm793, 1, 0
        %v801 = vsel %vm794, 1, 0
        %v802 = vsel %vm795, 1, 0
        %v803 = vcvt.s32.f32 %v796
        %v804 = vcvt.s32.f32 %v797
        %v805 = vcvt.s32.f32 %v798
        %v806 = vcvt.s32.f32 %v799
        %v807 = vcvt.s32.f32 %v800
        %v808 = vcvt.s32.f32 %v801
        %v809 = vcvt.s32.f32 %v802
        %v810 = vld [vmem:[%s5] sm:$0xff]
        %v811 = vld [vmem:[%s5 + $0x8] sm:$0xff]
        %v813 = vsel %vm638, %v803, 0
        %v816 = vsel %vm638, %v804, 0
        %v819 = vsel %vm638, %v805, 0
        %v822 = vsel %vm638, %v806, 0
        %v825 = vsel %vm638, %v807, 0
        %v828 = vsel %vm638, %v808, 0
        %v831 = vsel %vm638, %v809, 0
        %833 = vmatprep.subr.mxu0 0.0
        %834 = vmatpush1.msra.mxu0 0.0
        %835 = vmatprep.subr.mxu0 0.0
        %836 = vmatpush1.msra.mxu0 0.0
        %837 = vmatprep.subr.mxu0 0.0
        %838 = vmatpush1.msra.mxu0 0.0
        %839 = vmatprep.subr.mxu0 0.0
        %840 = vmatpush1.msra.mxu0 0.0
        %841 = vmatprep.subr.mxu0 0.0
        %842 = vmatpush1.msra.mxu0 0.0
        %843 = vmatprep.subr.mxu0 0.0
        %844 = vmatpush1.msra.mxu0 0.0
        %845 = vmatprep.subr.mxu0 0.0
        %846 = vmatpush1.msra.mxu0 0.0
        %847 = vmatprep.subr.mxu0 0.0
        %848 = vmatpush1.msra.mxu0 0.0
        %849 = vmatprep.subr.mxu0 0.0
        %850 = vmatpush1.msra.mxu0 0.0
        %851 = vmatprep.subr.mxu0 0.0
        %852 = vmatpush1.msra.mxu0 0.0
        %853 = vmatprep.subr.mxu0 0.0
        %854 = vmatpush1.msra.mxu0 0.0
        %855 = vmatprep.subr.mxu0 0.0
        %856 = vmatpush1.msra.mxu0 0.0
        %857 = vmatprep.subr.mxu0 0.0
        %858 = vmatpush1.msra.mxu0 0.0
        %859 = vmatprep.subr.mxu0 0.0
        %860 = vmatpush1.msra.mxu0 0.0
        %861 = vmatprep.subr.mxu0 0.0
        %862 = vmatpush1.msra.mxu0 %v811
        %863 = vmatprep.subr.mxu0 0.0
        %864 = vmatpush1.msra.mxu0 %v810
        %865 = vmatprep.subr.mxu0 0.0
        %866 = vmatpush2.msra.mxu0 0.0
        %867 = vmatprep.subr.mxu0 0.0
        %868 = vmatpush2.msra.mxu0 0.0
        %869 = vmatprep.subr.mxu0 0.0
        %870 = vmatpush2.msra.mxu0 0.0
        %871 = vmatprep.subr.mxu0 0.0
        %872 = vmatpush2.msra.mxu0 0.0
        %873 = vmatprep.subr.mxu0 0.0
        %874 = vmatpush2.msra.mxu0 0.0
        %875 = vmatprep.subr.mxu0 0.0
        %876 = vmatpush2.msra.mxu0 0.0
        %877 = vmatprep.subr.mxu0 0.0
        %878 = vmatpush2.msra.mxu0 0.0
        %879 = vmatprep.subr.mxu0 0.0
        %880 = vmatpush2.msra.mxu0 0.0
        %881 = vmatprep.subr.mxu0 0.0
        %882 = vmatpush2.msra.mxu0 0.0
        %883 = vmatprep.subr.mxu0 0.0
        %884 = vmatpush2.msra.mxu0 0.0
        %885 = vmatprep.subr.mxu0 0.0
        %886 = vmatpush2.msra.mxu0 0.0
        %887 = vmatprep.subr.mxu0 0.0
        %888 = vmatpush2.msra.mxu0 0.0
        %889 = vmatprep.subr.mxu0 0.0
        %890 = vmatpush2.msra.mxu0 0.0
        %891 = vmatprep.subr.mxu0 0.0
        %892 = vmatpush2.msra.mxu0 0.0
        %893 = vmatprep.subr.mxu0 0.0
        %894 = vmatpush2.msra.mxu0 0.0
        %895 = vmatprep.subr.mxu0 0.0
        %896 = vmatpush2.msra.mxu0 0.0
        %897 = vmatprep.mubr.f32.mxu0 0.0
        %898 = vmatmul.mubr.f32.gmra.mxu0 %v813
        %v899 = vpop.f32.mrf.mxu0
        %v900 = vadd.f32 0.0, %v899
        %v901 = vpop.f32.mrf.mxu0
        %902 = vmatprep.mubr.f32.mxu0 0.0
        %903 = vmatmul.mubr.f32.gmra.mxu0 %v816
        %v904 = vpop.f32.mrf.mxu0
        %v905 = vadd.f32 0.0, %v904
        %v906 = vpop.f32.mrf.mxu0
        %907 = vmatprep.mubr.f32.mxu0 0.0
        %908 = vmatmul.mubr.f32.gmra.mxu0 %v819
        %v909 = vpop.f32.mrf.mxu0
        %v910 = vadd.f32 0.0, %v909
        %v911 = vpop.f32.mrf.mxu0
        %912 = vmatprep.mubr.f32.mxu0 0.0
        %913 = vmatmul.mubr.f32.gmra.mxu0 %v822
        %v914 = vpop.f32.mrf.mxu0
        %v915 = vadd.f32 0.0, %v914
        %v916 = vpop.f32.mrf.mxu0
        %917 = vmatprep.mubr.f32.mxu0 0.0
        %918 = vmatmul.mubr.f32.gmra.mxu0 %v825
        %v919 = vpop.f32.mrf.mxu0
        %v920 = vadd.f32 0.0, %v919
        %v921 = vpop.f32.mrf.mxu0
        %922 = vmatprep.mubr.f32.mxu0 0.0
        %923 = vmatmul.mubr.f32.gmra.mxu0 %v828
        %v924 = vpop.f32.mrf.mxu0
        %v925 = vadd.f32 0.0, %v924
        %v926 = vpop.f32.mrf.mxu0
        %927 = vmatprep.mubr.f32.mxu0 0.0
        %928 = vmatmul.mubr.f32.gmra.mxu0 %v831
        %v929 = vpop.f32.mrf.mxu0
        %v930 = vadd.f32 0.0, %v929
        %v931 = vpop.f32.mrf.mxu0
        %932 = vdwg.mxu0
        %933 = vst.msk [vmem:[%s287] sm:$0xff] %vm466, %v900
        %934 = vst.msk [vmem:[%s287 + $0x8] sm:$0xff] %vm466, %v905
        %935 = vst.msk [vmem:[%s287 + $0x10] sm:$0xff] %vm466, %v910
        %936 = vst.msk [vmem:[%s287 + $0x18] sm:$0xff] %vm466, %v915
        %937 = vst.msk [vmem:[%s287 + $0x20] sm:$0xff] %vm466, %v920
        %938 = vst.msk [vmem:[%s287 + $0x28] sm:$0xff] %vm466, %v925
        %939 = vst.msk [vmem:[%s287 + $0x30] sm:$0xff] %vm466, %v930
        %s940 = sand.u32 %s158, 1
        %s941 = sand.u32 %s158, 1
        %s942 = smul.addr %s941, 56
        %s943 = scalar_lea.vmem [#allocation2], %s942
        %s944 = sand.u32 %s184, 1
        %s945 = sand.u32 %s184, 1
        %s946 = smul.addr %s945, 56
        %s947 = scalar_lea.vmem [#allocation3], %s946
        // Predicated region
        $region45: #{vqvae_forward.16} parent=43 // pred_check
          %p948 = pneg %p168
        $region46: #{vqvae_forward.16} parent=43 // pred_check_branch
          %950 = sbr.rel (%p948) target = $region48
        $region47: #{vqvae_forward.16} parent=43 // pred_region
          %s951 = smul.u32 7, %s19
          %s952 = ssub.s32 13, %s951
          %p953 = scmp.lt.s32.totalorder %s952, 7
          %s954 = scalar_select %p953, %s952, 7
          %s955 = smul.u32 128, %s954
          %p956 = scmp.ne.s32.totalorder 0, %s955
          %s957 = smul.addr %s951, 8
          %s958 = scalar_lea.vmem %s6, %s957
          // Predicated region
          $region49: #{vqvae_forward.16} parent=47 // pred_check
            %p959 = pneg %p956
          $region50: #{vqvae_forward.16} parent=47 // pred_check_branch
            %961 = sbr.rel (%p959) target = $region52
          $region51: #{vqvae_forward.16} parent=47 // pred_region
            // Predicated region
            $region53: #{vqvae_forward.16} parent=51 // pred_check
              _
            $region54: #{vqvae_forward.16} parent=51 // pred_check_branch
              %963 = sbr.rel (0) target = $region56
            $region55: #{vqvae_forward.16} parent=51 // pred_region
              // Predicated region
              $region75: #{vqvae_forward.16} parent=55 // pred_check
                _
              $region76: #{vqvae_forward.16} parent=55 // pred_check_branch
                %1026 = sbr.rel (0) target = $region78
              $region77: #{vqvae_forward.16} parent=55 // pred_region
                %s1027 = sdiv.u32.pop %s954, 7
                %s1028 = srem.u32.pop %s954, 7
                // While loop
                $region79: #{vqvae_forward.16} parent=77 // loop_pre_header
                  _
                $region80: #{vqvae_forward.16} parent=77 // loop_header
                  %s1030 = sphi 0, %s1032
                  %p1031 = scmp.ge.s32.totalorder %s1030, %s1027
                  %s1035 = sphi 0, %s1054
                  %s1036 = sphi %s943, %s1057
                  %s1037 = sphi %s958, %s1058
                $region81: #{vqvae_forward.16} parent=77 // loop_header_branch
                  %1034 = sbr.rel (%p1031) target = $region85
                $region82: #{vqvae_forward.16} parent=77 // loop_body
                  %v1038 = vld [vmem:[%s1036] sm:$0xff]
                  %1039 = vst [vmem:[%s1037] sm:$0xff] %v1038
                  %v1040 = vld [vmem:[%s1036 + $0x8] sm:$0xff]
                  %1041 = vst [vmem:[%s1037 + $0x8] sm:$0xff] %v1040
                  %v1042 = vld [vmem:[%s1036 + $0x10] sm:$0xff]
                  %1043 = vst [vmem:[%s1037 + $0x10] sm:$0xff] %v1042
                  %v1044 = vld [vmem:[%s1036 + $0x18] sm:$0xff]
                  %1045 = vst [vmem:[%s1037 + $0x18] sm:$0xff] %v1044
                  %v1046 = vld [vmem:[%s1036 + $0x20] sm:$0xff]
                  %1047 = vst [vmem:[%s1037 + $0x20] sm:$0xff] %v1046
                  %v1048 = vld [vmem:[%s1036 + $0x28] sm:$0xff]
                  %1049 = vst [vmem:[%s1037 + $0x28] sm:$0xff] %v1048
                  %v1050 = vld [vmem:[%s1036 + $0x30] sm:$0xff]
                  %1051 = vst [vmem:[%s1037 + $0x30] sm:$0xff] %v1050
                  %s1052 = sadd.s32 1, %s1035
                  %p1053 = scmp.ge.s32.totalorder %s1052, %s1027
                  %s1054 = scalar_select %p1053, 0, %s1052
                  %s1055 = smul.u32 %s1054, 56
                  %s1056 = smul.u32 %s1054, 56
                  %s1057 = scalar_lea.vmem %s943, %s1055 [#allocation2]
                  %s1058 = scalar_lea.vmem %s958, %s1056
                $region83: #{vqvae_forward.16} parent=77 // loop_footer
                  %s1032 = sadd.s32 %s1030, 1
                $region84: #{vqvae_forward.16} parent=77 // loop_footer_branch
                  %1029 = sbr.rel target = $region80
                $region85: #{vqvae_forward.16} parent=77 // loop_exit
                  _
                %s1059 = sdiv.u32.pop %s954, 7
                %s1060 = srem.u32.pop %s954, 7
                %s1061 = smul.u32 %s1059, 7
                %s1062 = smul.u32 8, %s1061
                %s1063 = scalar_lea.vmem %s943, %s1062 [#allocation2]
                %s1064 = smul.u32 8, %s1061
                %s1065 = scalar_lea.vmem %s958, %s1064
                // While loop
                $region86: #{vqvae_forward.16} parent=77 // loop_pre_header
                  _
                $region87: #{vqvae_forward.16} parent=77 // loop_header
                  %s1067 = sphi 0, %s1069
                  %p1068 = scmp.ge.s32.totalorder %s1067, %s1060
                  %s1072 = sphi 0, %s1079
                  %s1073 = sphi %s1063, %s1082
                  %s1074 = sphi %s1065, %s1083
                $region88: #{vqvae_forward.16} parent=77 // loop_header_branch
                  %1071 = sbr.rel (%p1068) target = $region92
                $region89: #{vqvae_forward.16} parent=77 // loop_body
                  %v1075 = vld [vmem:[%s1073] sm:$0xff]
                  %1076 = vst [vmem:[%s1074] sm:$0xff] %v1075
                  %s1077 = sadd.s32 1, %s1072
                  %p1078 = scmp.ge.s32.totalorder %s1077, %s1060
                  %s1079 = scalar_select %p1078, 0, %s1077
                  %s1080 = smul.u32 %s1079, 8
                  %s1081 = smul.u32 %s1079, 8
                  %s1082 = scalar_lea.vmem %s1063, %s1080 [#allocation2]
                  %s1083 = scalar_lea.vmem %s1065, %s1081
                $region90: #{vqvae_forward.16} parent=77 // loop_footer
                  %s1069 = sadd.s32 %s1067, 1
                $region91: #{vqvae_forward.16} parent=77 // loop_footer_branch
                  %1066 = sbr.rel target = $region87
                $region92: #{vqvae_forward.16} parent=77 // loop_exit
                  _
              $region78: #{vqvae_forward.16} parent=55 // pred_fallthru
                _
              // Predicated region
              $region93: #{vqvae_forward.16} parent=55 // pred_check
                _
              $region94: #{vqvae_forward.16} parent=55 // pred_check_branch
                %1085 = sbr.rel target = $region96
              $region95: #{vqvae_forward.16} parent=55 // pred_region
                _
              $region96: #{vqvae_forward.16} parent=55 // pred_fallthru
                _
            $region56: #{vqvae_forward.16} parent=51 // pred_fallthru
              _
            // Predicated region
            $region57: #{vqvae_forward.16} parent=51 // pred_check
              _
            $region58: #{vqvae_forward.16} parent=51 // pred_check_branch
              %965 = sbr.rel target = $region60
            $region59: #{vqvae_forward.16} parent=51 // pred_region
              %s967 = ssub.s32 256, 1
              %s968 = sdiv.u32.pop %s954, 7
              %s969 = srem.u32.pop %s954, 7
              // While loop
              $region61: #{vqvae_forward.16} parent=59 // loop_pre_header
                _
              $region62: #{vqvae_forward.16} parent=59 // loop_header
                %s971 = sphi 0, %s973
                %p972 = scmp.ge.s32.totalorder %s971, %s968
                %s976 = sphi 0, %s995
                %s977 = sphi %s943, %s998
                %s978 = sphi %s958, %s999
              $region63: #{vqvae_forward.16} parent=59 // loop_header_branch
                %975 = sbr.rel (%p972) target = $region67
              $region64: #{vqvae_forward.16} parent=59 // loop_body
                %v979 = vld [vmem:[%s977] sm:%s967]
                %980 = vst [vmem:[%s978] sm:%s967] %v979
                %v981 = vld [vmem:[%s977 + $0x8] sm:%s967]
                %982 = vst [vmem:[%s978 + $0x8] sm:%s967] %v981
                %v983 = vld [vmem:[%s977 + $0x10] sm:%s967]
                %984 = vst [vmem:[%s978 + $0x10] sm:%s967] %v983
                %v985 = vld [vmem:[%s977 + $0x18] sm:%s967]
                %986 = vst [vmem:[%s978 + $0x18] sm:%s967] %v985
                %v987 = vld [vmem:[%s977 + $0x20] sm:%s967]
                %988 = vst [vmem:[%s978 + $0x20] sm:%s967] %v987
                %v989 = vld [vmem:[%s977 + $0x28] sm:%s967]
                %990 = vst [vmem:[%s978 + $0x28] sm:%s967] %v989
                %v991 = vld [vmem:[%s977 + $0x30] sm:%s967]
                %992 = vst [vmem:[%s978 + $0x30] sm:%s967] %v991
                %s993 = sadd.s32 1, %s976
                %p994 = scmp.ge.s32.totalorder %s993, %s968
                %s995 = scalar_select %p994, 0, %s993
                %s996 = smul.u32 %s995, 56
                %s997 = smul.u32 %s995, 56
                %s998 = scalar_lea.vmem %s943, %s996 [#allocation2]
                %s999 = scalar_lea.vmem %s958, %s997
              $region65: #{vqvae_forward.16} parent=59 // loop_footer
                %s973 = sadd.s32 %s971, 1
              $region66: #{vqvae_forward.16} parent=59 // loop_footer_branch
                %970 = sbr.rel target = $region62
              $region67: #{vqvae_forward.16} parent=59 // loop_exit
                _
              %s1000 = sdiv.u32.pop %s954, 7
              %s1001 = srem.u32.pop %s954, 7
              %s1002 = smul.u32 %s1000, 7
              %s1003 = smul.u32 8, %s1002
              %s1004 = scalar_lea.vmem %s943, %s1003 [#allocation2]
              %s1005 = smul.u32 8, %s1002
              %s1006 = scalar_lea.vmem %s958, %s1005
              // While loop
              $region68: #{vqvae_forward.16} parent=59 // loop_pre_header
                _
              $region69: #{vqvae_forward.16} parent=59 // loop_header
                %s1008 = sphi 0, %s1010
                %p1009 = scmp.ge.s32.totalorder %s1008, %s1001
                %s1013 = sphi 0, %s1020
                %s1014 = sphi %s1004, %s1023
                %s1015 = sphi %s1006, %s1024
              $region70: #{vqvae_forward.16} parent=59 // loop_header_branch
                %1012 = sbr.rel (%p1009) target = $region74
              $region71: #{vqvae_forward.16} parent=59 // loop_body
                %v1016 = vld [vmem:[%s1014] sm:%s967]
                %1017 = vst [vmem:[%s1015] sm:%s967] %v1016
                %s1018 = sadd.s32 1, %s1013
                %p1019 = scmp.ge.s32.totalorder %s1018, %s1001
                %s1020 = scalar_select %p1019, 0, %s1018
                %s1021 = smul.u32 %s1020, 8
                %s1022 = smul.u32 %s1020, 8
                %s1023 = scalar_lea.vmem %s1004, %s1021 [#allocation2]
                %s1024 = scalar_lea.vmem %s1006, %s1022
              $region72: #{vqvae_forward.16} parent=59 // loop_footer
                %s1010 = sadd.s32 %s1008, 1
              $region73: #{vqvae_forward.16} parent=59 // loop_footer_branch
                %1007 = sbr.rel target = $region69
              $region74: #{vqvae_forward.16} parent=59 // loop_exit
                _
            $region60: #{vqvae_forward.16} parent=51 // pred_fallthru
              _
          $region52: #{vqvae_forward.16} parent=47 // pred_fallthru
            _
          %1086 = vnop
        $region48: #{vqvae_forward.16} parent=43 // pred_fallthru
          _
        // Predicated region
        $region97: #{vqvae_forward.16} parent=43 // pred_check
          %p1087 = pneg %p194
        $region98: #{vqvae_forward.16} parent=43 // pred_check_branch
          %1089 = sbr.rel (%p1087) target = $region100
        $region99: #{vqvae_forward.16} parent=43 // pred_region
          %s1090 = smul.u32 7, %s19
          %s1091 = ssub.s32 13, %s1090
          %p1092 = scmp.lt.s32.totalorder %s1091, 7
          %s1093 = scalar_select %p1092, %s1091, 7
          %s1094 = smul.u32 128, %s1093
          %p1095 = scmp.ne.s32.totalorder 0, %s1094
          %s1096 = smul.addr %s1090, 8
          %s1097 = scalar_lea.vmem %s7, %s1096
          // Predicated region
          $region101: #{vqvae_forward.16} parent=99 // pred_check
            %p1098 = pneg %p1095
          $region102: #{vqvae_forward.16} parent=99 // pred_check_branch
            %1100 = sbr.rel (%p1098) target = $region104
          $region103: #{vqvae_forward.16} parent=99 // pred_region
            // Predicated region
            $region105: #{vqvae_forward.16} parent=103 // pred_check
              _
            $region106: #{vqvae_forward.16} parent=103 // pred_check_branch
              %1102 = sbr.rel (0) target = $region108
            $region107: #{vqvae_forward.16} parent=103 // pred_region
              // Predicated region
              $region127: #{vqvae_forward.16} parent=107 // pred_check
                _
              $region128: #{vqvae_forward.16} parent=107 // pred_check_branch
                %1165 = sbr.rel (0) target = $region130
              $region129: #{vqvae_forward.16} parent=107 // pred_region
                %s1166 = sdiv.u32.pop %s1093, 7
                %s1167 = srem.u32.pop %s1093, 7
                // While loop
                $region131: #{vqvae_forward.16} parent=129 // loop_pre_header
                  _
                $region132: #{vqvae_forward.16} parent=129 // loop_header
                  %s1169 = sphi 0, %s1171
                  %p1170 = scmp.ge.s32.totalorder %s1169, %s1166
                  %s1174 = sphi 0, %s1193
                  %s1175 = sphi %s947, %s1196
                  %s1176 = sphi %s1097, %s1197
                $region133: #{vqvae_forward.16} parent=129 // loop_header_branch
                  %1173 = sbr.rel (%p1170) target = $region137
                $region134: #{vqvae_forward.16} parent=129 // loop_body
                  %v1177 = vld [vmem:[%s1175] sm:$0xff]
                  %1178 = vst [vmem:[%s1176] sm:$0xff] %v1177
                  %v1179 = vld [vmem:[%s1175 + $0x8] sm:$0xff]
                  %1180 = vst [vmem:[%s1176 + $0x8] sm:$0xff] %v1179
                  %v1181 = vld [vmem:[%s1175 + $0x10] sm:$0xff]
                  %1182 = vst [vmem:[%s1176 + $0x10] sm:$0xff] %v1181
                  %v1183 = vld [vmem:[%s1175 + $0x18] sm:$0xff]
                  %1184 = vst [vmem:[%s1176 + $0x18] sm:$0xff] %v1183
                  %v1185 = vld [vmem:[%s1175 + $0x20] sm:$0xff]
                  %1186 = vst [vmem:[%s1176 + $0x20] sm:$0xff] %v1185
                  %v1187 = vld [vmem:[%s1175 + $0x28] sm:$0xff]
                  %1188 = vst [vmem:[%s1176 + $0x28] sm:$0xff] %v1187
                  %v1189 = vld [vmem:[%s1175 + $0x30] sm:$0xff]
                  %1190 = vst [vmem:[%s1176 + $0x30] sm:$0xff] %v1189
                  %s1191 = sadd.s32 1, %s1174
                  %p1192 = scmp.ge.s32.totalorder %s1191, %s1166
                  %s1193 = scalar_select %p1192, 0, %s1191
                  %s1194 = smul.u32 %s1193, 56
                  %s1195 = smul.u32 %s1193, 56
                  %s1196 = scalar_lea.vmem %s947, %s1194 [#allocation3]
                  %s1197 = scalar_lea.vmem %s1097, %s1195
                $region135: #{vqvae_forward.16} parent=129 // loop_footer
                  %s1171 = sadd.s32 %s1169, 1
                $region136: #{vqvae_forward.16} parent=129 // loop_footer_branch
                  %1168 = sbr.rel target = $region132
                $region137: #{vqvae_forward.16} parent=129 // loop_exit
                  _
                %s1198 = sdiv.u32.pop %s1093, 7
                %s1199 = srem.u32.pop %s1093, 7
                %s1200 = smul.u32 %s1198, 7
                %s1201 = smul.u32 8, %s1200
                %s1202 = scalar_lea.vmem %s947, %s1201 [#allocation3]
                %s1203 = smul.u32 8, %s1200
                %s1204 = scalar_lea.vmem %s1097, %s1203
                // While loop
                $region138: #{vqvae_forward.16} parent=129 // loop_pre_header
                  _
                $region139: #{vqvae_forward.16} parent=129 // loop_header
                  %s1206 = sphi 0, %s1208
                  %p1207 = scmp.ge.s32.totalorder %s1206, %s1199
                  %s1211 = sphi 0, %s1218
                  %s1212 = sphi %s1202, %s1221
                  %s1213 = sphi %s1204, %s1222
                $region140: #{vqvae_forward.16} parent=129 // loop_header_branch
                  %1210 = sbr.rel (%p1207) target = $region144
                $region141: #{vqvae_forward.16} parent=129 // loop_body
                  %v1214 = vld [vmem:[%s1212] sm:$0xff]
                  %1215 = vst [vmem:[%s1213] sm:$0xff] %v1214
                  %s1216 = sadd.s32 1, %s1211
                  %p1217 = scmp.ge.s32.totalorder %s1216, %s1199
                  %s1218 = scalar_select %p1217, 0, %s1216
                  %s1219 = smul.u32 %s1218, 8
                  %s1220 = smul.u32 %s1218, 8
                  %s1221 = scalar_lea.vmem %s1202, %s1219 [#allocation3]
                  %s1222 = scalar_lea.vmem %s1204, %s1220
                $region142: #{vqvae_forward.16} parent=129 // loop_footer
                  %s1208 = sadd.s32 %s1206, 1
                $region143: #{vqvae_forward.16} parent=129 // loop_footer_branch
                  %1205 = sbr.rel target = $region139
                $region144: #{vqvae_forward.16} parent=129 // loop_exit
                  _
              $region130: #{vqvae_forward.16} parent=107 // pred_fallthru
                _
              // Predicated region
              $region145: #{vqvae_forward.16} parent=107 // pred_check
                _
              $region146: #{vqvae_forward.16} parent=107 // pred_check_branch
                %1224 = sbr.rel target = $region148
              $region147: #{vqvae_forward.16} parent=107 // pred_region
                _
              $region148: #{vqvae_forward.16} parent=107 // pred_fallthru
                _
            $region108: #{vqvae_forward.16} parent=103 // pred_fallthru
              _
            // Predicated region
            $region109: #{vqvae_forward.16} parent=103 // pred_check
              _
            $region110: #{vqvae_forward.16} parent=103 // pred_check_branch
              %1104 = sbr.rel target = $region112
            $region111: #{vqvae_forward.16} parent=103 // pred_region
              %s1106 = ssub.s32 256, 1
              %s1107 = sdiv.u32.pop %s1093, 7
              %s1108 = srem.u32.pop %s1093, 7
              // While loop
              $region113: #{vqvae_forward.16} parent=111 // loop_pre_header
                _
              $region114: #{vqvae_forward.16} parent=111 // loop_header
                %s1110 = sphi 0, %s1112
                %p1111 = scmp.ge.s32.totalorder %s1110, %s1107
                %s1115 = sphi 0, %s1134
                %s1116 = sphi %s947, %s1137
                %s1117 = sphi %s1097, %s1138
              $region115: #{vqvae_forward.16} parent=111 // loop_header_branch
                %1114 = sbr.rel (%p1111) target = $region119
              $region116: #{vqvae_forward.16} parent=111 // loop_body
                %v1118 = vld [vmem:[%s1116] sm:%s1106]
                %1119 = vst [vmem:[%s1117] sm:%s1106] %v1118
                %v1120 = vld [vmem:[%s1116 + $0x8] sm:%s1106]
                %1121 = vst [vmem:[%s1117 + $0x8] sm:%s1106] %v1120
                %v1122 = vld [vmem:[%s1116 + $0x10] sm:%s1106]
                %1123 = vst [vmem:[%s1117 + $0x10] sm:%s1106] %v1122
                %v1124 = vld [vmem:[%s1116 + $0x18] sm:%s1106]
                %1125 = vst [vmem:[%s1117 + $0x18] sm:%s1106] %v1124
                %v1126 = vld [vmem:[%s1116 + $0x20] sm:%s1106]
                %1127 = vst [vmem:[%s1117 + $0x20] sm:%s1106] %v1126
                %v1128 = vld [vmem:[%s1116 + $0x28] sm:%s1106]
                %1129 = vst [vmem:[%s1117 + $0x28] sm:%s1106] %v1128
                %v1130 = vld [vmem:[%s1116 + $0x30] sm:%s1106]
                %1131 = vst [vmem:[%s1117 + $0x30] sm:%s1106] %v1130
                %s1132 = sadd.s32 1, %s1115
                %p1133 = scmp.ge.s32.totalorder %s1132, %s1107
                %s1134 = scalar_select %p1133, 0, %s1132
                %s1135 = smul.u32 %s1134, 56
                %s1136 = smul.u32 %s1134, 56
                %s1137 = scalar_lea.vmem %s947, %s1135 [#allocation3]
                %s1138 = scalar_lea.vmem %s1097, %s1136
              $region117: #{vqvae_forward.16} parent=111 // loop_footer
                %s1112 = sadd.s32 %s1110, 1
              $region118: #{vqvae_forward.16} parent=111 // loop_footer_branch
                %1109 = sbr.rel target = $region114
              $region119: #{vqvae_forward.16} parent=111 // loop_exit
                _
              %s1139 = sdiv.u32.pop %s1093, 7
              %s1140 = srem.u32.pop %s1093, 7
              %s1141 = smul.u32 %s1139, 7
              %s1142 = smul.u32 8, %s1141
              %s1143 = scalar_lea.vmem %s947, %s1142 [#allocation3]
              %s1144 = smul.u32 8, %s1141
              %s1145 = scalar_lea.vmem %s1097, %s1144
              // While loop
              $region120: #{vqvae_forward.16} parent=111 // loop_pre_header
                _
              $region121: #{vqvae_forward.16} parent=111 // loop_header
                %s1147 = sphi 0, %s1149
                %p1148 = scmp.ge.s32.totalorder %s1147, %s1140
                %s1152 = sphi 0, %s1159
                %s1153 = sphi %s1143, %s1162
                %s1154 = sphi %s1145, %s1163
              $region122: #{vqvae_forward.16} parent=111 // loop_header_branch
                %1151 = sbr.rel (%p1148) target = $region126
              $region123: #{vqvae_forward.16} parent=111 // loop_body
                %v1155 = vld [vmem:[%s1153] sm:%s1106]
                %1156 = vst [vmem:[%s1154] sm:%s1106] %v1155
                %s1157 = sadd.s32 1, %s1152
                %p1158 = scmp.ge.s32.totalorder %s1157, %s1140
                %s1159 = scalar_select %p1158, 0, %s1157
                %s1160 = smul.u32 %s1159, 8
                %s1161 = smul.u32 %s1159, 8
                %s1162 = scalar_lea.vmem %s1143, %s1160 [#allocation3]
                %s1163 = scalar_lea.vmem %s1145, %s1161
              $region124: #{vqvae_forward.16} parent=111 // loop_footer
                %s1149 = sadd.s32 %s1147, 1
              $region125: #{vqvae_forward.16} parent=111 // loop_footer_branch
                %1146 = sbr.rel target = $region121
              $region126: #{vqvae_forward.16} parent=111 // loop_exit
                _
            $region112: #{vqvae_forward.16} parent=103 // pred_fallthru
              _
          $region104: #{vqvae_forward.16} parent=99 // pred_fallthru
            _
          %1225 = vnop
        $region100: #{vqvae_forward.16} parent=43 // pred_fallthru
          _
      $region44: #{vqvae_forward.16} parent=5 // pred_fallthru
        _
      %p1226 = scmp.le.s32.totalorder 2, %s14
      // Predicated region
      $region149: #{vqvae_forward.16} parent=5 // pred_check
        %p1227 = pneg %p1226
      $region150: #{vqvae_forward.16} parent=5 // pred_check_branch
        %1229 = sbr.rel (%p1227) target = $region152
      $region151: #{vqvae_forward.16} parent=5 // pred_region
        %s1230 = ssub.s32 %s14, 2
        // Predicated region
        $region153: #{vqvae_forward.16} parent=151 // pred_check
          %p1231 = pneg %p174
        $region154: #{vqvae_forward.16} parent=151 // pred_check_branch
          %1233 = sbr.rel (%p1231) target = $region156
        $region155: #{vqvae_forward.16} parent=151 // pred_region
          %s1234 = sand.u32 %s159, 1
          %s1235 = sand.u32 %s159, 1
          %s1236 = smul.addr %s1235, 56
          %s1237 = scalar_lea.vmem [#allocation2], %s1236
        $region156: #{vqvae_forward.16} parent=151 // pred_fallthru
          _
        // Predicated region
        $region157: #{vqvae_forward.16} parent=151 // pred_check
          %p1238 = pneg %p200
        $region158: #{vqvae_forward.16} parent=151 // pred_check_branch
          %1240 = sbr.rel (%p1238) target = $region160
        $region159: #{vqvae_forward.16} parent=151 // pred_region
          %s1241 = sand.u32 %s185, 1
          %s1242 = sand.u32 %s185, 1
          %s1243 = smul.addr %s1242, 56
          %s1244 = scalar_lea.vmem [#allocation3], %s1243
        $region160: #{vqvae_forward.16} parent=151 // pred_fallthru
          _
      $region152: #{vqvae_forward.16} parent=5 // pred_fallthru
        _
    $region6: #{vqvae_forward.16} parent=1 // loop_footer
      %s18 = sadd.s32 1, %s14
    $region7: #{vqvae_forward.16} parent=1 // loop_footer_branch
      %13 = sbr.rel target = $region3
    $region8: #{vqvae_forward.16} parent=1 // loop_exit
      _

// kernel: vqvae_forward.17
$region0: #{vqvae_forward.17}
  #allocation0 [shape = 'u32[]', space=smem, size = 0x4, offset = 0x4, fixed_abs, tag = 'smem constant byte address 0x4 - core index']
  #allocation1 [shape = 'u32[144,128]{1,0:T(1,128)}', space=vmem, size = 0x12000, scoped, tag = 'internal scratch']
  %s0 = inlined_call_operand.vmem [shape: bf16[98,72], index: 0, kind: input, shape index: {}]
  %s1 = inlined_call_operand.vmem [shape: bf16[72,32], index: 1, kind: input, shape index: {}]
  %s2 = inlined_call_operand.vmem [shape: f32[1,32], index: 2, kind: input, shape index: {}]
  %s3 = inlined_call_operand.vmem [shape: f32[98,32], index: 3, kind: output, shape index: {}]
  %s4 = sld [smem:[#allocation0]]
  $region93: #{vqvae_forward.17} parent=0
    _
  %s6 = ssub.s32 1, %s4
  %s7 = scalar_select 0, %s6, %s4
  $region1: #{vqvae_forward.17} parent=0
    #allocation2 [shape = 'u8[57344]{0}', space=vmem, size = 0xe000, scoped, tag = 'output window, operand 0']
    loop: start=0, step=1, limit=4
    $region2: #{vqvae_forward.17} parent=1 // loop_pre_header
      _
    $region3: #{vqvae_forward.17} parent=1 // loop_header
      %s9 = sphi 0, %s13
      %p10 = scmp.ge.s32.totalorder %s9, 4
      %s19 = sphi 0, %s21
      %s22 = sphi 0, %s19
      %s23 = sphi 0, %s22
      %s39 = sphi 0, %s23
      %s43 = sphi 0, %s43
      %s45 = sphi 0, %s43
      %s46 = sphi 0, %s45
      %s60 = sphi 0, %s46
      %s64 = sphi 0, %s64
      %s66 = sphi 0, %s64
      %s67 = sphi 0, %s66
      %s81 = sphi 0, %s67
      %s87 = sphi 0, %s89
      %s90 = sphi 0, %s87
      %s91 = sphi 0, %s90
      %s107 = sphi 0, %s91
    $region4: #{vqvae_forward.17} parent=1 // loop_header_branch
      %12 = sbr.rel (%p10) target = $region8
    $region5: #{vqvae_forward.17} parent=1 // loop_body
      %s14 = ssub.s32 %s9, 1
      %s15 = ssub.s32 %s9, 2
      %s16 = sadd.s32 %s9, 1
      %s17 = ssub.s32 %s9, %s16
      %p18 = scmp.eq.s32.totalorder %s17, 0
      %s20 = sadd.s32 %s19, 1
      %s21 = scalar_select %p18, %s19, %s20
      %p24 = pneg %p18
      %p25 = scmp.eq.s32.totalorder %s9, 1
      %p26 = por %p24, %p25
      %p27 = scmp.ne.s32.totalorder %s19, %s22
      %p28 = scmp.eq.s32.totalorder %s9, 0
      %p29 = por %p27, %p28
      %p30 = scmp.ne.s32.totalorder %s19, %s22
      %p31 = scmp.eq.s32.totalorder %s14, 1
      %p32 = por %p30, %p31
      %p33 = scmp.ne.s32.totalorder %s22, %s23
      %p34 = scmp.eq.s32.totalorder %s14, 0
      %p35 = por %p33, %p34
      %p36 = scmp.ne.s32.totalorder %s22, %s23
      %p37 = scmp.eq.s32.totalorder %s15, 1
      %p38 = por %p36, %p37
      %p40 = scmp.ne.s32.totalorder %s23, %s39
      %p41 = scmp.eq.s32.totalorder %s15, 0
      %p42 = por %p40, %p41
      %s44 = sadd.s32 %s43, 1
      %p47 = scmp.eq.s32.totalorder %s9, 1
      %p48 = scmp.ne.s32.totalorder %s43, %s45
      %p49 = scmp.eq.s32.totalorder %s9, 0
      %p50 = por %p48, %p49
      %p51 = scmp.ne.s32.totalorder %s43, %s45
      %p52 = scmp.eq.s32.totalorder %s14, 1
      %p53 = por %p51, %p52
      %p54 = scmp.ne.s32.totalorder %s45, %s46
      %p55 = scmp.eq.s32.totalorder %s14, 0
      %p56 = por %p54, %p55
      %p57 = scmp.ne.s32.totalorder %s45, %s46
      %p58 = scmp.eq.s32.totalorder %s15, 1
      %p59 = por %p57, %p58
      %p61 = scmp.ne.s32.totalorder %s46, %s60
      %p62 = scmp.eq.s32.totalorder %s15, 0
      %p63 = por %p61, %p62
      %s65 = sadd.s32 %s64, 1
      %p68 = scmp.eq.s32.totalorder %s9, 1
      %p69 = scmp.ne.s32.totalorder %s64, %s66
      %p70 = scmp.eq.s32.totalorder %s9, 0
      %p71 = por %p69, %p70
      %p72 = scmp.ne.s32.totalorder %s64, %s66
      %p73 = scmp.eq.s32.totalorder %s14, 1
      %p74 = por %p72, %p73
      %p75 = scmp.ne.s32.totalorder %s66, %s67
      %p76 = scmp.eq.s32.totalorder %s14, 0
      %p77 = por %p75, %p76
      %p78 = scmp.ne.s32.totalorder %s66, %s67
      %p79 = scmp.eq.s32.totalorder %s15, 1
      %p80 = por %p78, %p79
      %p82 = scmp.ne.s32.totalorder %s67, %s81
      %p83 = scmp.eq.s32.totalorder %s15, 0
      %p84 = por %p82, %p83
      %s85 = ssub.s32 %s9, %s16
      %p86 = scmp.eq.s32.totalorder %s85, 0
      %s88 = sadd.s32 %s87, 1
      %s89 = scalar_select %p86, %s87, %s88
      %p92 = pneg %p86
      %p93 = scmp.eq.s32.totalorder %s9, 1
      %p94 = por %p92, %p93
      %p95 = scmp.ne.s32.totalorder %s87, %s90
      %p96 = scmp.eq.s32.totalorder %s9, 0
      %p97 = por %p95, %p96
      %p98 = scmp.ne.s32.totalorder %s87, %s90
      %p99 = scmp.eq.s32.totalorder %s14, 1
      %p100 = por %p98, %p99
      %p101 = scmp.ne.s32.totalorder %s90, %s91
      %p102 = scmp.eq.s32.totalorder %s14, 0
      %p103 = por %p101, %p102
      %p104 = scmp.ne.s32.totalorder %s90, %s91
      %p105 = scmp.eq.s32.totalorder %s15, 1
      %p106 = por %p104, %p105
      %p108 = scmp.ne.s32.totalorder %s91, %s107
      %p109 = scmp.eq.s32.totalorder %s15, 0
      %p110 = por %p108, %p109
      %p111 = scmp.le.s32.totalorder 1, %s9
      %p112 = scmp.lt.s32.totalorder %s9, 3
      %p113 = pnand %p111, %p112
      %p114 = pneg %p113
      // Predicated region
      $region9: #{vqvae_forward.17} parent=5 // pred_check
        _
      $region10: #{vqvae_forward.17} parent=5 // pred_check_branch
        %116 = sbr.rel (%p113) target = $region12
      $region11: #{vqvae_forward.17} parent=5 // pred_region
        %s117 = ssub.s32 %s9, 1
        // Predicated region
        $region13: #{vqvae_forward.17} parent=11 // pred_check
          %p118 = pneg %p56
        $region14: #{vqvae_forward.17} parent=11 // pred_check_branch
          %120 = sbr.rel (%p118) target = $region16
        $region15: #{vqvae_forward.17} parent=11 // pred_region
          _
        $region16: #{vqvae_forward.17} parent=11 // pred_fallthru
          _
        // Predicated region
        $region17: #{vqvae_forward.17} parent=11 // pred_check
          %p121 = pneg %p77
        $region18: #{vqvae_forward.17} parent=11 // pred_check_branch
          %123 = sbr.rel (%p121) target = $region20
        $region19: #{vqvae_forward.17} parent=11 // pred_region
          _
        $region20: #{vqvae_forward.17} parent=11 // pred_fallthru
          _
      $region12: #{vqvae_forward.17} parent=5 // pred_fallthru
        _
      %p124 = scmp.lt.s32.totalorder %s9, 2
      // Predicated region
      $region21: #{vqvae_forward.17} parent=5 // pred_check
        %p125 = pneg %p124
      $region22: #{vqvae_forward.17} parent=5 // pred_check_branch
        %127 = sbr.rel (%p125) target = $region24
      $region23: #{vqvae_forward.17} parent=5 // pred_region
        // Predicated region
        $region25: #{vqvae_forward.17} parent=23 // pred_check
          %p128 = pneg %p29
        $region26: #{vqvae_forward.17} parent=23 // pred_check_branch
          %130 = sbr.rel (%p128) target = $region28
        $region27: #{vqvae_forward.17} parent=23 // pred_region
          %s131 = smul.u32 7, %s9
          %s132 = ssub.s32 13, %s131
          %p133 = scmp.lt.s32.totalorder %s132, 7
          %s134 = scalar_select %p133, %s132, 7
          %s135 = smul.u32 64, %s134
          %p136 = scmp.lt.s32.totalorder %s131, 12
          %s137 = scalar_select %p136, %s131, 12
          %s138 = smul.addr %s137, 4
          %s139 = scalar_lea.vmem %s0, %s138
          %s140 = smul.u32 7, %s9
          %s141 = ssub.s32 13, %s140
          %p142 = scmp.lt.s32.totalorder %s141, 7
          %s143 = scalar_select %p142, %s141, 7
          %s144 = smul.u32 64, %s143
        $region28: #{vqvae_forward.17} parent=23 // pred_fallthru
          _
      $region24: #{vqvae_forward.17} parent=5 // pred_fallthru
        _
      %p145 = scmp.le.s32.totalorder 1, %s9
      %p146 = scmp.lt.s32.totalorder %s9, 3
      %p147 = pnand %p145, %p146
      %p148 = pneg %p147
      // Predicated region
      $region29: #{vqvae_forward.17} parent=5 // pred_check
        _
      $region30: #{vqvae_forward.17} parent=5 // pred_check_branch
        %150 = sbr.rel (%p147) target = $region32
      $region31: #{vqvae_forward.17} parent=5 // pred_region
        %s151 = ssub.s32 %s9, 1
        %s152 = smul.u32 7, %s14
        %s153 = ssub.s32 13, %s152
        %p154 = scmp.lt.s32.totalorder %s153, 7
        %s155 = scalar_select %p154, %s153, 7
        %s156 = smul.u32 64, %s155
        %p157 = scmp.lt.s32.totalorder %s152, 12
        %s158 = scalar_select %p157, %s152, 12
        %s159 = smul.addr %s158, 4
        %s160 = scalar_lea.vmem %s0, %s159
        %p161 = pneg %p35
        %p162 = pneg %p32
        %p163 = pneg %p56
        %p164 = pneg %p53
        %p165 = pneg %p77
        %p166 = pneg %p74
        %p167 = pneg %p103
        %p168 = pneg %p100
        %s169 = sand.u32 %s90, 1
        %s170 = sand.u32 %s90, 1
        %s171 = smul.addr %s170, 56
        %s172 = scalar_lea.vmem [#allocation2], %s171
        %s173 = smul.u32 7, %s14
        %s174 = ssub.s32 13, %s173
        %p175 = scmp.lt.s32.totalorder %s174, 7
        %s176 = scalar_select %p175, %s174, 7
        %s177 = smul.u32 64, %s176
        %p178 = scmp.lt.s32.totalorder %s173, 12
        %s179 = scalar_select %p178, %s173, 12
        %s180 = smul.addr %s179, 4
        %s181 = scalar_lea.vmem %s0, %s180
        %s182 = smul.u32 7, %s14
        %s183 = ssub.s32 13, %s182
        %p184 = scmp.lt.s32.totalorder %s183, 7
        %s185 = scalar_select %p184, %s183, 7
        %s186 = smul.u32 64, %s185
        %s187 = smul.u32 7, %s14
        %s188 = ssub.s32 13, %s187
        %p189 = scmp.lt.s32.totalorder %s188, 7
        %s190 = scalar_select %p189, %s188, 7
        %s191 = smul.u32 128, %s190
        %v193 = vld [vmem:[%s181] sm:$0xf]
        %v194 = vld [vmem:[%s181 + $0x4] sm:$0xf]
        %v195 = vld [vmem:[%s181 + $0x8] sm:$0xf]
        %v196 = vld [vmem:[%s181 + $0xc] sm:$0xf]
        %v197 = vld [vmem:[%s181 + $0x10] sm:$0xf]
        %v198 = vld [vmem:[%s181 + $0x14] sm:$0xf]
        %v199 = vld [vmem:[%s181 + $0x18] sm:$0xf]
        %v200 = vld [vmem:[%s1] sm:$0xf]
        %v201 = vld [vmem:[%s1 + $0x4] sm:$0xf]
        %v202 = vld [vmem:[%s1 + $0x8] sm:$0xf]
        %v203 = vld [vmem:[%s1 + $0xc] sm:$0xf]
        %v204 = vld [vmem:[%s1 + $0x10] sm:$0xf]
        %v205 = vld [vmem:[%s1 + $0x14] sm:$0xf]
        %v206 = vld [vmem:[%s1 + $0x18] sm:$0xf]
        %v207 = vld [vmem:[%s1 + $0x1c] sm:$0xf]
        %v208 = vld [vmem:[%s1 + $0x20] sm:$0xf]
        %v209 = vld [vmem:[%s2] sm:$0x1]
        %v211 = vlaneseq
        %v212 = vshrl.u32 %v211, 7
        %v213 = vsub.s32 0, %v212
        %v214 = vrot.slane %v209, %v213
        %v223 = vunpack.c.l.b16 %v193
        %v224 = vunpack.c.l.b16 %v194
        %v225 = vunpack.c.l.b16 %v195
        %v226 = vunpack.c.l.b16 %v196
        %v227 = vunpack.c.l.b16 %v197
        %v228 = vunpack.c.l.b16 %v198
        %v229 = vunpack.c.l.b16 %v199
        %v230 = vpack.c.b16 %v224, %v223
        %v231 = vpack.c.b16 %v226, %v225
        %v232 = vpack.c.b16 %v228, %v227
        %v233 = vpack.c.b16 %v229, %v229
        %v243 = vunpack.c.l.b16 %v200
        %v244 = vunpack.c.l.b16 %v201
        %v245 = vunpack.c.l.b16 %v202
        %v246 = vunpack.c.l.b16 %v203
        %v247 = vunpack.c.l.b16 %v204
        %v248 = vunpack.c.l.b16 %v205
        %v249 = vunpack.c.l.b16 %v206
        %v250 = vunpack.c.l.b16 %v207
        %v251 = vunpack.c.l.b16 %v208
        %v252 = vpack.c.b16 %v244, %v243
        %v253 = vpack.c.b16 %v246, %v245
        %v254 = vpack.c.b16 %v248, %v247
        %v255 = vpack.c.b16 %v250, %v249
        %v256 = vpack.c.b16 %v251, %v251
        %vm261 = vcmask 588800
        %v263 = vsel %vm261, %v230, 0
        %v266 = vsel %vm261, %v231, 0
        %v269 = vsel %vm261, %v232, 0
        %v272 = vsel %vm261, %v233, 0
        %vm274 = vcmask 1043456
        %v276 = vsel %vm274, %v256, 0
        %278 = vmatprep.subr.bf16.mxu0 0
        %279 = vmatpush1.bf16.msra.mxu0 0
        %280 = vmatprep.subr.bf16.mxu0 0
        %281 = vmatpush1.bf16.msra.mxu0 0
        %282 = vmatprep.subr.bf16.mxu0 0
        %283 = vmatpush1.bf16.msra.mxu0 0
        %284 = vmatprep.subr.bf16.mxu0 0
        %285 = vmatpush1.bf16.msra.mxu0 %v276
        %286 = vmatprep.subr.bf16.mxu0 0
        %287 = vmatpush1.bf16.msra.mxu0 %v255
        %288 = vmatprep.subr.bf16.mxu0 0
        %289 = vmatpush1.bf16.msra.mxu0 %v254
        %290 = vmatprep.subr.bf16.mxu0 0
        %291 = vmatpush1.bf16.msra.mxu0 %v253
        %292 = vmatprep.subr.bf16.mxu0 0
        %293 = vmatpush1.bf16.msra.mxu0 %v252
        %294 = vmatprep.subr.bf16.mxu0 0
        %295 = vmatpush2.bf16.msra.mxu0 0
        %296 = vmatprep.subr.bf16.mxu0 0
        %297 = vmatpush2.bf16.msra.mxu0 0
        %298 = vmatprep.subr.bf16.mxu0 0
        %299 = vmatpush2.bf16.msra.mxu0 0
        %300 = vmatprep.subr.bf16.mxu0 0
        %301 = vmatpush2.bf16.msra.mxu0 0
        %302 = vmatprep.subr.bf16.mxu0 0
        %303 = vmatpush2.bf16.msra.mxu0 0
        %304 = vmatprep.subr.bf16.mxu0 0
        %305 = vmatpush2.bf16.msra.mxu0 0
        %306 = vmatprep.subr.bf16.mxu0 0
        %307 = vmatpush2.bf16.msra.mxu0 0
        %308 = vmatprep.subr.bf16.mxu0 0
        %309 = vmatpush2.bf16.msra.mxu0 0
        %310 = vmatprep.mubr.bf16.mxu0 0
        %311 = vmatmul.mubr.bf16.gmra.mxu0 %v263
        %v312 = vpop.f32.mrf.mxu0
        %v313 = vadd.f32 %v214, %v312
        %v314 = vpop.f32.mrf.mxu0
        %v315 = vpop.f32.mrf.mxu0
        %v316 = vadd.f32 %v214, %v315
        %v317 = vpop.f32.mrf.mxu0
        %318 = vmatprep.mubr.bf16.mxu0 0
        %319 = vmatmul.mubr.bf16.gmra.mxu0 %v266
        %v320 = vpop.f32.mrf.mxu0
        %v321 = vadd.f32 %v214, %v320
        %v322 = vpop.f32.mrf.mxu0
        %v323 = vpop.f32.mrf.mxu0
        %v324 = vadd.f32 %v214, %v323
        %v325 = vpop.f32.mrf.mxu0
        %326 = vmatprep.mubr.bf16.mxu0 0
        %327 = vmatmul.mubr.bf16.gmra.mxu0 %v269
        %v328 = vpop.f32.mrf.mxu0
        %v329 = vadd.f32 %v214, %v328
        %v330 = vpop.f32.mrf.mxu0
        %v331 = vpop.f32.mrf.mxu0
        %v332 = vadd.f32 %v214, %v331
        %v333 = vpop.f32.mrf.mxu0
        %334 = vmatprep.mubr.bf16.mxu0 0
        %335 = vmatmul.mubr.bf16.gmra.mxu0 %v272
        %v336 = vpop.f32.mrf.mxu0
        %v337 = vadd.f32 %v214, %v336
        %v338 = vpop.f32.mrf.mxu0
        %v339 = vpop.f32.mrf.mxu0
        %v340 = vpop.f32.mrf.mxu0
        %341 = vdwg.mxu0
        %vm342 = vcmask 261120
        %343 = vst.msk [vmem:[%s172] sm:$0xff] %vm342, %v313
        %344 = vst.msk [vmem:[%s172 + $0x8] sm:$0xff] %vm342, %v316
        %345 = vst.msk [vmem:[%s172 + $0x10] sm:$0xff] %vm342, %v321
        %346 = vst.msk [vmem:[%s172 + $0x18] sm:$0xff] %vm342, %v324
        %347 = vst.msk [vmem:[%s172 + $0x20] sm:$0xff] %vm342, %v329
        %348 = vst.msk [vmem:[%s172 + $0x28] sm:$0xff] %vm342, %v332
        %349 = vst.msk [vmem:[%s172 + $0x30] sm:$0xff] %vm342, %v337
        %s350 = sand.u32 %s90, 1
        %s351 = sand.u32 %s90, 1
        %s352 = smul.addr %s351, 56
        %s353 = scalar_lea.vmem [#allocation2], %s352
        // Predicated region
        $region33: #{vqvae_forward.17} parent=31 // pred_check
          %p354 = pneg %p100
        $region34: #{vqvae_forward.17} parent=31 // pred_check_branch
          %356 = sbr.rel (%p354) target = $region36
        $region35: #{vqvae_forward.17} parent=31 // pred_region
          %s357 = smul.u32 7, %s14
          %s358 = ssub.s32 13, %s357
          %p359 = scmp.lt.s32.totalorder %s358, 7
          %s360 = scalar_select %p359, %s358, 7
          %s361 = smul.u32 128, %s360
          %p362 = scmp.ne.s32.totalorder 0, %s361
          %s363 = smul.addr %s357, 8
          %s364 = scalar_lea.vmem %s3, %s363
          // Predicated region
          $region37: #{vqvae_forward.17} parent=35 // pred_check
            %p365 = pneg %p362
          $region38: #{vqvae_forward.17} parent=35 // pred_check_branch
            %367 = sbr.rel (%p365) target = $region40
          $region39: #{vqvae_forward.17} parent=35 // pred_region
            // Predicated region
            $region41: #{vqvae_forward.17} parent=39 // pred_check
              _
            $region42: #{vqvae_forward.17} parent=39 // pred_check_branch
              %369 = sbr.rel (0) target = $region44
            $region43: #{vqvae_forward.17} parent=39 // pred_region
              // Predicated region
              $region63: #{vqvae_forward.17} parent=43 // pred_check
                _
              $region64: #{vqvae_forward.17} parent=43 // pred_check_branch
                %432 = sbr.rel (0) target = $region66
              $region65: #{vqvae_forward.17} parent=43 // pred_region
                %s433 = sdiv.u32.pop %s360, 7
                %s434 = srem.u32.pop %s360, 7
                // While loop
                $region67: #{vqvae_forward.17} parent=65 // loop_pre_header
                  _
                $region68: #{vqvae_forward.17} parent=65 // loop_header
                  %s436 = sphi 0, %s438
                  %p437 = scmp.ge.s32.totalorder %s436, %s433
                  %s441 = sphi 0, %s460
                  %s442 = sphi %s353, %s463
                  %s443 = sphi %s364, %s464
                $region69: #{vqvae_forward.17} parent=65 // loop_header_branch
                  %440 = sbr.rel (%p437) target = $region73
                $region70: #{vqvae_forward.17} parent=65 // loop_body
                  %v444 = vld [vmem:[%s442] sm:$0xff]
                  %445 = vst [vmem:[%s443] sm:$0xff] %v444
                  %v446 = vld [vmem:[%s442 + $0x8] sm:$0xff]
                  %447 = vst [vmem:[%s443 + $0x8] sm:$0xff] %v446
                  %v448 = vld [vmem:[%s442 + $0x10] sm:$0xff]
                  %449 = vst [vmem:[%s443 + $0x10] sm:$0xff] %v448
                  %v450 = vld [vmem:[%s442 + $0x18] sm:$0xff]
                  %451 = vst [vmem:[%s443 + $0x18] sm:$0xff] %v450
                  %v452 = vld [vmem:[%s442 + $0x20] sm:$0xff]
                  %453 = vst [vmem:[%s443 + $0x20] sm:$0xff] %v452
                  %v454 = vld [vmem:[%s442 + $0x28] sm:$0xff]
                  %455 = vst [vmem:[%s443 + $0x28] sm:$0xff] %v454
                  %v456 = vld [vmem:[%s442 + $0x30] sm:$0xff]
                  %457 = vst [vmem:[%s443 + $0x30] sm:$0xff] %v456
                  %s458 = sadd.s32 1, %s441
                  %p459 = scmp.ge.s32.totalorder %s458, %s433
                  %s460 = scalar_select %p459, 0, %s458
                  %s461 = smul.u32 %s460, 56
                  %s462 = smul.u32 %s460, 56
                  %s463 = scalar_lea.vmem %s353, %s461 [#allocation2]
                  %s464 = scalar_lea.vmem %s364, %s462
                $region71: #{vqvae_forward.17} parent=65 // loop_footer
                  %s438 = sadd.s32 %s436, 1
                $region72: #{vqvae_forward.17} parent=65 // loop_footer_branch
                  %435 = sbr.rel target = $region68
                $region73: #{vqvae_forward.17} parent=65 // loop_exit
                  _
                %s465 = sdiv.u32.pop %s360, 7
                %s466 = srem.u32.pop %s360, 7
                %s467 = smul.u32 %s465, 7
                %s468 = smul.u32 8, %s467
                %s469 = scalar_lea.vmem %s353, %s468 [#allocation2]
                %s470 = smul.u32 8, %s467
                %s471 = scalar_lea.vmem %s364, %s470
                // While loop
                $region74: #{vqvae_forward.17} parent=65 // loop_pre_header
                  _
                $region75: #{vqvae_forward.17} parent=65 // loop_header
                  %s473 = sphi 0, %s475
                  %p474 = scmp.ge.s32.totalorder %s473, %s466
                  %s478 = sphi 0, %s485
                  %s479 = sphi %s469, %s488
                  %s480 = sphi %s471, %s489
                $region76: #{vqvae_forward.17} parent=65 // loop_header_branch
                  %477 = sbr.rel (%p474) target = $region80
                $region77: #{vqvae_forward.17} parent=65 // loop_body
                  %v481 = vld [vmem:[%s479] sm:$0xff]
                  %482 = vst [vmem:[%s480] sm:$0xff] %v481
                  %s483 = sadd.s32 1, %s478
                  %p484 = scmp.ge.s32.totalorder %s483, %s466
                  %s485 = scalar_select %p484, 0, %s483
                  %s486 = smul.u32 %s485, 8
                  %s487 = smul.u32 %s485, 8
                  %s488 = scalar_lea.vmem %s469, %s486 [#allocation2]
                  %s489 = scalar_lea.vmem %s471, %s487
                $region78: #{vqvae_forward.17} parent=65 // loop_footer
                  %s475 = sadd.s32 %s473, 1
                $region79: #{vqvae_forward.17} parent=65 // loop_footer_branch
                  %472 = sbr.rel target = $region75
                $region80: #{vqvae_forward.17} parent=65 // loop_exit
                  _
              $region66: #{vqvae_forward.17} parent=43 // pred_fallthru
                _
              // Predicated region
              $region81: #{vqvae_forward.17} parent=43 // pred_check
                _
              $region82: #{vqvae_forward.17} parent=43 // pred_check_branch
                %491 = sbr.rel target = $region84
              $region83: #{vqvae_forward.17} parent=43 // pred_region
                _
              $region84: #{vqvae_forward.17} parent=43 // pred_fallthru
                _
            $region44: #{vqvae_forward.17} parent=39 // pred_fallthru
              _
            // Predicated region
            $region45: #{vqvae_forward.17} parent=39 // pred_check
              _
            $region46: #{vqvae_forward.17} parent=39 // pred_check_branch
              %371 = sbr.rel target = $region48
            $region47: #{vqvae_forward.17} parent=39 // pred_region
              %s373 = ssub.s32 256, 1
              %s374 = sdiv.u32.pop %s360, 7
              %s375 = srem.u32.pop %s360, 7
              // While loop
              $region49: #{vqvae_forward.17} parent=47 // loop_pre_header
                _
              $region50: #{vqvae_forward.17} parent=47 // loop_header
                %s377 = sphi 0, %s379
                %p378 = scmp.ge.s32.totalorder %s377, %s374
                %s382 = sphi 0, %s401
                %s383 = sphi %s353, %s404
                %s384 = sphi %s364, %s405
              $region51: #{vqvae_forward.17} parent=47 // loop_header_branch
                %381 = sbr.rel (%p378) target = $region55
              $region52: #{vqvae_forward.17} parent=47 // loop_body
                %v385 = vld [vmem:[%s383] sm:%s373]
                %386 = vst [vmem:[%s384] sm:%s373] %v385
                %v387 = vld [vmem:[%s383 + $0x8] sm:%s373]
                %388 = vst [vmem:[%s384 + $0x8] sm:%s373] %v387
                %v389 = vld [vmem:[%s383 + $0x10] sm:%s373]
                %390 = vst [vmem:[%s384 + $0x10] sm:%s373] %v389
                %v391 = vld [vmem:[%s383 + $0x18] sm:%s373]
                %392 = vst [vmem:[%s384 + $0x18] sm:%s373] %v391
                %v393 = vld [vmem:[%s383 + $0x20] sm:%s373]
                %394 = vst [vmem:[%s384 + $0x20] sm:%s373] %v393
                %v395 = vld [vmem:[%s383 + $0x28] sm:%s373]
                %396 = vst [vmem:[%s384 + $0x28] sm:%s373] %v395
                %v397 = vld [vmem:[%s383 + $0x30] sm:%s373]
                %398 = vst [vmem:[%s384 + $0x30] sm:%s373] %v397
                %s399 = sadd.s32 1, %s382
                %p400 = scmp.ge.s32.totalorder %s399, %s374
                %s401 = scalar_select %p400, 0, %s399
                %s402 = smul.u32 %s401, 56
                %s403 = smul.u32 %s401, 56
                %s404 = scalar_lea.vmem %s353, %s402 [#allocation2]
                %s405 = scalar_lea.vmem %s364, %s403
              $region53: #{vqvae_forward.17} parent=47 // loop_footer
                %s379 = sadd.s32 %s377, 1
              $region54: #{vqvae_forward.17} parent=47 // loop_footer_branch
                %376 = sbr.rel target = $region50
              $region55: #{vqvae_forward.17} parent=47 // loop_exit
                _
              %s406 = sdiv.u32.pop %s360, 7
              %s407 = srem.u32.pop %s360, 7
              %s408 = smul.u32 %s406, 7
              %s409 = smul.u32 8, %s408
              %s410 = scalar_lea.vmem %s353, %s409 [#allocation2]
              %s411 = smul.u32 8, %s408
              %s412 = scalar_lea.vmem %s364, %s411
              // While loop
              $region56: #{vqvae_forward.17} parent=47 // loop_pre_header
                _
              $region57: #{vqvae_forward.17} parent=47 // loop_header
                %s414 = sphi 0, %s416
                %p415 = scmp.ge.s32.totalorder %s414, %s407
                %s419 = sphi 0, %s426
                %s420 = sphi %s410, %s429
                %s421 = sphi %s412, %s430
              $region58: #{vqvae_forward.17} parent=47 // loop_header_branch
                %418 = sbr.rel (%p415) target = $region62
              $region59: #{vqvae_forward.17} parent=47 // loop_body
                %v422 = vld [vmem:[%s420] sm:%s373]
                %423 = vst [vmem:[%s421] sm:%s373] %v422
                %s424 = sadd.s32 1, %s419
                %p425 = scmp.ge.s32.totalorder %s424, %s407
                %s426 = scalar_select %p425, 0, %s424
                %s427 = smul.u32 %s426, 8
                %s428 = smul.u32 %s426, 8
                %s429 = scalar_lea.vmem %s410, %s427 [#allocation2]
                %s430 = scalar_lea.vmem %s412, %s428
              $region60: #{vqvae_forward.17} parent=47 // loop_footer
                %s416 = sadd.s32 %s414, 1
              $region61: #{vqvae_forward.17} parent=47 // loop_footer_branch
                %413 = sbr.rel target = $region57
              $region62: #{vqvae_forward.17} parent=47 // loop_exit
                _
            $region48: #{vqvae_forward.17} parent=39 // pred_fallthru
              _
          $region40: #{vqvae_forward.17} parent=35 // pred_fallthru
            _
          %492 = vnop
        $region36: #{vqvae_forward.17} parent=31 // pred_fallthru
          _
      $region32: #{vqvae_forward.17} parent=5 // pred_fallthru
        _
      %p493 = scmp.le.s32.totalorder 2, %s9
      // Predicated region
      $region85: #{vqvae_forward.17} parent=5 // pred_check
        %p494 = pneg %p493
      $region86: #{vqvae_forward.17} parent=5 // pred_check_branch
        %496 = sbr.rel (%p494) target = $region88
      $region87: #{vqvae_forward.17} parent=5 // pred_region
        %s497 = ssub.s32 %s9, 2
        // Predicated region
        $region89: #{vqvae_forward.17} parent=87 // pred_check
          %p498 = pneg %p106
        $region90: #{vqvae_forward.17} parent=87 // pred_check_branch
          %500 = sbr.rel (%p498) target = $region92
        $region91: #{vqvae_forward.17} parent=87 // pred_region
          %s501 = sand.u32 %s91, 1
          %s502 = sand.u32 %s91, 1
          %s503 = smul.addr %s502, 56
          %s504 = scalar_lea.vmem [#allocation2], %s503
        $region92: #{vqvae_forward.17} parent=87 // pred_fallthru
          _
      $region88: #{vqvae_forward.17} parent=5 // pred_fallthru
        _
    $region6: #{vqvae_forward.17} parent=1 // loop_footer
      %s13 = sadd.s32 1, %s9
    $region7: #{vqvae_forward.17} parent=1 // loop_footer_branch
      %8 = sbr.rel target = $region3
    $region8: #{vqvae_forward.17} parent=1 // loop_exit
      _

// kernel: vqvae_forward.19
$region0: #{vqvae_forward.19}
  #allocation0 [shape = 'u32[]', space=smem, size = 0x4, offset = 0x4, fixed_abs, tag = 'smem constant byte address 0x4 - core index']
  #allocation1 [shape = 'u32[144,128]{1,0:T(1,128)}', space=vmem, size = 0x12000, scoped, tag = 'internal scratch']
  %s0 = inlined_call_operand.vmem [shape: bf16[98,288], index: 0, kind: input, shape index: {}]
  %s1 = inlined_call_operand.vmem [shape: f32[98,32], index: 1, kind: input, shape index: {}]
  %s2 = inlined_call_operand.vmem [shape: bf16[288,8], index: 2, kind: input, shape index: {}]
  %s3 = inlined_call_operand.vmem [shape: bf16[8,32], index: 3, kind: input, shape index: {}]
  %s4 = inlined_call_operand.vmem [shape: f32[98,32], index: 4, kind: output, shape index: {}]
  %s5 = sld [smem:[#allocation0]]
  $region97: #{vqvae_forward.19} parent=0
    _
  %s7 = ssub.s32 1, %s5
  %s8 = scalar_select 0, %s7, %s5
  $region1: #{vqvae_forward.19} parent=0
    #allocation2 [shape = 'u8[57344]{0}', space=vmem, size = 0xe000, scoped, tag = 'output window, operand 0']
    loop: start=0, step=1, limit=4
    $region2: #{vqvae_forward.19} parent=1 // loop_pre_header
      _
    $region3: #{vqvae_forward.19} parent=1 // loop_header
      %s10 = sphi 0, %s14
      %p11 = scmp.ge.s32.totalorder %s10, 4
      %s20 = sphi 0, %s22
      %s23 = sphi 0, %s20
      %s24 = sphi 0, %s23
      %s40 = sphi 0, %s24
      %s46 = sphi 0, %s48
      %s49 = sphi 0, %s46
      %s50 = sphi 0, %s49
      %s66 = sphi 0, %s50
      %s70 = sphi 0, %s70
      %s72 = sphi 0, %s70
      %s73 = sphi 0, %s72
      %s87 = sphi 0, %s73
      %s91 = sphi 0, %s91
      %s93 = sphi 0, %s91
      %s94 = sphi 0, %s93
      %s108 = sphi 0, %s94
      %s114 = sphi 0, %s116
      %s117 = sphi 0, %s114
      %s118 = sphi 0, %s117
      %s134 = sphi 0, %s118
    $region4: #{vqvae_forward.19} parent=1 // loop_header_branch
      %13 = sbr.rel (%p11) target = $region8
    $region5: #{vqvae_forward.19} parent=1 // loop_body
      %s15 = ssub.s32 %s10, 1
      %s16 = ssub.s32 %s10, 2
      %s17 = sadd.s32 %s10, 1
      %s18 = ssub.s32 %s10, %s17
      %p19 = scmp.eq.s32.totalorder %s18, 0
      %s21 = sadd.s32 %s20, 1
      %s22 = scalar_select %p19, %s20, %s21
      %p25 = pneg %p19
      %p26 = scmp.eq.s32.totalorder %s10, 1
      %p27 = por %p25, %p26
      %p28 = scmp.ne.s32.totalorder %s20, %s23
      %p29 = scmp.eq.s32.totalorder %s10, 0
      %p30 = por %p28, %p29
      %p31 = scmp.ne.s32.totalorder %s20, %s23
      %p32 = scmp.eq.s32.totalorder %s15, 1
      %p33 = por %p31, %p32
      %p34 = scmp.ne.s32.totalorder %s23, %s24
      %p35 = scmp.eq.s32.totalorder %s15, 0
      %p36 = por %p34, %p35
      %p37 = scmp.ne.s32.totalorder %s23, %s24
      %p38 = scmp.eq.s32.totalorder %s16, 1
      %p39 = por %p37, %p38
      %p41 = scmp.ne.s32.totalorder %s24, %s40
      %p42 = scmp.eq.s32.totalorder %s16, 0
      %p43 = por %p41, %p42
      %s44 = ssub.s32 %s10, %s17
      %p45 = scmp.eq.s32.totalorder %s44, 0
      %s47 = sadd.s32 %s46, 1
      %s48 = scalar_select %p45, %s46, %s47
      %p51 = pneg %p45
      %p52 = scmp.eq.s32.totalorder %s10, 1
      %p53 = por %p51, %p52
      %p54 = scmp.ne.s32.totalorder %s46, %s49
      %p55 = scmp.eq.s32.totalorder %s10, 0
      %p56 = por %p54, %p55
      %p57 = scmp.ne.s32.totalorder %s46, %s49
      %p58 = scmp.eq.s32.totalorder %s15, 1
      %p59 = por %p57, %p58
      %p60 = scmp.ne.s32.totalorder %s49, %s50
      %p61 = scmp.eq.s32.totalorder %s15, 0
      %p62 = por %p60, %p61
      %p63 = scmp.ne.s32.totalorder %s49, %s50
      %p64 = scmp.eq.s32.totalorder %s16, 1
      %p65 = por %p63, %p64
      %p67 = scmp.ne.s32.totalorder %s50, %s66
      %p68 = scmp.eq.s32.totalorder %s16, 0
      %p69 = por %p67, %p68
      %s71 = sadd.s32 %s70, 1
      %p74 = scmp.eq.s32.totalorder %s10, 1
      %p75 = scmp.ne.s32.totalorder %s70, %s72
      %p76 = scmp.eq.s32.totalorder %s10, 0
      %p77 = por %p75, %p76
      %p78 = scmp.ne.s32.totalorder %s70, %s72
      %p79 = scmp.eq.s32.totalorder %s15, 1
      %p80 = por %p78, %p79
      %p81 = scmp.ne.s32.totalorder %s72, %s73
      %p82 = scmp.eq.s32.totalorder %s15, 0
      %p83 = por %p81, %p82
      %p84 = scmp.ne.s32.totalorder %s72, %s73
      %p85 = scmp.eq.s32.totalorder %s16, 1
      %p86 = por %p84, %p85
      %p88 = scmp.ne.s32.totalorder %s73, %s87
      %p89 = scmp.eq.s32.totalorder %s16, 0
      %p90 = por %p88, %p89
      %s92 = sadd.s32 %s91, 1
      %p95 = scmp.eq.s32.totalorder %s10, 1
      %p96 = scmp.ne.s32.totalorder %s91, %s93
      %p97 = scmp.eq.s32.totalorder %s10, 0
      %p98 = por %p96, %p97
      %p99 = scmp.ne.s32.totalorder %s91, %s93
      %p100 = scmp.eq.s32.totalorder %s15, 1
      %p101 = por %p99, %p100
      %p102 = scmp.ne.s32.totalorder %s93, %s94
      %p103 = scmp.eq.s32.totalorder %s15, 0
      %p104 = por %p102, %p103
      %p105 = scmp.ne.s32.totalorder %s93, %s94
      %p106 = scmp.eq.s32.totalorder %s16, 1
      %p107 = por %p105, %p106
      %p109 = scmp.ne.s32.totalorder %s94, %s108
      %p110 = scmp.eq.s32.totalorder %s16, 0
      %p111 = por %p109, %p110
      %s112 = ssub.s32 %s10, %s17
      %p113 = scmp.eq.s32.totalorder %s112, 0
      %s115 = sadd.s32 %s114, 1
      %s116 = scalar_select %p113, %s114, %s115
      %p119 = pneg %p113
      %p120 = scmp.eq.s32.totalorder %s10, 1
      %p121 = por %p119, %p120
      %p122 = scmp.ne.s32.totalorder %s114, %s117
      %p123 = scmp.eq.s32.totalorder %s10, 0
      %p124 = por %p122, %p123
      %p125 = scmp.ne.s32.totalorder %s114, %s117
      %p126 = scmp.eq.s32.totalorder %s15, 1
      %p127 = por %p125, %p126
      %p128 = scmp.ne.s32.totalorder %s117, %s118
      %p129 = scmp.eq.s32.totalorder %s15, 0
      %p130 = por %p128, %p129
      %p131 = scmp.ne.s32.totalorder %s117, %s118
      %p132 = scmp.eq.s32.totalorder %s16, 1
      %p133 = por %p131, %p132
      %p135 = scmp.ne.s32.totalorder %s118, %s134
      %p136 = scmp.eq.s32.totalorder %s16, 0
      %p137 = por %p135, %p136
      %p138 = scmp.le.s32.totalorder 1, %s10
      %p139 = scmp.lt.s32.totalorder %s10, 3
      %p140 = pnand %p138, %p139
      %p141 = pneg %p140
      // Predicated region
      $region9: #{vqvae_forward.19} parent=5 // pred_check
        _
      $region10: #{vqvae_forward.19} parent=5 // pred_check_branch
        %143 = sbr.rel (%p140) target = $region12
      $region11: #{vqvae_forward.19} parent=5 // pred_region
        %s144 = ssub.s32 %s10, 1
        // Predicated region
        $region13: #{vqvae_forward.19} parent=11 // pred_check
          %p145 = pneg %p83
        $region14: #{vqvae_forward.19} parent=11 // pred_check_branch
          %147 = sbr.rel (%p145) target = $region16
        $region15: #{vqvae_forward.19} parent=11 // pred_region
          _
        $region16: #{vqvae_forward.19} parent=11 // pred_fallthru
          _
        // Predicated region
        $region17: #{vqvae_forward.19} parent=11 // pred_check
          %p148 = pneg %p104
        $region18: #{vqvae_forward.19} parent=11 // pred_check_branch
          %150 = sbr.rel (%p148) target = $region20
        $region19: #{vqvae_forward.19} parent=11 // pred_region
          _
        $region20: #{vqvae_forward.19} parent=11 // pred_fallthru
          _
      $region12: #{vqvae_forward.19} parent=5 // pred_fallthru
        _
      %p151 = scmp.lt.s32.totalorder %s10, 2
      // Predicated region
      $region21: #{vqvae_forward.19} parent=5 // pred_check
        %p152 = pneg %p151
      $region22: #{vqvae_forward.19} parent=5 // pred_check_branch
        %154 = sbr.rel (%p152) target = $region24
      $region23: #{vqvae_forward.19} parent=5 // pred_region
        // Predicated region
        $region25: #{vqvae_forward.19} parent=23 // pred_check
          %p155 = pneg %p30
        $region26: #{vqvae_forward.19} parent=23 // pred_check_branch
          %157 = sbr.rel (%p155) target = $region28
        $region27: #{vqvae_forward.19} parent=23 // pred_region
          %s158 = smul.u32 7, %s10
          %s159 = ssub.s32 13, %s158
          %p160 = scmp.lt.s32.totalorder %s159, 7
          %s161 = scalar_select %p160, %s159, 7
          %s162 = smul.u32 64, %s161
          %s163 = smul.u32 %s162, 3
          %p164 = scmp.lt.s32.totalorder %s158, 12
          %s165 = scalar_select %p164, %s158, 12
          %s166 = smul.addr %s165, 3
          %s167 = smul.addr %s166, 4
          %s168 = scalar_lea.vmem %s0, %s167
          %s169 = smul.u32 7, %s10
          %s170 = ssub.s32 13, %s169
          %p171 = scmp.lt.s32.totalorder %s170, 7
          %s172 = scalar_select %p171, %s170, 7
          %s173 = smul.u32 64, %s172
          %s174 = smul.u32 %s173, 3
        $region28: #{vqvae_forward.19} parent=23 // pred_fallthru
          _
        // Predicated region
        $region29: #{vqvae_forward.19} parent=23 // pred_check
          %p175 = pneg %p56
        $region30: #{vqvae_forward.19} parent=23 // pred_check_branch
          %177 = sbr.rel (%p175) target = $region32
        $region31: #{vqvae_forward.19} parent=23 // pred_region
          %s178 = smul.u32 7, %s10
          %s179 = ssub.s32 13, %s178
          %p180 = scmp.lt.s32.totalorder %s179, 7
          %s181 = scalar_select %p180, %s179, 7
          %s182 = smul.u32 128, %s181
          %p183 = scmp.lt.s32.totalorder %s178, 12
          %s184 = scalar_select %p183, %s178, 12
          %s185 = smul.addr %s184, 8
          %s186 = scalar_lea.vmem %s1, %s185
          %s187 = smul.u32 7, %s10
          %s188 = ssub.s32 13, %s187
          %p189 = scmp.lt.s32.totalorder %s188, 7
          %s190 = scalar_select %p189, %s188, 7
          %s191 = smul.u32 128, %s190
        $region32: #{vqvae_forward.19} parent=23 // pred_fallthru
          _
      $region24: #{vqvae_forward.19} parent=5 // pred_fallthru
        _
      %p192 = scmp.le.s32.totalorder 1, %s10
      %p193 = scmp.lt.s32.totalorder %s10, 3
      %p194 = pnand %p192, %p193
      %p195 = pneg %p194
      // Predicated region
      $region33: #{vqvae_forward.19} parent=5 // pred_check
        _
      $region34: #{vqvae_forward.19} parent=5 // pred_check_branch
        %197 = sbr.rel (%p194) target = $region36
      $region35: #{vqvae_forward.19} parent=5 // pred_region
        %s198 = ssub.s32 %s10, 1
        %s199 = smul.u32 7, %s15
        %s200 = ssub.s32 13, %s199
        %p201 = scmp.lt.s32.totalorder %s200, 7
        %s202 = scalar_select %p201, %s200, 7
        %s203 = smul.u32 64, %s202
        %s204 = smul.u32 %s203, 3
        %p205 = scmp.lt.s32.totalorder %s199, 12
        %s206 = scalar_select %p205, %s199, 12
        %s207 = smul.addr %s206, 3
        %s208 = smul.addr %s207, 4
        %s209 = scalar_lea.vmem %s0, %s208
        %p210 = pneg %p36
        %p211 = pneg %p33
        %s212 = smul.u32 7, %s15
        %s213 = ssub.s32 13, %s212
        %p214 = scmp.lt.s32.totalorder %s213, 7
        %s215 = scalar_select %p214, %s213, 7
        %s216 = smul.u32 128, %s215
        %p217 = scmp.lt.s32.totalorder %s212, 12
        %s218 = scalar_select %p217, %s212, 12
        %s219 = smul.addr %s218, 8
        %s220 = scalar_lea.vmem %s1, %s219
        %p221 = pneg %p62
        %p222 = pneg %p59
        %p223 = pneg %p83
        %p224 = pneg %p80
        %p225 = pneg %p104
        %p226 = pneg %p101
        %p227 = pneg %p130
        %p228 = pneg %p127
        %s229 = sand.u32 %s117, 1
        %s230 = sand.u32 %s117, 1
        %s231 = smul.addr %s230, 56
        %s232 = scalar_lea.vmem [#allocation2], %s231
        %s233 = smul.u32 7, %s15
        %s234 = ssub.s32 13, %s233
        %p235 = scmp.lt.s32.totalorder %s234, 7
        %s236 = scalar_select %p235, %s234, 7
        %s237 = smul.u32 64, %s236
        %s238 = smul.u32 %s237, 3
        %p239 = scmp.lt.s32.totalorder %s233, 12
        %s240 = scalar_select %p239, %s233, 12
        %s241 = smul.addr %s240, 3
        %s242 = smul.addr %s241, 4
        %s243 = scalar_lea.vmem %s0, %s242
        %s244 = smul.u32 7, %s15
        %s245 = ssub.s32 13, %s244
        %p246 = scmp.lt.s32.totalorder %s245, 7
        %s247 = scalar_select %p246, %s245, 7
        %s248 = smul.u32 64, %s247
        %s249 = smul.u32 %s248, 3
        %s250 = smul.u32 7, %s15
        %s251 = ssub.s32 13, %s250
        %p252 = scmp.lt.s32.totalorder %s251, 7
        %s253 = scalar_select %p252, %s251, 7
        %s254 = smul.u32 128, %s253
        %p255 = scmp.lt.s32.totalorder %s250, 12
        %s256 = scalar_select %p255, %s250, 12
        %s257 = smul.addr %s256, 8
        %s258 = scalar_lea.vmem %s1, %s257
        %s259 = smul.u32 7, %s15
        %s260 = ssub.s32 13, %s259
        %p261 = scmp.lt.s32.totalorder %s260, 7
        %s262 = scalar_select %p261, %s260, 7
        %s263 = smul.u32 128, %s262
        %s264 = smul.u32 7, %s15
        %s265 = ssub.s32 13, %s264
        %p266 = scmp.lt.s32.totalorder %s265, 7
        %s267 = scalar_select %p266, %s265, 7
        %s268 = smul.u32 128, %s267
        %v270 = vld [vmem:[%s243] sm:$0xff]
        %v271 = vld [vmem:[%s243 + $0x8] sm:$0xf]
        %v272 = vld [vmem:[%s243 + $0xc] sm:$0xff]
        %v273 = vld [vmem:[%s243 + $0x14] sm:$0xf]
        %v274 = vld [vmem:[%s243 + $0x18] sm:$0xff]
        %v275 = vld [vmem:[%s243 + $0x20] sm:$0xf]
        %v276 = vld [vmem:[%s243 + $0x24] sm:$0xff]
        %v277 = vld [vmem:[%s243 + $0x2c] sm:$0xf]
        %v278 = vld [vmem:[%s243 + $0x30] sm:$0xff]
        %v279 = vld [vmem:[%s243 + $0x38] sm:$0xf]
        %v280 = vld [vmem:[%s243 + $0x3c] sm:$0xff]
        %v281 = vld [vmem:[%s243 + $0x44] sm:$0xf]
        %v282 = vld [vmem:[%s243 + $0x48] sm:$0xff]
        %v283 = vld [vmem:[%s243 + $0x50] sm:$0xf]
        %v284 = vld [vmem:[%s2] sm:$0xf]
        %v285 = vld [vmem:[%s2 + $0x4] sm:$0xf]
        %v286 = vld [vmem:[%s2 + $0x8] sm:$0xf]
        %v287 = vld [vmem:[%s2 + $0xc] sm:$0xf]
        %v288 = vld [vmem:[%s2 + $0x10] sm:$0xf]
        %v289 = vld [vmem:[%s2 + $0x14] sm:$0xf]
        %v290 = vld [vmem:[%s2 + $0x18] sm:$0xf]
        %v291 = vld [vmem:[%s2 + $0x1c] sm:$0xf]
        %v292 = vld [vmem:[%s2 + $0x20] sm:$0xf]
        %v293 = vld [vmem:[%s2 + $0x24] sm:$0xf]
        %v294 = vld [vmem:[%s2 + $0x28] sm:$0xf]
        %v295 = vld [vmem:[%s2 + $0x2c] sm:$0xf]
        %v296 = vld [vmem:[%s2 + $0x30] sm:$0xf]
        %v297 = vld [vmem:[%s2 + $0x34] sm:$0xf]
        %v298 = vld [vmem:[%s2 + $0x38] sm:$0xf]
        %v299 = vld [vmem:[%s2 + $0x3c] sm:$0xf]
        %v300 = vld [vmem:[%s2 + $0x40] sm:$0xf]
        %v301 = vld [vmem:[%s2 + $0x44] sm:$0xf]
        %v302 = vld [vmem:[%s2 + $0x48] sm:$0xf]
        %v303 = vld [vmem:[%s2 + $0x4c] sm:$0xf]
        %v304 = vld [vmem:[%s2 + $0x50] sm:$0xf]
        %v305 = vld [vmem:[%s2 + $0x54] sm:$0xf]
        %v306 = vld [vmem:[%s2 + $0x58] sm:$0xf]
        %v307 = vld [vmem:[%s2 + $0x5c] sm:$0xf]
        %v308 = vld [vmem:[%s2 + $0x60] sm:$0xf]
        %v309 = vld [vmem:[%s2 + $0x64] sm:$0xf]
        %v310 = vld [vmem:[%s2 + $0x68] sm:$0xf]
        %v311 = vld [vmem:[%s2 + $0x6c] sm:$0xf]
        %v312 = vld [vmem:[%s2 + $0x70] sm:$0xf]
        %v313 = vld [vmem:[%s2 + $0x74] sm:$0xf]
        %v314 = vld [vmem:[%s2 + $0x78] sm:$0xf]
        %v315 = vld [vmem:[%s2 + $0x7c] sm:$0xf]
        %v316 = vld [vmem:[%s2 + $0x80] sm:$0xf]
        %v317 = vld [vmem:[%s2 + $0x84] sm:$0xf]
        %v318 = vld [vmem:[%s2 + $0x88] sm:$0xf]
        %v319 = vld [vmem:[%s2 + $0x8c] sm:$0xf]
        %v334 = vunpack.c.l.b16 %v270
        %v335 = vunpack.c.h.b16 %v270
        %v336 = vunpack.c.l.b16 %v271
        %v337 = vunpack.c.l.b16 %v272
        %v338 = vunpack.c.h.b16 %v272
        %v339 = vunpack.c.l.b16 %v273
        %v340 = vunpack.c.l.b16 %v274
        %v341 = vunpack.c.h.b16 %v274
        %v342 = vunpack.c.l.b16 %v275
        %v343 = vunpack.c.l.b16 %v276
        %v344 = vunpack.c.h.b16 %v276
        %v345 = vunpack.c.l.b16 %v277
        %v346 = vunpack.c.l.b16 %v278
        %v347 = vunpack.c.h.b16 %v278
        %v348 = vunpack.c.l.b16 %v279
        %v349 = vunpack.c.l.b16 %v280
        %v350 = vunpack.c.h.b16 %v280
        %v351 = vunpack.c.l.b16 %v281
        %v352 = vunpack.c.l.b16 %v282
        %v353 = vunpack.c.h.b16 %v282
        %v354 = vunpack.c.l.b16 %v283
        %v355 = vpack.c.b16 %v337, %v334
        %v356 = vpack.c.b16 %v338, %v335
        %v357 = vpack.c.b16 %v339, %v336
        %v358 = vpack.c.b16 %v343, %v340
        %v359 = vpack.c.b16 %v344, %v341
        %v360 = vpack.c.b16 %v345, %v342
        %v361 = vpack.c.b16 %v349, %v346
        %v362 = vpack.c.b16 %v350, %v347
        %v363 = vpack.c.b16 %v351, %v348
        %v364 = vpack.c.b16 %v352, %v352
        %v365 = vpack.c.b16 %v353, %v353
        %v366 = vpack.c.b16 %v354, %v354
        %v411 = vunpack.c.l.b16 %v284
        %v412 = vunpack.c.l.b16 %v285
        %v413 = vunpack.c.l.b16 %v286
        %v414 = vunpack.c.l.b16 %v287
        %v415 = vunpack.c.l.b16 %v288
        %v416 = vunpack.c.l.b16 %v289
        %v417 = vunpack.c.l.b16 %v290
        %v418 = vunpack.c.l.b16 %v291
        %v419 = vunpack.c.l.b16 %v292
        %v420 = vunpack.c.l.b16 %v293
        %v421 = vunpack.c.l.b16 %v294
        %v422 = vunpack.c.l.b16 %v295
        %v423 = vunpack.c.l.b16 %v296
        %v424 = vunpack.c.l.b16 %v297
        %v425 = vunpack.c.l.b16 %v298
        %v426 = vunpack.c.l.b16 %v299
        %v427 = vunpack.c.l.b16 %v300
        %v428 = vunpack.c.l.b16 %v301
        %v429 = vunpack.c.l.b16 %v302
        %v430 = vunpack.c.l.b16 %v303
        %v431 = vunpack.c.l.b16 %v304
        %v432 = vunpack.c.l.b16 %v305
        %v433 = vunpack.c.l.b16 %v306
        %v434 = vunpack.c.l.b16 %v307
        %v435 = vunpack.c.l.b16 %v308
        %v436 = vunpack.c.l.b16 %v309
        %v437 = vunpack.c.l.b16 %v310
        %v438 = vunpack.c.l.b16 %v311
        %v439 = vunpack.c.l.b16 %v312
        %v440 = vunpack.c.l.b16 %v313
        %v441 = vunpack.c.l.b16 %v314
        %v442 = vunpack.c.l.b16 %v315
        %v443 = vunpack.c.l.b16 %v316
        %v444 = vunpack.c.l.b16 %v317
        %v445 = vunpack.c.l.b16 %v318
        %v446 = vunpack.c.l.b16 %v319
        %v447 = vpack.c.b16 %v412, %v411
        %v448 = vpack.c.b16 %v414, %v413
        %v449 = vpack.c.b16 %v416, %v415
        %v450 = vpack.c.b16 %v418, %v417
        %v451 = vpack.c.b16 %v420, %v419
        %v452 = vpack.c.b16 %v422, %v421
        %v453 = vpack.c.b16 %v424, %v423
        %v454 = vpack.c.b16 %v426, %v425
        %v455 = vpack.c.b16 %v428, %v427
        %v456 = vpack.c.b16 %v430, %v429
        %v457 = vpack.c.b16 %v432, %v431
        %v458 = vpack.c.b16 %v434, %v433
        %v459 = vpack.c.b16 %v436, %v435
        %v460 = vpack.c.b16 %v438, %v437
        %v461 = vpack.c.b16 %v440, %v439
        %v462 = vpack.c.b16 %v442, %v441
        %v463 = vpack.c.b16 %v444, %v443
        %v464 = vpack.c.b16 %v446, %v445
        %vm483 = vcmask 261120
        %v485 = vsel %vm483, %v357, 0
        %v488 = vsel %vm483, %v360, 0
        %v491 = vsel %vm483, %v363, 0
        %v494 = vsel %vm483, %v366, 0
        %496 = vmatprep.subr.bf16.mxu0 0
        %497 = vmatpush1.bf16.msra.mxu0 %v454
        %498 = vmatprep.subr.bf16.mxu0 0
        %499 = vmatpush1.bf16.msra.mxu0 %v453
        %500 = vmatprep.subr.bf16.mxu0 0
        %501 = vmatpush1.bf16.msra.mxu0 %v452
        %502 = vmatprep.subr.bf16.mxu0 0
        %503 = vmatpush1.bf16.msra.mxu0 %v451
        %504 = vmatprep.subr.bf16.mxu0 0
        %505 = vmatpush1.bf16.msra.mxu0 %v450
        %506 = vmatprep.subr.bf16.mxu0 0
        %507 = vmatpush1.bf16.msra.mxu0 %v449
        %508 = vmatprep.subr.bf16.mxu0 0
        %509 = vmatpush1.bf16.msra.mxu0 %v448
        %510 = vmatprep.subr.bf16.mxu0 0
        %511 = vmatpush1.bf16.msra.mxu0 %v447
        %512 = vmatprep.subr.bf16.mxu0 0
        %513 = vmatpush2.bf16.msra.mxu0 %v462
        %514 = vmatprep.subr.bf16.mxu0 0
        %515 = vmatpush2.bf16.msra.mxu0 %v461
        %516 = vmatprep.subr.bf16.mxu0 0
        %517 = vmatpush2.bf16.msra.mxu0 %v460
        %518 = vmatprep.subr.bf16.mxu0 0
        %519 = vmatpush2.bf16.msra.mxu0 %v459
        %520 = vmatprep.subr.bf16.mxu0 0
        %521 = vmatpush2.bf16.msra.mxu0 %v458
        %522 = vmatprep.subr.bf16.mxu0 0
        %523 = vmatpush2.bf16.msra.mxu0 %v457
        %524 = vmatprep.subr.bf16.mxu0 0
        %525 = vmatpush2.bf16.msra.mxu0 %v456
        %526 = vmatprep.subr.bf16.mxu0 0
        %527 = vmatpush2.bf16.msra.mxu0 %v455
        %528 = vmatprep.mubr.bf16.mxu0 %v356
        %529 = vmatmul.mubr.bf16.gmra.mxu0 %v355
        %v530 = vpop.f32.mrf.mxu0
        %v531 = vadd.f32 0.0, %v530
        %v532 = vpop.f32.mrf.mxu0
        %v533 = vpop.f32.mrf.mxu0
        %v534 = vadd.f32 0.0, %v533
        %v535 = vpop.f32.mrf.mxu0
        %536 = vmatprep.mubr.bf16.mxu0 %v359
        %537 = vmatmul.mubr.bf16.gmra.mxu0 %v358
        %v538 = vpop.f32.mrf.mxu0
        %v539 = vadd.f32 0.0, %v538
        %v540 = vpop.f32.mrf.mxu0
        %v541 = vpop.f32.mrf.mxu0
        %v542 = vadd.f32 0.0, %v541
        %v543 = vpop.f32.mrf.mxu0
        %544 = vmatprep.mubr.bf16.mxu0 %v362
        %545 = vmatmul.mubr.bf16.gmra.mxu0 %v361
        %v546 = vpop.f32.mrf.mxu0
        %v547 = vadd.f32 0.0, %v546
        %v548 = vpop.f32.mrf.mxu0
        %v549 = vpop.f32.mrf.mxu0
        %v550 = vadd.f32 0.0, %v549
        %v551 = vpop.f32.mrf.mxu0
        %552 = vmatprep.mubr.bf16.mxu0 %v365
        %553 = vmatmul.mubr.bf16.gmra.mxu0 %v364
        %v554 = vpop.f32.mrf.mxu0
        %v555 = vadd.f32 0.0, %v554
        %v556 = vpop.f32.mrf.mxu0
        %v557 = vpop.f32.mrf.mxu0
        %v558 = vpop.f32.mrf.mxu0
        %559 = vdwg.mxu0
        %560 = vmatprep.subr.bf16.mxu0 0
        %561 = vmatpush1.bf16.msra.mxu0 0
        %562 = vmatprep.subr.bf16.mxu0 0
        %563 = vmatpush1.bf16.msra.mxu0 0
        %564 = vmatprep.subr.bf16.mxu0 0
        %565 = vmatpush1.bf16.msra.mxu0 0
        %566 = vmatprep.subr.bf16.mxu0 0
        %567 = vmatpush1.bf16.msra.mxu0 0
        %568 = vmatprep.subr.bf16.mxu0 0
        %569 = vmatpush1.bf16.msra.mxu0 0
        %570 = vmatprep.subr.bf16.mxu0 0
        %571 = vmatpush1.bf16.msra.mxu0 0
        %572 = vmatprep.subr.bf16.mxu0 0
        %573 = vmatpush1.bf16.msra.mxu0 %v464
        %574 = vmatprep.subr.bf16.mxu0 0
        %575 = vmatpush1.bf16.msra.mxu0 %v463
        %576 = vmatprep.subr.bf16.mxu0 0
        %577 = vmatpush2.bf16.msra.mxu0 0
        %578 = vmatprep.subr.bf16.mxu0 0
        %579 = vmatpush2.bf16.msra.mxu0 0
        %580 = vmatprep.subr.bf16.mxu0 0
        %581 = vmatpush2.bf16.msra.mxu0 0
        %582 = vmatprep.subr.bf16.mxu0 0
        %583 = vmatpush2.bf16.msra.mxu0 0
        %584 = vmatprep.subr.bf16.mxu0 0
        %585 = vmatpush2.bf16.msra.mxu0 0
        %586 = vmatprep.subr.bf16.mxu0 0
        %587 = vmatpush2.bf16.msra.mxu0 0
        %588 = vmatprep.subr.bf16.mxu0 0
        %589 = vmatpush2.bf16.msra.mxu0 0
        %590 = vmatprep.subr.bf16.mxu0 0
        %591 = vmatpush2.bf16.msra.mxu0 0
        %592 = vmatprep.mubr.bf16.mxu0 0
        %593 = vmatmul.mubr.bf16.gmra.mxu0 %v485
        %v594 = vpop.f32.mrf.mxu0
        %v595 = vadd.f32 %v531, %v594
        %v596 = vpop.f32.mrf.mxu0
        %v597 = vpop.f32.mrf.mxu0
        %v598 = vadd.f32 %v534, %v597
        %v599 = vpop.f32.mrf.mxu0
        %600 = vmatprep.mubr.bf16.mxu0 0
        %601 = vmatmul.mubr.bf16.gmra.mxu0 %v488
        %v602 = vpop.f32.mrf.mxu0
        %v603 = vadd.f32 %v539, %v602
        %v604 = vpop.f32.mrf.mxu0
        %v605 = vpop.f32.mrf.mxu0
        %v606 = vadd.f32 %v542, %v605
        %v607 = vpop.f32.mrf.mxu0
        %608 = vmatprep.mubr.bf16.mxu0 0
        %609 = vmatmul.mubr.bf16.gmra.mxu0 %v491
        %v610 = vpop.f32.mrf.mxu0
        %v611 = vadd.f32 %v547, %v610
        %v612 = vpop.f32.mrf.mxu0
        %v613 = vpop.f32.mrf.mxu0
        %v614 = vadd.f32 %v550, %v613
        %v615 = vpop.f32.mrf.mxu0
        %616 = vmatprep.mubr.bf16.mxu0 0
        %617 = vmatmul.mubr.bf16.gmra.mxu0 %v494
        %v618 = vpop.f32.mrf.mxu0
        %v619 = vadd.f32 %v555, %v618
        %v620 = vpop.f32.mrf.mxu0
        %v621 = vpop.f32.mrf.mxu0
        %v622 = vpop.f32.mrf.mxu0
        %623 = vdwg.mxu0
        %v624 = vmax.f32 %v595, 0.0
        %v625 = vmax.f32 %v598, 0.0
        %v626 = vmax.f32 %v603, 0.0
        %v627 = vmax.f32 %v606, 0.0
        %v628 = vmax.f32 %v611, 0.0
        %v629 = vmax.f32 %v614, 0.0
        %v630 = vmax.f32 %v619, 0.0
        %v631 = vpack.c.bf16 %v625, %v624
        %v632 = vpack.c.bf16 %v627, %v626
        %v633 = vpack.c.bf16 %v629, %v628
        %v634 = vpack.c.bf16 %v630, %v630
        %v635 = vld [vmem:[%s3] sm:$0xf]
        %vm636 = vcmask 64512
        %v638 = vsel %vm636, %v631, 0
        %v641 = vsel %vm636, %v632, 0
        %v644 = vsel %vm636, %v633, 0
        %v647 = vsel %vm636, %v634, 0
        %vm649 = vcmask 1043456
        %v651 = vsel %vm649, %v635, 0
        %653 = vmatprep.subr.bf16.mxu0 0
        %654 = vmatpush1.bf16.msra.mxu0 0
        %655 = vmatprep.subr.bf16.mxu0 0
        %656 = vmatpush1.bf16.msra.mxu0 0
        %657 = vmatprep.subr.bf16.mxu0 0
        %658 = vmatpush1.bf16.msra.mxu0 0
        %659 = vmatprep.subr.bf16.mxu0 0
        %660 = vmatpush1.bf16.msra.mxu0 0
        %661 = vmatprep.subr.bf16.mxu0 0
        %662 = vmatpush1.bf16.msra.mxu0 0
        %663 = vmatprep.subr.bf16.mxu0 0
        %664 = vmatpush1.bf16.msra.mxu0 0
        %665 = vmatprep.subr.bf16.mxu0 0
        %666 = vmatpush1.bf16.msra.mxu0 0
        %667 = vmatprep.subr.bf16.mxu0 0
        %668 = vmatpush1.bf16.msra.mxu0 %v651
        %669 = vmatprep.subr.bf16.mxu0 0
        %670 = vmatpush2.bf16.msra.mxu0 0
        %671 = vmatprep.subr.bf16.mxu0 0
        %672 = vmatpush2.bf16.msra.mxu0 0
        %673 = vmatprep.subr.bf16.mxu0 0
        %674 = vmatpush2.bf16.msra.mxu0 0
        %675 = vmatprep.subr.bf16.mxu0 0
        %676 = vmatpush2.bf16.msra.mxu0 0
        %677 = vmatprep.subr.bf16.mxu0 0
        %678 = vmatpush2.bf16.msra.mxu0 0
        %679 = vmatprep.subr.bf16.mxu0 0
        %680 = vmatpush2.bf16.msra.mxu0 0
        %681 = vmatprep.subr.bf16.mxu0 0
        %682 = vmatpush2.bf16.msra.mxu0 0
        %683 = vmatprep.subr.bf16.mxu0 0
        %684 = vmatpush2.bf16.msra.mxu0 0
        %685 = vmatprep.mubr.bf16.mxu0 0
        %686 = vmatmul.mubr.bf16.gmra.mxu0 %v638
        %v687 = vpop.f32.mrf.mxu0
        %v688 = vadd.f32 0.0, %v687
        %v689 = vpop.f32.mrf.mxu0
        %v690 = vpop.f32.mrf.mxu0
        %v691 = vadd.f32 0.0, %v690
        %v692 = vpop.f32.mrf.mxu0
        %693 = vmatprep.mubr.bf16.mxu0 0
        %694 = vmatmul.mubr.bf16.gmra.mxu0 %v641
        %v695 = vpop.f32.mrf.mxu0
        %v696 = vadd.f32 0.0, %v695
        %v697 = vpop.f32.mrf.mxu0
        %v698 = vpop.f32.mrf.mxu0
        %v699 = vadd.f32 0.0, %v698
        %v700 = vpop.f32.mrf.mxu0
        %701 = vmatprep.mubr.bf16.mxu0 0
        %702 = vmatmul.mubr.bf16.gmra.mxu0 %v644
        %v703 = vpop.f32.mrf.mxu0
        %v704 = vadd.f32 0.0, %v703
        %v705 = vpop.f32.mrf.mxu0
        %v706 = vpop.f32.mrf.mxu0
        %v707 = vadd.f32 0.0, %v706
        %v708 = vpop.f32.mrf.mxu0
        %709 = vmatprep.mubr.bf16.mxu0 0
        %710 = vmatmul.mubr.bf16.gmra.mxu0 %v647
        %v711 = vpop.f32.mrf.mxu0
        %v712 = vadd.f32 0.0, %v711
        %v713 = vpop.f32.mrf.mxu0
        %v714 = vpop.f32.mrf.mxu0
        %v715 = vpop.f32.mrf.mxu0
        %716 = vdwg.mxu0
        %v717 = vld [vmem:[%s258] sm:$0xff]
        %v718 = vld [vmem:[%s258 + $0x8] sm:$0xff]
        %v719 = vld [vmem:[%s258 + $0x10] sm:$0xff]
        %v720 = vld [vmem:[%s258 + $0x18] sm:$0xff]
        %v721 = vld [vmem:[%s258 + $0x20] sm:$0xff]
        %v722 = vld [vmem:[%s258 + $0x28] sm:$0xff]
        %v723 = vld [vmem:[%s258 + $0x30] sm:$0xff]
        %v724 = vadd.f32 %v717, %v688
        %v725 = vadd.f32 %v718, %v691
        %v726 = vadd.f32 %v719, %v696
        %v727 = vadd.f32 %v720, %v699
        %v728 = vadd.f32 %v721, %v704
        %v729 = vadd.f32 %v722, %v707
        %v730 = vadd.f32 %v723, %v712
        %v731 = vmax.f32 %v724, 0.0
        %v732 = vmax.f32 %v725, 0.0
        %v733 = vmax.f32 %v726, 0.0
        %v734 = vmax.f32 %v727, 0.0
        %v735 = vmax.f32 %v728, 0.0
        %v736 = vmax.f32 %v729, 0.0
        %v737 = vmax.f32 %v730, 0.0
        %738 = vst.msk [vmem:[%s232] sm:$0xff] %vm483, %v731
        %739 = vst.msk [vmem:[%s232 + $0x8] sm:$0xff] %vm483, %v732
        %740 = vst.msk [vmem:[%s232 + $0x10] sm:$0xff] %vm483, %v733
        %741 = vst.msk [vmem:[%s232 + $0x18] sm:$0xff] %vm483, %v734
        %742 = vst.msk [vmem:[%s232 + $0x20] sm:$0xff] %vm483, %v735
        %743 = vst.msk [vmem:[%s232 + $0x28] sm:$0xff] %vm483, %v736
        %744 = vst.msk [vmem:[%s232 + $0x30] sm:$0xff] %vm483, %v737
        %s745 = sand.u32 %s117, 1
        %s746 = sand.u32 %s117, 1
        %s747 = smul.addr %s746, 56
        %s748 = scalar_lea.vmem [#allocation2], %s747
        // Predicated region
        $region37: #{vqvae_forward.19} parent=35 // pred_check
          %p749 = pneg %p127
        $region38: #{vqvae_forward.19} parent=35 // pred_check_branch
          %751 = sbr.rel (%p749) target = $region40
        $region39: #{vqvae_forward.19} parent=35 // pred_region
          %s752 = smul.u32 7, %s15
          %s753 = ssub.s32 13, %s752
          %p754 = scmp.lt.s32.totalorder %s753, 7
          %s755 = scalar_select %p754, %s753, 7
          %s756 = smul.u32 128, %s755
          %p757 = scmp.ne.s32.totalorder 0, %s756
          %s758 = smul.addr %s752, 8
          %s759 = scalar_lea.vmem %s4, %s758
          // Predicated region
          $region41: #{vqvae_forward.19} parent=39 // pred_check
            %p760 = pneg %p757
          $region42: #{vqvae_forward.19} parent=39 // pred_check_branch
            %762 = sbr.rel (%p760) target = $region44
          $region43: #{vqvae_forward.19} parent=39 // pred_region
            // Predicated region
            $region45: #{vqvae_forward.19} parent=43 // pred_check
              _
            $region46: #{vqvae_forward.19} parent=43 // pred_check_branch
              %764 = sbr.rel (0) target = $region48
            $region47: #{vqvae_forward.19} parent=43 // pred_region
              // Predicated region
              $region67: #{vqvae_forward.19} parent=47 // pred_check
                _
              $region68: #{vqvae_forward.19} parent=47 // pred_check_branch
                %827 = sbr.rel (0) target = $region70
              $region69: #{vqvae_forward.19} parent=47 // pred_region
                %s828 = sdiv.u32.pop %s755, 7
                %s829 = srem.u32.pop %s755, 7
                // While loop
                $region71: #{vqvae_forward.19} parent=69 // loop_pre_header
                  _
                $region72: #{vqvae_forward.19} parent=69 // loop_header
                  %s831 = sphi 0, %s833
                  %p832 = scmp.ge.s32.totalorder %s831, %s828
                  %s836 = sphi 0, %s855
                  %s837 = sphi %s748, %s858
                  %s838 = sphi %s759, %s859
                $region73: #{vqvae_forward.19} parent=69 // loop_header_branch
                  %835 = sbr.rel (%p832) target = $region77
                $region74: #{vqvae_forward.19} parent=69 // loop_body
                  %v839 = vld [vmem:[%s837] sm:$0xff]
                  %840 = vst [vmem:[%s838] sm:$0xff] %v839
                  %v841 = vld [vmem:[%s837 + $0x8] sm:$0xff]
                  %842 = vst [vmem:[%s838 + $0x8] sm:$0xff] %v841
                  %v843 = vld [vmem:[%s837 + $0x10] sm:$0xff]
                  %844 = vst [vmem:[%s838 + $0x10] sm:$0xff] %v843
                  %v845 = vld [vmem:[%s837 + $0x18] sm:$0xff]
                  %846 = vst [vmem:[%s838 + $0x18] sm:$0xff] %v845
                  %v847 = vld [vmem:[%s837 + $0x20] sm:$0xff]
                  %848 = vst [vmem:[%s838 + $0x20] sm:$0xff] %v847
                  %v849 = vld [vmem:[%s837 + $0x28] sm:$0xff]
                  %850 = vst [vmem:[%s838 + $0x28] sm:$0xff] %v849
                  %v851 = vld [vmem:[%s837 + $0x30] sm:$0xff]
                  %852 = vst [vmem:[%s838 + $0x30] sm:$0xff] %v851
                  %s853 = sadd.s32 1, %s836
                  %p854 = scmp.ge.s32.totalorder %s853, %s828
                  %s855 = scalar_select %p854, 0, %s853
                  %s856 = smul.u32 %s855, 56
                  %s857 = smul.u32 %s855, 56
                  %s858 = scalar_lea.vmem %s748, %s856 [#allocation2]
                  %s859 = scalar_lea.vmem %s759, %s857
                $region75: #{vqvae_forward.19} parent=69 // loop_footer
                  %s833 = sadd.s32 %s831, 1
                $region76: #{vqvae_forward.19} parent=69 // loop_footer_branch
                  %830 = sbr.rel target = $region72
                $region77: #{vqvae_forward.19} parent=69 // loop_exit
                  _
                %s860 = sdiv.u32.pop %s755, 7
                %s861 = srem.u32.pop %s755, 7
                %s862 = smul.u32 %s860, 7
                %s863 = smul.u32 8, %s862
                %s864 = scalar_lea.vmem %s748, %s863 [#allocation2]
                %s865 = smul.u32 8, %s862
                %s866 = scalar_lea.vmem %s759, %s865
                // While loop
                $region78: #{vqvae_forward.19} parent=69 // loop_pre_header
                  _
                $region79: #{vqvae_forward.19} parent=69 // loop_header
                  %s868 = sphi 0, %s870
                  %p869 = scmp.ge.s32.totalorder %s868, %s861
                  %s873 = sphi 0, %s880
                  %s874 = sphi %s864, %s883
                  %s875 = sphi %s866, %s884
                $region80: #{vqvae_forward.19} parent=69 // loop_header_branch
                  %872 = sbr.rel (%p869) target = $region84
                $region81: #{vqvae_forward.19} parent=69 // loop_body
                  %v876 = vld [vmem:[%s874] sm:$0xff]
                  %877 = vst [vmem:[%s875] sm:$0xff] %v876
                  %s878 = sadd.s32 1, %s873
                  %p879 = scmp.ge.s32.totalorder %s878, %s861
                  %s880 = scalar_select %p879, 0, %s878
                  %s881 = smul.u32 %s880, 8
                  %s882 = smul.u32 %s880, 8
                  %s883 = scalar_lea.vmem %s864, %s881 [#allocation2]
                  %s884 = scalar_lea.vmem %s866, %s882
                $region82: #{vqvae_forward.19} parent=69 // loop_footer
                  %s870 = sadd.s32 %s868, 1
                $region83: #{vqvae_forward.19} parent=69 // loop_footer_branch
                  %867 = sbr.rel target = $region79
                $region84: #{vqvae_forward.19} parent=69 // loop_exit
                  _
              $region70: #{vqvae_forward.19} parent=47 // pred_fallthru
                _
              // Predicated region
              $region85: #{vqvae_forward.19} parent=47 // pred_check
                _
              $region86: #{vqvae_forward.19} parent=47 // pred_check_branch
                %886 = sbr.rel target = $region88
              $region87: #{vqvae_forward.19} parent=47 // pred_region
                _
              $region88: #{vqvae_forward.19} parent=47 // pred_fallthru
                _
            $region48: #{vqvae_forward.19} parent=43 // pred_fallthru
              _
            // Predicated region
            $region49: #{vqvae_forward.19} parent=43 // pred_check
              _
            $region50: #{vqvae_forward.19} parent=43 // pred_check_branch
              %766 = sbr.rel target = $region52
            $region51: #{vqvae_forward.19} parent=43 // pred_region
              %s768 = ssub.s32 256, 1
              %s769 = sdiv.u32.pop %s755, 7
              %s770 = srem.u32.pop %s755, 7
              // While loop
              $region53: #{vqvae_forward.19} parent=51 // loop_pre_header
                _
              $region54: #{vqvae_forward.19} parent=51 // loop_header
                %s772 = sphi 0, %s774
                %p773 = scmp.ge.s32.totalorder %s772, %s769
                %s777 = sphi 0, %s796
                %s778 = sphi %s748, %s799
                %s779 = sphi %s759, %s800
              $region55: #{vqvae_forward.19} parent=51 // loop_header_branch
                %776 = sbr.rel (%p773) target = $region59
              $region56: #{vqvae_forward.19} parent=51 // loop_body
                %v780 = vld [vmem:[%s778] sm:%s768]
                %781 = vst [vmem:[%s779] sm:%s768] %v780
                %v782 = vld [vmem:[%s778 + $0x8] sm:%s768]
                %783 = vst [vmem:[%s779 + $0x8] sm:%s768] %v782
                %v784 = vld [vmem:[%s778 + $0x10] sm:%s768]
                %785 = vst [vmem:[%s779 + $0x10] sm:%s768] %v784
                %v786 = vld [vmem:[%s778 + $0x18] sm:%s768]
                %787 = vst [vmem:[%s779 + $0x18] sm:%s768] %v786
                %v788 = vld [vmem:[%s778 + $0x20] sm:%s768]
                %789 = vst [vmem:[%s779 + $0x20] sm:%s768] %v788
                %v790 = vld [vmem:[%s778 + $0x28] sm:%s768]
                %791 = vst [vmem:[%s779 + $0x28] sm:%s768] %v790
                %v792 = vld [vmem:[%s778 + $0x30] sm:%s768]
                %793 = vst [vmem:[%s779 + $0x30] sm:%s768] %v792
                %s794 = sadd.s32 1, %s777
                %p795 = scmp.ge.s32.totalorder %s794, %s769
                %s796 = scalar_select %p795, 0, %s794
                %s797 = smul.u32 %s796, 56
                %s798 = smul.u32 %s796, 56
                %s799 = scalar_lea.vmem %s748, %s797 [#allocation2]
                %s800 = scalar_lea.vmem %s759, %s798
              $region57: #{vqvae_forward.19} parent=51 // loop_footer
                %s774 = sadd.s32 %s772, 1
              $region58: #{vqvae_forward.19} parent=51 // loop_footer_branch
                %771 = sbr.rel target = $region54
              $region59: #{vqvae_forward.19} parent=51 // loop_exit
                _
              %s801 = sdiv.u32.pop %s755, 7
              %s802 = srem.u32.pop %s755, 7
              %s803 = smul.u32 %s801, 7
              %s804 = smul.u32 8, %s803
              %s805 = scalar_lea.vmem %s748, %s804 [#allocation2]
              %s806 = smul.u32 8, %s803
              %s807 = scalar_lea.vmem %s759, %s806
              // While loop
              $region60: #{vqvae_forward.19} parent=51 // loop_pre_header
                _
              $region61: #{vqvae_forward.19} parent=51 // loop_header
                %s809 = sphi 0, %s811
                %p810 = scmp.ge.s32.totalorder %s809, %s802
                %s814 = sphi 0, %s821
                %s815 = sphi %s805, %s824
                %s816 = sphi %s807, %s825
              $region62: #{vqvae_forward.19} parent=51 // loop_header_branch
                %813 = sbr.rel (%p810) target = $region66
              $region63: #{vqvae_forward.19} parent=51 // loop_body
                %v817 = vld [vmem:[%s815] sm:%s768]
                %818 = vst [vmem:[%s816] sm:%s768] %v817
                %s819 = sadd.s32 1, %s814
                %p820 = scmp.ge.s32.totalorder %s819, %s802
                %s821 = scalar_select %p820, 0, %s819
                %s822 = smul.u32 %s821, 8
                %s823 = smul.u32 %s821, 8
                %s824 = scalar_lea.vmem %s805, %s822 [#allocation2]
                %s825 = scalar_lea.vmem %s807, %s823
              $region64: #{vqvae_forward.19} parent=51 // loop_footer
                %s811 = sadd.s32 %s809, 1
              $region65: #{vqvae_forward.19} parent=51 // loop_footer_branch
                %808 = sbr.rel target = $region61
              $region66: #{vqvae_forward.19} parent=51 // loop_exit
                _
            $region52: #{vqvae_forward.19} parent=43 // pred_fallthru
              _
          $region44: #{vqvae_forward.19} parent=39 // pred_fallthru
            _
          %887 = vnop
        $region40: #{vqvae_forward.19} parent=35 // pred_fallthru
          _
      $region36: #{vqvae_forward.19} parent=5 // pred_fallthru
        _
      %p888 = scmp.le.s32.totalorder 2, %s10
      // Predicated region
      $region89: #{vqvae_forward.19} parent=5 // pred_check
        %p889 = pneg %p888
      $region90: #{vqvae_forward.19} parent=5 // pred_check_branch
        %891 = sbr.rel (%p889) target = $region92
      $region91: #{vqvae_forward.19} parent=5 // pred_region
        %s892 = ssub.s32 %s10, 2
        // Predicated region
        $region93: #{vqvae_forward.19} parent=91 // pred_check
          %p893 = pneg %p133
        $region94: #{vqvae_forward.19} parent=91 // pred_check_branch
          %895 = sbr.rel (%p893) target = $region96
        $region95: #{vqvae_forward.19} parent=91 // pred_region
          %s896 = sand.u32 %s118, 1
          %s897 = sand.u32 %s118, 1
          %s898 = smul.addr %s897, 56
          %s899 = scalar_lea.vmem [#allocation2], %s898
        $region96: #{vqvae_forward.19} parent=91 // pred_fallthru
          _
      $region92: #{vqvae_forward.19} parent=5 // pred_fallthru
        _
    $region6: #{vqvae_forward.19} parent=1 // loop_footer
      %s14 = sadd.s32 1, %s10
    $region7: #{vqvae_forward.19} parent=1 // loop_footer_branch
      %9 = sbr.rel target = $region3
    $region8: #{vqvae_forward.19} parent=1 // loop_exit
      _

// kernel: vqvae_forward.20
$region0: #{vqvae_forward.20}
  #allocation0 [shape = 'u32[]', space=smem, size = 0x4, offset = 0x4, fixed_abs, tag = 'smem constant byte address 0x4 - core index']
  #allocation1 [shape = 'u32[144,128]{1,0:T(1,128)}', space=vmem, size = 0x12000, scoped, tag = 'internal scratch']
  %s0 = inlined_call_operand.vmem [shape: bf16[98,288], index: 0, kind: input, shape index: {}]
  %s1 = inlined_call_operand.vmem [shape: bf16[288,64], index: 1, kind: input, shape index: {}]
  %s2 = inlined_call_operand.vmem [shape: f32[1,64], index: 2, kind: input, shape index: {}]
  %s3 = inlined_call_operand.vmem [shape: f32[98,64], index: 3, kind: output, shape index: {}]
  %s4 = sld [smem:[#allocation0]]
  $region93: #{vqvae_forward.20} parent=0
    _
  %s6 = ssub.s32 1, %s4
  %s7 = scalar_select 0, %s6, %s4
  $region1: #{vqvae_forward.20} parent=0
    #allocation2 [shape = 'u8[57344]{0}', space=vmem, size = 0xe000, scoped, tag = 'output window, operand 0']
    loop: start=0, step=1, limit=4
    $region2: #{vqvae_forward.20} parent=1 // loop_pre_header
      _
    $region3: #{vqvae_forward.20} parent=1 // loop_header
      %s9 = sphi 0, %s13
      %p10 = scmp.ge.s32.totalorder %s9, 4
      %s19 = sphi 0, %s21
      %s22 = sphi 0, %s19
      %s23 = sphi 0, %s22
      %s39 = sphi 0, %s23
      %s43 = sphi 0, %s43
      %s45 = sphi 0, %s43
      %s46 = sphi 0, %s45
      %s60 = sphi 0, %s46
      %s64 = sphi 0, %s64
      %s66 = sphi 0, %s64
      %s67 = sphi 0, %s66
      %s81 = sphi 0, %s67
      %s87 = sphi 0, %s89
      %s90 = sphi 0, %s87
      %s91 = sphi 0, %s90
      %s107 = sphi 0, %s91
    $region4: #{vqvae_forward.20} parent=1 // loop_header_branch
      %12 = sbr.rel (%p10) target = $region8
    $region5: #{vqvae_forward.20} parent=1 // loop_body
      %s14 = ssub.s32 %s9, 1
      %s15 = ssub.s32 %s9, 2
      %s16 = sadd.s32 %s9, 1
      %s17 = ssub.s32 %s9, %s16
      %p18 = scmp.eq.s32.totalorder %s17, 0
      %s20 = sadd.s32 %s19, 1
      %s21 = scalar_select %p18, %s19, %s20
      %p24 = pneg %p18
      %p25 = scmp.eq.s32.totalorder %s9, 1
      %p26 = por %p24, %p25
      %p27 = scmp.ne.s32.totalorder %s19, %s22
      %p28 = scmp.eq.s32.totalorder %s9, 0
      %p29 = por %p27, %p28
      %p30 = scmp.ne.s32.totalorder %s19, %s22
      %p31 = scmp.eq.s32.totalorder %s14, 1
      %p32 = por %p30, %p31
      %p33 = scmp.ne.s32.totalorder %s22, %s23
      %p34 = scmp.eq.s32.totalorder %s14, 0
      %p35 = por %p33, %p34
      %p36 = scmp.ne.s32.totalorder %s22, %s23
      %p37 = scmp.eq.s32.totalorder %s15, 1
      %p38 = por %p36, %p37
      %p40 = scmp.ne.s32.totalorder %s23, %s39
      %p41 = scmp.eq.s32.totalorder %s15, 0
      %p42 = por %p40, %p41
      %s44 = sadd.s32 %s43, 1
      %p47 = scmp.eq.s32.totalorder %s9, 1
      %p48 = scmp.ne.s32.totalorder %s43, %s45
      %p49 = scmp.eq.s32.totalorder %s9, 0
      %p50 = por %p48, %p49
      %p51 = scmp.ne.s32.totalorder %s43, %s45
      %p52 = scmp.eq.s32.totalorder %s14, 1
      %p53 = por %p51, %p52
      %p54 = scmp.ne.s32.totalorder %s45, %s46
      %p55 = scmp.eq.s32.totalorder %s14, 0
      %p56 = por %p54, %p55
      %p57 = scmp.ne.s32.totalorder %s45, %s46
      %p58 = scmp.eq.s32.totalorder %s15, 1
      %p59 = por %p57, %p58
      %p61 = scmp.ne.s32.totalorder %s46, %s60
      %p62 = scmp.eq.s32.totalorder %s15, 0
      %p63 = por %p61, %p62
      %s65 = sadd.s32 %s64, 1
      %p68 = scmp.eq.s32.totalorder %s9, 1
      %p69 = scmp.ne.s32.totalorder %s64, %s66
      %p70 = scmp.eq.s32.totalorder %s9, 0
      %p71 = por %p69, %p70
      %p72 = scmp.ne.s32.totalorder %s64, %s66
      %p73 = scmp.eq.s32.totalorder %s14, 1
      %p74 = por %p72, %p73
      %p75 = scmp.ne.s32.totalorder %s66, %s67
      %p76 = scmp.eq.s32.totalorder %s14, 0
      %p77 = por %p75, %p76
      %p78 = scmp.ne.s32.totalorder %s66, %s67
      %p79 = scmp.eq.s32.totalorder %s15, 1
      %p80 = por %p78, %p79
      %p82 = scmp.ne.s32.totalorder %s67, %s81
      %p83 = scmp.eq.s32.totalorder %s15, 0
      %p84 = por %p82, %p83
      %s85 = ssub.s32 %s9, %s16
      %p86 = scmp.eq.s32.totalorder %s85, 0
      %s88 = sadd.s32 %s87, 1
      %s89 = scalar_select %p86, %s87, %s88
      %p92 = pneg %p86
      %p93 = scmp.eq.s32.totalorder %s9, 1
      %p94 = por %p92, %p93
      %p95 = scmp.ne.s32.totalorder %s87, %s90
      %p96 = scmp.eq.s32.totalorder %s9, 0
      %p97 = por %p95, %p96
      %p98 = scmp.ne.s32.totalorder %s87, %s90
      %p99 = scmp.eq.s32.totalorder %s14, 1
      %p100 = por %p98, %p99
      %p101 = scmp.ne.s32.totalorder %s90, %s91
      %p102 = scmp.eq.s32.totalorder %s14, 0
      %p103 = por %p101, %p102
      %p104 = scmp.ne.s32.totalorder %s90, %s91
      %p105 = scmp.eq.s32.totalorder %s15, 1
      %p106 = por %p104, %p105
      %p108 = scmp.ne.s32.totalorder %s91, %s107
      %p109 = scmp.eq.s32.totalorder %s15, 0
      %p110 = por %p108, %p109
      %p111 = scmp.le.s32.totalorder 1, %s9
      %p112 = scmp.lt.s32.totalorder %s9, 3
      %p113 = pnand %p111, %p112
      %p114 = pneg %p113
      // Predicated region
      $region9: #{vqvae_forward.20} parent=5 // pred_check
        _
      $region10: #{vqvae_forward.20} parent=5 // pred_check_branch
        %116 = sbr.rel (%p113) target = $region12
      $region11: #{vqvae_forward.20} parent=5 // pred_region
        %s117 = ssub.s32 %s9, 1
        // Predicated region
        $region13: #{vqvae_forward.20} parent=11 // pred_check
          %p118 = pneg %p56
        $region14: #{vqvae_forward.20} parent=11 // pred_check_branch
          %120 = sbr.rel (%p118) target = $region16
        $region15: #{vqvae_forward.20} parent=11 // pred_region
          _
        $region16: #{vqvae_forward.20} parent=11 // pred_fallthru
          _
        // Predicated region
        $region17: #{vqvae_forward.20} parent=11 // pred_check
          %p121 = pneg %p77
        $region18: #{vqvae_forward.20} parent=11 // pred_check_branch
          %123 = sbr.rel (%p121) target = $region20
        $region19: #{vqvae_forward.20} parent=11 // pred_region
          _
        $region20: #{vqvae_forward.20} parent=11 // pred_fallthru
          _
      $region12: #{vqvae_forward.20} parent=5 // pred_fallthru
        _
      %p124 = scmp.lt.s32.totalorder %s9, 2
      // Predicated region
      $region21: #{vqvae_forward.20} parent=5 // pred_check
        %p125 = pneg %p124
      $region22: #{vqvae_forward.20} parent=5 // pred_check_branch
        %127 = sbr.rel (%p125) target = $region24
      $region23: #{vqvae_forward.20} parent=5 // pred_region
        // Predicated region
        $region25: #{vqvae_forward.20} parent=23 // pred_check
          %p128 = pneg %p29
        $region26: #{vqvae_forward.20} parent=23 // pred_check_branch
          %130 = sbr.rel (%p128) target = $region28
        $region27: #{vqvae_forward.20} parent=23 // pred_region
          %s131 = smul.u32 7, %s9
          %s132 = ssub.s32 13, %s131
          %p133 = scmp.lt.s32.totalorder %s132, 7
          %s134 = scalar_select %p133, %s132, 7
          %s135 = smul.u32 64, %s134
          %s136 = smul.u32 %s135, 3
          %p137 = scmp.lt.s32.totalorder %s131, 12
          %s138 = scalar_select %p137, %s131, 12
          %s139 = smul.addr %s138, 3
          %s140 = smul.addr %s139, 4
          %s141 = scalar_lea.vmem %s0, %s140
          %s142 = smul.u32 7, %s9
          %s143 = ssub.s32 13, %s142
          %p144 = scmp.lt.s32.totalorder %s143, 7
          %s145 = scalar_select %p144, %s143, 7
          %s146 = smul.u32 64, %s145
          %s147 = smul.u32 %s146, 3
        $region28: #{vqvae_forward.20} parent=23 // pred_fallthru
          _
      $region24: #{vqvae_forward.20} parent=5 // pred_fallthru
        _
      %p148 = scmp.le.s32.totalorder 1, %s9
      %p149 = scmp.lt.s32.totalorder %s9, 3
      %p150 = pnand %p148, %p149
      %p151 = pneg %p150
      // Predicated region
      $region29: #{vqvae_forward.20} parent=5 // pred_check
        _
      $region30: #{vqvae_forward.20} parent=5 // pred_check_branch
        %153 = sbr.rel (%p150) target = $region32
      $region31: #{vqvae_forward.20} parent=5 // pred_region
        %s154 = ssub.s32 %s9, 1
        %s155 = smul.u32 7, %s14
        %s156 = ssub.s32 13, %s155
        %p157 = scmp.lt.s32.totalorder %s156, 7
        %s158 = scalar_select %p157, %s156, 7
        %s159 = smul.u32 64, %s158
        %s160 = smul.u32 %s159, 3
        %p161 = scmp.lt.s32.totalorder %s155, 12
        %s162 = scalar_select %p161, %s155, 12
        %s163 = smul.addr %s162, 3
        %s164 = smul.addr %s163, 4
        %s165 = scalar_lea.vmem %s0, %s164
        %p166 = pneg %p35
        %p167 = pneg %p32
        %p168 = pneg %p56
        %p169 = pneg %p53
        %p170 = pneg %p77
        %p171 = pneg %p74
        %p172 = pneg %p103
        %p173 = pneg %p100
        %s174 = sand.u32 %s90, 1
        %s175 = sand.u32 %s90, 1
        %s176 = smul.addr %s175, 56
        %s177 = scalar_lea.vmem [#allocation2], %s176
        %s178 = smul.u32 7, %s14
        %s179 = ssub.s32 13, %s178
        %p180 = scmp.lt.s32.totalorder %s179, 7
        %s181 = scalar_select %p180, %s179, 7
        %s182 = smul.u32 64, %s181
        %s183 = smul.u32 %s182, 3
        %p184 = scmp.lt.s32.totalorder %s178, 12
        %s185 = scalar_select %p184, %s178, 12
        %s186 = smul.addr %s185, 3
        %s187 = smul.addr %s186, 4
        %s188 = scalar_lea.vmem %s0, %s187
        %s189 = smul.u32 7, %s14
        %s190 = ssub.s32 13, %s189
        %p191 = scmp.lt.s32.totalorder %s190, 7
        %s192 = scalar_select %p191, %s190, 7
        %s193 = smul.u32 64, %s192
        %s194 = smul.u32 %s193, 3
        %s195 = smul.u32 7, %s14
        %s196 = ssub.s32 13, %s195
        %p197 = scmp.lt.s32.totalorder %s196, 7
        %s198 = scalar_select %p197, %s196, 7
        %s199 = smul.u32 128, %s198
        %v201 = vld [vmem:[%s188] sm:$0xff]
        %v202 = vld [vmem:[%s188 + $0x8] sm:$0xf]
        %v203 = vld [vmem:[%s188 + $0xc] sm:$0xff]
        %v204 = vld [vmem:[%s188 + $0x14] sm:$0xf]
        %v205 = vld [vmem:[%s188 + $0x18] sm:$0xff]
        %v206 = vld [vmem:[%s188 + $0x20] sm:$0xf]
        %v207 = vld [vmem:[%s188 + $0x24] sm:$0xff]
        %v208 = vld [vmem:[%s188 + $0x2c] sm:$0xf]
        %v209 = vld [vmem:[%s188 + $0x30] sm:$0xff]
        %v210 = vld [vmem:[%s188 + $0x38] sm:$0xf]
        %v211 = vld [vmem:[%s188 + $0x3c] sm:$0xff]
        %v212 = vld [vmem:[%s188 + $0x44] sm:$0xf]
        %v213 = vld [vmem:[%s188 + $0x48] sm:$0xff]
        %v214 = vld [vmem:[%s188 + $0x50] sm:$0xf]
        %v215 = vld [vmem:[%s1] sm:$0xf]
        %v216 = vld [vmem:[%s1 + $0x4] sm:$0xf]
        %v217 = vld [vmem:[%s1 + $0x8] sm:$0xf]
        %v218 = vld [vmem:[%s1 + $0xc] sm:$0xf]
        %v219 = vld [vmem:[%s1 + $0x10] sm:$0xf]
        %v220 = vld [vmem:[%s1 + $0x14] sm:$0xf]
        %v221 = vld [vmem:[%s1 + $0x18] sm:$0xf]
        %v222 = vld [vmem:[%s1 + $0x1c] sm:$0xf]
        %v223 = vld [vmem:[%s1 + $0x20] sm:$0xf]
        %v224 = vld [vmem:[%s1 + $0x24] sm:$0xf]
        %v225 = vld [vmem:[%s1 + $0x28] sm:$0xf]
        %v226 = vld [vmem:[%s1 + $0x2c] sm:$0xf]
        %v227 = vld [vmem:[%s1 + $0x30] sm:$0xf]
        %v228 = vld [vmem:[%s1 + $0x34] sm:$0xf]
        %v229 = vld [vmem:[%s1 + $0x38] sm:$0xf]
        %v230 = vld [vmem:[%s1 + $0x3c] sm:$0xf]
        %v231 = vld [vmem:[%s1 + $0x40] sm:$0xf]
        %v232 = vld [vmem:[%s1 + $0x44] sm:$0xf]
        %v233 = vld [vmem:[%s1 + $0x48] sm:$0xf]
        %v234 = vld [vmem:[%s1 + $0x4c] sm:$0xf]
        %v235 = vld [vmem:[%s1 + $0x50] sm:$0xf]
        %v236 = vld [vmem:[%s1 + $0x54] sm:$0xf]
        %v237 = vld [vmem:[%s1 + $0x58] sm:$0xf]
        %v238 = vld [vmem:[%s1 + $0x5c] sm:$0xf]
        %v239 = vld [vmem:[%s1 + $0x60] sm:$0xf]
        %v240 = vld [vmem:[%s1 + $0x64] sm:$0xf]
        %v241 = vld [vmem:[%s1 + $0x68] sm:$0xf]
        %v242 = vld [vmem:[%s1 + $0x6c] sm:$0xf]
        %v243 = vld [vmem:[%s1 + $0x70] sm:$0xf]
        %v244 = vld [vmem:[%s1 + $0x74] sm:$0xf]
        %v245 = vld [vmem:[%s1 + $0x78] sm:$0xf]
        %v246 = vld [vmem:[%s1 + $0x7c] sm:$0xf]
        %v247 = vld [vmem:[%s1 + $0x80] sm:$0xf]
        %v248 = vld [vmem:[%s1 + $0x84] sm:$0xf]
        %v249 = vld [vmem:[%s1 + $0x88] sm:$0xf]
        %v250 = vld [vmem:[%s1 + $0x8c] sm:$0xf]
        %v251 = vld [vmem:[%s2] sm:$0x1]
        %v253 = vlaneseq
        %v254 = vshrl.u32 %v253, 7
        %v255 = vsub.s32 0, %v254
        %v256 = vrot.slane %v251, %v255
        %v272 = vunpack.c.l.b16 %v201
        %v273 = vunpack.c.h.b16 %v201
        %v274 = vunpack.c.l.b16 %v202
        %v275 = vunpack.c.l.b16 %v203
        %v276 = vunpack.c.h.b16 %v203
        %v277 = vunpack.c.l.b16 %v204
        %v278 = vunpack.c.l.b16 %v205
        %v279 = vunpack.c.h.b16 %v205
        %v280 = vunpack.c.l.b16 %v206
        %v281 = vunpack.c.l.b16 %v207
        %v282 = vunpack.c.h.b16 %v207
        %v283 = vunpack.c.l.b16 %v208
        %v284 = vunpack.c.l.b16 %v209
        %v285 = vunpack.c.h.b16 %v209
        %v286 = vunpack.c.l.b16 %v210
        %v287 = vunpack.c.l.b16 %v211
        %v288 = vunpack.c.h.b16 %v211
        %v289 = vunpack.c.l.b16 %v212
        %v290 = vunpack.c.l.b16 %v213
        %v291 = vunpack.c.h.b16 %v213
        %v292 = vunpack.c.l.b16 %v214
        %v293 = vpack.c.b16 %v275, %v272
        %v294 = vpack.c.b16 %v276, %v273
        %v295 = vpack.c.b16 %v277, %v274
        %v296 = vpack.c.b16 %v281, %v278
        %v297 = vpack.c.b16 %v282, %v279
        %v298 = vpack.c.b16 %v283, %v280
        %v299 = vpack.c.b16 %v287, %v284
        %v300 = vpack.c.b16 %v288, %v285
        %v301 = vpack.c.b16 %v289, %v286
        %v302 = vpack.c.b16 %v290, %v290
        %v303 = vpack.c.b16 %v291, %v291
        %v304 = vpack.c.b16 %v292, %v292
        %v349 = vunpack.c.l.b16 %v215
        %v350 = vunpack.c.l.b16 %v216
        %v351 = vunpack.c.l.b16 %v217
        %v352 = vunpack.c.l.b16 %v218
        %v353 = vunpack.c.l.b16 %v219
        %v354 = vunpack.c.l.b16 %v220
        %v355 = vunpack.c.l.b16 %v221
        %v356 = vunpack.c.l.b16 %v222
        %v357 = vunpack.c.l.b16 %v223
        %v358 = vunpack.c.l.b16 %v224
        %v359 = vunpack.c.l.b16 %v225
        %v360 = vunpack.c.l.b16 %v226
        %v361 = vunpack.c.l.b16 %v227
        %v362 = vunpack.c.l.b16 %v228
        %v363 = vunpack.c.l.b16 %v229
        %v364 = vunpack.c.l.b16 %v230
        %v365 = vunpack.c.l.b16 %v231
        %v366 = vunpack.c.l.b16 %v232
        %v367 = vunpack.c.l.b16 %v233
        %v368 = vunpack.c.l.b16 %v234
        %v369 = vunpack.c.l.b16 %v235
        %v370 = vunpack.c.l.b16 %v236
        %v371 = vunpack.c.l.b16 %v237
        %v372 = vunpack.c.l.b16 %v238
        %v373 = vunpack.c.l.b16 %v239
        %v374 = vunpack.c.l.b16 %v240
        %v375 = vunpack.c.l.b16 %v241
        %v376 = vunpack.c.l.b16 %v242
        %v377 = vunpack.c.l.b16 %v243
        %v378 = vunpack.c.l.b16 %v244
        %v379 = vunpack.c.l.b16 %v245
        %v380 = vunpack.c.l.b16 %v246
        %v381 = vunpack.c.l.b16 %v247
        %v382 = vunpack.c.l.b16 %v248
        %v383 = vunpack.c.l.b16 %v249
        %v384 = vunpack.c.l.b16 %v250
        %v385 = vpack.c.b16 %v350, %v349
        %v386 = vpack.c.b16 %v352, %v351
        %v387 = vpack.c.b16 %v354, %v353
        %v388 = vpack.c.b16 %v356, %v355
        %v389 = vpack.c.b16 %v358, %v357
        %v390 = vpack.c.b16 %v360, %v359
        %v391 = vpack.c.b16 %v362, %v361
        %v392 = vpack.c.b16 %v364, %v363
        %v393 = vpack.c.b16 %v366, %v365
        %v394 = vpack.c.b16 %v368, %v367
        %v395 = vpack.c.b16 %v370, %v369
        %v396 = vpack.c.b16 %v372, %v371
        %v397 = vpack.c.b16 %v374, %v373
        %v398 = vpack.c.b16 %v376, %v375
        %v399 = vpack.c.b16 %v378, %v377
        %v400 = vpack.c.b16 %v380, %v379
        %v401 = vpack.c.b16 %v382, %v381
        %v402 = vpack.c.b16 %v384, %v383
        %vm421 = vcmask 261120
        %v423 = vsel %vm421, %v295, 0
        %v426 = vsel %vm421, %v298, 0
        %v429 = vsel %vm421, %v301, 0
        %v432 = vsel %vm421, %v304, 0
        %434 = vmatprep.subr.bf16.mxu0 0
        %435 = vmatpush1.bf16.msra.mxu0 %v392
        %436 = vmatprep.subr.bf16.mxu0 0
        %437 = vmatpush1.bf16.msra.mxu0 %v391
        %438 = vmatprep.subr.bf16.mxu0 0
        %439 = vmatpush1.bf16.msra.mxu0 %v390
        %440 = vmatprep.subr.bf16.mxu0 0
        %441 = vmatpush1.bf16.msra.mxu0 %v389
        %442 = vmatprep.subr.bf16.mxu0 0
        %443 = vmatpush1.bf16.msra.mxu0 %v388
        %444 = vmatprep.subr.bf16.mxu0 0
        %445 = vmatpush1.bf16.msra.mxu0 %v387
        %446 = vmatprep.subr.bf16.mxu0 0
        %447 = vmatpush1.bf16.msra.mxu0 %v386
        %448 = vmatprep.subr.bf16.mxu0 0
        %449 = vmatpush1.bf16.msra.mxu0 %v385
        %450 = vmatprep.subr.bf16.mxu0 0
        %451 = vmatpush2.bf16.msra.mxu0 %v400
        %452 = vmatprep.subr.bf16.mxu0 0
        %453 = vmatpush2.bf16.msra.mxu0 %v399
        %454 = vmatprep.subr.bf16.mxu0 0
        %455 = vmatpush2.bf16.msra.mxu0 %v398
        %456 = vmatprep.subr.bf16.mxu0 0
        %457 = vmatpush2.bf16.msra.mxu0 %v397
        %458 = vmatprep.subr.bf16.mxu0 0
        %459 = vmatpush2.bf16.msra.mxu0 %v396
        %460 = vmatprep.subr.bf16.mxu0 0
        %461 = vmatpush2.bf16.msra.mxu0 %v395
        %462 = vmatprep.subr.bf16.mxu0 0
        %463 = vmatpush2.bf16.msra.mxu0 %v394
        %464 = vmatprep.subr.bf16.mxu0 0
        %465 = vmatpush2.bf16.msra.mxu0 %v393
        %466 = vmatprep.mubr.bf16.mxu0 %v294
        %467 = vmatmul.mubr.bf16.gmra.mxu0 %v293
        %v468 = vpop.f32.mrf.mxu0
        %v469 = vadd.f32 %v256, %v468
        %v470 = vpop.f32.mrf.mxu0
        %v471 = vpop.f32.mrf.mxu0
        %v472 = vadd.f32 %v256, %v471
        %v473 = vpop.f32.mrf.mxu0
        %474 = vmatprep.mubr.bf16.mxu0 %v297
        %475 = vmatmul.mubr.bf16.gmra.mxu0 %v296
        %v476 = vpop.f32.mrf.mxu0
        %v477 = vadd.f32 %v256, %v476
        %v478 = vpop.f32.mrf.mxu0
        %v479 = vpop.f32.mrf.mxu0
        %v480 = vadd.f32 %v256, %v479
        %v481 = vpop.f32.mrf.mxu0
        %482 = vmatprep.mubr.bf16.mxu0 %v300
        %483 = vmatmul.mubr.bf16.gmra.mxu0 %v299
        %v484 = vpop.f32.mrf.mxu0
        %v485 = vadd.f32 %v256, %v484
        %v486 = vpop.f32.mrf.mxu0
        %v487 = vpop.f32.mrf.mxu0
        %v488 = vadd.f32 %v256, %v487
        %v489 = vpop.f32.mrf.mxu0
        %490 = vmatprep.mubr.bf16.mxu0 %v303
        %491 = vmatmul.mubr.bf16.gmra.mxu0 %v302
        %v492 = vpop.f32.mrf.mxu0
        %v493 = vadd.f32 %v256, %v492
        %v494 = vpop.f32.mrf.mxu0
        %v495 = vpop.f32.mrf.mxu0
        %v496 = vpop.f32.mrf.mxu0
        %497 = vdwg.mxu0
        %498 = vmatprep.subr.bf16.mxu0 0
        %499 = vmatpush1.bf16.msra.mxu0 0
        %500 = vmatprep.subr.bf16.mxu0 0
        %501 = vmatpush1.bf16.msra.mxu0 0
        %502 = vmatprep.subr.bf16.mxu0 0
        %503 = vmatpush1.bf16.msra.mxu0 0
        %504 = vmatprep.subr.bf16.mxu0 0
        %505 = vmatpush1.bf16.msra.mxu0 0
        %506 = vmatprep.subr.bf16.mxu0 0
        %507 = vmatpush1.bf16.msra.mxu0 0
        %508 = vmatprep.subr.bf16.mxu0 0
        %509 = vmatpush1.bf16.msra.mxu0 0
        %510 = vmatprep.subr.bf16.mxu0 0
        %511 = vmatpush1.bf16.msra.mxu0 %v402
        %512 = vmatprep.subr.bf16.mxu0 0
        %513 = vmatpush1.bf16.msra.mxu0 %v401
        %514 = vmatprep.subr.bf16.mxu0 0
        %515 = vmatpush2.bf16.msra.mxu0 0
        %516 = vmatprep.subr.bf16.mxu0 0
        %517 = vmatpush2.bf16.msra.mxu0 0
        %518 = vmatprep.subr.bf16.mxu0 0
        %519 = vmatpush2.bf16.msra.mxu0 0
        %520 = vmatprep.subr.bf16.mxu0 0
        %521 = vmatpush2.bf16.msra.mxu0 0
        %522 = vmatprep.subr.bf16.mxu0 0
        %523 = vmatpush2.bf16.msra.mxu0 0
        %524 = vmatprep.subr.bf16.mxu0 0
        %525 = vmatpush2.bf16.msra.mxu0 0
        %526 = vmatprep.subr.bf16.mxu0 0
        %527 = vmatpush2.bf16.msra.mxu0 0
        %528 = vmatprep.subr.bf16.mxu0 0
        %529 = vmatpush2.bf16.msra.mxu0 0
        %530 = vmatprep.mubr.bf16.mxu0 0
        %531 = vmatmul.mubr.bf16.gmra.mxu0 %v423
        %v532 = vpop.f32.mrf.mxu0
        %v533 = vadd.f32 %v469, %v532
        %v534 = vpop.f32.mrf.mxu0
        %v535 = vpop.f32.mrf.mxu0
        %v536 = vadd.f32 %v472, %v535
        %v537 = vpop.f32.mrf.mxu0
        %538 = vmatprep.mubr.bf16.mxu0 0
        %539 = vmatmul.mubr.bf16.gmra.mxu0 %v426
        %v540 = vpop.f32.mrf.mxu0
        %v541 = vadd.f32 %v477, %v540
        %v542 = vpop.f32.mrf.mxu0
        %v543 = vpop.f32.mrf.mxu0
        %v544 = vadd.f32 %v480, %v543
        %v545 = vpop.f32.mrf.mxu0
        %546 = vmatprep.mubr.bf16.mxu0 0
        %547 = vmatmul.mubr.bf16.gmra.mxu0 %v429
        %v548 = vpop.f32.mrf.mxu0
        %v549 = vadd.f32 %v485, %v548
        %v550 = vpop.f32.mrf.mxu0
        %v551 = vpop.f32.mrf.mxu0
        %v552 = vadd.f32 %v488, %v551
        %v553 = vpop.f32.mrf.mxu0
        %554 = vmatprep.mubr.bf16.mxu0 0
        %555 = vmatmul.mubr.bf16.gmra.mxu0 %v432
        %v556 = vpop.f32.mrf.mxu0
        %v557 = vadd.f32 %v493, %v556
        %v558 = vpop.f32.mrf.mxu0
        %v559 = vpop.f32.mrf.mxu0
        %v560 = vpop.f32.mrf.mxu0
        %561 = vdwg.mxu0
        %v562 = vmax.f32 %v533, 0.0
        %v563 = vmax.f32 %v536, 0.0
        %v564 = vmax.f32 %v541, 0.0
        %v565 = vmax.f32 %v544, 0.0
        %v566 = vmax.f32 %v549, 0.0
        %v567 = vmax.f32 %v552, 0.0
        %v568 = vmax.f32 %v557, 0.0
        %vm569 = vcmask 523264
        %570 = vst.msk [vmem:[%s177] sm:$0xff] %vm569, %v562
        %571 = vst.msk [vmem:[%s177 + $0x8] sm:$0xff] %vm569, %v563
        %572 = vst.msk [vmem:[%s177 + $0x10] sm:$0xff] %vm569, %v564
        %573 = vst.msk [vmem:[%s177 + $0x18] sm:$0xff] %vm569, %v565
        %574 = vst.msk [vmem:[%s177 + $0x20] sm:$0xff] %vm569, %v566
        %575 = vst.msk [vmem:[%s177 + $0x28] sm:$0xff] %vm569, %v567
        %576 = vst.msk [vmem:[%s177 + $0x30] sm:$0xff] %vm569, %v568
        %s577 = sand.u32 %s90, 1
        %s578 = sand.u32 %s90, 1
        %s579 = smul.addr %s578, 56
        %s580 = scalar_lea.vmem [#allocation2], %s579
        // Predicated region
        $region33: #{vqvae_forward.20} parent=31 // pred_check
          %p581 = pneg %p100
        $region34: #{vqvae_forward.20} parent=31 // pred_check_branch
          %583 = sbr.rel (%p581) target = $region36
        $region35: #{vqvae_forward.20} parent=31 // pred_region
          %s584 = smul.u32 7, %s14
          %s585 = ssub.s32 13, %s584
          %p586 = scmp.lt.s32.totalorder %s585, 7
          %s587 = scalar_select %p586, %s585, 7
          %s588 = smul.u32 128, %s587
          %p589 = scmp.ne.s32.totalorder 0, %s588
          %s590 = smul.addr %s584, 8
          %s591 = scalar_lea.vmem %s3, %s590
          // Predicated region
          $region37: #{vqvae_forward.20} parent=35 // pred_check
            %p592 = pneg %p589
          $region38: #{vqvae_forward.20} parent=35 // pred_check_branch
            %594 = sbr.rel (%p592) target = $region40
          $region39: #{vqvae_forward.20} parent=35 // pred_region
            // Predicated region
            $region41: #{vqvae_forward.20} parent=39 // pred_check
              _
            $region42: #{vqvae_forward.20} parent=39 // pred_check_branch
              %596 = sbr.rel (0) target = $region44
            $region43: #{vqvae_forward.20} parent=39 // pred_region
              // Predicated region
              $region63: #{vqvae_forward.20} parent=43 // pred_check
                _
              $region64: #{vqvae_forward.20} parent=43 // pred_check_branch
                %659 = sbr.rel (0) target = $region66
              $region65: #{vqvae_forward.20} parent=43 // pred_region
                %s660 = sdiv.u32.pop %s587, 7
                %s661 = srem.u32.pop %s587, 7
                // While loop
                $region67: #{vqvae_forward.20} parent=65 // loop_pre_header
                  _
                $region68: #{vqvae_forward.20} parent=65 // loop_header
                  %s663 = sphi 0, %s665
                  %p664 = scmp.ge.s32.totalorder %s663, %s660
                  %s668 = sphi 0, %s687
                  %s669 = sphi %s580, %s690
                  %s670 = sphi %s591, %s691
                $region69: #{vqvae_forward.20} parent=65 // loop_header_branch
                  %667 = sbr.rel (%p664) target = $region73
                $region70: #{vqvae_forward.20} parent=65 // loop_body
                  %v671 = vld [vmem:[%s669] sm:$0xff]
                  %672 = vst [vmem:[%s670] sm:$0xff] %v671
                  %v673 = vld [vmem:[%s669 + $0x8] sm:$0xff]
                  %674 = vst [vmem:[%s670 + $0x8] sm:$0xff] %v673
                  %v675 = vld [vmem:[%s669 + $0x10] sm:$0xff]
                  %676 = vst [vmem:[%s670 + $0x10] sm:$0xff] %v675
                  %v677 = vld [vmem:[%s669 + $0x18] sm:$0xff]
                  %678 = vst [vmem:[%s670 + $0x18] sm:$0xff] %v677
                  %v679 = vld [vmem:[%s669 + $0x20] sm:$0xff]
                  %680 = vst [vmem:[%s670 + $0x20] sm:$0xff] %v679
                  %v681 = vld [vmem:[%s669 + $0x28] sm:$0xff]
                  %682 = vst [vmem:[%s670 + $0x28] sm:$0xff] %v681
                  %v683 = vld [vmem:[%s669 + $0x30] sm:$0xff]
                  %684 = vst [vmem:[%s670 + $0x30] sm:$0xff] %v683
                  %s685 = sadd.s32 1, %s668
                  %p686 = scmp.ge.s32.totalorder %s685, %s660
                  %s687 = scalar_select %p686, 0, %s685
                  %s688 = smul.u32 %s687, 56
                  %s689 = smul.u32 %s687, 56
                  %s690 = scalar_lea.vmem %s580, %s688 [#allocation2]
                  %s691 = scalar_lea.vmem %s591, %s689
                $region71: #{vqvae_forward.20} parent=65 // loop_footer
                  %s665 = sadd.s32 %s663, 1
                $region72: #{vqvae_forward.20} parent=65 // loop_footer_branch
                  %662 = sbr.rel target = $region68
                $region73: #{vqvae_forward.20} parent=65 // loop_exit
                  _
                %s692 = sdiv.u32.pop %s587, 7
                %s693 = srem.u32.pop %s587, 7
                %s694 = smul.u32 %s692, 7
                %s695 = smul.u32 8, %s694
                %s696 = scalar_lea.vmem %s580, %s695 [#allocation2]
                %s697 = smul.u32 8, %s694
                %s698 = scalar_lea.vmem %s591, %s697
                // While loop
                $region74: #{vqvae_forward.20} parent=65 // loop_pre_header
                  _
                $region75: #{vqvae_forward.20} parent=65 // loop_header
                  %s700 = sphi 0, %s702
                  %p701 = scmp.ge.s32.totalorder %s700, %s693
                  %s705 = sphi 0, %s712
                  %s706 = sphi %s696, %s715
                  %s707 = sphi %s698, %s716
                $region76: #{vqvae_forward.20} parent=65 // loop_header_branch
                  %704 = sbr.rel (%p701) target = $region80
                $region77: #{vqvae_forward.20} parent=65 // loop_body
                  %v708 = vld [vmem:[%s706] sm:$0xff]
                  %709 = vst [vmem:[%s707] sm:$0xff] %v708
                  %s710 = sadd.s32 1, %s705
                  %p711 = scmp.ge.s32.totalorder %s710, %s693
                  %s712 = scalar_select %p711, 0, %s710
                  %s713 = smul.u32 %s712, 8
                  %s714 = smul.u32 %s712, 8
                  %s715 = scalar_lea.vmem %s696, %s713 [#allocation2]
                  %s716 = scalar_lea.vmem %s698, %s714
                $region78: #{vqvae_forward.20} parent=65 // loop_footer
                  %s702 = sadd.s32 %s700, 1
                $region79: #{vqvae_forward.20} parent=65 // loop_footer_branch
                  %699 = sbr.rel target = $region75
                $region80: #{vqvae_forward.20} parent=65 // loop_exit
                  _
              $region66: #{vqvae_forward.20} parent=43 // pred_fallthru
                _
              // Predicated region
              $region81: #{vqvae_forward.20} parent=43 // pred_check
                _
              $region82: #{vqvae_forward.20} parent=43 // pred_check_branch
                %718 = sbr.rel target = $region84
              $region83: #{vqvae_forward.20} parent=43 // pred_region
                _
              $region84: #{vqvae_forward.20} parent=43 // pred_fallthru
                _
            $region44: #{vqvae_forward.20} parent=39 // pred_fallthru
              _
            // Predicated region
            $region45: #{vqvae_forward.20} parent=39 // pred_check
              _
            $region46: #{vqvae_forward.20} parent=39 // pred_check_branch
              %598 = sbr.rel target = $region48
            $region47: #{vqvae_forward.20} parent=39 // pred_region
              %s600 = ssub.s32 256, 1
              %s601 = sdiv.u32.pop %s587, 7
              %s602 = srem.u32.pop %s587, 7
              // While loop
              $region49: #{vqvae_forward.20} parent=47 // loop_pre_header
                _
              $region50: #{vqvae_forward.20} parent=47 // loop_header
                %s604 = sphi 0, %s606
                %p605 = scmp.ge.s32.totalorder %s604, %s601
                %s609 = sphi 0, %s628
                %s610 = sphi %s580, %s631
                %s611 = sphi %s591, %s632
              $region51: #{vqvae_forward.20} parent=47 // loop_header_branch
                %608 = sbr.rel (%p605) target = $region55
              $region52: #{vqvae_forward.20} parent=47 // loop_body
                %v612 = vld [vmem:[%s610] sm:%s600]
                %613 = vst [vmem:[%s611] sm:%s600] %v612
                %v614 = vld [vmem:[%s610 + $0x8] sm:%s600]
                %615 = vst [vmem:[%s611 + $0x8] sm:%s600] %v614
                %v616 = vld [vmem:[%s610 + $0x10] sm:%s600]
                %617 = vst [vmem:[%s611 + $0x10] sm:%s600] %v616
                %v618 = vld [vmem:[%s610 + $0x18] sm:%s600]
                %619 = vst [vmem:[%s611 + $0x18] sm:%s600] %v618
                %v620 = vld [vmem:[%s610 + $0x20] sm:%s600]
                %621 = vst [vmem:[%s611 + $0x20] sm:%s600] %v620
                %v622 = vld [vmem:[%s610 + $0x28] sm:%s600]
                %623 = vst [vmem:[%s611 + $0x28] sm:%s600] %v622
                %v624 = vld [vmem:[%s610 + $0x30] sm:%s600]
                %625 = vst [vmem:[%s611 + $0x30] sm:%s600] %v624
                %s626 = sadd.s32 1, %s609
                %p627 = scmp.ge.s32.totalorder %s626, %s601
                %s628 = scalar_select %p627, 0, %s626
                %s629 = smul.u32 %s628, 56
                %s630 = smul.u32 %s628, 56
                %s631 = scalar_lea.vmem %s580, %s629 [#allocation2]
                %s632 = scalar_lea.vmem %s591, %s630
              $region53: #{vqvae_forward.20} parent=47 // loop_footer
                %s606 = sadd.s32 %s604, 1
              $region54: #{vqvae_forward.20} parent=47 // loop_footer_branch
                %603 = sbr.rel target = $region50
              $region55: #{vqvae_forward.20} parent=47 // loop_exit
                _
              %s633 = sdiv.u32.pop %s587, 7
              %s634 = srem.u32.pop %s587, 7
              %s635 = smul.u32 %s633, 7
              %s636 = smul.u32 8, %s635
              %s637 = scalar_lea.vmem %s580, %s636 [#allocation2]
              %s638 = smul.u32 8, %s635
              %s639 = scalar_lea.vmem %s591, %s638
              // While loop
              $region56: #{vqvae_forward.20} parent=47 // loop_pre_header
                _
              $region57: #{vqvae_forward.20} parent=47 // loop_header
                %s641 = sphi 0, %s643
                %p642 = scmp.ge.s32.totalorder %s641, %s634
                %s646 = sphi 0, %s653
                %s647 = sphi %s637, %s656
                %s648 = sphi %s639, %s657
              $region58: #{vqvae_forward.20} parent=47 // loop_header_branch
                %645 = sbr.rel (%p642) target = $region62
              $region59: #{vqvae_forward.20} parent=47 // loop_body
                %v649 = vld [vmem:[%s647] sm:%s600]
                %650 = vst [vmem:[%s648] sm:%s600] %v649
                %s651 = sadd.s32 1, %s646
                %p652 = scmp.ge.s32.totalorder %s651, %s634
                %s653 = scalar_select %p652, 0, %s651
                %s654 = smul.u32 %s653, 8
                %s655 = smul.u32 %s653, 8
                %s656 = scalar_lea.vmem %s637, %s654 [#allocation2]
                %s657 = scalar_lea.vmem %s639, %s655
              $region60: #{vqvae_forward.20} parent=47 // loop_footer
                %s643 = sadd.s32 %s641, 1
              $region61: #{vqvae_forward.20} parent=47 // loop_footer_branch
                %640 = sbr.rel target = $region57
              $region62: #{vqvae_forward.20} parent=47 // loop_exit
                _
            $region48: #{vqvae_forward.20} parent=39 // pred_fallthru
              _
          $region40: #{vqvae_forward.20} parent=35 // pred_fallthru
            _
          %719 = vnop
        $region36: #{vqvae_forward.20} parent=31 // pred_fallthru
          _
      $region32: #{vqvae_forward.20} parent=5 // pred_fallthru
        _
      %p720 = scmp.le.s32.totalorder 2, %s9
      // Predicated region
      $region85: #{vqvae_forward.20} parent=5 // pred_check
        %p721 = pneg %p720
      $region86: #{vqvae_forward.20} parent=5 // pred_check_branch
        %723 = sbr.rel (%p721) target = $region88
      $region87: #{vqvae_forward.20} parent=5 // pred_region
        %s724 = ssub.s32 %s9, 2
        // Predicated region
        $region89: #{vqvae_forward.20} parent=87 // pred_check
          %p725 = pneg %p106
        $region90: #{vqvae_forward.20} parent=87 // pred_check_branch
          %727 = sbr.rel (%p725) target = $region92
        $region91: #{vqvae_forward.20} parent=87 // pred_region
          %s728 = sand.u32 %s91, 1
          %s729 = sand.u32 %s91, 1
          %s730 = smul.addr %s729, 56
          %s731 = scalar_lea.vmem [#allocation2], %s730
        $region92: #{vqvae_forward.20} parent=87 // pred_fallthru
          _
      $region88: #{vqvae_forward.20} parent=5 // pred_fallthru
        _
    $region6: #{vqvae_forward.20} parent=1 // loop_footer
      %s13 = sadd.s32 1, %s9
    $region7: #{vqvae_forward.20} parent=1 // loop_footer_branch
      %8 = sbr.rel target = $region3
    $region8: #{vqvae_forward.20} parent=1 // loop_exit
      _

// kernel: vqvae_forward.21
$region0: #{vqvae_forward.21}
  #allocation0 [shape = 'u32[]', space=smem, size = 0x4, offset = 0x4, fixed_abs, tag = 'smem constant byte address 0x4 - core index']
  #allocation1 [shape = 'u32[144,128]{1,0:T(1,128)}', space=vmem, size = 0x12000, scoped, tag = 'internal scratch']
  %s0 = inlined_call_operand.vmem [shape: bf16[392,144], index: 0, kind: input, shape index: {}]
  %s1 = inlined_call_operand.vmem [shape: bf16[144,12], index: 1, kind: input, shape index: {}]
  %s2 = inlined_call_operand.vmem [shape: f32[1,12], index: 2, kind: input, shape index: {}]
  %s3 = inlined_call_operand.vmem [shape: f32[392,12], index: 3, kind: output, shape index: {}]
  %s4 = sld [smem:[#allocation0]]
  $region93: #{vqvae_forward.21} parent=0
    _
  %s6 = ssub.s32 1, %s4
  %s7 = scalar_select 0, %s6, %s4
  $region1: #{vqvae_forward.21} parent=0
    #allocation2 [shape = 'u8[204800]{0}', space=vmem, size = 0x32000, scoped, tag = 'output window, operand 0']
    loop: start=0, step=1, limit=4
    $region2: #{vqvae_forward.21} parent=1 // loop_pre_header
      _
    $region3: #{vqvae_forward.21} parent=1 // loop_header
      %s9 = sphi 0, %s13
      %p10 = scmp.ge.s32.totalorder %s9, 4
      %s19 = sphi 0, %s21
      %s22 = sphi 0, %s19
      %s23 = sphi 0, %s22
      %s39 = sphi 0, %s23
      %s43 = sphi 0, %s43
      %s45 = sphi 0, %s43
      %s46 = sphi 0, %s45
      %s60 = sphi 0, %s46
      %s64 = sphi 0, %s64
      %s66 = sphi 0, %s64
      %s67 = sphi 0, %s66
      %s81 = sphi 0, %s67
      %s87 = sphi 0, %s89
      %s90 = sphi 0, %s87
      %s91 = sphi 0, %s90
      %s107 = sphi 0, %s91
    $region4: #{vqvae_forward.21} parent=1 // loop_header_branch
      %12 = sbr.rel (%p10) target = $region8
    $region5: #{vqvae_forward.21} parent=1 // loop_body
      %s14 = ssub.s32 %s9, 1
      %s15 = ssub.s32 %s9, 2
      %s16 = sadd.s32 %s9, 1
      %s17 = ssub.s32 %s9, %s16
      %p18 = scmp.eq.s32.totalorder %s17, 0
      %s20 = sadd.s32 %s19, 1
      %s21 = scalar_select %p18, %s19, %s20
      %p24 = pneg %p18
      %p25 = scmp.eq.s32.totalorder %s9, 1
      %p26 = por %p24, %p25
      %p27 = scmp.ne.s32.totalorder %s19, %s22
      %p28 = scmp.eq.s32.totalorder %s9, 0
      %p29 = por %p27, %p28
      %p30 = scmp.ne.s32.totalorder %s19, %s22
      %p31 = scmp.eq.s32.totalorder %s14, 1
      %p32 = por %p30, %p31
      %p33 = scmp.ne.s32.totalorder %s22, %s23
      %p34 = scmp.eq.s32.totalorder %s14, 0
      %p35 = por %p33, %p34
      %p36 = scmp.ne.s32.totalorder %s22, %s23
      %p37 = scmp.eq.s32.totalorder %s15, 1
      %p38 = por %p36, %p37
      %p40 = scmp.ne.s32.totalorder %s23, %s39
      %p41 = scmp.eq.s32.totalorder %s15, 0
      %p42 = por %p40, %p41
      %s44 = sadd.s32 %s43, 1
      %p47 = scmp.eq.s32.totalorder %s9, 1
      %p48 = scmp.ne.s32.totalorder %s43, %s45
      %p49 = scmp.eq.s32.totalorder %s9, 0
      %p50 = por %p48, %p49
      %p51 = scmp.ne.s32.totalorder %s43, %s45
      %p52 = scmp.eq.s32.totalorder %s14, 1
      %p53 = por %p51, %p52
      %p54 = scmp.ne.s32.totalorder %s45, %s46
      %p55 = scmp.eq.s32.totalorder %s14, 0
      %p56 = por %p54, %p55
      %p57 = scmp.ne.s32.totalorder %s45, %s46
      %p58 = scmp.eq.s32.totalorder %s15, 1
      %p59 = por %p57, %p58
      %p61 = scmp.ne.s32.totalorder %s46, %s60
      %p62 = scmp.eq.s32.totalorder %s15, 0
      %p63 = por %p61, %p62
      %s65 = sadd.s32 %s64, 1
      %p68 = scmp.eq.s32.totalorder %s9, 1
      %p69 = scmp.ne.s32.totalorder %s64, %s66
      %p70 = scmp.eq.s32.totalorder %s9, 0
      %p71 = por %p69, %p70
      %p72 = scmp.ne.s32.totalorder %s64, %s66
      %p73 = scmp.eq.s32.totalorder %s14, 1
      %p74 = por %p72, %p73
      %p75 = scmp.ne.s32.totalorder %s66, %s67
      %p76 = scmp.eq.s32.totalorder %s14, 0
      %p77 = por %p75, %p76
      %p78 = scmp.ne.s32.totalorder %s66, %s67
      %p79 = scmp.eq.s32.totalorder %s15, 1
      %p80 = por %p78, %p79
      %p82 = scmp.ne.s32.totalorder %s67, %s81
      %p83 = scmp.eq.s32.totalorder %s15, 0
      %p84 = por %p82, %p83
      %s85 = ssub.s32 %s9, %s16
      %p86 = scmp.eq.s32.totalorder %s85, 0
      %s88 = sadd.s32 %s87, 1
      %s89 = scalar_select %p86, %s87, %s88
      %p92 = pneg %p86
      %p93 = scmp.eq.s32.totalorder %s9, 1
      %p94 = por %p92, %p93
      %p95 = scmp.ne.s32.totalorder %s87, %s90
      %p96 = scmp.eq.s32.totalorder %s9, 0
      %p97 = por %p95, %p96
      %p98 = scmp.ne.s32.totalorder %s87, %s90
      %p99 = scmp.eq.s32.totalorder %s14, 1
      %p100 = por %p98, %p99
      %p101 = scmp.ne.s32.totalorder %s90, %s91
      %p102 = scmp.eq.s32.totalorder %s14, 0
      %p103 = por %p101, %p102
      %p104 = scmp.ne.s32.totalorder %s90, %s91
      %p105 = scmp.eq.s32.totalorder %s15, 1
      %p106 = por %p104, %p105
      %p108 = scmp.ne.s32.totalorder %s91, %s107
      %p109 = scmp.eq.s32.totalorder %s15, 0
      %p110 = por %p108, %p109
      %p111 = scmp.le.s32.totalorder 1, %s9
      %p112 = scmp.lt.s32.totalorder %s9, 3
      %p113 = pnand %p111, %p112
      %p114 = pneg %p113
      // Predicated region
      $region9: #{vqvae_forward.21} parent=5 // pred_check
        _
      $region10: #{vqvae_forward.21} parent=5 // pred_check_branch
        %116 = sbr.rel (%p113) target = $region12
      $region11: #{vqvae_forward.21} parent=5 // pred_region
        %s117 = ssub.s32 %s9, 1
        // Predicated region
        $region13: #{vqvae_forward.21} parent=11 // pred_check
          %p118 = pneg %p56
        $region14: #{vqvae_forward.21} parent=11 // pred_check_branch
          %120 = sbr.rel (%p118) target = $region16
        $region15: #{vqvae_forward.21} parent=11 // pred_region
          _
        $region16: #{vqvae_forward.21} parent=11 // pred_fallthru
          _
        // Predicated region
        $region17: #{vqvae_forward.21} parent=11 // pred_check
          %p121 = pneg %p77
        $region18: #{vqvae_forward.21} parent=11 // pred_check_branch
          %123 = sbr.rel (%p121) target = $region20
        $region19: #{vqvae_forward.21} parent=11 // pred_region
          _
        $region20: #{vqvae_forward.21} parent=11 // pred_fallthru
          _
      $region12: #{vqvae_forward.21} parent=5 // pred_fallthru
        _
      %p124 = scmp.lt.s32.totalorder %s9, 2
      // Predicated region
      $region21: #{vqvae_forward.21} parent=5 // pred_check
        %p125 = pneg %p124
      $region22: #{vqvae_forward.21} parent=5 // pred_check_branch
        %127 = sbr.rel (%p125) target = $region24
      $region23: #{vqvae_forward.21} parent=5 // pred_region
        // Predicated region
        $region25: #{vqvae_forward.21} parent=23 // pred_check
          %p128 = pneg %p29
        $region26: #{vqvae_forward.21} parent=23 // pred_check_branch
          %130 = sbr.rel (%p128) target = $region28
        $region27: #{vqvae_forward.21} parent=23 // pred_region
          %s131 = smul.u32 25, %s9
          %s132 = ssub.s32 49, %s131
          %p133 = scmp.lt.s32.totalorder %s132, 25
          %s134 = scalar_select %p133, %s132, 25
          %s135 = smul.u32 64, %s134
          %s136 = smul.u32 %s135, 2
          %p137 = scmp.lt.s32.totalorder %s131, 48
          %s138 = scalar_select %p137, %s131, 48
          %s139 = smul.addr %s138, 2
          %s140 = smul.addr %s139, 4
          %s141 = scalar_lea.vmem %s0, %s140
          %s142 = smul.u32 25, %s9
          %s143 = ssub.s32 49, %s142
          %p144 = scmp.lt.s32.totalorder %s143, 25
          %s145 = scalar_select %p144, %s143, 25
          %s146 = smul.u32 64, %s145
          %s147 = smul.u32 %s146, 2
        $region28: #{vqvae_forward.21} parent=23 // pred_fallthru
          _
      $region24: #{vqvae_forward.21} parent=5 // pred_fallthru
        _
      %p148 = scmp.le.s32.totalorder 1, %s9
      %p149 = scmp.lt.s32.totalorder %s9, 3
      %p150 = pnand %p148, %p149
      %p151 = pneg %p150
      // Predicated region
      $region29: #{vqvae_forward.21} parent=5 // pred_check
        _
      $region30: #{vqvae_forward.21} parent=5 // pred_check_branch
        %153 = sbr.rel (%p150) target = $region32
      $region31: #{vqvae_forward.21} parent=5 // pred_region
        %s154 = ssub.s32 %s9, 1
        %s155 = smul.u32 25, %s14
        %s156 = ssub.s32 49, %s155
        %p157 = scmp.lt.s32.totalorder %s156, 25
        %s158 = scalar_select %p157, %s156, 25
        %s159 = smul.u32 64, %s158
        %s160 = smul.u32 %s159, 2
        %p161 = scmp.lt.s32.totalorder %s155, 48
        %s162 = scalar_select %p161, %s155, 48
        %s163 = smul.addr %s162, 2
        %s164 = smul.addr %s163, 4
        %s165 = scalar_lea.vmem %s0, %s164
        %p166 = pneg %p35
        %p167 = pneg %p32
        %p168 = pneg %p56
        %p169 = pneg %p53
        %p170 = pneg %p77
        %p171 = pneg %p74
        %p172 = pneg %p103
        %p173 = pneg %p100
        %s174 = sand.u32 %s90, 1
        %s175 = sand.u32 %s90, 1
        %s176 = smul.addr %s175, 200
        %s177 = scalar_lea.vmem [#allocation2], %s176
        %s178 = smul.u32 25, %s14
        %s179 = ssub.s32 49, %s178
        %p180 = scmp.lt.s32.totalorder %s179, 25
        %s181 = scalar_select %p180, %s179, 25
        %s182 = smul.u32 64, %s181
        %s183 = smul.u32 %s182, 2
        %p184 = scmp.lt.s32.totalorder %s178, 48
        %s185 = scalar_select %p184, %s178, 48
        %s186 = smul.addr %s185, 2
        %s187 = smul.addr %s186, 4
        %s188 = scalar_lea.vmem %s0, %s187
        %s189 = smul.u32 25, %s14
        %s190 = ssub.s32 49, %s189
        %p191 = scmp.lt.s32.totalorder %s190, 25
        %s192 = scalar_select %p191, %s190, 25
        %s193 = smul.u32 64, %s192
        %s194 = smul.u32 %s193, 2
        %s195 = smul.u32 25, %s14
        %s196 = ssub.s32 49, %s195
        %p197 = scmp.lt.s32.totalorder %s196, 25
        %s198 = scalar_select %p197, %s196, 25
        %s199 = smul.u32 128, %s198
        %v201 = vld [vmem:[%s188] sm:$0xff]
        %v202 = vld [vmem:[%s188 + $0x8] sm:$0xff]
        %v203 = vld [vmem:[%s188 + $0x10] sm:$0xff]
        %v204 = vld [vmem:[%s188 + $0x18] sm:$0xff]
        %v205 = vld [vmem:[%s188 + $0x20] sm:$0xff]
        %v206 = vld [vmem:[%s188 + $0x28] sm:$0xff]
        %v207 = vld [vmem:[%s188 + $0x30] sm:$0xff]
        %v208 = vld [vmem:[%s188 + $0x38] sm:$0xff]
        %v209 = vld [vmem:[%s188 + $0x40] sm:$0xff]
        %v210 = vld [vmem:[%s188 + $0x48] sm:$0xff]
        %v211 = vld [vmem:[%s188 + $0x50] sm:$0xff]
        %v212 = vld [vmem:[%s188 + $0x58] sm:$0xff]
        %v213 = vld [vmem:[%s188 + $0x60] sm:$0xff]
        %v214 = vld [vmem:[%s188 + $0x68] sm:$0xff]
        %v215 = vld [vmem:[%s188 + $0x70] sm:$0xff]
        %v216 = vld [vmem:[%s188 + $0x78] sm:$0xff]
        %v217 = vld [vmem:[%s188 + $0x80] sm:$0xff]
        %v218 = vld [vmem:[%s188 + $0x88] sm:$0xff]
        %v219 = vld [vmem:[%s188 + $0x90] sm:$0xff]
        %v220 = vld [vmem:[%s188 + $0x98] sm:$0xff]
        %v221 = vld [vmem:[%s188 + $0xa0] sm:$0xff]
        %v222 = vld [vmem:[%s188 + $0xa8] sm:$0xff]
        %v223 = vld [vmem:[%s188 + $0xb0] sm:$0xff]
        %v224 = vld [vmem:[%s188 + $0xb8] sm:$0xff]
        %v225 = vld [vmem:[%s188 + $0xc0] sm:$0xff]
        %v226 = vld [vmem:[%s1] sm:$0xf]
        %v227 = vld [vmem:[%s1 + $0x4] sm:$0xf]
        %v228 = vld [vmem:[%s1 + $0x8] sm:$0xf]
        %v229 = vld [vmem:[%s1 + $0xc] sm:$0xf]
        %v230 = vld [vmem:[%s1 + $0x10] sm:$0xf]
        %v231 = vld [vmem:[%s1 + $0x14] sm:$0xf]
        %v232 = vld [vmem:[%s1 + $0x18] sm:$0xf]
        %v233 = vld [vmem:[%s1 + $0x1c] sm:$0xf]
        %v234 = vld [vmem:[%s1 + $0x20] sm:$0xf]
        %v235 = vld [vmem:[%s1 + $0x24] sm:$0xf]
        %v236 = vld [vmem:[%s1 + $0x28] sm:$0xf]
        %v237 = vld [vmem:[%s1 + $0x2c] sm:$0xf]
        %v238 = vld [vmem:[%s1 + $0x30] sm:$0xf]
        %v239 = vld [vmem:[%s1 + $0x34] sm:$0xf]
        %v240 = vld [vmem:[%s1 + $0x38] sm:$0xf]
        %v241 = vld [vmem:[%s1 + $0x3c] sm:$0xf]
        %v242 = vld [vmem:[%s1 + $0x40] sm:$0xf]
        %v243 = vld [vmem:[%s1 + $0x44] sm:$0xf]
        %v244 = vld [vmem:[%s2] sm:$0x1]
        %v246 = vlaneseq
        %v247 = vshrl.u32 %v246, 7
        %v248 = vsub.s32 0, %v247
        %v249 = vrot.slane %v244, %v248
        %v276 = vunpack.c.l.b16 %v201
        %v277 = vunpack.c.h.b16 %v201
        %v278 = vunpack.c.l.b16 %v202
        %v279 = vunpack.c.h.b16 %v202
        %v280 = vunpack.c.l.b16 %v203
        %v281 = vunpack.c.h.b16 %v203
        %v282 = vunpack.c.l.b16 %v204
        %v283 = vunpack.c.h.b16 %v204
        %v284 = vunpack.c.l.b16 %v205
        %v285 = vunpack.c.h.b16 %v205
        %v286 = vunpack.c.l.b16 %v206
        %v287 = vunpack.c.h.b16 %v206
        %v288 = vunpack.c.l.b16 %v207
        %v289 = vunpack.c.h.b16 %v207
        %v290 = vunpack.c.l.b16 %v208
        %v291 = vunpack.c.h.b16 %v208
        %v292 = vunpack.c.l.b16 %v209
        %v293 = vunpack.c.h.b16 %v209
        %v294 = vunpack.c.l.b16 %v210
        %v295 = vunpack.c.h.b16 %v210
        %v296 = vunpack.c.l.b16 %v211
        %v297 = vunpack.c.h.b16 %v211
        %v298 = vunpack.c.l.b16 %v212
        %v299 = vunpack.c.h.b16 %v212
        %v300 = vunpack.c.l.b16 %v213
        %v301 = vunpack.c.h.b16 %v213
        %v302 = vunpack.c.l.b16 %v214
        %v303 = vunpack.c.h.b16 %v214
        %v304 = vunpack.c.l.b16 %v215
        %v305 = vunpack.c.h.b16 %v215
        %v306 = vunpack.c.l.b16 %v216
        %v307 = vunpack.c.h.b16 %v216
        %v308 = vunpack.c.l.b16 %v217
        %v309 = vunpack.c.h.b16 %v217
        %v310 = vunpack.c.l.b16 %v218
        %v311 = vunpack.c.h.b16 %v218
        %v312 = vunpack.c.l.b16 %v219
        %v313 = vunpack.c.h.b16 %v219
        %v314 = vunpack.c.l.b16 %v220
        %v315 = vunpack.c.h.b16 %v220
        %v316 = vunpack.c.l.b16 %v221
        %v317 = vunpack.c.h.b16 %v221
        %v318 = vunpack.c.l.b16 %v222
        %v319 = vunpack.c.h.b16 %v222
        %v320 = vunpack.c.l.b16 %v223
        %v321 = vunpack.c.h.b16 %v223
        %v322 = vunpack.c.l.b16 %v224
        %v323 = vunpack.c.h.b16 %v224
        %v324 = vunpack.c.l.b16 %v225
        %v325 = vunpack.c.h.b16 %v225
        %v326 = vpack.c.b16 %v278, %v276
        %v327 = vpack.c.b16 %v279, %v277
        %v328 = vpack.c.b16 %v282, %v280
        %v329 = vpack.c.b16 %v283, %v281
        %v330 = vpack.c.b16 %v286, %v284
        %v331 = vpack.c.b16 %v287, %v285
        %v332 = vpack.c.b16 %v290, %v288
        %v333 = vpack.c.b16 %v291, %v289
        %v334 = vpack.c.b16 %v294, %v292
        %v335 = vpack.c.b16 %v295, %v293
        %v336 = vpack.c.b16 %v298, %v296
        %v337 = vpack.c.b16 %v299, %v297
        %v338 = vpack.c.b16 %v302, %v300
        %v339 = vpack.c.b16 %v303, %v301
        %v340 = vpack.c.b16 %v306, %v304
        %v341 = vpack.c.b16 %v307, %v305
        %v342 = vpack.c.b16 %v310, %v308
        %v343 = vpack.c.b16 %v311, %v309
        %v344 = vpack.c.b16 %v314, %v312
        %v345 = vpack.c.b16 %v315, %v313
        %v346 = vpack.c.b16 %v318, %v316
        %v347 = vpack.c.b16 %v319, %v317
        %v348 = vpack.c.b16 %v322, %v320
        %v349 = vpack.c.b16 %v323, %v321
        %v350 = vpack.c.b16 %v324, %v324
        %v351 = vpack.c.b16 %v325, %v325
        %v383 = vunpack.c.l.b16 %v226
        %v384 = vunpack.c.l.b16 %v227
        %v385 = vunpack.c.l.b16 %v228
        %v386 = vunpack.c.l.b16 %v229
        %v387 = vunpack.c.l.b16 %v230
        %v388 = vunpack.c.l.b16 %v231
        %v389 = vunpack.c.l.b16 %v232
        %v390 = vunpack.c.l.b16 %v233
        %v391 = vunpack.c.l.b16 %v234
        %v392 = vunpack.c.l.b16 %v235
        %v393 = vunpack.c.l.b16 %v236
        %v394 = vunpack.c.l.b16 %v237
        %v395 = vunpack.c.l.b16 %v238
        %v396 = vunpack.c.l.b16 %v239
        %v397 = vunpack.c.l.b16 %v240
        %v398 = vunpack.c.l.b16 %v241
        %v399 = vunpack.c.l.b16 %v242
        %v400 = vunpack.c.l.b16 %v243
        %v401 = vpack.c.b16 %v384, %v383
        %v402 = vpack.c.b16 %v386, %v385
        %v403 = vpack.c.b16 %v388, %v387
        %v404 = vpack.c.b16 %v390, %v389
        %v405 = vpack.c.b16 %v392, %v391
        %v406 = vpack.c.b16 %v394, %v393
        %v407 = vpack.c.b16 %v396, %v395
        %v408 = vpack.c.b16 %v398, %v397
        %v409 = vpack.c.b16 %v400, %v399
        %vm419 = vcmask 130048
        %v421 = vsel %vm419, %v327, 0
        %v424 = vsel %vm419, %v329, 0
        %v427 = vsel %vm419, %v331, 0
        %v430 = vsel %vm419, %v333, 0
        %v433 = vsel %vm419, %v335, 0
        %v436 = vsel %vm419, %v337, 0
        %v439 = vsel %vm419, %v339, 0
        %v442 = vsel %vm419, %v341, 0
        %v445 = vsel %vm419, %v343, 0
        %v448 = vsel %vm419, %v345, 0
        %v451 = vsel %vm419, %v347, 0
        %v454 = vsel %vm419, %v349, 0
        %v457 = vsel %vm419, %v351, 0
        %459 = vmatprep.subr.bf16.mxu0 0
        %460 = vmatpush1.bf16.msra.mxu0 %v408
        %461 = vmatprep.subr.bf16.mxu0 0
        %462 = vmatpush1.bf16.msra.mxu0 %v407
        %463 = vmatprep.subr.bf16.mxu0 0
        %464 = vmatpush1.bf16.msra.mxu0 %v406
        %465 = vmatprep.subr.bf16.mxu0 0
        %466 = vmatpush1.bf16.msra.mxu0 %v405
        %467 = vmatprep.subr.bf16.mxu0 0
        %468 = vmatpush1.bf16.msra.mxu0 %v404
        %469 = vmatprep.subr.bf16.mxu0 0
        %470 = vmatpush1.bf16.msra.mxu0 %v403
        %471 = vmatprep.subr.bf16.mxu0 0
        %472 = vmatpush1.bf16.msra.mxu0 %v402
        %473 = vmatprep.subr.bf16.mxu0 0
        %474 = vmatpush1.bf16.msra.mxu0 %v401
        %475 = vmatprep.subr.bf16.mxu0 0
        %476 = vmatpush2.bf16.msra.mxu0 0
        %477 = vmatprep.subr.bf16.mxu0 0
        %478 = vmatpush2.bf16.msra.mxu0 0
        %479 = vmatprep.subr.bf16.mxu0 0
        %480 = vmatpush2.bf16.msra.mxu0 0
        %481 = vmatprep.subr.bf16.mxu0 0
        %482 = vmatpush2.bf16.msra.mxu0 0
        %483 = vmatprep.subr.bf16.mxu0 0
        %484 = vmatpush2.bf16.msra.mxu0 0
        %485 = vmatprep.subr.bf16.mxu0 0
        %486 = vmatpush2.bf16.msra.mxu0 0
        %487 = vmatprep.subr.bf16.mxu0 0
        %488 = vmatpush2.bf16.msra.mxu0 0
        %489 = vmatprep.subr.bf16.mxu0 0
        %490 = vmatpush2.bf16.msra.mxu0 %v409
        %491 = vmatprep.mubr.bf16.mxu0 %v421
        %492 = vmatmul.mubr.bf16.gmra.mxu0 %v326
        %v493 = vpop.f32.mrf.mxu0
        %v494 = vadd.f32 %v249, %v493
        %v495 = vpop.f32.mrf.mxu0
        %v496 = vpop.f32.mrf.mxu0
        %v497 = vadd.f32 %v249, %v496
        %v498 = vpop.f32.mrf.mxu0
        %499 = vmatprep.mubr.bf16.mxu0 %v424
        %500 = vmatmul.mubr.bf16.gmra.mxu0 %v328
        %v501 = vpop.f32.mrf.mxu0
        %v502 = vadd.f32 %v249, %v501
        %v503 = vpop.f32.mrf.mxu0
        %v504 = vpop.f32.mrf.mxu0
        %v505 = vadd.f32 %v249, %v504
        %v506 = vpop.f32.mrf.mxu0
        %507 = vmatprep.mubr.bf16.mxu0 %v427
        %508 = vmatmul.mubr.bf16.gmra.mxu0 %v330
        %v509 = vpop.f32.mrf.mxu0
        %v510 = vadd.f32 %v249, %v509
        %v511 = vpop.f32.mrf.mxu0
        %v512 = vpop.f32.mrf.mxu0
        %v513 = vadd.f32 %v249, %v512
        %v514 = vpop.f32.mrf.mxu0
        %515 = vmatprep.mubr.bf16.mxu0 %v430
        %516 = vmatmul.mubr.bf16.gmra.mxu0 %v332
        %v517 = vpop.f32.mrf.mxu0
        %v518 = vadd.f32 %v249, %v517
        %v519 = vpop.f32.mrf.mxu0
        %v520 = vpop.f32.mrf.mxu0
        %v521 = vadd.f32 %v249, %v520
        %v522 = vpop.f32.mrf.mxu0
        %523 = vmatprep.mubr.bf16.mxu0 %v433
        %524 = vmatmul.mubr.bf16.gmra.mxu0 %v334
        %v525 = vpop.f32.mrf.mxu0
        %v526 = vadd.f32 %v249, %v525
        %v527 = vpop.f32.mrf.mxu0
        %v528 = vpop.f32.mrf.mxu0
        %v529 = vadd.f32 %v249, %v528
        %v530 = vpop.f32.mrf.mxu0
        %531 = vmatprep.mubr.bf16.mxu0 %v436
        %532 = vmatmul.mubr.bf16.gmra.mxu0 %v336
        %v533 = vpop.f32.mrf.mxu0
        %v534 = vadd.f32 %v249, %v533
        %v535 = vpop.f32.mrf.mxu0
        %v536 = vpop.f32.mrf.mxu0
        %v537 = vadd.f32 %v249, %v536
        %v538 = vpop.f32.mrf.mxu0
        %539 = vmatprep.mubr.bf16.mxu0 %v439
        %540 = vmatmul.mubr.bf16.gmra.mxu0 %v338
        %v541 = vpop.f32.mrf.mxu0
        %v542 = vadd.f32 %v249, %v541
        %v543 = vpop.f32.mrf.mxu0
        %v544 = vpop.f32.mrf.mxu0
        %v545 = vadd.f32 %v249, %v544
        %v546 = vpop.f32.mrf.mxu0
        %547 = vmatprep.mubr.bf16.mxu0 %v442
        %548 = vmatmul.mubr.bf16.gmra.mxu0 %v340
        %v549 = vpop.f32.mrf.mxu0
        %v550 = vadd.f32 %v249, %v549
        %v551 = vpop.f32.mrf.mxu0
        %v552 = vpop.f32.mrf.mxu0
        %v553 = vadd.f32 %v249, %v552
        %v554 = vpop.f32.mrf.mxu0
        %555 = vmatprep.mubr.bf16.mxu0 %v445
        %556 = vmatmul.mubr.bf16.gmra.mxu0 %v342
        %v557 = vpop.f32.mrf.mxu0
        %v558 = vadd.f32 %v249, %v557
        %v559 = vpop.f32.mrf.mxu0
        %v560 = vpop.f32.mrf.mxu0
        %v561 = vadd.f32 %v249, %v560
        %v562 = vpop.f32.mrf.mxu0
        %563 = vmatprep.mubr.bf16.mxu0 %v448
        %564 = vmatmul.mubr.bf16.gmra.mxu0 %v344
        %v565 = vpop.f32.mrf.mxu0
        %v566 = vadd.f32 %v249, %v565
        %v567 = vpop.f32.mrf.mxu0
        %v568 = vpop.f32.mrf.mxu0
        %v569 = vadd.f32 %v249, %v568
        %v570 = vpop.f32.mrf.mxu0
        %571 = vmatprep.mubr.bf16.mxu0 %v451
        %572 = vmatmul.mubr.bf16.gmra.mxu0 %v346
        %v573 = vpop.f32.mrf.mxu0
        %v574 = vadd.f32 %v249, %v573
        %v575 = vpop.f32.mrf.mxu0
        %v576 = vpop.f32.mrf.mxu0
        %v577 = vadd.f32 %v249, %v576
        %v578 = vpop.f32.mrf.mxu0
        %579 = vmatprep.mubr.bf16.mxu0 %v454
        %580 = vmatmul.mubr.bf16.gmra.mxu0 %v348
        %v581 = vpop.f32.mrf.mxu0
        %v582 = vadd.f32 %v249, %v581
        %v583 = vpop.f32.mrf.mxu0
        %v584 = vpop.f32.mrf.mxu0
        %v585 = vadd.f32 %v249, %v584
        %v586 = vpop.f32.mrf.mxu0
        %587 = vmatprep.mubr.bf16.mxu0 %v457
        %588 = vmatmul.mubr.bf16.gmra.mxu0 %v350
        %v589 = vpop.f32.mrf.mxu0
        %v590 = vadd.f32 %v249, %v589
        %v591 = vpop.f32.mrf.mxu0
        %v592 = vpop.f32.mrf.mxu0
        %v593 = vpop.f32.mrf.mxu0
        %594 = vdwg.mxu0
        %vm595 = vcmask 97280
        %596 = vst.msk [vmem:[%s177] sm:$0xff] %vm595, %v494
        %597 = vst.msk [vmem:[%s177 + $0x8] sm:$0xff] %vm595, %v497
        %598 = vst.msk [vmem:[%s177 + $0x10] sm:$0xff] %vm595, %v502
        %599 = vst.msk [vmem:[%s177 + $0x18] sm:$0xff] %vm595, %v505
        %600 = vst.msk [vmem:[%s177 + $0x20] sm:$0xff] %vm595, %v510
        %601 = vst.msk [vmem:[%s177 + $0x28] sm:$0xff] %vm595, %v513
        %602 = vst.msk [vmem:[%s177 + $0x30] sm:$0xff] %vm595, %v518
        %603 = vst.msk [vmem:[%s177 + $0x38] sm:$0xff] %vm595, %v521
        %604 = vst.msk [vmem:[%s177 + $0x40] sm:$0xff] %vm595, %v526
        %605 = vst.msk [vmem:[%s177 + $0x48] sm:$0xff] %vm595, %v529
        %606 = vst.msk [vmem:[%s177 + $0x50] sm:$0xff] %vm595, %v534
        %607 = vst.msk [vmem:[%s177 + $0x58] sm:$0xff] %vm595, %v537
        %608 = vst.msk [vmem:[%s177 + $0x60] sm:$0xff] %vm595, %v542
        %609 = vst.msk [vmem:[%s177 + $0x68] sm:$0xff] %vm595, %v545
        %610 = vst.msk [vmem:[%s177 + $0x70] sm:$0xff] %vm595, %v550
        %611 = vst.msk [vmem:[%s177 + $0x78] sm:$0xff] %vm595, %v553
        %612 = vst.msk [vmem:[%s177 + $0x80] sm:$0xff] %vm595, %v558
        %613 = vst.msk [vmem:[%s177 + $0x88] sm:$0xff] %vm595, %v561
        %614 = vst.msk [vmem:[%s177 + $0x90] sm:$0xff] %vm595, %v566
        %615 = vst.msk [vmem:[%s177 + $0x98] sm:$0xff] %vm595, %v569
        %616 = vst.msk [vmem:[%s177 + $0xa0] sm:$0xff] %vm595, %v574
        %617 = vst.msk [vmem:[%s177 + $0xa8] sm:$0xff] %vm595, %v577
        %618 = vst.msk [vmem:[%s177 + $0xb0] sm:$0xff] %vm595, %v582
        %619 = vst.msk [vmem:[%s177 + $0xb8] sm:$0xff] %vm595, %v585
        %620 = vst.msk [vmem:[%s177 + $0xc0] sm:$0xff] %vm595, %v590
        %s621 = sand.u32 %s90, 1
        %s622 = sand.u32 %s90, 1
        %s623 = smul.addr %s622, 200
        %s624 = scalar_lea.vmem [#allocation2], %s623
        // Predicated region
        $region33: #{vqvae_forward.21} parent=31 // pred_check
          %p625 = pneg %p100
        $region34: #{vqvae_forward.21} parent=31 // pred_check_branch
          %627 = sbr.rel (%p625) target = $region36
        $region35: #{vqvae_forward.21} parent=31 // pred_region
          %s628 = smul.u32 25, %s14
          %s629 = ssub.s32 49, %s628
          %p630 = scmp.lt.s32.totalorder %s629, 25
          %s631 = scalar_select %p630, %s629, 25
          %s632 = smul.u32 128, %s631
          %p633 = scmp.ne.s32.totalorder 0, %s632
          %s634 = smul.addr %s628, 8
          %s635 = scalar_lea.vmem %s3, %s634
          // Predicated region
          $region37: #{vqvae_forward.21} parent=35 // pred_check
            %p636 = pneg %p633
          $region38: #{vqvae_forward.21} parent=35 // pred_check_branch
            %638 = sbr.rel (%p636) target = $region40
          $region39: #{vqvae_forward.21} parent=35 // pred_region
            // Predicated region
            $region41: #{vqvae_forward.21} parent=39 // pred_check
              _
            $region42: #{vqvae_forward.21} parent=39 // pred_check_branch
              %640 = sbr.rel (0) target = $region44
            $region43: #{vqvae_forward.21} parent=39 // pred_region
              // Predicated region
              $region63: #{vqvae_forward.21} parent=43 // pred_check
                _
              $region64: #{vqvae_forward.21} parent=43 // pred_check_branch
                %739 = sbr.rel (0) target = $region66
              $region65: #{vqvae_forward.21} parent=43 // pred_region
                %s740 = sdiv.u32.pop %s631, 25
                %s741 = srem.u32.pop %s631, 25
                // While loop
                $region67: #{vqvae_forward.21} parent=65 // loop_pre_header
                  _
                $region68: #{vqvae_forward.21} parent=65 // loop_header
                  %s743 = sphi 0, %s745
                  %p744 = scmp.ge.s32.totalorder %s743, %s740
                  %s748 = sphi 0, %s803
                  %s749 = sphi %s624, %s806
                  %s750 = sphi %s635, %s807
                $region69: #{vqvae_forward.21} parent=65 // loop_header_branch
                  %747 = sbr.rel (%p744) target = $region73
                $region70: #{vqvae_forward.21} parent=65 // loop_body
                  %v751 = vld [vmem:[%s749] sm:$0xff]
                  %752 = vst [vmem:[%s750] sm:$0xff] %v751
                  %v753 = vld [vmem:[%s749 + $0x8] sm:$0xff]
                  %754 = vst [vmem:[%s750 + $0x8] sm:$0xff] %v753
                  %v755 = vld [vmem:[%s749 + $0x10] sm:$0xff]
                  %756 = vst [vmem:[%s750 + $0x10] sm:$0xff] %v755
                  %v757 = vld [vmem:[%s749 + $0x18] sm:$0xff]
                  %758 = vst [vmem:[%s750 + $0x18] sm:$0xff] %v757
                  %v759 = vld [vmem:[%s749 + $0x20] sm:$0xff]
                  %760 = vst [vmem:[%s750 + $0x20] sm:$0xff] %v759
                  %v761 = vld [vmem:[%s749 + $0x28] sm:$0xff]
                  %762 = vst [vmem:[%s750 + $0x28] sm:$0xff] %v761
                  %v763 = vld [vmem:[%s749 + $0x30] sm:$0xff]
                  %764 = vst [vmem:[%s750 + $0x30] sm:$0xff] %v763
                  %v765 = vld [vmem:[%s749 + $0x38] sm:$0xff]
                  %766 = vst [vmem:[%s750 + $0x38] sm:$0xff] %v765
                  %v767 = vld [vmem:[%s749 + $0x40] sm:$0xff]
                  %768 = vst [vmem:[%s750 + $0x40] sm:$0xff] %v767
                  %v769 = vld [vmem:[%s749 + $0x48] sm:$0xff]
                  %770 = vst [vmem:[%s750 + $0x48] sm:$0xff] %v769
                  %v771 = vld [vmem:[%s749 + $0x50] sm:$0xff]
                  %772 = vst [vmem:[%s750 + $0x50] sm:$0xff] %v771
                  %v773 = vld [vmem:[%s749 + $0x58] sm:$0xff]
                  %774 = vst [vmem:[%s750 + $0x58] sm:$0xff] %v773
                  %v775 = vld [vmem:[%s749 + $0x60] sm:$0xff]
                  %776 = vst [vmem:[%s750 + $0x60] sm:$0xff] %v775
                  %v777 = vld [vmem:[%s749 + $0x68] sm:$0xff]
                  %778 = vst [vmem:[%s750 + $0x68] sm:$0xff] %v777
                  %v779 = vld [vmem:[%s749 + $0x70] sm:$0xff]
                  %780 = vst [vmem:[%s750 + $0x70] sm:$0xff] %v779
                  %v781 = vld [vmem:[%s749 + $0x78] sm:$0xff]
                  %782 = vst [vmem:[%s750 + $0x78] sm:$0xff] %v781
                  %v783 = vld [vmem:[%s749 + $0x80] sm:$0xff]
                  %784 = vst [vmem:[%s750 + $0x80] sm:$0xff] %v783
                  %v785 = vld [vmem:[%s749 + $0x88] sm:$0xff]
                  %786 = vst [vmem:[%s750 + $0x88] sm:$0xff] %v785
                  %v787 = vld [vmem:[%s749 + $0x90] sm:$0xff]
                  %788 = vst [vmem:[%s750 + $0x90] sm:$0xff] %v787
                  %v789 = vld [vmem:[%s749 + $0x98] sm:$0xff]
                  %790 = vst [vmem:[%s750 + $0x98] sm:$0xff] %v789
                  %v791 = vld [vmem:[%s749 + $0xa0] sm:$0xff]
                  %792 = vst [vmem:[%s750 + $0xa0] sm:$0xff] %v791
                  %v793 = vld [vmem:[%s749 + $0xa8] sm:$0xff]
                  %794 = vst [vmem:[%s750 + $0xa8] sm:$0xff] %v793
                  %v795 = vld [vmem:[%s749 + $0xb0] sm:$0xff]
                  %796 = vst [vmem:[%s750 + $0xb0] sm:$0xff] %v795
                  %v797 = vld [vmem:[%s749 + $0xb8] sm:$0xff]
                  %798 = vst [vmem:[%s750 + $0xb8] sm:$0xff] %v797
                  %v799 = vld [vmem:[%s749 + $0xc0] sm:$0xff]
                  %800 = vst [vmem:[%s750 + $0xc0] sm:$0xff] %v799
                  %s801 = sadd.s32 1, %s748
                  %p802 = scmp.ge.s32.totalorder %s801, %s740
                  %s803 = scalar_select %p802, 0, %s801
                  %s804 = smul.u32 %s803, 200
                  %s805 = smul.u32 %s803, 200
                  %s806 = scalar_lea.vmem %s624, %s804 [#allocation2]
                  %s807 = scalar_lea.vmem %s635, %s805
                $region71: #{vqvae_forward.21} parent=65 // loop_footer
                  %s745 = sadd.s32 %s743, 1
                $region72: #{vqvae_forward.21} parent=65 // loop_footer_branch
                  %742 = sbr.rel target = $region68
                $region73: #{vqvae_forward.21} parent=65 // loop_exit
                  _
                %s808 = sdiv.u32.pop %s631, 25
                %s809 = srem.u32.pop %s631, 25
                %s810 = smul.u32 %s808, 25
                %s811 = smul.u32 8, %s810
                %s812 = scalar_lea.vmem %s624, %s811 [#allocation2]
                %s813 = smul.u32 8, %s810
                %s814 = scalar_lea.vmem %s635, %s813
                // While loop
                $region74: #{vqvae_forward.21} parent=65 // loop_pre_header
                  _
                $region75: #{vqvae_forward.21} parent=65 // loop_header
                  %s816 = sphi 0, %s818
                  %p817 = scmp.ge.s32.totalorder %s816, %s809
                  %s821 = sphi 0, %s828
                  %s822 = sphi %s812, %s831
                  %s823 = sphi %s814, %s832
                $region76: #{vqvae_forward.21} parent=65 // loop_header_branch
                  %820 = sbr.rel (%p817) target = $region80
                $region77: #{vqvae_forward.21} parent=65 // loop_body
                  %v824 = vld [vmem:[%s822] sm:$0xff]
                  %825 = vst [vmem:[%s823] sm:$0xff] %v824
                  %s826 = sadd.s32 1, %s821
                  %p827 = scmp.ge.s32.totalorder %s826, %s809
                  %s828 = scalar_select %p827, 0, %s826
                  %s829 = smul.u32 %s828, 8
                  %s830 = smul.u32 %s828, 8
                  %s831 = scalar_lea.vmem %s812, %s829 [#allocation2]
                  %s832 = scalar_lea.vmem %s814, %s830
                $region78: #{vqvae_forward.21} parent=65 // loop_footer
                  %s818 = sadd.s32 %s816, 1
                $region79: #{vqvae_forward.21} parent=65 // loop_footer_branch
                  %815 = sbr.rel target = $region75
                $region80: #{vqvae_forward.21} parent=65 // loop_exit
                  _
              $region66: #{vqvae_forward.21} parent=43 // pred_fallthru
                _
              // Predicated region
              $region81: #{vqvae_forward.21} parent=43 // pred_check
                _
              $region82: #{vqvae_forward.21} parent=43 // pred_check_branch
                %834 = sbr.rel target = $region84
              $region83: #{vqvae_forward.21} parent=43 // pred_region
                _
              $region84: #{vqvae_forward.21} parent=43 // pred_fallthru
                _
            $region44: #{vqvae_forward.21} parent=39 // pred_fallthru
              _
            // Predicated region
            $region45: #{vqvae_forward.21} parent=39 // pred_check
              _
            $region46: #{vqvae_forward.21} parent=39 // pred_check_branch
              %642 = sbr.rel target = $region48
            $region47: #{vqvae_forward.21} parent=39 // pred_region
              %s644 = ssub.s32 256, 1
              %s645 = sdiv.u32.pop %s631, 25
              %s646 = srem.u32.pop %s631, 25
              // While loop
              $region49: #{vqvae_forward.21} parent=47 // loop_pre_header
                _
              $region50: #{vqvae_forward.21} parent=47 // loop_header
                %s648 = sphi 0, %s650
                %p649 = scmp.ge.s32.totalorder %s648, %s645
                %s653 = sphi 0, %s708
                %s654 = sphi %s624, %s711
                %s655 = sphi %s635, %s712
              $region51: #{vqvae_forward.21} parent=47 // loop_header_branch
                %652 = sbr.rel (%p649) target = $region55
              $region52: #{vqvae_forward.21} parent=47 // loop_body
                %v656 = vld [vmem:[%s654] sm:%s644]
                %657 = vst [vmem:[%s655] sm:%s644] %v656
                %v658 = vld [vmem:[%s654 + $0x8] sm:%s644]
                %659 = vst [vmem:[%s655 + $0x8] sm:%s644] %v658
                %v660 = vld [vmem:[%s654 + $0x10] sm:%s644]
                %661 = vst [vmem:[%s655 + $0x10] sm:%s644] %v660
                %v662 = vld [vmem:[%s654 + $0x18] sm:%s644]
                %663 = vst [vmem:[%s655 + $0x18] sm:%s644] %v662
                %v664 = vld [vmem:[%s654 + $0x20] sm:%s644]
                %665 = vst [vmem:[%s655 + $0x20] sm:%s644] %v664
                %v666 = vld [vmem:[%s654 + $0x28] sm:%s644]
                %667 = vst [vmem:[%s655 + $0x28] sm:%s644] %v666
                %v668 = vld [vmem:[%s654 + $0x30] sm:%s644]
                %669 = vst [vmem:[%s655 + $0x30] sm:%s644] %v668
                %v670 = vld [vmem:[%s654 + $0x38] sm:%s644]
                %671 = vst [vmem:[%s655 + $0x38] sm:%s644] %v670
                %v672 = vld [vmem:[%s654 + $0x40] sm:%s644]
                %673 = vst [vmem:[%s655 + $0x40] sm:%s644] %v672
                %v674 = vld [vmem:[%s654 + $0x48] sm:%s644]
                %675 = vst [vmem:[%s655 + $0x48] sm:%s644] %v674
                %v676 = vld [vmem:[%s654 + $0x50] sm:%s644]
                %677 = vst [vmem:[%s655 + $0x50] sm:%s644] %v676
                %v678 = vld [vmem:[%s654 + $0x58] sm:%s644]
                %679 = vst [vmem:[%s655 + $0x58] sm:%s644] %v678
                %v680 = vld [vmem:[%s654 + $0x60] sm:%s644]
                %681 = vst [vmem:[%s655 + $0x60] sm:%s644] %v680
                %v682 = vld [vmem:[%s654 + $0x68] sm:%s644]
                %683 = vst [vmem:[%s655 + $0x68] sm:%s644] %v682
                %v684 = vld [vmem:[%s654 + $0x70] sm:%s644]
                %685 = vst [vmem:[%s655 + $0x70] sm:%s644] %v684
                %v686 = vld [vmem:[%s654 + $0x78] sm:%s644]
                %687 = vst [vmem:[%s655 + $0x78] sm:%s644] %v686
                %v688 = vld [vmem:[%s654 + $0x80] sm:%s644]
                %689 = vst [vmem:[%s655 + $0x80] sm:%s644] %v688
                %v690 = vld [vmem:[%s654 + $0x88] sm:%s644]
                %691 = vst [vmem:[%s655 + $0x88] sm:%s644] %v690
                %v692 = vld [vmem:[%s654 + $0x90] sm:%s644]
                %693 = vst [vmem:[%s655 + $0x90] sm:%s644] %v692
                %v694 = vld [vmem:[%s654 + $0x98] sm:%s644]
                %695 = vst [vmem:[%s655 + $0x98] sm:%s644] %v694
                %v696 = vld [vmem:[%s654 + $0xa0] sm:%s644]
                %697 = vst [vmem:[%s655 + $0xa0] sm:%s644] %v696
                %v698 = vld [vmem:[%s654 + $0xa8] sm:%s644]
                %699 = vst [vmem:[%s655 + $0xa8] sm:%s644] %v698
                %v700 = vld [vmem:[%s654 + $0xb0] sm:%s644]
                %701 = vst [vmem:[%s655 + $0xb0] sm:%s644] %v700
                %v702 = vld [vmem:[%s654 + $0xb8] sm:%s644]
                %703 = vst [vmem:[%s655 + $0xb8] sm:%s644] %v702
                %v704 = vld [vmem:[%s654 + $0xc0] sm:%s644]
                %705 = vst [vmem:[%s655 + $0xc0] sm:%s644] %v704
                %s706 = sadd.s32 1, %s653
                %p707 = scmp.ge.s32.totalorder %s706, %s645
                %s708 = scalar_select %p707, 0, %s706
                %s709 = smul.u32 %s708, 200
                %s710 = smul.u32 %s708, 200
                %s711 = scalar_lea.vmem %s624, %s709 [#allocation2]
                %s712 = scalar_lea.vmem %s635, %s710
              $region53: #{vqvae_forward.21} parent=47 // loop_footer
                %s650 = sadd.s32 %s648, 1
              $region54: #{vqvae_forward.21} parent=47 // loop_footer_branch
                %647 = sbr.rel target = $region50
              $region55: #{vqvae_forward.21} parent=47 // loop_exit
                _
              %s713 = sdiv.u32.pop %s631, 25
              %s714 = srem.u32.pop %s631, 25
              %s715 = smul.u32 %s713, 25
              %s716 = smul.u32 8, %s715
              %s717 = scalar_lea.vmem %s624, %s716 [#allocation2]
              %s718 = smul.u32 8, %s715
              %s719 = scalar_lea.vmem %s635, %s718
              // While loop
              $region56: #{vqvae_forward.21} parent=47 // loop_pre_header
                _
              $region57: #{vqvae_forward.21} parent=47 // loop_header
                %s721 = sphi 0, %s723
                %p722 = scmp.ge.s32.totalorder %s721, %s714
                %s726 = sphi 0, %s733
                %s727 = sphi %s717, %s736
                %s728 = sphi %s719, %s737
              $region58: #{vqvae_forward.21} parent=47 // loop_header_branch
                %725 = sbr.rel (%p722) target = $region62
              $region59: #{vqvae_forward.21} parent=47 // loop_body
                %v729 = vld [vmem:[%s727] sm:%s644]
                %730 = vst [vmem:[%s728] sm:%s644] %v729
                %s731 = sadd.s32 1, %s726
                %p732 = scmp.ge.s32.totalorder %s731, %s714
                %s733 = scalar_select %p732, 0, %s731
                %s734 = smul.u32 %s733, 8
                %s735 = smul.u32 %s733, 8
                %s736 = scalar_lea.vmem %s717, %s734 [#allocation2]
                %s737 = scalar_lea.vmem %s719, %s735
              $region60: #{vqvae_forward.21} parent=47 // loop_footer
                %s723 = sadd.s32 %s721, 1
              $region61: #{vqvae_forward.21} parent=47 // loop_footer_branch
                %720 = sbr.rel target = $region57
              $region62: #{vqvae_forward.21} parent=47 // loop_exit
                _
            $region48: #{vqvae_forward.21} parent=39 // pred_fallthru
              _
          $region40: #{vqvae_forward.21} parent=35 // pred_fallthru
            _
          %835 = vnop
        $region36: #{vqvae_forward.21} parent=31 // pred_fallthru
          _
      $region32: #{vqvae_forward.21} parent=5 // pred_fallthru
        _
      %p836 = scmp.le.s32.totalorder 2, %s9
      // Predicated region
      $region85: #{vqvae_forward.21} parent=5 // pred_check
        %p837 = pneg %p836
      $region86: #{vqvae_forward.21} parent=5 // pred_check_branch
        %839 = sbr.rel (%p837) target = $region88
      $region87: #{vqvae_forward.21} parent=5 // pred_region
        %s840 = ssub.s32 %s9, 2
        // Predicated region
        $region89: #{vqvae_forward.21} parent=87 // pred_check
          %p841 = pneg %p106
        $region90: #{vqvae_forward.21} parent=87 // pred_check_branch
          %843 = sbr.rel (%p841) target = $region92
        $region91: #{vqvae_forward.21} parent=87 // pred_region
          %s844 = sand.u32 %s91, 1
          %s845 = sand.u32 %s91, 1
          %s846 = smul.addr %s845, 200
          %s847 = scalar_lea.vmem [#allocation2], %s846
        $region92: #{vqvae_forward.21} parent=87 // pred_fallthru
          _
      $region88: #{vqvae_forward.21} parent=5 // pred_fallthru
        _
    $region6: #{vqvae_forward.21} parent=1 // loop_footer
      %s13 = sadd.s32 1, %s9
    $region7: #{vqvae_forward.21} parent=1 // loop_footer_branch
      %8 = sbr.rel target = $region3
    $region8: #{vqvae_forward.21} parent=1 // loop_exit
      _

</llo_original>
